<compile_context>
chip_gen: v7x
topology: tpu7x:2x2x1
jax: 0.10.0
libtpu: 0.0.40
codegen_flags: <defaults>
</compile_context>

<pallas_src>
import math
from functools import partial

import jax
import jax.numpy as jnp
from jax import lax
from jax.experimental import pallas as pl
from jax.experimental.pallas import tpu as pltpu


# ----------------------------- small math helpers ---------------------------
def _sigmoid(x):
    return 1.0 / (1.0 + jnp.exp(-x))


def _silu(x):
    return x * _sigmoid(x)


def _softplus(x):
    return jnp.maximum(x, 0.0) + jnp.log(1.0 + jnp.exp(-jnp.abs(x)))


# ------------------------------ fused forward kernel -------------------------
def _fused_kernel(
    tok_ref, embw_ref, shw_ref, bd1_ref, bd2_ref, cvb_ref, lbt_ref,
    wcat_ref, cw_ref, cb_ref, vec_ref, woutT_ref,
    mavg_ref, wa_ref, fcw_ref, fcb_ref,
    out_ref, attn_ref,
    h_s, y_s,
    *, B, S, C1, C2, L, E, DI, N, NH, P, DCONV, K1, K2, CLS, NL, HALF, XW,
):
    f32 = jnp.float32
    bf16 = jnp.bfloat16
    BL = B * L

    # packed per-layer vector layout (must match init_mamba_layer)
    OFF_DTB = 0
    OFF_A = NH
    OFF_D = 2 * NH
    OFF_NRM = 3 * NH
    OFF_LNW = OFF_NRM + DI
    OFF_LNB = OFF_LNW + E

    # ---------------- embedding: one-hot tokens @ embedding weight -----------
    x = jnp.dot(tok_ref[...], embw_ref[...], preferred_element_type=f32)   # (B*S, E)

    # ---------------- Conv1d (NCW) along the embedding (width) axis ----------
    # Width shift stays a tiny matmul (lane-roll of a 32-wide array is not lowerable).
    def conv_nchw(inp, bd_ref, bias, k):
        pad = (k - 1) // 2
        acc = None
        for j in range(k):
            d = j - pad
            shifted = inp if d == 0 else jnp.dot(
                inp, shw_ref[d + HALF], preferred_element_type=f32)
            term = jnp.dot(bd_ref[j], shifted, preferred_element_type=f32)
            acc = term if acc is None else acc + term
        return acc + bias

    x1 = conv_nchw(x, bd1_ref, cvb_ref[0:B * C1, :], K1)                    # (B*C1, E)
    x2 = conv_nchw(x1, bd2_ref, cvb_ref[B * C1:B * C1 + B * C2, :], K2)     # (B*C2, E)

    # ---------------- channel-axis concat -> (B*L, E) -------------------------
    for b in range(B):
        h_s[pl.ds(b * L, S), :] = x[b * S:(b + 1) * S, :]
        h_s[pl.ds(b * L + S, C1), :] = x1[b * C1:(b + 1) * C1, :]
        h_s[pl.ds(b * L + S + C1, C2), :] = x2[b * C2:(b + 1) * C2, :]
    h = h_s[...]

    lbt = lbt_ref[...]                              # within-batch causal mask (BL, BL)

    # per-shift batch-boundary masks for the causal depthwise conv (built once, VPU)
    row = lax.broadcasted_iota(jnp.int32, (BL, 1), 0)
    smask = []
    for k in range(DCONV):
        bad = None
        for b in range(B):
            c = jnp.logical_and(row >= b * L, row < b * L + k)
            bad = c if bad is None else jnp.logical_or(bad, c)
        smask.append(1.0 - bad.astype(f32))

    # ---------------- Mamba2 layers (batch folded into M) ---------------------
    for l in range(NL):
        vecl = vec_ref[l]                                                   # (1, VW)

        # one fused in_proj matmul: [ x | B | C | pad->128 | z | dt_head ]
        proj = jnp.dot(h.astype(bf16), wcat_ref[l],
                       preferred_element_type=f32)                          # (BL, XW+DI+NH)
        xBC = proj[:, :XW]                                                  # (BL, 128)
        z = proj[:, XW:XW + DI]                                             # (BL, DI)
        dt_nh = _softplus(proj[:, XW + DI:XW + DI + NH]
                          + vecl[:, OFF_DTB:OFF_DTB + NH])                  # (BL, NH)

        # causal depthwise conv along the sequence axis: sublane roll + mask + SiLU
        cw_l = cw_ref[l]                                                    # (DCONV, XW)
        acc = xBC * cw_l[DCONV - 1:DCONV, :]
        for k in range(1, DCONV):
            shifted = pltpu.roll(xBC, shift=k, axis=0) * smask[k]
            acc = acc + shifted * cw_l[DCONV - 1 - k:DCONV - k, :]
        xBCc = _silu(acc + cb_ref[l])                                       # (BL, XW)
        xc = xBCc[:, :DI]
        Bc = xBCc[:, DI:DI + N]
        Cc = xBCc[:, DI + N:DI + 2 * N]

        # single-chunk (quadratic) SSD scan -- pure matmuls, no sequential loop
        CBt = lax.dot_general(Cc, Bc, (((1,), (1,)), ((), ())),
                              preferred_element_type=f32)                   # (BL, BL)
        tinc = jnp.dot(lbt, dt_nh, preferred_element_type=f32)              # (BL, NH) col cumsum
        tincT = lax.dot_general(dt_nh, lbt, (((0,), (1,)), ((), ())),
                                preferred_element_type=f32)                 # (NH, BL) row cumsum
        for hd in range(NH):
            lo = hd * P
            seg = (tinc[:, hd:hd + 1] - tincT[hd:hd + 1, :]) * lbt          # (BL, BL)
            w = CBt * (jnp.exp(vecl[:, OFF_A + hd:OFF_A + hd + 1] * seg) * lbt)
            xdt_h = xc[:, lo:lo + P] * dt_nh[:, hd:hd + 1]                  # (BL, P)
            yh = jnp.dot(w, xdt_h, preferred_element_type=f32)              # (BL, P)
            y_s[:, lo:lo + P] = (
                yh + vecl[:, OFF_D + hd:OFF_D + hd + 1] * xc[:, lo:lo + P])

        # gating, gated RMSNorm (norm_before_gate=False), out_proj
        y = y_s[...] * _silu(z)
        y = y * lax.rsqrt(jnp.mean(y * y, axis=1, keepdims=True) + 1e-5)
        y = y * vecl[:, OFF_NRM:OFF_NRM + DI]
        o = jnp.dot(y.astype(bf16), woutT_ref[l], preferred_element_type=f32)  # (BL, E)

        # post-block LayerNorm (dropout is identity in eval)
        mu = jnp.mean(o, axis=1, keepdims=True)
        var = jnp.mean((o - mu) * (o - mu), axis=1, keepdims=True)
        h = ((o - mu) * lax.rsqrt(var + 1e-5) * vecl[:, OFF_LNW:OFF_LNW + E]
             + vecl[:, OFF_LNB:OFF_LNB + E])

    # ---------------- p-vector: per-batch mean over L, L2-normalized ----------
    pv = jnp.dot(mavg_ref[...], h, preferred_element_type=f32)              # (B, E)
    pv = pv * lax.rsqrt(jnp.sum(pv * pv, axis=1, keepdims=True) + 1e-12)
    out_ref[:, CLS:CLS + E] = pv

    # ---------------- pseudo-label-wise attention + MLP head ------------------
    wa = wa_ref[...]                                                         # (E, CLS) bf16
    fcw = fcw_ref[...]
    fcb = fcb_ref[...]
    for b in range(B):
        hb_rows = h[b * L:(b + 1) * L, :]                                    # (L, E)
        scoresT = lax.dot_general(wa, hb_rows.astype(bf16),
                                  (((0,), (1,)), ((), ())),
                                  preferred_element_type=f32)                # (CLS, L)
        m = jnp.max(scoresT, axis=1, keepdims=True)
        e = jnp.exp(scoresT - m)
        attnT = e / jnp.sum(e, axis=1, keepdims=True)                        # exact softmax
        attn_ref[b] = attnT
        ctxT = lax.dot_general(hb_rows, attnT, (((0,), (1,)), ((), ())),
                               preferred_element_type=f32)                   # (E, CLS)
        out_ref[pl.ds(b, 1), 0:CLS] = (
            jnp.dot(fcw, ctxT, preferred_element_type=f32) + fcb)


# ------------------------------- parameters ----------------------------------
def init_mamba_layer(key, d_model, d_state, d_conv, expand, headdim,
                     dt_min=0.001, dt_max=0.1, dt_init_floor=1e-4):
    d_inner = expand * d_model
    H = d_inner // headdim
    conv_dim = d_inner + 2 * d_state
    xw = ((conv_dim + 127) // 128) * 128          # lane-pad the conv slab to 128
    pad = xw - conv_dim

    ks = jax.random.split(key, 8)
    s = 1.0 / math.sqrt(d_model)
    wx = jax.random.normal(ks[0], (d_model, d_inner), jnp.float32) * s
    wb = jax.random.normal(ks[1], (d_model, d_state), jnp.float32) * s
    wc = jax.random.normal(ks[2], (d_model, d_state), jnp.float32) * s
    wz = jax.random.normal(ks[3], (d_model, d_inner), jnp.float32) * s
    wdt = jax.random.normal(ks[4], (d_model, H), jnp.float32) * s           # per-head dt
    # fused in_proj weight layout: [ x | B | C | pad | z | dt ]
    wcat = jnp.concatenate(
        [wx, wb, wc, jnp.zeros((d_model, pad), jnp.float32), wz, wdt], axis=1)

    cw_core = jax.random.normal(ks[5], (d_conv, conv_dim), jnp.float32) * 0.3
    cb_core = jax.random.normal(ks[6], (1, conv_dim), jnp.float32) * 0.1
    cw = jnp.concatenate([cw_core, jnp.zeros((d_conv, pad), jnp.float32)], axis=1)
    cb = jnp.concatenate([cb_core, jnp.zeros((1, pad), jnp.float32)], axis=1)

    kdt, ka, kout = jax.random.split(ks[7], 3)
    dt = jnp.exp(jax.random.uniform(kdt, (H,), jnp.float32)
                 * (math.log(dt_max) - math.log(dt_min)) + math.log(dt_min))
    dt = jnp.maximum(dt, dt_init_floor)
    dt_bias = dt + jnp.log(-jnp.expm1(-dt))
    A_neg = -jnp.exp(jnp.log(jax.random.uniform(ka, (H,), jnp.float32, 1.0, 16.0)))
    D = jnp.ones((H,), jnp.float32)
    woutT = (jax.random.normal(kout, (d_inner, d_model), jnp.float32)
             / math.sqrt(d_inner))

    # packed per-layer vector: [dt_bias | A | D | rmsnorm_w | ln_w | ln_b]
    vec = jnp.concatenate(
        [dt_bias, A_neg, D,
         jnp.ones((d_inner,), jnp.float32),     # RMSNormGated weight
         jnp.ones((d_model,), jnp.float32),     # LayerNorm weight
         jnp.zeros((d_model,), jnp.float32)],   # LayerNorm bias
    ).reshape(1, -1)
    return dict(wcat=wcat, cw=cw, cb=cb, vec=vec, woutT=woutT)


def init_params(key, vocab, emb, s_tok, c1_out, c2_out, n_layers, class_num,
                d_state, d_conv, expand, headdim):
    ks = jax.random.split(key, 8 + n_layers)
    p = {}
    p['emb'] = jax.random.normal(ks[0], (vocab, emb), jnp.float32)
    p['conv1_w'] = jax.random.normal(ks[1], (c1_out, s_tok, 3), jnp.float32) / math.sqrt(s_tok * 3)
    p['conv1_b'] = jax.random.normal(ks[2], (c1_out,), jnp.float32) * 0.05
    p['conv2_w'] = jax.random.normal(ks[3], (c2_out, c1_out, 5), jnp.float32) / math.sqrt(c1_out * 5)
    p['conv2_b'] = jax.random.normal(ks[4], (c2_out,), jnp.float32) * 0.05
    p['attn_w'] = jax.random.normal(ks[5], (emb, class_num), jnp.float32) / math.sqrt(emb)
    p['fc_w'] = jax.random.normal(ks[6], (1, emb), jnp.float32) / math.sqrt(emb)
    p['fc_b'] = jnp.zeros((1, 1), jnp.float32)
    layers = [init_mamba_layer(ks[8 + i], emb, d_state, d_conv, expand, headdim)
              for i in range(n_layers)]
    p['layers'] = {k: jnp.stack([lp[k] for lp in layers]) for k in layers[0]}
    return p


# --------------------------------- forward -----------------------------------
def forward(params, tok, *, cfg):
    B, S, V = tok.shape
    embw = params['emb']
    E = embw.shape[1]
    w1, b1 = params['conv1_w'], params['conv1_b']
    w2, b2 = params['conv2_w'], params['conv2_b']
    C1, _, K1 = w1.shape
    C2, _, K2 = w2.shape
    L = S + C1 + C2
    BL = B * L
    lp = params['layers']
    NL = lp['wcat'].shape[0]
    DCONV = lp['cw'].shape[1]
    XW = lp['cw'].shape[2]
    DI = lp['woutT'].shape[1]
    N = cfg['d_state']
    P = cfg['headdim']
    NH = DI // P
    CLS = params['attn_w'].shape[1]
    f32 = jnp.float32
    bf16 = jnp.bfloat16

    # structural constants (built once per trace)
    half = max(K1, K2) // 2
    ar = jnp.arange(E)
    shw = jnp.stack([(ar[:, None] == ar[None, :] + d).astype(f32)
                     for d in range(-half, half + 1)])                       # width shifts
    eyeB = jnp.eye(B, dtype=f32)
    bd1 = jnp.stack([jnp.kron(eyeB, w1[:, :, j]) for j in range(K1)])        # block-diag conv1
    bd2 = jnp.stack([jnp.kron(eyeB, w2[:, :, j]) for j in range(K2)])        # block-diag conv2
    cvb = jnp.concatenate([jnp.tile(b1, B).reshape(B * C1, 1),
                           jnp.tile(b2, B).reshape(B * C2, 1)], axis=0).astype(f32)

    ri = jnp.arange(BL)
    blk = ri // L
    same = blk[:, None] == blk[None, :]
    lbt = ((ri[:, None] >= ri[None, :]) & same).astype(f32)                  # causal-in-batch
    mavg = (jnp.arange(B)[:, None] == blk[None, :]).astype(f32) / L          # mean pooling

    inputs = (
        tok.reshape(B * S, V).astype(f32),
        embw.astype(f32),
        shw, bd1, bd2, cvb, lbt,
        lp['wcat'].astype(bf16),
        lp['cw'], lp['cb'], lp['vec'],
        lp['woutT'].astype(bf16),
        mavg,
        params['attn_w'].astype(bf16),
        params['fc_w'], params['fc_b'],
    )
    vmem = pl.BlockSpec(memory_space=pltpu.MemorySpace.VMEM)
    kern = partial(_fused_kernel, B=B, S=S, C1=C1, C2=C2, L=L, E=E, DI=DI, N=N,
                   NH=NH, P=P, DCONV=DCONV, K1=K1, K2=K2, CLS=CLS, NL=NL,
                   HALF=half, XW=XW)
    out_bc, attnT = pl.pallas_call(
        kern,
        out_shape=(jax.ShapeDtypeStruct((B, CLS + E), f32),      # [y_logit | p_vector]
                   jax.ShapeDtypeStruct((B, CLS, L), f32)),      # attention (transposed)
        in_specs=[vmem] * len(inputs),
        out_specs=(vmem, vmem),
        scratch_shapes=[pltpu.VMEM((BL, E), jnp.float32),
                        pltpu.VMEM((BL, DI), jnp.float32)],
    )(*inputs)
    return {'y_logit': out_bc[:, :CLS],
            'p_vector': out_bc[:, CLS:],
            'attn_weights': jnp.transpose(attnT, (0, 2, 1))}


# ----------------------------------- main -------------------------------------
if __name__ == "__main__":
    B, S_TOK, VOCAB, EMB = 2, 32, 24, 32
    CONV1_OUT, CONV2_OUT = 16, 8
    N_LAYERS, CLASS_NUM = 2, 4
    D_STATE, D_CONV, EXPAND, HEADDIM = 16, 4, 2, 32

    key = jax.random.PRNGKey(0)
    k_tok, k_par = jax.random.split(key)
    tok_ids = jax.random.randint(k_tok, (B, S_TOK), 0, VOCAB)
    tok = jax.nn.one_hot(tok_ids, VOCAB, dtype=jnp.float32)   # data['tokenizedKgpSeqArr']

    params = init_params(k_par, VOCAB, EMB, S_TOK, CONV1_OUT, CONV2_OUT,
                         N_LAYERS, CLASS_NUM, D_STATE, D_CONV, EXPAND, HEADDIM)

    cfg = dict(d_state=D_STATE, headdim=HEADDIM)
    fwd = jax.jit(partial(forward, cfg=cfg))
    out = jax.block_until_ready(fwd(params, tok))

    L_TOTAL = S_TOK + CONV1_OUT + CONV2_OUT
    assert out['y_logit'].shape == (B, CLASS_NUM)
    assert out['p_vector'].shape == (B, EMB)
    assert out['attn_weights'].shape == (B, L_TOTAL, CLASS_NUM)
    assert all(bool(jnp.all(jnp.isfinite(v))) for v in out.values())
    print("KERNEL_OK")
</pallas_src>

<mosaic_0001>
module attributes {stable_mosaic.version = 11 : i64} {
  func.func @_fused_kernel(%arg0: memref<64x24xf32, #tpu.memory_space<vmem>>, %arg1: memref<24x32xf32, #tpu.memory_space<vmem>>, %arg2: memref<5x32x32xf32, #tpu.memory_space<vmem>>, %arg3: memref<3x32x64xf32, #tpu.memory_space<vmem>>, %arg4: memref<5x16x32xf32, #tpu.memory_space<vmem>>, %arg5: memref<48x1xf32, #tpu.memory_space<vmem>>, %arg6: memref<112x112xf32, #tpu.memory_space<vmem>>, %arg7: memref<2x32x194xbf16, #tpu.memory_space<vmem>>, %arg8: memref<2x4x128xf32, #tpu.memory_space<vmem>>, %arg9: memref<2x1x128xf32, #tpu.memory_space<vmem>>, %arg10: memref<2x1x134xf32, #tpu.memory_space<vmem>>, %arg11: memref<2x64x32xbf16, #tpu.memory_space<vmem>>, %arg12: memref<2x112xf32, #tpu.memory_space<vmem>>, %arg13: memref<32x4xbf16, #tpu.memory_space<vmem>>, %arg14: memref<1x32xf32, #tpu.memory_space<vmem>>, %arg15: memref<1x1xf32, #tpu.memory_space<vmem>>, %arg16: memref<2x36xf32, #tpu.memory_space<vmem>>, %arg17: memref<2x4x56xf32, #tpu.memory_space<vmem>>, %arg18: memref<112x32xf32, #tpu.memory_space<vmem>>, %arg19: memref<112x64xf32, #tpu.memory_space<vmem>>) attributes {dimension_semantics = [], scalar_prefetch = 0 : i64, scratch_operands = 2 : i64, tpu.core_type = #tpu.core_type<tc>} {
    %c0 = arith.constant 0 : index
    %c0_0 = arith.constant 0 : index
    %0 = vector.load %arg0[%c0, %c0_0] : memref<64x24xf32, #tpu.memory_space<vmem>>, vector<64x24xf32>
    %c0_1 = arith.constant 0 : index
    %c0_2 = arith.constant 0 : index
    %1 = vector.load %arg1[%c0_1, %c0_2] : memref<24x32xf32, #tpu.memory_space<vmem>>, vector<24x32xf32>
    %cst = arith.constant dense<0.000000e+00> : vector<64x32xf32>
    %2 = tpu.matmul %0, %1, %cst {dimension_numbers = #tpu.dot_dimension_numbers<[1], [0], [0], [1], [0, 0, 1, 1], [], []>} : vector<64x24xf32>, vector<24x32xf32>, vector<64x32xf32> -> vector<64x32xf32>
    %c0_3 = arith.constant 0 : index
    %c0_4 = arith.constant 0 : index
    %3 = vector.load %arg5[%c0_3, %c0_4] : memref<48x1xf32, #tpu.memory_space<vmem>>, vector<32x1xf32>
    %c1 = arith.constant 1 : index
    %c0_5 = arith.constant 0 : index
    %c0_6 = arith.constant 0 : index
    %4 = vector.load %arg2[%c1, %c0_5, %c0_6] : memref<5x32x32xf32, #tpu.memory_space<vmem>>, vector<1x32x32xf32>
    %5 = vector.shape_cast %4 : vector<1x32x32xf32> to vector<32x32xf32>
    %cst_7 = arith.constant dense<0.000000e+00> : vector<64x32xf32>
    %6 = tpu.matmul %2, %5, %cst_7 {dimension_numbers = #tpu.dot_dimension_numbers<[1], [0], [0], [1], [0, 0, 1, 1], [], []>} : vector<64x32xf32>, vector<32x32xf32>, vector<64x32xf32> -> vector<64x32xf32>
    %c0_8 = arith.constant 0 : index
    %c0_9 = arith.constant 0 : index
    %c0_10 = arith.constant 0 : index
    %7 = vector.load %arg3[%c0_8, %c0_9, %c0_10] : memref<3x32x64xf32, #tpu.memory_space<vmem>>, vector<1x32x64xf32>
    %8 = vector.shape_cast %7 : vector<1x32x64xf32> to vector<32x64xf32>
    %cst_11 = arith.constant dense<0.000000e+00> : vector<32x32xf32>
    %9 = tpu.matmul %8, %6, %cst_11 {dimension_numbers = #tpu.dot_dimension_numbers<[1], [0], [0], [1], [0, 0, 1, 1], [], []>} : vector<32x64xf32>, vector<64x32xf32>, vector<32x32xf32> -> vector<32x32xf32>
    %c1_12 = arith.constant 1 : index
    %c0_13 = arith.constant 0 : index
    %c0_14 = arith.constant 0 : index
    %10 = vector.load %arg3[%c1_12, %c0_13, %c0_14] : memref<3x32x64xf32, #tpu.memory_space<vmem>>, vector<1x32x64xf32>
    %11 = vector.shape_cast %10 : vector<1x32x64xf32> to vector<32x64xf32>
    %cst_15 = arith.constant dense<0.000000e+00> : vector<32x32xf32>
    %12 = tpu.matmul %11, %2, %cst_15 {dimension_numbers = #tpu.dot_dimension_numbers<[1], [0], [0], [1], [0, 0, 1, 1], [], []>} : vector<32x64xf32>, vector<64x32xf32>, vector<32x32xf32> -> vector<32x32xf32>
    %13 = arith.addf %9, %12 : vector<32x32xf32>
    %c3 = arith.constant 3 : index
    %c0_16 = arith.constant 0 : index
    %c0_17 = arith.constant 0 : index
    %14 = vector.load %arg2[%c3, %c0_16, %c0_17] : memref<5x32x32xf32, #tpu.memory_space<vmem>>, vector<1x32x32xf32>
    %15 = vector.shape_cast %14 : vector<1x32x32xf32> to vector<32x32xf32>
    %cst_18 = arith.constant dense<0.000000e+00> : vector<64x32xf32>
    %16 = tpu.matmul %2, %15, %cst_18 {dimension_numbers = #tpu.dot_dimension_numbers<[1], [0], [0], [1], [0, 0, 1, 1], [], []>} : vector<64x32xf32>, vector<32x32xf32>, vector<64x32xf32> -> vector<64x32xf32>
    %c2 = arith.constant 2 : index
    %c0_19 = arith.constant 0 : index
    %c0_20 = arith.constant 0 : index
    %17 = vector.load %arg3[%c2, %c0_19, %c0_20] : memref<3x32x64xf32, #tpu.memory_space<vmem>>, vector<1x32x64xf32>
    %18 = vector.shape_cast %17 : vector<1x32x64xf32> to vector<32x64xf32>
    %cst_21 = arith.constant dense<0.000000e+00> : vector<32x32xf32>
    %19 = tpu.matmul %18, %16, %cst_21 {dimension_numbers = #tpu.dot_dimension_numbers<[1], [0], [0], [1], [0, 0, 1, 1], [], []>} : vector<32x64xf32>, vector<64x32xf32>, vector<32x32xf32> -> vector<32x32xf32>
    %20 = arith.addf %13, %19 : vector<32x32xf32>
    %21 = vector.broadcast %3 : vector<32x1xf32> to vector<32x32xf32>
    %22 = arith.addf %20, %21 : vector<32x32xf32>
    %c32 = arith.constant 32 : index
    %c0_22 = arith.constant 0 : index
    %23 = vector.load %arg5[%c32, %c0_22] : memref<48x1xf32, #tpu.memory_space<vmem>>, vector<16x1xf32>
    %c0_23 = arith.constant 0 : index
    %c0_24 = arith.constant 0 : index
    %c0_25 = arith.constant 0 : index
    %24 = vector.load %arg2[%c0_23, %c0_24, %c0_25] : memref<5x32x32xf32, #tpu.memory_space<vmem>>, vector<1x32x32xf32>
    %25 = vector.shape_cast %24 : vector<1x32x32xf32> to vector<32x32xf32>
    %cst_26 = arith.constant dense<0.000000e+00> : vector<32x32xf32>
    %26 = tpu.matmul %22, %25, %cst_26 {dimension_numbers = #tpu.dot_dimension_numbers<[1], [0], [0], [1], [0, 0, 1, 1], [], []>} : vector<32x32xf32>, vector<32x32xf32>, vector<32x32xf32> -> vector<32x32xf32>
    %c0_27 = arith.constant 0 : index
    %c0_28 = arith.constant 0 : index
    %c0_29 = arith.constant 0 : index
    %27 = vector.load %arg4[%c0_27, %c0_28, %c0_29] : memref<5x16x32xf32, #tpu.memory_space<vmem>>, vector<1x16x32xf32>
    %28 = vector.shape_cast %27 : vector<1x16x32xf32> to vector<16x32xf32>
    %cst_30 = arith.constant dense<0.000000e+00> : vector<16x32xf32>
    %29 = tpu.matmul %28, %26, %cst_30 {dimension_numbers = #tpu.dot_dimension_numbers<[1], [0], [0], [1], [0, 0, 1, 1], [], []>} : vector<16x32xf32>, vector<32x32xf32>, vector<16x32xf32> -> vector<16x32xf32>
    %c1_31 = arith.constant 1 : index
    %c0_32 = arith.constant 0 : index
    %c0_33 = arith.constant 0 : index
    %30 = vector.load %arg2[%c1_31, %c0_32, %c0_33] : memref<5x32x32xf32, #tpu.memory_space<vmem>>, vector<1x32x32xf32>
    %31 = vector.shape_cast %30 : vector<1x32x32xf32> to vector<32x32xf32>
    %cst_34 = arith.constant dense<0.000000e+00> : vector<32x32xf32>
    %32 = tpu.matmul %22, %31, %cst_34 {dimension_numbers = #tpu.dot_dimension_numbers<[1], [0], [0], [1], [0, 0, 1, 1], [], []>} : vector<32x32xf32>, vector<32x32xf32>, vector<32x32xf32> -> vector<32x32xf32>
    %c1_35 = arith.constant 1 : index
    %c0_36 = arith.constant 0 : index
    %c0_37 = arith.constant 0 : index
    %33 = vector.load %arg4[%c1_35, %c0_36, %c0_37] : memref<5x16x32xf32, #tpu.memory_space<vmem>>, vector<1x16x32xf32>
    %34 = vector.shape_cast %33 : vector<1x16x32xf32> to vector<16x32xf32>
    %cst_38 = arith.constant dense<0.000000e+00> : vector<16x32xf32>
    %35 = tpu.matmul %34, %32, %cst_38 {dimension_numbers = #tpu.dot_dimension_numbers<[1], [0], [0], [1], [0, 0, 1, 1], [], []>} : vector<16x32xf32>, vector<32x32xf32>, vector<16x32xf32> -> vector<16x32xf32>
    %36 = arith.addf %29, %35 : vector<16x32xf32>
    %c2_39 = arith.constant 2 : index
    %c0_40 = arith.constant 0 : index
    %c0_41 = arith.constant 0 : index
    %37 = vector.load %arg4[%c2_39, %c0_40, %c0_41] : memref<5x16x32xf32, #tpu.memory_space<vmem>>, vector<1x16x32xf32>
    %38 = vector.shape_cast %37 : vector<1x16x32xf32> to vector<16x32xf32>
    %cst_42 = arith.constant dense<0.000000e+00> : vector<16x32xf32>
    %39 = tpu.matmul %38, %22, %cst_42 {dimension_numbers = #tpu.dot_dimension_numbers<[1], [0], [0], [1], [0, 0, 1, 1], [], []>} : vector<16x32xf32>, vector<32x32xf32>, vector<16x32xf32> -> vector<16x32xf32>
    %40 = arith.addf %36, %39 : vector<16x32xf32>
    %c3_43 = arith.constant 3 : index
    %c0_44 = arith.constant 0 : index
    %c0_45 = arith.constant 0 : index
    %41 = vector.load %arg2[%c3_43, %c0_44, %c0_45] : memref<5x32x32xf32, #tpu.memory_space<vmem>>, vector<1x32x32xf32>
    %42 = vector.shape_cast %41 : vector<1x32x32xf32> to vector<32x32xf32>
    %cst_46 = arith.constant dense<0.000000e+00> : vector<32x32xf32>
    %43 = tpu.matmul %22, %42, %cst_46 {dimension_numbers = #tpu.dot_dimension_numbers<[1], [0], [0], [1], [0, 0, 1, 1], [], []>} : vector<32x32xf32>, vector<32x32xf32>, vector<32x32xf32> -> vector<32x32xf32>
    %c3_47 = arith.constant 3 : index
    %c0_48 = arith.constant 0 : index
    %c0_49 = arith.constant 0 : index
    %44 = vector.load %arg4[%c3_47, %c0_48, %c0_49] : memref<5x16x32xf32, #tpu.memory_space<vmem>>, vector<1x16x32xf32>
    %45 = vector.shape_cast %44 : vector<1x16x32xf32> to vector<16x32xf32>
    %cst_50 = arith.constant dense<0.000000e+00> : vector<16x32xf32>
    %46 = tpu.matmul %45, %43, %cst_50 {dimension_numbers = #tpu.dot_dimension_numbers<[1], [0], [0], [1], [0, 0, 1, 1], [], []>} : vector<16x32xf32>, vector<32x32xf32>, vector<16x32xf32> -> vector<16x32xf32>
    %47 = arith.addf %40, %46 : vector<16x32xf32>
    %c4 = arith.constant 4 : index
    %c0_51 = arith.constant 0 : index
    %c0_52 = arith.constant 0 : index
    %48 = vector.load %arg2[%c4, %c0_51, %c0_52] : memref<5x32x32xf32, #tpu.memory_space<vmem>>, vector<1x32x32xf32>
    %49 = vector.shape_cast %48 : vector<1x32x32xf32> to vector<32x32xf32>
    %cst_53 = arith.constant dense<0.000000e+00> : vector<32x32xf32>
    %50 = tpu.matmul %22, %49, %cst_53 {dimension_numbers = #tpu.dot_dimension_numbers<[1], [0], [0], [1], [0, 0, 1, 1], [], []>} : vector<32x32xf32>, vector<32x32xf32>, vector<32x32xf32> -> vector<32x32xf32>
    %c4_54 = arith.constant 4 : index
    %c0_55 = arith.constant 0 : index
    %c0_56 = arith.constant 0 : index
    %51 = vector.load %arg4[%c4_54, %c0_55, %c0_56] : memref<5x16x32xf32, #tpu.memory_space<vmem>>, vector<1x16x32xf32>
    %52 = vector.shape_cast %51 : vector<1x16x32xf32> to vector<16x32xf32>
    %cst_57 = arith.constant dense<0.000000e+00> : vector<16x32xf32>
    %53 = tpu.matmul %52, %50, %cst_57 {dimension_numbers = #tpu.dot_dimension_numbers<[1], [0], [0], [1], [0, 0, 1, 1], [], []>} : vector<16x32xf32>, vector<32x32xf32>, vector<16x32xf32> -> vector<16x32xf32>
    %54 = arith.addf %47, %53 : vector<16x32xf32>
    %55 = vector.broadcast %23 : vector<16x1xf32> to vector<16x32xf32>
    %56 = arith.addf %54, %55 : vector<16x32xf32>
    %57 = vector.extract_strided_slice %2 {offsets = [0, 0], sizes = [32, 32], strides = [1, 1]} : vector<64x32xf32> to vector<32x32xf32>
    %c0_58 = arith.constant 0 : index
    %c0_59 = arith.constant 0 : index
    %58 = vector.load %arg18[%c0_58, %c0_59] : memref<112x32xf32, #tpu.memory_space<vmem>>, vector<32x32xf32>
    tpu.vector_store %arg18[%c0_58, %c0_59], %57 {strides = array<i32>} : memref<112x32xf32, #tpu.memory_space<vmem>>, vector<32x32xf32>,
    %59 = vector.extract_strided_slice %22 {offsets = [0, 0], sizes = [16, 32], strides = [1, 1]} : vector<32x32xf32> to vector<16x32xf32>
    %c32_60 = arith.constant 32 : index
    %c0_61 = arith.constant 0 : index
    %60 = vector.load %arg18[%c32_60, %c0_61] : memref<112x32xf32, #tpu.memory_space<vmem>>, vector<16x32xf32>
    tpu.vector_store %arg18[%c32_60, %c0_61], %59 {strides = array<i32>} : memref<112x32xf32, #tpu.memory_space<vmem>>, vector<16x32xf32>,
    %61 = vector.extract_strided_slice %56 {offsets = [0, 0], sizes = [8, 32], strides = [1, 1]} : vector<16x32xf32> to vector<8x32xf32>
    %c48 = arith.constant 48 : index
    %c0_62 = arith.constant 0 : index
    %62 = vector.load %arg18[%c48, %c0_62] : memref<112x32xf32, #tpu.memory_space<vmem>>, vector<8x32xf32>
    tpu.vector_store %arg18[%c48, %c0_62], %61 {strides = array<i32>} : memref<112x32xf32, #tpu.memory_space<vmem>>, vector<8x32xf32>,
    %63 = vector.extract_strided_slice %2 {offsets = [32, 0], sizes = [32, 32], strides = [1, 1]} : vector<64x32xf32> to vector<32x32xf32>
    %c56 = arith.constant 56 : index
    %c0_63 = arith.constant 0 : index
    %64 = vector.load %arg18[%c56, %c0_63] : memref<112x32xf32, #tpu.memory_space<vmem>>, vector<32x32xf32>
    tpu.vector_store %arg18[%c56, %c0_63], %63 {strides = array<i32>} : memref<112x32xf32, #tpu.memory_space<vmem>>, vector<32x32xf32>,
    %65 = vector.extract_strided_slice %22 {offsets = [16, 0], sizes = [16, 32], strides = [1, 1]} : vector<32x32xf32> to vector<16x32xf32>
    %c88 = arith.constant 88 : index
    %c0_64 = arith.constant 0 : index
    %66 = vector.load %arg18[%c88, %c0_64] : memref<112x32xf32, #tpu.memory_space<vmem>>, vector<16x32xf32>
    tpu.vector_store %arg18[%c88, %c0_64], %65 {strides = array<i32>} : memref<112x32xf32, #tpu.memory_space<vmem>>, vector<16x32xf32>,
    %67 = vector.extract_strided_slice %56 {offsets = [8, 0], sizes = [8, 32], strides = [1, 1]} : vector<16x32xf32> to vector<8x32xf32>
    %c104 = arith.constant 104 : index
    %c0_65 = arith.constant 0 : index
    %68 = vector.load %arg18[%c104, %c0_65] : memref<112x32xf32, #tpu.memory_space<vmem>>, vector<8x32xf32>
    tpu.vector_store %arg18[%c104, %c0_65], %67 {strides = array<i32>} : memref<112x32xf32, #tpu.memory_space<vmem>>, vector<8x32xf32>,
    %c0_66 = arith.constant 0 : index
    %c0_67 = arith.constant 0 : index
    %69 = vector.load %arg18[%c0_66, %c0_67] : memref<112x32xf32, #tpu.memory_space<vmem>>, vector<112x32xf32>
    %c0_68 = arith.constant 0 : index
    %c0_69 = arith.constant 0 : index
    %70 = vector.load %arg6[%c0_68, %c0_69] : memref<112x112xf32, #tpu.memory_space<vmem>>, vector<112x112xf32>
    %71 = tpu.iota {dimensions = array<i32: 0>} : vector<112x1xi32>
    %c0_i32 = arith.constant 0 : i32
    %72 = vector.broadcast %c0_i32 : i32 to vector<112x1xi32>
    %73 = arith.cmpi sge, %71, %72 : vector<112x1xi32>
    %c1_i32 = arith.constant 1 : i32
    %74 = vector.broadcast %c1_i32 : i32 to vector<112x1xi32>
    %75 = arith.cmpi slt, %71, %74 : vector<112x1xi32>
    %76 = arith.andi %73, %75 : vector<112x1xi1>
    %c56_i32 = arith.constant 56 : i32
    %77 = vector.broadcast %c56_i32 : i32 to vector<112x1xi32>
    %78 = arith.cmpi sge, %71, %77 : vector<112x1xi32>
    %c57_i32 = arith.constant 57 : i32
    %79 = vector.broadcast %c57_i32 : i32 to vector<112x1xi32>
    %80 = arith.cmpi slt, %71, %79 : vector<112x1xi32>
    %81 = arith.andi %78, %80 : vector<112x1xi1>
    %82 = arith.ori %76, %81 : vector<112x1xi1>
    %83 = arith.extui %82 : vector<112x1xi1> to vector<112x1xi32>
    %84 = arith.sitofp %83 : vector<112x1xi32> to vector<112x1xf32>
    %cst_70 = arith.constant 1.000000e+00 : f32
    %85 = vector.broadcast %cst_70 : f32 to vector<112x1xf32>
    %86 = arith.subf %85, %84 : vector<112x1xf32>
    %c0_i32_71 = arith.constant 0 : i32
    %87 = vector.broadcast %c0_i32_71 : i32 to vector<112x1xi32>
    %88 = arith.cmpi sge, %71, %87 : vector<112x1xi32>
    %c2_i32 = arith.constant 2 : i32
    %89 = vector.broadcast %c2_i32 : i32 to vector<112x1xi32>
    %90 = arith.cmpi slt, %71, %89 : vector<112x1xi32>
    %91 = arith.andi %88, %90 : vector<112x1xi1>
    %c56_i32_72 = arith.constant 56 : i32
    %92 = vector.broadcast %c56_i32_72 : i32 to vector<112x1xi32>
    %93 = arith.cmpi sge, %71, %92 : vector<112x1xi32>
    %c58_i32 = arith.constant 58 : i32
    %94 = vector.broadcast %c58_i32 : i32 to vector<112x1xi32>
    %95 = arith.cmpi slt, %71, %94 : vector<112x1xi32>
    %96 = arith.andi %93, %95 : vector<112x1xi1>
    %97 = arith.ori %91, %96 : vector<112x1xi1>
    %98 = arith.extui %97 : vector<112x1xi1> to vector<112x1xi32>
    %99 = arith.sitofp %98 : vector<112x1xi32> to vector<112x1xf32>
    %cst_73 = arith.constant 1.000000e+00 : f32
    %100 = vector.broadcast %cst_73 : f32 to vector<112x1xf32>
    %101 = arith.subf %100, %99 : vector<112x1xf32>
    %c0_i32_74 = arith.constant 0 : i32
    %102 = vector.broadcast %c0_i32_74 : i32 to vector<112x1xi32>
    %103 = arith.cmpi sge, %71, %102 : vector<112x1xi32>
    %c3_i32 = arith.constant 3 : i32
    %104 = vector.broadcast %c3_i32 : i32 to vector<112x1xi32>
    %105 = arith.cmpi slt, %71, %104 : vector<112x1xi32>
    %106 = arith.andi %103, %105 : vector<112x1xi1>
    %c56_i32_75 = arith.constant 56 : i32
    %107 = vector.broadcast %c56_i32_75 : i32 to vector<112x1xi32>
    %108 = arith.cmpi sge, %71, %107 : vector<112x1xi32>
    %c59_i32 = arith.constant 59 : i32
    %109 = vector.broadcast %c59_i32 : i32 to vector<112x1xi32>
    %110 = arith.cmpi slt, %71, %109 : vector<112x1xi32>
    %111 = arith.andi %108, %110 : vector<112x1xi1>
    %112 = arith.ori %106, %111 : vector<112x1xi1>
    %113 = arith.extui %112 : vector<112x1xi1> to vector<112x1xi32>
    %114 = arith.sitofp %113 : vector<112x1xi32> to vector<112x1xf32>
    %cst_76 = arith.constant 1.000000e+00 : f32
    %115 = vector.broadcast %cst_76 : f32 to vector<112x1xf32>
    %116 = arith.subf %115, %114 : vector<112x1xf32>
    %c0_77 = arith.constant 0 : index
    %c0_78 = arith.constant 0 : index
    %c0_79 = arith.constant 0 : index
    %117 = vector.load %arg10[%c0_77, %c0_78, %c0_79] : memref<2x1x134xf32, #tpu.memory_space<vmem>>, vector<1x1x134xf32>
    %118 = vector.shape_cast %117 : vector<1x1x134xf32> to vector<1x134xf32>
    %119 = arith.truncf %69 : vector<112x32xf32> to vector<112x32xbf16>
    %c0_80 = arith.constant 0 : index
    %c0_81 = arith.constant 0 : index
    %c0_82 = arith.constant 0 : index
    %120 = vector.load %arg7[%c0_80, %c0_81, %c0_82] : memref<2x32x194xbf16, #tpu.memory_space<vmem>>, vector<1x32x194xbf16>
    %121 = vector.shape_cast %120 : vector<1x32x194xbf16> to vector<32x194xbf16>
    %cst_83 = arith.constant dense<0.000000e+00> : vector<112x194xf32>
    %122 = tpu.matmul %119, %121, %cst_83 {dimension_numbers = #tpu.dot_dimension_numbers<[1], [0], [0], [1], [0, 0, 1, 1], [], []>} : vector<112x32xbf16>, vector<32x194xbf16>, vector<112x194xf32> -> vector<112x194xf32>
    %123 = vector.extract_strided_slice %122 {offsets = [0, 0], sizes = [112, 128], strides = [1, 1]} : vector<112x194xf32> to vector<112x128xf32>
    %124 = vector.extract_strided_slice %122 {offsets = [0, 128], sizes = [112, 64], strides = [1, 1]} : vector<112x194xf32> to vector<112x64xf32>
    %125 = vector.extract_strided_slice %122 {offsets = [0, 192], sizes = [112, 2], strides = [1, 1]} : vector<112x194xf32> to vector<112x2xf32>
    %126 = vector.extract_strided_slice %118 {offsets = [0, 0], sizes = [1, 2], strides = [1, 1]} : vector<1x134xf32> to vector<1x2xf32>
    %127 = vector.broadcast %126 : vector<1x2xf32> to vector<112x2xf32>
    %128 = arith.addf %125, %127 : vector<112x2xf32>
    %cst_84 = arith.constant 0.000000e+00 : f32
    %129 = vector.broadcast %cst_84 : f32 to vector<112x2xf32>
    %130 = arith.maximumf %128, %129 : vector<112x2xf32>
    %131 = math.absf %128 : vector<112x2xf32>
    %cst_85 = arith.constant 0.000000e+00 : f32
    %132 = vector.broadcast %cst_85 : f32 to vector<112x2xf32>
    %133 = arith.subf %132, %131 : vector<112x2xf32>
    %134 = math.exp %133 : vector<112x2xf32>
    %cst_86 = arith.constant 1.000000e+00 : f32
    %135 = vector.broadcast %cst_86 : f32 to vector<112x2xf32>
    %136 = arith.addf %135, %134 : vector<112x2xf32>
    %137 = math.log %136 : vector<112x2xf32>
    %138 = arith.addf %130, %137 : vector<112x2xf32>
    %c0_87 = arith.constant 0 : index
    %c0_88 = arith.constant 0 : index
    %c0_89 = arith.constant 0 : index
    %139 = vector.load %arg8[%c0_87, %c0_88, %c0_89] : memref<2x4x128xf32, #tpu.memory_space<vmem>>, vector<1x4x128xf32>
    %140 = vector.shape_cast %139 : vector<1x4x128xf32> to vector<4x128xf32>
    %141 = vector.extract_strided_slice %140 {offsets = [3, 0], sizes = [1, 128], strides = [1, 1]} : vector<4x128xf32> to vector<1x128xf32>
    %142 = vector.broadcast %141 : vector<1x128xf32> to vector<112x128xf32>
    %143 = arith.mulf %123, %142 : vector<112x128xf32>
    %c1_i32_90 = arith.constant 1 : i32
    %144 = tpu.dynamic_rotate %123 by %c1_i32_90 dim 0 : vector<112x128xf32>, i32 -> vector<112x128xf32>
    %145 = vector.broadcast %86 : vector<112x1xf32> to vector<112x128xf32>
    %146 = arith.mulf %144, %145 : vector<112x128xf32>
    %147 = vector.extract_strided_slice %140 {offsets = [2, 0], sizes = [1, 128], strides = [1, 1]} : vector<4x128xf32> to vector<1x128xf32>
    %148 = vector.broadcast %147 : vector<1x128xf32> to vector<112x128xf32>
    %149 = arith.mulf %146, %148 : vector<112x128xf32>
    %150 = arith.addf %143, %149 : vector<112x128xf32>
    %c2_i32_91 = arith.constant 2 : i32
    %151 = tpu.dynamic_rotate %123 by %c2_i32_91 dim 0 : vector<112x128xf32>, i32 -> vector<112x128xf32>
    %152 = vector.broadcast %101 : vector<112x1xf32> to vector<112x128xf32>
    %153 = arith.mulf %151, %152 : vector<112x128xf32>
    %154 = vector.extract_strided_slice %140 {offsets = [1, 0], sizes = [1, 128], strides = [1, 1]} : vector<4x128xf32> to vector<1x128xf32>
    %155 = vector.broadcast %154 : vector<1x128xf32> to vector<112x128xf32>
    %156 = arith.mulf %153, %155 : vector<112x128xf32>
    %157 = arith.addf %150, %156 : vector<112x128xf32>
    %c3_i32_92 = arith.constant 3 : i32
    %158 = tpu.dynamic_rotate %123 by %c3_i32_92 dim 0 : vector<112x128xf32>, i32 -> vector<112x128xf32>
    %159 = vector.broadcast %116 : vector<112x1xf32> to vector<112x128xf32>
    %160 = arith.mulf %158, %159 : vector<112x128xf32>
    %161 = vector.extract_strided_slice %140 {offsets = [0, 0], sizes = [1, 128], strides = [1, 1]} : vector<4x128xf32> to vector<1x128xf32>
    %162 = vector.broadcast %161 : vector<1x128xf32> to vector<112x128xf32>
    %163 = arith.mulf %160, %162 : vector<112x128xf32>
    %164 = arith.addf %157, %163 : vector<112x128xf32>
    %c0_93 = arith.constant 0 : index
    %c0_94 = arith.constant 0 : index
    %c0_95 = arith.constant 0 : index
    %165 = vector.load %arg9[%c0_93, %c0_94, %c0_95] : memref<2x1x128xf32, #tpu.memory_space<vmem>>, vector<1x1x128xf32>
    %166 = vector.shape_cast %165 : vector<1x1x128xf32> to vector<1x128xf32>
    %167 = vector.broadcast %166 : vector<1x128xf32> to vector<112x128xf32>
    %168 = arith.addf %164, %167 : vector<112x128xf32>
    %cst_96 = arith.constant 0.000000e+00 : f32
    %169 = vector.broadcast %cst_96 : f32 to vector<112x128xf32>
    %170 = arith.subf %169, %168 : vector<112x128xf32>
    %171 = math.exp %170 : vector<112x128xf32>
    %cst_97 = arith.constant 1.000000e+00 : f32
    %172 = vector.broadcast %cst_97 : f32 to vector<112x128xf32>
    %173 = arith.addf %172, %171 : vector<112x128xf32>
    %cst_98 = arith.constant 1.000000e+00 : f32
    %174 = vector.broadcast %cst_98 : f32 to vector<112x128xf32>
    %175 = arith.divf %174, %173 : vector<112x128xf32>
    %176 = arith.mulf %168, %175 : vector<112x128xf32>
    %177 = vector.extract_strided_slice %176 {offsets = [0, 0], sizes = [112, 64], strides = [1, 1]} : vector<112x128xf32> to vector<112x64xf32>
    %178 = vector.extract_strided_slice %176 {offsets = [0, 64], sizes = [112, 16], strides = [1, 1]} : vector<112x128xf32> to vector<112x16xf32>
    %179 = vector.extract_strided_slice %176 {offsets = [0, 80], sizes = [112, 16], strides = [1, 1]} : vector<112x128xf32> to vector<112x16xf32>
    %cst_99 = arith.constant dense<0.000000e+00> : vector<112x112xf32>
    %180 = tpu.matmul %179, %178, %cst_99 {dimension_numbers = #tpu.dot_dimension_numbers<[1], [1], [0], [0], [0, 0, 1, 0], [], []>} : vector<112x16xf32>, vector<112x16xf32>, vector<112x112xf32> -> vector<112x112xf32>
    %cst_100 = arith.constant dense<0.000000e+00> : vector<112x2xf32>
    %181 = tpu.matmul %70, %138, %cst_100 {dimension_numbers = #tpu.dot_dimension_numbers<[1], [0], [0], [1], [0, 0, 1, 1], [], []>} : vector<112x112xf32>, vector<112x2xf32>, vector<112x2xf32> -> vector<112x2xf32>
    %cst_101 = arith.constant dense<0.000000e+00> : vector<2x112xf32>
    %182 = tpu.matmul %138, %70, %cst_101 {dimension_numbers = #tpu.dot_dimension_numbers<[0], [1], [1], [0], [0, 1, 1, 0], [], []>} : vector<112x2xf32>, vector<112x112xf32>, vector<2x112xf32> -> vector<2x112xf32>
    %183 = vector.extract_strided_slice %181 {offsets = [0, 0], sizes = [112, 1], strides = [1, 1]} : vector<112x2xf32> to vector<112x1xf32>
    %184 = vector.extract_strided_slice %182 {offsets = [0, 0], sizes = [1, 112], strides = [1, 1]} : vector<2x112xf32> to vector<1x112xf32>
    %185 = vector.broadcast %183 : vector<112x1xf32> to vector<112x112xf32>
    %186 = vector.broadcast %184 : vector<1x112xf32> to vector<112x112xf32>
    %187 = arith.subf %185, %186 : vector<112x112xf32>
    %188 = arith.mulf %187, %70 : vector<112x112xf32>
    %189 = vector.extract_strided_slice %118 {offsets = [0, 2], sizes = [1, 1], strides = [1, 1]} : vector<1x134xf32> to vector<1x1xf32>
    %190 = vector.broadcast %189 : vector<1x1xf32> to vector<112x112xf32>
    %191 = arith.mulf %190, %188 : vector<112x112xf32>
    %192 = math.exp %191 : vector<112x112xf32>
    %193 = arith.mulf %192, %70 : vector<112x112xf32>
    %194 = arith.mulf %180, %193 : vector<112x112xf32>
    %195 = vector.extract_strided_slice %177 {offsets = [0, 0], sizes = [112, 32], strides = [1, 1]} : vector<112x64xf32> to vector<112x32xf32>
    %196 = vector.extract_strided_slice %138 {offsets = [0, 0], sizes = [112, 1], strides = [1, 1]} : vector<112x2xf32> to vector<112x1xf32>
    %197 = vector.broadcast %196 : vector<112x1xf32> to vector<112x32xf32>
    %198 = arith.mulf %195, %197 : vector<112x32xf32>
    %cst_102 = arith.constant dense<0.000000e+00> : vector<112x32xf32>
    %199 = tpu.matmul %194, %198, %cst_102 {dimension_numbers = #tpu.dot_dimension_numbers<[1], [0], [0], [1], [0, 0, 1, 1], [], []>} : vector<112x112xf32>, vector<112x32xf32>, vector<112x32xf32> -> vector<112x32xf32>
    %200 = vector.extract_strided_slice %118 {offsets = [0, 4], sizes = [1, 1], strides = [1, 1]} : vector<1x134xf32> to vector<1x1xf32>
    %201 = vector.extract_strided_slice %177 {offsets = [0, 0], sizes = [112, 32], strides = [1, 1]} : vector<112x64xf32> to vector<112x32xf32>
    %202 = vector.broadcast %200 : vector<1x1xf32> to vector<112x32xf32>
    %203 = arith.mulf %202, %201 : vector<112x32xf32>
    %204 = arith.addf %199, %203 : vector<112x32xf32>
    %c0_103 = arith.constant 0 : index
    %c0_104 = arith.constant 0 : index
    %205 = vector.load %arg19[%c0_103, %c0_104] : memref<112x64xf32, #tpu.memory_space<vmem>>, vector<112x32xf32>
    tpu.vector_store %arg19[%c0_103, %c0_104], %204 {strides = array<i32>} : memref<112x64xf32, #tpu.memory_space<vmem>>, vector<112x32xf32>,
    %206 = vector.extract_strided_slice %181 {offsets = [0, 1], sizes = [112, 1], strides = [1, 1]} : vector<112x2xf32> to vector<112x1xf32>
    %207 = vector.extract_strided_slice %182 {offsets = [1, 0], sizes = [1, 112], strides = [1, 1]} : vector<2x112xf32> to vector<1x112xf32>
    %208 = vector.broadcast %206 : vector<112x1xf32> to vector<112x112xf32>
    %209 = vector.broadcast %207 : vector<1x112xf32> to vector<112x112xf32>
    %210 = arith.subf %208, %209 : vector<112x112xf32>
    %211 = arith.mulf %210, %70 : vector<112x112xf32>
    %212 = vector.extract_strided_slice %118 {offsets = [0, 3], sizes = [1, 1], strides = [1, 1]} : vector<1x134xf32> to vector<1x1xf32>
    %213 = vector.broadcast %212 : vector<1x1xf32> to vector<112x112xf32>
    %214 = arith.mulf %213, %211 : vector<112x112xf32>
    %215 = math.exp %214 : vector<112x112xf32>
    %216 = arith.mulf %215, %70 : vector<112x112xf32>
    %217 = arith.mulf %180, %216 : vector<112x112xf32>
    %218 = vector.extract_strided_slice %177 {offsets = [0, 32], sizes = [112, 32], strides = [1, 1]} : vector<112x64xf32> to vector<112x32xf32>
    %219 = vector.extract_strided_slice %138 {offsets = [0, 1], sizes = [112, 1], strides = [1, 1]} : vector<112x2xf32> to vector<112x1xf32>
    %220 = vector.broadcast %219 : vector<112x1xf32> to vector<112x32xf32>
    %221 = arith.mulf %218, %220 : vector<112x32xf32>
    %cst_105 = arith.constant dense<0.000000e+00> : vector<112x32xf32>
    %222 = tpu.matmul %217, %221, %cst_105 {dimension_numbers = #tpu.dot_dimension_numbers<[1], [0], [0], [1], [0, 0, 1, 1], [], []>} : vector<112x112xf32>, vector<112x32xf32>, vector<112x32xf32> -> vector<112x32xf32>
    %223 = vector.extract_strided_slice %118 {offsets = [0, 5], sizes = [1, 1], strides = [1, 1]} : vector<1x134xf32> to vector<1x1xf32>
    %224 = vector.extract_strided_slice %177 {offsets = [0, 32], sizes = [112, 32], strides = [1, 1]} : vector<112x64xf32> to vector<112x32xf32>
    %225 = vector.broadcast %223 : vector<1x1xf32> to vector<112x32xf32>
    %226 = arith.mulf %225, %224 : vector<112x32xf32>
    %227 = arith.addf %222, %226 : vector<112x32xf32>
    %c0_106 = arith.constant 0 : index
    %c32_107 = arith.constant 32 : index
    %228 = vector.load %arg19[%c0_106, %c32_107] : memref<112x64xf32, #tpu.memory_space<vmem>>, vector<112x32xf32>
    tpu.vector_store %arg19[%c0_106, %c32_107], %227 {strides = array<i32>} : memref<112x64xf32, #tpu.memory_space<vmem>>, vector<112x32xf32>,
    %c0_108 = arith.constant 0 : index
    %c0_109 = arith.constant 0 : index
    %229 = vector.load %arg19[%c0_108, %c0_109] : memref<112x64xf32, #tpu.memory_space<vmem>>, vector<112x64xf32>
    %cst_110 = arith.constant 0.000000e+00 : f32
    %230 = vector.broadcast %cst_110 : f32 to vector<112x64xf32>
    %231 = arith.subf %230, %124 : vector<112x64xf32>
    %232 = math.exp %231 : vector<112x64xf32>
    %cst_111 = arith.constant 1.000000e+00 : f32
    %233 = vector.broadcast %cst_111 : f32 to vector<112x64xf32>
    %234 = arith.addf %233, %232 : vector<112x64xf32>
    %cst_112 = arith.constant 1.000000e+00 : f32
    %235 = vector.broadcast %cst_112 : f32 to vector<112x64xf32>
    %236 = arith.divf %235, %234 : vector<112x64xf32>
    %237 = arith.mulf %124, %236 : vector<112x64xf32>
    %238 = arith.mulf %229, %237 : vector<112x64xf32>
    %239 = arith.mulf %238, %238 : vector<112x64xf32>
    %cst_113 = arith.constant dense<0.000000e+00> : vector<112xf32>
    %240 = vector.multi_reduction <add>, %239, %cst_113 [1] : vector<112x64xf32> to vector<112xf32>
    %241 = vector.shape_cast %240 : vector<112xf32> to vector<112x1xf32>
    %cst_114 = arith.constant 6.400000e+01 : f32
    %242 = vector.broadcast %cst_114 : f32 to vector<112x1xf32>
    %243 = arith.divf %241, %242 : vector<112x1xf32>
    %cst_115 = arith.constant 9.99999974E-6 : f32
    %244 = vector.broadcast %cst_115 : f32 to vector<112x1xf32>
    %245 = arith.addf %243, %244 : vector<112x1xf32>
    %246 = math.rsqrt %245 : vector<112x1xf32>
    %247 = vector.broadcast %246 : vector<112x1xf32> to vector<112x64xf32>
    %248 = arith.mulf %238, %247 : vector<112x64xf32>
    %249 = vector.extract_strided_slice %118 {offsets = [0, 6], sizes = [1, 64], strides = [1, 1]} : vector<1x134xf32> to vector<1x64xf32>
    %250 = vector.broadcast %249 : vector<1x64xf32> to vector<112x64xf32>
    %251 = arith.mulf %248, %250 : vector<112x64xf32>
    %252 = arith.truncf %251 : vector<112x64xf32> to vector<112x64xbf16>
    %c0_116 = arith.constant 0 : index
    %c0_117 = arith.constant 0 : index
    %c0_118 = arith.constant 0 : index
    %253 = vector.load %arg11[%c0_116, %c0_117, %c0_118] : memref<2x64x32xbf16, #tpu.memory_space<vmem>>, vector<1x64x32xbf16>
    %254 = vector.shape_cast %253 : vector<1x64x32xbf16> to vector<64x32xbf16>
    %cst_119 = arith.constant dense<0.000000e+00> : vector<112x32xf32>
    %255 = tpu.matmul %252, %254, %cst_119 {dimension_numbers = #tpu.dot_dimension_numbers<[1], [0], [0], [1], [0, 0, 1, 1], [], []>} : vector<112x64xbf16>, vector<64x32xbf16>, vector<112x32xf32> -> vector<112x32xf32>
    %cst_120 = arith.constant dense<0.000000e+00> : vector<112xf32>
    %256 = vector.multi_reduction <add>, %255, %cst_120 [1] : vector<112x32xf32> to vector<112xf32>
    %257 = vector.shape_cast %256 : vector<112xf32> to vector<112x1xf32>
    %cst_121 = arith.constant 3.200000e+01 : f32
    %258 = vector.broadcast %cst_121 : f32 to vector<112x1xf32>
    %259 = arith.divf %257, %258 : vector<112x1xf32>
    %260 = vector.broadcast %259 : vector<112x1xf32> to vector<112x32xf32>
    %261 = arith.subf %255, %260 : vector<112x32xf32>
    %262 = vector.broadcast %259 : vector<112x1xf32> to vector<112x32xf32>
    %263 = arith.subf %255, %262 : vector<112x32xf32>
    %264 = arith.mulf %261, %263 : vector<112x32xf32>
    %cst_122 = arith.constant dense<0.000000e+00> : vector<112xf32>
    %265 = vector.multi_reduction <add>, %264, %cst_122 [1] : vector<112x32xf32> to vector<112xf32>
    %266 = vector.shape_cast %265 : vector<112xf32> to vector<112x1xf32>
    %cst_123 = arith.constant 3.200000e+01 : f32
    %267 = vector.broadcast %cst_123 : f32 to vector<112x1xf32>
    %268 = arith.divf %266, %267 : vector<112x1xf32>
    %269 = vector.broadcast %259 : vector<112x1xf32> to vector<112x32xf32>
    %270 = arith.subf %255, %269 : vector<112x32xf32>
    %cst_124 = arith.constant 9.99999974E-6 : f32
    %271 = vector.broadcast %cst_124 : f32 to vector<112x1xf32>
    %272 = arith.addf %268, %271 : vector<112x1xf32>
    %273 = math.rsqrt %272 : vector<112x1xf32>
    %274 = vector.broadcast %273 : vector<112x1xf32> to vector<112x32xf32>
    %275 = arith.mulf %270, %274 : vector<112x32xf32>
    %276 = vector.extract_strided_slice %118 {offsets = [0, 70], sizes = [1, 32], strides = [1, 1]} : vector<1x134xf32> to vector<1x32xf32>
    %277 = vector.broadcast %276 : vector<1x32xf32> to vector<112x32xf32>
    %278 = arith.mulf %275, %277 : vector<112x32xf32>
    %279 = vector.extract_strided_slice %118 {offsets = [0, 102], sizes = [1, 32], strides = [1, 1]} : vector<1x134xf32> to vector<1x32xf32>
    %280 = vector.broadcast %279 : vector<1x32xf32> to vector<112x32xf32>
    %281 = arith.addf %278, %280 : vector<112x32xf32>
    %c1_125 = arith.constant 1 : index
    %c0_126 = arith.constant 0 : index
    %c0_127 = arith.constant 0 : index
    %282 = vector.load %arg10[%c1_125, %c0_126, %c0_127] : memref<2x1x134xf32, #tpu.memory_space<vmem>>, vector<1x1x134xf32>
    %283 = vector.shape_cast %282 : vector<1x1x134xf32> to vector<1x134xf32>
    %284 = arith.truncf %281 : vector<112x32xf32> to vector<112x32xbf16>
    %c1_128 = arith.constant 1 : index
    %c0_129 = arith.constant 0 : index
    %c0_130 = arith.constant 0 : index
    %285 = vector.load %arg7[%c1_128, %c0_129, %c0_130] : memref<2x32x194xbf16, #tpu.memory_space<vmem>>, vector<1x32x194xbf16>
    %286 = vector.shape_cast %285 : vector<1x32x194xbf16> to vector<32x194xbf16>
    %cst_131 = arith.constant dense<0.000000e+00> : vector<112x194xf32>
    %287 = tpu.matmul %284, %286, %cst_131 {dimension_numbers = #tpu.dot_dimension_numbers<[1], [0], [0], [1], [0, 0, 1, 1], [], []>} : vector<112x32xbf16>, vector<32x194xbf16>, vector<112x194xf32> -> vector<112x194xf32>
    %288 = vector.extract_strided_slice %287 {offsets = [0, 0], sizes = [112, 128], strides = [1, 1]} : vector<112x194xf32> to vector<112x128xf32>
    %289 = vector.extract_strided_slice %287 {offsets = [0, 128], sizes = [112, 64], strides = [1, 1]} : vector<112x194xf32> to vector<112x64xf32>
    %290 = vector.extract_strided_slice %287 {offsets = [0, 192], sizes = [112, 2], strides = [1, 1]} : vector<112x194xf32> to vector<112x2xf32>
    %291 = vector.extract_strided_slice %283 {offsets = [0, 0], sizes = [1, 2], strides = [1, 1]} : vector<1x134xf32> to vector<1x2xf32>
    %292 = vector.broadcast %291 : vector<1x2xf32> to vector<112x2xf32>
    %293 = arith.addf %290, %292 : vector<112x2xf32>
    %cst_132 = arith.constant 0.000000e+00 : f32
    %294 = vector.broadcast %cst_132 : f32 to vector<112x2xf32>
    %295 = arith.maximumf %293, %294 : vector<112x2xf32>
    %296 = math.absf %293 : vector<112x2xf32>
    %cst_133 = arith.constant 0.000000e+00 : f32
    %297 = vector.broadcast %cst_133 : f32 to vector<112x2xf32>
    %298 = arith.subf %297, %296 : vector<112x2xf32>
    %299 = math.exp %298 : vector<112x2xf32>
    %cst_134 = arith.constant 1.000000e+00 : f32
    %300 = vector.broadcast %cst_134 : f32 to vector<112x2xf32>
    %301 = arith.addf %300, %299 : vector<112x2xf32>
    %302 = math.log %301 : vector<112x2xf32>
    %303 = arith.addf %295, %302 : vector<112x2xf32>
    %c1_135 = arith.constant 1 : index
    %c0_136 = arith.constant 0 : index
    %c0_137 = arith.constant 0 : index
    %304 = vector.load %arg8[%c1_135, %c0_136, %c0_137] : memref<2x4x128xf32, #tpu.memory_space<vmem>>, vector<1x4x128xf32>
    %305 = vector.shape_cast %304 : vector<1x4x128xf32> to vector<4x128xf32>
    %306 = vector.extract_strided_slice %305 {offsets = [3, 0], sizes = [1, 128], strides = [1, 1]} : vector<4x128xf32> to vector<1x128xf32>
    %307 = vector.broadcast %306 : vector<1x128xf32> to vector<112x128xf32>
    %308 = arith.mulf %288, %307 : vector<112x128xf32>
    %c1_i32_138 = arith.constant 1 : i32
    %309 = tpu.dynamic_rotate %288 by %c1_i32_138 dim 0 : vector<112x128xf32>, i32 -> vector<112x128xf32>
    %310 = vector.broadcast %86 : vector<112x1xf32> to vector<112x128xf32>
    %311 = arith.mulf %309, %310 : vector<112x128xf32>
    %312 = vector.extract_strided_slice %305 {offsets = [2, 0], sizes = [1, 128], strides = [1, 1]} : vector<4x128xf32> to vector<1x128xf32>
    %313 = vector.broadcast %312 : vector<1x128xf32> to vector<112x128xf32>
    %314 = arith.mulf %311, %313 : vector<112x128xf32>
    %315 = arith.addf %308, %314 : vector<112x128xf32>
    %c2_i32_139 = arith.constant 2 : i32
    %316 = tpu.dynamic_rotate %288 by %c2_i32_139 dim 0 : vector<112x128xf32>, i32 -> vector<112x128xf32>
    %317 = vector.broadcast %101 : vector<112x1xf32> to vector<112x128xf32>
    %318 = arith.mulf %316, %317 : vector<112x128xf32>
    %319 = vector.extract_strided_slice %305 {offsets = [1, 0], sizes = [1, 128], strides = [1, 1]} : vector<4x128xf32> to vector<1x128xf32>
    %320 = vector.broadcast %319 : vector<1x128xf32> to vector<112x128xf32>
    %321 = arith.mulf %318, %320 : vector<112x128xf32>
    %322 = arith.addf %315, %321 : vector<112x128xf32>
    %c3_i32_140 = arith.constant 3 : i32
    %323 = tpu.dynamic_rotate %288 by %c3_i32_140 dim 0 : vector<112x128xf32>, i32 -> vector<112x128xf32>
    %324 = vector.broadcast %116 : vector<112x1xf32> to vector<112x128xf32>
    %325 = arith.mulf %323, %324 : vector<112x128xf32>
    %326 = vector.extract_strided_slice %305 {offsets = [0, 0], sizes = [1, 128], strides = [1, 1]} : vector<4x128xf32> to vector<1x128xf32>
    %327 = vector.broadcast %326 : vector<1x128xf32> to vector<112x128xf32>
    %328 = arith.mulf %325, %327 : vector<112x128xf32>
    %329 = arith.addf %322, %328 : vector<112x128xf32>
    %c1_141 = arith.constant 1 : index
    %c0_142 = arith.constant 0 : index
    %c0_143 = arith.constant 0 : index
    %330 = vector.load %arg9[%c1_141, %c0_142, %c0_143] : memref<2x1x128xf32, #tpu.memory_space<vmem>>, vector<1x1x128xf32>
    %331 = vector.shape_cast %330 : vector<1x1x128xf32> to vector<1x128xf32>
    %332 = vector.broadcast %331 : vector<1x128xf32> to vector<112x128xf32>
    %333 = arith.addf %329, %332 : vector<112x128xf32>
    %cst_144 = arith.constant 0.000000e+00 : f32
    %334 = vector.broadcast %cst_144 : f32 to vector<112x128xf32>
    %335 = arith.subf %334, %333 : vector<112x128xf32>
    %336 = math.exp %335 : vector<112x128xf32>
    %cst_145 = arith.constant 1.000000e+00 : f32
    %337 = vector.broadcast %cst_145 : f32 to vector<112x128xf32>
    %338 = arith.addf %337, %336 : vector<112x128xf32>
    %cst_146 = arith.constant 1.000000e+00 : f32
    %339 = vector.broadcast %cst_146 : f32 to vector<112x128xf32>
    %340 = arith.divf %339, %338 : vector<112x128xf32>
    %341 = arith.mulf %333, %340 : vector<112x128xf32>
    %342 = vector.extract_strided_slice %341 {offsets = [0, 0], sizes = [112, 64], strides = [1, 1]} : vector<112x128xf32> to vector<112x64xf32>
    %343 = vector.extract_strided_slice %341 {offsets = [0, 64], sizes = [112, 16], strides = [1, 1]} : vector<112x128xf32> to vector<112x16xf32>
    %344 = vector.extract_strided_slice %341 {offsets = [0, 80], sizes = [112, 16], strides = [1, 1]} : vector<112x128xf32> to vector<112x16xf32>
    %cst_147 = arith.constant dense<0.000000e+00> : vector<112x112xf32>
    %345 = tpu.matmul %344, %343, %cst_147 {dimension_numbers = #tpu.dot_dimension_numbers<[1], [1], [0], [0], [0, 0, 1, 0], [], []>} : vector<112x16xf32>, vector<112x16xf32>, vector<112x112xf32> -> vector<112x112xf32>
    %cst_148 = arith.constant dense<0.000000e+00> : vector<112x2xf32>
    %346 = tpu.matmul %70, %303, %cst_148 {dimension_numbers = #tpu.dot_dimension_numbers<[1], [0], [0], [1], [0, 0, 1, 1], [], []>} : vector<112x112xf32>, vector<112x2xf32>, vector<112x2xf32> -> vector<112x2xf32>
    %cst_149 = arith.constant dense<0.000000e+00> : vector<2x112xf32>
    %347 = tpu.matmul %303, %70, %cst_149 {dimension_numbers = #tpu.dot_dimension_numbers<[0], [1], [1], [0], [0, 1, 1, 0], [], []>} : vector<112x2xf32>, vector<112x112xf32>, vector<2x112xf32> -> vector<2x112xf32>
    %348 = vector.extract_strided_slice %346 {offsets = [0, 0], sizes = [112, 1], strides = [1, 1]} : vector<112x2xf32> to vector<112x1xf32>
    %349 = vector.extract_strided_slice %347 {offsets = [0, 0], sizes = [1, 112], strides = [1, 1]} : vector<2x112xf32> to vector<1x112xf32>
    %350 = vector.broadcast %348 : vector<112x1xf32> to vector<112x112xf32>
    %351 = vector.broadcast %349 : vector<1x112xf32> to vector<112x112xf32>
    %352 = arith.subf %350, %351 : vector<112x112xf32>
    %353 = arith.mulf %352, %70 : vector<112x112xf32>
    %354 = vector.extract_strided_slice %283 {offsets = [0, 2], sizes = [1, 1], strides = [1, 1]} : vector<1x134xf32> to vector<1x1xf32>
    %355 = vector.broadcast %354 : vector<1x1xf32> to vector<112x112xf32>
    %356 = arith.mulf %355, %353 : vector<112x112xf32>
    %357 = math.exp %356 : vector<112x112xf32>
    %358 = arith.mulf %357, %70 : vector<112x112xf32>
    %359 = arith.mulf %345, %358 : vector<112x112xf32>
    %360 = vector.extract_strided_slice %342 {offsets = [0, 0], sizes = [112, 32], strides = [1, 1]} : vector<112x64xf32> to vector<112x32xf32>
    %361 = vector.extract_strided_slice %303 {offsets = [0, 0], sizes = [112, 1], strides = [1, 1]} : vector<112x2xf32> to vector<112x1xf32>
    %362 = vector.broadcast %361 : vector<112x1xf32> to vector<112x32xf32>
    %363 = arith.mulf %360, %362 : vector<112x32xf32>
    %cst_150 = arith.constant dense<0.000000e+00> : vector<112x32xf32>
    %364 = tpu.matmul %359, %363, %cst_150 {dimension_numbers = #tpu.dot_dimension_numbers<[1], [0], [0], [1], [0, 0, 1, 1], [], []>} : vector<112x112xf32>, vector<112x32xf32>, vector<112x32xf32> -> vector<112x32xf32>
    %365 = vector.extract_strided_slice %283 {offsets = [0, 4], sizes = [1, 1], strides = [1, 1]} : vector<1x134xf32> to vector<1x1xf32>
    %366 = vector.extract_strided_slice %342 {offsets = [0, 0], sizes = [112, 32], strides = [1, 1]} : vector<112x64xf32> to vector<112x32xf32>
    %367 = vector.broadcast %365 : vector<1x1xf32> to vector<112x32xf32>
    %368 = arith.mulf %367, %366 : vector<112x32xf32>
    %369 = arith.addf %364, %368 : vector<112x32xf32>
    %c0_151 = arith.constant 0 : index
    %c0_152 = arith.constant 0 : index
    %370 = vector.load %arg19[%c0_151, %c0_152] : memref<112x64xf32, #tpu.memory_space<vmem>>, vector<112x32xf32>
    tpu.vector_store %arg19[%c0_151, %c0_152], %369 {strides = array<i32>} : memref<112x64xf32, #tpu.memory_space<vmem>>, vector<112x32xf32>,
    %371 = vector.extract_strided_slice %346 {offsets = [0, 1], sizes = [112, 1], strides = [1, 1]} : vector<112x2xf32> to vector<112x1xf32>
    %372 = vector.extract_strided_slice %347 {offsets = [1, 0], sizes = [1, 112], strides = [1, 1]} : vector<2x112xf32> to vector<1x112xf32>
    %373 = vector.broadcast %371 : vector<112x1xf32> to vector<112x112xf32>
    %374 = vector.broadcast %372 : vector<1x112xf32> to vector<112x112xf32>
    %375 = arith.subf %373, %374 : vector<112x112xf32>
    %376 = arith.mulf %375, %70 : vector<112x112xf32>
    %377 = vector.extract_strided_slice %283 {offsets = [0, 3], sizes = [1, 1], strides = [1, 1]} : vector<1x134xf32> to vector<1x1xf32>
    %378 = vector.broadcast %377 : vector<1x1xf32> to vector<112x112xf32>
    %379 = arith.mulf %378, %376 : vector<112x112xf32>
    %380 = math.exp %379 : vector<112x112xf32>
    %381 = arith.mulf %380, %70 : vector<112x112xf32>
    %382 = arith.mulf %345, %381 : vector<112x112xf32>
    %383 = vector.extract_strided_slice %342 {offsets = [0, 32], sizes = [112, 32], strides = [1, 1]} : vector<112x64xf32> to vector<112x32xf32>
    %384 = vector.extract_strided_slice %303 {offsets = [0, 1], sizes = [112, 1], strides = [1, 1]} : vector<112x2xf32> to vector<112x1xf32>
    %385 = vector.broadcast %384 : vector<112x1xf32> to vector<112x32xf32>
    %386 = arith.mulf %383, %385 : vector<112x32xf32>
    %cst_153 = arith.constant dense<0.000000e+00> : vector<112x32xf32>
    %387 = tpu.matmul %382, %386, %cst_153 {dimension_numbers = #tpu.dot_dimension_numbers<[1], [0], [0], [1], [0, 0, 1, 1], [], []>} : vector<112x112xf32>, vector<112x32xf32>, vector<112x32xf32> -> vector<112x32xf32>
    %388 = vector.extract_strided_slice %283 {offsets = [0, 5], sizes = [1, 1], strides = [1, 1]} : vector<1x134xf32> to vector<1x1xf32>
    %389 = vector.extract_strided_slice %342 {offsets = [0, 32], sizes = [112, 32], strides = [1, 1]} : vector<112x64xf32> to vector<112x32xf32>
    %390 = vector.broadcast %388 : vector<1x1xf32> to vector<112x32xf32>
    %391 = arith.mulf %390, %389 : vector<112x32xf32>
    %392 = arith.addf %387, %391 : vector<112x32xf32>
    %c0_154 = arith.constant 0 : index
    %c32_155 = arith.constant 32 : index
    %393 = vector.load %arg19[%c0_154, %c32_155] : memref<112x64xf32, #tpu.memory_space<vmem>>, vector<112x32xf32>
    tpu.vector_store %arg19[%c0_154, %c32_155], %392 {strides = array<i32>} : memref<112x64xf32, #tpu.memory_space<vmem>>, vector<112x32xf32>,
    %c0_156 = arith.constant 0 : index
    %c0_157 = arith.constant 0 : index
    %394 = vector.load %arg19[%c0_156, %c0_157] : memref<112x64xf32, #tpu.memory_space<vmem>>, vector<112x64xf32>
    %cst_158 = arith.constant 0.000000e+00 : f32
    %395 = vector.broadcast %cst_158 : f32 to vector<112x64xf32>
    %396 = arith.subf %395, %289 : vector<112x64xf32>
    %397 = math.exp %396 : vector<112x64xf32>
    %cst_159 = arith.constant 1.000000e+00 : f32
    %398 = vector.broadcast %cst_159 : f32 to vector<112x64xf32>
    %399 = arith.addf %398, %397 : vector<112x64xf32>
    %cst_160 = arith.constant 1.000000e+00 : f32
    %400 = vector.broadcast %cst_160 : f32 to vector<112x64xf32>
    %401 = arith.divf %400, %399 : vector<112x64xf32>
    %402 = arith.mulf %289, %401 : vector<112x64xf32>
    %403 = arith.mulf %394, %402 : vector<112x64xf32>
    %404 = arith.mulf %403, %403 : vector<112x64xf32>
    %cst_161 = arith.constant dense<0.000000e+00> : vector<112xf32>
    %405 = vector.multi_reduction <add>, %404, %cst_161 [1] : vector<112x64xf32> to vector<112xf32>
    %406 = vector.shape_cast %405 : vector<112xf32> to vector<112x1xf32>
    %cst_162 = arith.constant 6.400000e+01 : f32
    %407 = vector.broadcast %cst_162 : f32 to vector<112x1xf32>
    %408 = arith.divf %406, %407 : vector<112x1xf32>
    %cst_163 = arith.constant 9.99999974E-6 : f32
    %409 = vector.broadcast %cst_163 : f32 to vector<112x1xf32>
    %410 = arith.addf %408, %409 : vector<112x1xf32>
    %411 = math.rsqrt %410 : vector<112x1xf32>
    %412 = vector.broadcast %411 : vector<112x1xf32> to vector<112x64xf32>
    %413 = arith.mulf %403, %412 : vector<112x64xf32>
    %414 = vector.extract_strided_slice %283 {offsets = [0, 6], sizes = [1, 64], strides = [1, 1]} : vector<1x134xf32> to vector<1x64xf32>
    %415 = vector.broadcast %414 : vector<1x64xf32> to vector<112x64xf32>
    %416 = arith.mulf %413, %415 : vector<112x64xf32>
    %417 = arith.truncf %416 : vector<112x64xf32> to vector<112x64xbf16>
    %c1_164 = arith.constant 1 : index
    %c0_165 = arith.constant 0 : index
    %c0_166 = arith.constant 0 : index
    %418 = vector.load %arg11[%c1_164, %c0_165, %c0_166] : memref<2x64x32xbf16, #tpu.memory_space<vmem>>, vector<1x64x32xbf16>
    %419 = vector.shape_cast %418 : vector<1x64x32xbf16> to vector<64x32xbf16>
    %cst_167 = arith.constant dense<0.000000e+00> : vector<112x32xf32>
    %420 = tpu.matmul %417, %419, %cst_167 {dimension_numbers = #tpu.dot_dimension_numbers<[1], [0], [0], [1], [0, 0, 1, 1], [], []>} : vector<112x64xbf16>, vector<64x32xbf16>, vector<112x32xf32> -> vector<112x32xf32>
    %cst_168 = arith.constant dense<0.000000e+00> : vector<112xf32>
    %421 = vector.multi_reduction <add>, %420, %cst_168 [1] : vector<112x32xf32> to vector<112xf32>
    %422 = vector.shape_cast %421 : vector<112xf32> to vector<112x1xf32>
    %cst_169 = arith.constant 3.200000e+01 : f32
    %423 = vector.broadcast %cst_169 : f32 to vector<112x1xf32>
    %424 = arith.divf %422, %423 : vector<112x1xf32>
    %425 = vector.broadcast %424 : vector<112x1xf32> to vector<112x32xf32>
    %426 = arith.subf %420, %425 : vector<112x32xf32>
    %427 = vector.broadcast %424 : vector<112x1xf32> to vector<112x32xf32>
    %428 = arith.subf %420, %427 : vector<112x32xf32>
    %429 = arith.mulf %426, %428 : vector<112x32xf32>
    %cst_170 = arith.constant dense<0.000000e+00> : vector<112xf32>
    %430 = vector.multi_reduction <add>, %429, %cst_170 [1] : vector<112x32xf32> to vector<112xf32>
    %431 = vector.shape_cast %430 : vector<112xf32> to vector<112x1xf32>
    %cst_171 = arith.constant 3.200000e+01 : f32
    %432 = vector.broadcast %cst_171 : f32 to vector<112x1xf32>
    %433 = arith.divf %431, %432 : vector<112x1xf32>
    %434 = vector.broadcast %424 : vector<112x1xf32> to vector<112x32xf32>
    %435 = arith.subf %420, %434 : vector<112x32xf32>
    %cst_172 = arith.constant 9.99999974E-6 : f32
    %436 = vector.broadcast %cst_172 : f32 to vector<112x1xf32>
    %437 = arith.addf %433, %436 : vector<112x1xf32>
    %438 = math.rsqrt %437 : vector<112x1xf32>
    %439 = vector.broadcast %438 : vector<112x1xf32> to vector<112x32xf32>
    %440 = arith.mulf %435, %439 : vector<112x32xf32>
    %441 = vector.extract_strided_slice %283 {offsets = [0, 70], sizes = [1, 32], strides = [1, 1]} : vector<1x134xf32> to vector<1x32xf32>
    %442 = vector.broadcast %441 : vector<1x32xf32> to vector<112x32xf32>
    %443 = arith.mulf %440, %442 : vector<112x32xf32>
    %444 = vector.extract_strided_slice %283 {offsets = [0, 102], sizes = [1, 32], strides = [1, 1]} : vector<1x134xf32> to vector<1x32xf32>
    %445 = vector.broadcast %444 : vector<1x32xf32> to vector<112x32xf32>
    %446 = arith.addf %443, %445 : vector<112x32xf32>
    %c0_173 = arith.constant 0 : index
    %c0_174 = arith.constant 0 : index
    %447 = vector.load %arg12[%c0_173, %c0_174] : memref<2x112xf32, #tpu.memory_space<vmem>>, vector<2x112xf32>
    %cst_175 = arith.constant dense<0.000000e+00> : vector<2x32xf32>
    %448 = tpu.matmul %447, %446, %cst_175 {dimension_numbers = #tpu.dot_dimension_numbers<[1], [0], [0], [1], [0, 0, 1, 1], [], []>} : vector<2x112xf32>, vector<112x32xf32>, vector<2x32xf32> -> vector<2x32xf32>
    %449 = arith.mulf %448, %448 : vector<2x32xf32>
    %cst_176 = arith.constant dense<0.000000e+00> : vector<2xf32>
    %450 = vector.multi_reduction <add>, %449, %cst_176 [1] : vector<2x32xf32> to vector<2xf32>
    %451 = vector.shape_cast %450 : vector<2xf32> to vector<2x1xf32>
    %cst_177 = arith.constant 9.99999996E-13 : f32
    %452 = vector.broadcast %cst_177 : f32 to vector<2x1xf32>
    %453 = arith.addf %451, %452 : vector<2x1xf32>
    %454 = math.rsqrt %453 : vector<2x1xf32>
    %455 = vector.broadcast %454 : vector<2x1xf32> to vector<2x32xf32>
    %456 = arith.mulf %448, %455 : vector<2x32xf32>
    %c0_178 = arith.constant 0 : index
    %c4_179 = arith.constant 4 : index
    %457 = vector.load %arg16[%c0_178, %c4_179] : memref<2x36xf32, #tpu.memory_space<vmem>>, vector<2x32xf32>
    tpu.vector_store %arg16[%c0_178, %c4_179], %456 {strides = array<i32>} : memref<2x36xf32, #tpu.memory_space<vmem>>, vector<2x32xf32>,
    %c0_180 = arith.constant 0 : index
    %c0_181 = arith.constant 0 : index
    %458 = vector.load %arg13[%c0_180, %c0_181] : memref<32x4xbf16, #tpu.memory_space<vmem>>, vector<32x4xbf16>
    %c0_182 = arith.constant 0 : index
    %c0_183 = arith.constant 0 : index
    %459 = vector.load %arg14[%c0_182, %c0_183] : memref<1x32xf32, #tpu.memory_space<vmem>>, vector<1x32xf32>
    %c0_184 = arith.constant 0 : index
    %c0_185 = arith.constant 0 : index
    %460 = vector.load %arg15[%c0_184, %c0_185] : memref<1x1xf32, #tpu.memory_space<vmem>>, vector<1x1xf32>
    %461 = vector.extract_strided_slice %446 {offsets = [0, 0], sizes = [56, 32], strides = [1, 1]} : vector<112x32xf32> to vector<56x32xf32>
    %462 = arith.truncf %461 : vector<56x32xf32> to vector<56x32xbf16>
    %cst_186 = arith.constant dense<0.000000e+00> : vector<4x56xf32>
    %463 = tpu.matmul %458, %462, %cst_186 {dimension_numbers = #tpu.dot_dimension_numbers<[0], [1], [1], [0], [0, 1, 1, 0], [], []>} : vector<32x4xbf16>, vector<56x32xbf16>, vector<4x56xf32> -> vector<4x56xf32>
    %cst_187 = arith.constant dense<0xFF800000> : vector<4xf32>
    %464 = vector.multi_reduction <maximumf>, %463, %cst_187 [1] : vector<4x56xf32> to vector<4xf32>
    %465 = vector.shape_cast %464 : vector<4xf32> to vector<4x1xf32>
    %466 = vector.broadcast %465 : vector<4x1xf32> to vector<4x56xf32>
    %467 = arith.subf %463, %466 : vector<4x56xf32>
    %468 = math.exp %467 : vector<4x56xf32>
    %cst_188 = arith.constant dense<0.000000e+00> : vector<4xf32>
    %469 = vector.multi_reduction <add>, %468, %cst_188 [1] : vector<4x56xf32> to vector<4xf32>
    %470 = vector.shape_cast %469 : vector<4xf32> to vector<4x1xf32>
    %471 = vector.broadcast %470 : vector<4x1xf32> to vector<4x56xf32>
    %472 = arith.divf %468, %471 : vector<4x56xf32>
    %c0_189 = arith.constant 0 : index
    %c0_190 = arith.constant 0 : index
    %c0_191 = arith.constant 0 : index
    %473 = vector.load %arg17[%c0_189, %c0_190, %c0_191] : memref<2x4x56xf32, #tpu.memory_space<vmem>>, vector<1x4x56xf32>
    %474 = vector.shape_cast %473 : vector<1x4x56xf32> to vector<4x56xf32>
    %475 = vector.shape_cast %472 : vector<4x56xf32> to vector<1x4x56xf32>
    tpu.vector_store %arg17[%c0_189, %c0_190, %c0_191], %475 {strides = array<i32>} : memref<2x4x56xf32, #tpu.memory_space<vmem>>, vector<1x4x56xf32>,
    %cst_192 = arith.constant dense<0.000000e+00> : vector<32x4xf32>
    %476 = tpu.matmul %461, %472, %cst_192 {dimension_numbers = #tpu.dot_dimension_numbers<[0], [1], [1], [0], [0, 1, 1, 0], [], []>} : vector<56x32xf32>, vector<4x56xf32>, vector<32x4xf32> -> vector<32x4xf32>
    %cst_193 = arith.constant dense<0.000000e+00> : vector<1x4xf32>
    %477 = tpu.matmul %459, %476, %cst_193 {dimension_numbers = #tpu.dot_dimension_numbers<[1], [0], [0], [1], [0, 0, 1, 1], [], []>} : vector<1x32xf32>, vector<32x4xf32>, vector<1x4xf32> -> vector<1x4xf32>
    %478 = vector.broadcast %460 : vector<1x1xf32> to vector<1x4xf32>
    %479 = arith.addf %477, %478 : vector<1x4xf32>
    %c0_194 = arith.constant 0 : index
    %c0_195 = arith.constant 0 : index
    %480 = vector.load %arg16[%c0_194, %c0_195] : memref<2x36xf32, #tpu.memory_space<vmem>>, vector<1x4xf32>
    tpu.vector_store %arg16[%c0_194, %c0_195], %479 {strides = array<i32>} : memref<2x36xf32, #tpu.memory_space<vmem>>, vector<1x4xf32>,
    %481 = vector.extract_strided_slice %446 {offsets = [56, 0], sizes = [56, 32], strides = [1, 1]} : vector<112x32xf32> to vector<56x32xf32>
    %482 = arith.truncf %481 : vector<56x32xf32> to vector<56x32xbf16>
    %cst_196 = arith.constant dense<0.000000e+00> : vector<4x56xf32>
    %483 = tpu.matmul %458, %482, %cst_196 {dimension_numbers = #tpu.dot_dimension_numbers<[0], [1], [1], [0], [0, 1, 1, 0], [], []>} : vector<32x4xbf16>, vector<56x32xbf16>, vector<4x56xf32> -> vector<4x56xf32>
    %cst_197 = arith.constant dense<0xFF800000> : vector<4xf32>
    %484 = vector.multi_reduction <maximumf>, %483, %cst_197 [1] : vector<4x56xf32> to vector<4xf32>
    %485 = vector.shape_cast %484 : vector<4xf32> to vector<4x1xf32>
    %486 = vector.broadcast %485 : vector<4x1xf32> to vector<4x56xf32>
    %487 = arith.subf %483, %486 : vector<4x56xf32>
    %488 = math.exp %487 : vector<4x56xf32>
    %cst_198 = arith.constant dense<0.000000e+00> : vector<4xf32>
    %489 = vector.multi_reduction <add>, %488, %cst_198 [1] : vector<4x56xf32> to vector<4xf32>
    %490 = vector.shape_cast %489 : vector<4xf32> to vector<4x1xf32>
    %491 = vector.broadcast %490 : vector<4x1xf32> to vector<4x56xf32>
    %492 = arith.divf %488, %491 : vector<4x56xf32>
    %c1_199 = arith.constant 1 : index
    %c0_200 = arith.constant 0 : index
    %c0_201 = arith.constant 0 : index
    %493 = vector.load %arg17[%c1_199, %c0_200, %c0_201] : memref<2x4x56xf32, #tpu.memory_space<vmem>>, vector<1x4x56xf32>
    %494 = vector.shape_cast %493 : vector<1x4x56xf32> to vector<4x56xf32>
    %495 = vector.shape_cast %492 : vector<4x56xf32> to vector<1x4x56xf32>
    tpu.vector_store %arg17[%c1_199, %c0_200, %c0_201], %495 {strides = array<i32>} : memref<2x4x56xf32, #tpu.memory_space<vmem>>, vector<1x4x56xf32>,
    %cst_202 = arith.constant dense<0.000000e+00> : vector<32x4xf32>
    %496 = tpu.matmul %481, %492, %cst_202 {dimension_numbers = #tpu.dot_dimension_numbers<[0], [1], [1], [0], [0, 1, 1, 0], [], []>} : vector<56x32xf32>, vector<4x56xf32>, vector<32x4xf32> -> vector<32x4xf32>
    %cst_203 = arith.constant dense<0.000000e+00> : vector<1x4xf32>
    %497 = tpu.matmul %459, %496, %cst_203 {dimension_numbers = #tpu.dot_dimension_numbers<[1], [0], [0], [1], [0, 0, 1, 1], [], []>} : vector<1x32xf32>, vector<32x4xf32>, vector<1x4xf32> -> vector<1x4xf32>
    %498 = vector.broadcast %460 : vector<1x1xf32> to vector<1x4xf32>
    %499 = arith.addf %497, %498 : vector<1x4xf32>
    %c1_204 = arith.constant 1 : index
    %c0_205 = arith.constant 0 : index
    %500 = vector.load %arg16[%c1_204, %c0_205] : memref<2x36xf32, #tpu.memory_space<vmem>>, vector<1x4xf32>
    tpu.vector_store %arg16[%c1_204, %c0_205], %499 {strides = array<i32>} : memref<2x36xf32, #tpu.memory_space<vmem>>, vector<1x4xf32>,
    return
  }
}

</mosaic_0001>

<llo_original>
// kernel: tile.13
$region0: #{tile.13}
  #allocation0 [shape = 's32[1]{0}', space=sflag, size = 0x4, scoped, tag = 'scoped memory for tile.13']
  %s0 = inlined_call_operand.vmem [shape: f32[16], index: 0, kind: input, shape index: {}]
  %s1 = inlined_call_operand.vmem [shape: f32[2,16], index: 1, kind: output, shape index: {}]
  // Predicated region
  $region2: #{tile.13} parent=0 // pred_check
    _
  $region3: #{tile.13} parent=0 // pred_check_branch
    %3 = sbr.rel (0) target = $region5
  $region4: #{tile.13} parent=0 // pred_region
    _
  $region5: #{tile.13} parent=0 // pred_fallthru
    _
  %v4 = vld [vmem:[%s0] ss:$0 sm:$0xff]
  %5 = vst [vmem:[%s1] sm:$0x3] %v4

// kernel: tile.14
$region0: #{tile.14}
  %s0 = inlined_call_operand.vmem [shape: f32[2,16], index: 0, kind: input, shape index: {}]
  %s1 = inlined_call_operand.vmem [shape: f32[32,1], index: 1, kind: output, shape index: {}]
  $region1: #{tile.14} parent=0
    #allocation0 [shape = 'u8[4096]{0}', space=vmem, size = 0x1000, scoped, tag = 'scoped mem for output reshape']
    #allocation1 [shape = 'u8[4096]{0}', space=vmem, size = 0x1000, scoped, tag = 'scoped mem for input reshape']
    %s3 = sshllo.u32 0, 2
    %v4 = vld [vmem:[%s0] sm:%s3]
    %5 = vst [vmem:[#allocation1] sm:%s3] %v4
    %v6 = vld [vmem:[#allocation1] sm:$0x1]
    %vm7 = vcmask 130048
    %8 = vst.msk [vmem:[#allocation0] sm:$0x1] %vm7, %v6
    %s9 = scalar_lea.vmem [#allocation1], 1
    %v10 = vld [vmem:[%s9] sm:$0x1]
    %11 = vrot.lane.b32.xlu0 %v10, 16
    %v12 = vpop.permute.xlu0 %11
    %vm13 = vcmask 261248
    %14 = vst.msk [vmem:[#allocation0] sm:$0x1] %vm13, %v12
    %s16 = sshllo.u32 0, 1
    %v18 = vld [vmem:[#allocation0] sm:%s16]
    %s19 = sshllo.u32 0, 1
    %20 = vst [vmem:[%s1] sm:%s19] %v18

// kernel: tile.18
$region0: #{tile.18}
  #allocation0 [shape = 's32[1]{0}', space=sflag, size = 0x4, scoped, tag = 'scoped memory for tile.18']
  %s0 = inlined_call_operand.vmem [shape: f32[8], index: 0, kind: input, shape index: {}]
  %s1 = inlined_call_operand.vmem [shape: f32[2,8], index: 1, kind: output, shape index: {}]
  // Predicated region
  $region2: #{tile.18} parent=0 // pred_check
    _
  $region3: #{tile.18} parent=0 // pred_check_branch
    %3 = sbr.rel (0) target = $region5
  $region4: #{tile.18} parent=0 // pred_region
    _
  $region5: #{tile.18} parent=0 // pred_fallthru
    _
  %v4 = vld [vmem:[%s0] ss:$0 sm:$0xff]
  %5 = vst [vmem:[%s1] sm:$0x3] %v4

// kernel: tile.19
$region0: #{tile.19}
  %s0 = inlined_call_operand.vmem [shape: f32[2,8], index: 0, kind: input, shape index: {}]
  %s1 = inlined_call_operand.vmem [shape: f32[16,1], index: 1, kind: output, shape index: {}]
  $region1: #{tile.19} parent=0
    #allocation0 [shape = 'u8[4096]{0}', space=vmem, size = 0x1000, scoped, tag = 'scoped mem for output reshape']
    #allocation1 [shape = 'u8[4096]{0}', space=vmem, size = 0x1000, scoped, tag = 'scoped mem for input reshape']
    %s3 = sshllo.u32 0, 2
    %v4 = vld [vmem:[%s0] sm:%s3]
    %5 = vst [vmem:[#allocation1] sm:%s3] %v4
    %v6 = vld [vmem:[#allocation1] sm:$0x1]
    %vm7 = vcmask 64512
    %8 = vst.msk [vmem:[#allocation0] sm:$0x1] %vm7, %v6
    %s9 = scalar_lea.vmem [#allocation1], 1
    %v10 = vld [vmem:[%s9] sm:$0x1]
    %11 = vrot.lane.b32.xlu0 %v10, 8
    %v12 = vpop.permute.xlu0 %11
    %vm13 = vcmask 130112
    %14 = vst.msk [vmem:[#allocation0] sm:$0x1] %vm13, %v12
    %s16 = sshllo.u32 0, 1
    %v18 = vld [vmem:[#allocation0] sm:%s16]
    %s19 = sshllo.u32 0, 1
    %20 = vst [vmem:[%s1] sm:%s19] %v18

// kernel: forward.1
$region0: #{forward.1}
  #allocation0 [shape = 'u32[]', space=smem, size = 0x4, offset = 0x4, fixed_abs, tag = 'smem constant byte address 0x4 - core index']
  #allocation1 [shape = 'u32[144,128]{1,0:T(1,128)}', space=vmem, size = 0x12000, scoped, tag = 'internal scratch']
  #allocation2 [shape = 'f32[112,32]{1,0:T(8,128)}', space=vmem, size = 0xe000, scoped, tag = 'scratch operand']
  #allocation3 [shape = 'f32[112,64]{1,0:T(8,128)}', space=vmem, size = 0xe000, scoped, tag = 'scratch operand']
  #allocation4 [shape = 'f32[1,1]{1,0:T(1,128)S(1)}', space=vmem, size = 0x200, scoped, tag = 'scoped memory for forward.1']
  %s0 = inlined_call_operand.vmem [shape: f32[64,24], index: 0, kind: input, shape index: {}]
  %s1 = inlined_call_operand.vmem [shape: f32[24,32], index: 1, kind: input, shape index: {}]
  %s2 = inlined_call_operand.vmem [shape: f32[5,32,32], index: 2, kind: input, shape index: {}]
  %s3 = inlined_call_operand.vmem [shape: f32[3,32,64], index: 3, kind: input, shape index: {}]
  %s4 = inlined_call_operand.vmem [shape: f32[5,16,32], index: 4, kind: input, shape index: {}]
  %s5 = inlined_call_operand.vmem [shape: f32[48,1], index: 5, kind: input, shape index: {}]
  %s6 = inlined_call_operand.vmem [shape: f32[112,112], index: 6, kind: input, shape index: {}]
  %s7 = inlined_call_operand.vmem [shape: bf16[2,32,194], index: 7, kind: input, shape index: {}]
  %s8 = inlined_call_operand.vmem [shape: f32[2,4,128], index: 8, kind: input, shape index: {}]
  %s9 = inlined_call_operand.vmem [shape: f32[2,1,128], index: 9, kind: input, shape index: {}]
  %s10 = inlined_call_operand.vmem [shape: f32[2,1,134], index: 10, kind: input, shape index: {}]
  %s11 = inlined_call_operand.vmem [shape: bf16[2,64,32], index: 11, kind: input, shape index: {}]
  %s12 = inlined_call_operand.vmem [shape: f32[2,112], index: 12, kind: input, shape index: {}]
  %s13 = inlined_call_operand.vmem [shape: bf16[32,4], index: 13, kind: input, shape index: {}]
  %s14 = inlined_call_operand.vmem [shape: f32[1,32], index: 14, kind: input, shape index: {}]
  %s15 = inlined_call_operand.<no memory space> [shape: f32[1,1], index: 15, kind: input, shape index: {}]
  %s16 = inlined_call_operand.vmem [shape: f32[2,36], index: 16, kind: output, shape index: {0}]
  %s17 = inlined_call_operand.hbm [shape: f32[2,4,56], index: 17, kind: output, shape index: {1}]
  %18 = xla_tuple %s16, %s17
  %s19 = sld [smem:[#allocation0]]
  $region82: #{forward.1} parent=0
    _
  %s21 = ssub.s32 1, %s19
  %s22 = scalar_select 0, %s21, %s19
  %v23 = vstv %s15
  %24 = vst [vmem:[#allocation4] sm:$0x1] %v23
  $region1: #{forward.1} parent=0
    #allocation5 [shape = 'u8[4096]{0}', space=vmem, size = 0x1000, scoped, tag = 'output window, operand 1, single buffered']
    #allocation6 [shape = 's32[1]{0}', space=sflag, size = 0x4, scoped, tag = 'scoped memory for forward.1']
    %25 = vsyncpa [#allocation6], 0
    // Predicated region
    $region2: #{forward.1} parent=1 // pred_check
      _
    $region3: #{forward.1} parent=1 // pred_check_branch
      %27 = sbr.rel (0) target = $region5
    $region4: #{forward.1} parent=1 // pred_region
      _
    $region5: #{forward.1} parent=1 // pred_fallthru
      _
    // Predicated region
    $region6: #{forward.1} parent=1 // pred_check
      _
    $region7: #{forward.1} parent=1 // pred_check_branch
      %29 = sbr.rel (0) target = $region9
    $region8: #{forward.1} parent=1 // pred_region
      _
    $region9: #{forward.1} parent=1 // pred_fallthru
      _
    // Predicated region
    $region10: #{forward.1} parent=1 // pred_check
      _
    $region11: #{forward.1} parent=1 // pred_check_branch
      %31 = sbr.rel (0) target = $region13
    $region12: #{forward.1} parent=1 // pred_region
      _
    $region13: #{forward.1} parent=1 // pred_fallthru
      _
    // Predicated region
    $region14: #{forward.1} parent=1 // pred_check
      _
    $region15: #{forward.1} parent=1 // pred_check_branch
      %33 = sbr.rel (0) target = $region17
    $region16: #{forward.1} parent=1 // pred_region
      _
    $region17: #{forward.1} parent=1 // pred_fallthru
      _
    // Predicated region
    $region18: #{forward.1} parent=1 // pred_check
      _
    $region19: #{forward.1} parent=1 // pred_check_branch
      %35 = sbr.rel (0) target = $region21
    $region20: #{forward.1} parent=1 // pred_region
      _
    $region21: #{forward.1} parent=1 // pred_fallthru
      _
    // Predicated region
    $region22: #{forward.1} parent=1 // pred_check
      _
    $region23: #{forward.1} parent=1 // pred_check_branch
      %37 = sbr.rel (0) target = $region25
    $region24: #{forward.1} parent=1 // pred_region
      _
    $region25: #{forward.1} parent=1 // pred_fallthru
      _
    // Predicated region
    $region26: #{forward.1} parent=1 // pred_check
      _
    $region27: #{forward.1} parent=1 // pred_check_branch
      %39 = sbr.rel (0) target = $region29
    $region28: #{forward.1} parent=1 // pred_region
      _
    $region29: #{forward.1} parent=1 // pred_fallthru
      _
    // Predicated region
    $region30: #{forward.1} parent=1 // pred_check
      _
    $region31: #{forward.1} parent=1 // pred_check_branch
      %41 = sbr.rel (0) target = $region33
    $region32: #{forward.1} parent=1 // pred_region
      _
    $region33: #{forward.1} parent=1 // pred_fallthru
      _
    // Predicated region
    $region34: #{forward.1} parent=1 // pred_check
      _
    $region35: #{forward.1} parent=1 // pred_check_branch
      %43 = sbr.rel (0) target = $region37
    $region36: #{forward.1} parent=1 // pred_region
      _
    $region37: #{forward.1} parent=1 // pred_fallthru
      _
    // Predicated region
    $region38: #{forward.1} parent=1 // pred_check
      _
    $region39: #{forward.1} parent=1 // pred_check_branch
      %45 = sbr.rel (0) target = $region41
    $region40: #{forward.1} parent=1 // pred_region
      _
    $region41: #{forward.1} parent=1 // pred_fallthru
      _
    // Predicated region
    $region42: #{forward.1} parent=1 // pred_check
      _
    $region43: #{forward.1} parent=1 // pred_check_branch
      %47 = sbr.rel (0) target = $region45
    $region44: #{forward.1} parent=1 // pred_region
      _
    $region45: #{forward.1} parent=1 // pred_fallthru
      _
    // Predicated region
    $region46: #{forward.1} parent=1 // pred_check
      _
    $region47: #{forward.1} parent=1 // pred_check_branch
      %49 = sbr.rel (0) target = $region49
    $region48: #{forward.1} parent=1 // pred_region
      _
    $region49: #{forward.1} parent=1 // pred_fallthru
      _
    // Predicated region
    $region50: #{forward.1} parent=1 // pred_check
      _
    $region51: #{forward.1} parent=1 // pred_check_branch
      %51 = sbr.rel (0) target = $region53
    $region52: #{forward.1} parent=1 // pred_region
      _
    $region53: #{forward.1} parent=1 // pred_fallthru
      _
    // Predicated region
    $region54: #{forward.1} parent=1 // pred_check
      _
    $region55: #{forward.1} parent=1 // pred_check_branch
      %53 = sbr.rel (0) target = $region57
    $region56: #{forward.1} parent=1 // pred_region
      _
    $region57: #{forward.1} parent=1 // pred_fallthru
      _
    // Predicated region
    $region58: #{forward.1} parent=1 // pred_check
      _
    $region59: #{forward.1} parent=1 // pred_check_branch
      %55 = sbr.rel (0) target = $region61
    $region60: #{forward.1} parent=1 // pred_region
      _
    $region61: #{forward.1} parent=1 // pred_fallthru
      _
    // Predicated region
    $region62: #{forward.1} parent=1 // pred_check
      _
    $region63: #{forward.1} parent=1 // pred_check_branch
      %57 = sbr.rel (0) target = $region65
    $region64: #{forward.1} parent=1 // pred_region
      _
    $region65: #{forward.1} parent=1 // pred_fallthru
      _
    %v59 = vld [vmem:[%s0] sm:$0xff]
    %v60 = vld [vmem:[%s0 + $0x8] sm:$0xff]
    %v61 = vld [vmem:[%s0 + $0x10] sm:$0xff]
    %v62 = vld [vmem:[%s0 + $0x18] sm:$0xff]
    %v63 = vld [vmem:[%s0 + $0x20] sm:$0xff]
    %v64 = vld [vmem:[%s0 + $0x28] sm:$0xff]
    %v65 = vld [vmem:[%s0 + $0x30] sm:$0xff]
    %v66 = vld [vmem:[%s0 + $0x38] sm:$0xff]
    %v67 = vld [vmem:[%s1] sm:$0xff]
    %v68 = vld [vmem:[%s1 + $0x8] sm:$0xff]
    %v69 = vld [vmem:[%s1 + $0x10] sm:$0xff]
    %vm70 = vcmask 195584
    %v72 = vsel %vm70, %v59, 0
    %v75 = vsel %vm70, %v60, 0
    %v78 = vsel %vm70, %v61, 0
    %v81 = vsel %vm70, %v62, 0
    %v84 = vsel %vm70, %v63, 0
    %v87 = vsel %vm70, %v64, 0
    %v90 = vsel %vm70, %v65, 0
    %v93 = vsel %vm70, %v66, 0
    %95 = vmatprep.subr.mxu0 0.0
    %96 = vmatpush1.msra.mxu0 %v67
    %97 = vmatprep.subr.mxu0 0.0
    %98 = vmatpush1.msra.mxu0 %v68
    %99 = vmatprep.subr.mxu0 0.0
    %100 = vmatpush1.msra.mxu0 %v69
    %101 = vmatprep.subr.mxu0 0.0
    %102 = vmatpush1.msra.mxu0 0.0
    %103 = vmatprep.subr.mxu0 0.0
    %104 = vmatpush1.msra.mxu0 0.0
    %105 = vmatprep.subr.mxu0 0.0
    %106 = vmatpush1.msra.mxu0 0.0
    %107 = vmatprep.subr.mxu0 0.0
    %108 = vmatpush1.msra.mxu0 0.0
    %109 = vmatprep.subr.mxu0 0.0
    %110 = vmatpush1.msra.mxu0 0.0
    %111 = vmatprep.subr.mxu0 0.0
    %112 = vmatpush1.msra.mxu0 0.0
    %113 = vmatprep.subr.mxu0 0.0
    %114 = vmatpush1.msra.mxu0 0.0
    %115 = vmatprep.subr.mxu0 0.0
    %116 = vmatpush1.msra.mxu0 0.0
    %117 = vmatprep.subr.mxu0 0.0
    %118 = vmatpush1.msra.mxu0 0.0
    %119 = vmatprep.subr.mxu0 0.0
    %120 = vmatpush1.msra.mxu0 0.0
    %121 = vmatprep.subr.mxu0 0.0
    %122 = vmatpush1.msra.mxu0 0.0
    %123 = vmatprep.subr.mxu0 0.0
    %124 = vmatpush1.msra.mxu0 0.0
    %125 = vmatprep.subr.mxu0 0.0
    %126 = vmatpush1.msra.mxu0 0.0
    %127 = vmatprep.subr.mxu0 0.0
    %128 = vmatpush1.msra.mxu0 0.0
    %129 = vmatprep.subr.mxu0 0.0
    %130 = vmatpush1.msra.mxu0 0.0
    %131 = vmatprep.subr.mxu0 0.0
    %132 = vmatpush1.msra.mxu0 0.0
    %133 = vmatprep.subr.mxu0 0.0
    %134 = vmatpush1.msra.mxu0 0.0
    %135 = vmatprep.subr.mxu0 0.0
    %136 = vmatpush1.msra.mxu0 0.0
    %137 = vmatprep.subr.mxu0 0.0
    %138 = vmatpush1.msra.mxu0 0.0
    %139 = vmatprep.subr.mxu0 0.0
    %140 = vmatpush1.msra.mxu0 0.0
    %141 = vmatprep.subr.mxu0 0.0
    %142 = vmatpush1.msra.mxu0 0.0
    %143 = vmatprep.subr.mxu0 0.0
    %144 = vmatpush1.msra.mxu0 0.0
    %145 = vmatprep.subr.mxu0 0.0
    %146 = vmatpush1.msra.mxu0 0.0
    %147 = vmatprep.subr.mxu0 0.0
    %148 = vmatpush1.msra.mxu0 0.0
    %149 = vmatprep.subr.mxu0 0.0
    %150 = vmatpush1.msra.mxu0 0.0
    %151 = vmatprep.subr.mxu0 0.0
    %152 = vmatpush1.msra.mxu0 0.0
    %153 = vmatprep.subr.mxu0 0.0
    %154 = vmatpush1.msra.mxu0 0.0
    %155 = vmatprep.subr.mxu0 0.0
    %156 = vmatpush1.msra.mxu0 0.0
    %157 = vmatprep.subr.mxu0 0.0
    %158 = vmatpush1.msra.mxu0 0.0
    %159 = vmatprep.mubr.f32.mxu0 0.0
    %160 = vmatmul.mubr.f32.gmra.mrb[0].mxu0 %v72
    %v161 = vpop.f32.mrb[0].mxu0
    %v162 = vadd.f32 0.0, %v161
    %v163 = vpop.f32.mrb[0].mxu0
    %164 = vmatprep.mubr.f32.mxu0 0.0
    %165 = vmatmul.mubr.f32.gmra.mrb[0].mxu0 %v75
    %v166 = vpop.f32.mrb[0].mxu0
    %v167 = vadd.f32 0.0, %v166
    %v168 = vpop.f32.mrb[0].mxu0
    %169 = vmatprep.mubr.f32.mxu0 0.0
    %170 = vmatmul.mubr.f32.gmra.mrb[0].mxu0 %v78
    %v171 = vpop.f32.mrb[0].mxu0
    %v172 = vadd.f32 0.0, %v171
    %v173 = vpop.f32.mrb[0].mxu0
    %174 = vmatprep.mubr.f32.mxu0 0.0
    %175 = vmatmul.mubr.f32.gmra.mrb[0].mxu0 %v81
    %v176 = vpop.f32.mrb[0].mxu0
    %v177 = vadd.f32 0.0, %v176
    %v178 = vpop.f32.mrb[0].mxu0
    %179 = vmatprep.mubr.f32.mxu0 0.0
    %180 = vmatmul.mubr.f32.gmra.mrb[0].mxu0 %v84
    %v181 = vpop.f32.mrb[0].mxu0
    %v182 = vadd.f32 0.0, %v181
    %v183 = vpop.f32.mrb[0].mxu0
    %184 = vmatprep.mubr.f32.mxu0 0.0
    %185 = vmatmul.mubr.f32.gmra.mrb[0].mxu0 %v87
    %v186 = vpop.f32.mrb[0].mxu0
    %v187 = vadd.f32 0.0, %v186
    %v188 = vpop.f32.mrb[0].mxu0
    %189 = vmatprep.mubr.f32.mxu0 0.0
    %190 = vmatmul.mubr.f32.gmra.mrb[0].mxu0 %v90
    %v191 = vpop.f32.mrb[0].mxu0
    %v192 = vadd.f32 0.0, %v191
    %v193 = vpop.f32.mrb[0].mxu0
    %194 = vmatprep.mubr.f32.mxu0 0.0
    %195 = vmatmul.mubr.f32.gmra.mrb[0].mxu0 %v93
    %v196 = vpop.f32.mrb[0].mxu0
    %v197 = vadd.f32 0.0, %v196
    %v198 = vpop.f32.mrb[0].mxu0
    %199 = vdwg.mxu0
    %v200 = vld [vmem:[%s5] sm:$0xff]
    %v201 = vld [vmem:[%s5 + $0x8] sm:$0xff]
    %v202 = vld [vmem:[%s5 + $0x10] sm:$0xff]
    %v203 = vld [vmem:[%s5 + $0x18] sm:$0xff]
    %s204 = scalar_lea.vmem %s2, 32
    %v205 = vld [vmem:[%s204] sm:$0xff]
    %v206 = vld [vmem:[%s204 + $0x8] sm:$0xff]
    %v207 = vld [vmem:[%s204 + $0x10] sm:$0xff]
    %v208 = vld [vmem:[%s204 + $0x18] sm:$0xff]
    %vm209 = vcmask 261120
    %v211 = vsel %vm209, %v162, 0
    %v214 = vsel %vm209, %v167, 0
    %v217 = vsel %vm209, %v172, 0
    %v220 = vsel %vm209, %v177, 0
    %v223 = vsel %vm209, %v182, 0
    %v226 = vsel %vm209, %v187, 0
    %v229 = vsel %vm209, %v192, 0
    %v232 = vsel %vm209, %v197, 0
    %234 = vmatprep.subr.mxu0 0.0
    %235 = vmatpush1.msra.mxu0 %v205
    %236 = vmatprep.subr.mxu0 0.0
    %237 = vmatpush1.msra.mxu0 %v206
    %238 = vmatprep.subr.mxu0 0.0
    %239 = vmatpush1.msra.mxu0 %v207
    %240 = vmatprep.subr.mxu0 0.0
    %241 = vmatpush1.msra.mxu0 %v208
    %242 = vmatprep.subr.mxu0 0.0
    %243 = vmatpush1.msra.mxu0 0.0
    %244 = vmatprep.subr.mxu0 0.0
    %245 = vmatpush1.msra.mxu0 0.0
    %246 = vmatprep.subr.mxu0 0.0
    %247 = vmatpush1.msra.mxu0 0.0
    %248 = vmatprep.subr.mxu0 0.0
    %249 = vmatpush1.msra.mxu0 0.0
    %250 = vmatprep.subr.mxu0 0.0
    %251 = vmatpush1.msra.mxu0 0.0
    %252 = vmatprep.subr.mxu0 0.0
    %253 = vmatpush1.msra.mxu0 0.0
    %254 = vmatprep.subr.mxu0 0.0
    %255 = vmatpush1.msra.mxu0 0.0
    %256 = vmatprep.subr.mxu0 0.0
    %257 = vmatpush1.msra.mxu0 0.0
    %258 = vmatprep.subr.mxu0 0.0
    %259 = vmatpush1.msra.mxu0 0.0
    %260 = vmatprep.subr.mxu0 0.0
    %261 = vmatpush1.msra.mxu0 0.0
    %262 = vmatprep.subr.mxu0 0.0
    %263 = vmatpush1.msra.mxu0 0.0
    %264 = vmatprep.subr.mxu0 0.0
    %265 = vmatpush1.msra.mxu0 0.0
    %266 = vmatprep.subr.mxu0 0.0
    %267 = vmatpush1.msra.mxu0 0.0
    %268 = vmatprep.subr.mxu0 0.0
    %269 = vmatpush1.msra.mxu0 0.0
    %270 = vmatprep.subr.mxu0 0.0
    %271 = vmatpush1.msra.mxu0 0.0
    %272 = vmatprep.subr.mxu0 0.0
    %273 = vmatpush1.msra.mxu0 0.0
    %274 = vmatprep.subr.mxu0 0.0
    %275 = vmatpush1.msra.mxu0 0.0
    %276 = vmatprep.subr.mxu0 0.0
    %277 = vmatpush1.msra.mxu0 0.0
    %278 = vmatprep.subr.mxu0 0.0
    %279 = vmatpush1.msra.mxu0 0.0
    %280 = vmatprep.subr.mxu0 0.0
    %281 = vmatpush1.msra.mxu0 0.0
    %282 = vmatprep.subr.mxu0 0.0
    %283 = vmatpush1.msra.mxu0 0.0
    %284 = vmatprep.subr.mxu0 0.0
    %285 = vmatpush1.msra.mxu0 0.0
    %286 = vmatprep.subr.mxu0 0.0
    %287 = vmatpush1.msra.mxu0 0.0
    %288 = vmatprep.subr.mxu0 0.0
    %289 = vmatpush1.msra.mxu0 0.0
    %290 = vmatprep.subr.mxu0 0.0
    %291 = vmatpush1.msra.mxu0 0.0
    %292 = vmatprep.subr.mxu0 0.0
    %293 = vmatpush1.msra.mxu0 0.0
    %294 = vmatprep.subr.mxu0 0.0
    %295 = vmatpush1.msra.mxu0 0.0
    %296 = vmatprep.subr.mxu0 0.0
    %297 = vmatpush1.msra.mxu0 0.0
    %298 = vmatprep.mubr.f32.mxu0 0.0
    %299 = vmatmul.mubr.f32.gmra.mrb[0].mxu0 %v211
    %v300 = vpop.f32.mrb[0].mxu0
    %v301 = vadd.f32 0.0, %v300
    %v302 = vpop.f32.mrb[0].mxu0
    %303 = vmatprep.mubr.f32.mxu0 0.0
    %304 = vmatmul.mubr.f32.gmra.mrb[0].mxu0 %v214
    %v305 = vpop.f32.mrb[0].mxu0
    %v306 = vadd.f32 0.0, %v305
    %v307 = vpop.f32.mrb[0].mxu0
    %308 = vmatprep.mubr.f32.mxu0 0.0
    %309 = vmatmul.mubr.f32.gmra.mrb[0].mxu0 %v217
    %v310 = vpop.f32.mrb[0].mxu0
    %v311 = vadd.f32 0.0, %v310
    %v312 = vpop.f32.mrb[0].mxu0
    %313 = vmatprep.mubr.f32.mxu0 0.0
    %314 = vmatmul.mubr.f32.gmra.mrb[0].mxu0 %v220
    %v315 = vpop.f32.mrb[0].mxu0
    %v316 = vadd.f32 0.0, %v315
    %v317 = vpop.f32.mrb[0].mxu0
    %318 = vmatprep.mubr.f32.mxu0 0.0
    %319 = vmatmul.mubr.f32.gmra.mrb[0].mxu0 %v223
    %v320 = vpop.f32.mrb[0].mxu0
    %v321 = vadd.f32 0.0, %v320
    %v322 = vpop.f32.mrb[0].mxu0
    %323 = vmatprep.mubr.f32.mxu0 0.0
    %324 = vmatmul.mubr.f32.gmra.mrb[0].mxu0 %v226
    %v325 = vpop.f32.mrb[0].mxu0
    %v326 = vadd.f32 0.0, %v325
    %v327 = vpop.f32.mrb[0].mxu0
    %328 = vmatprep.mubr.f32.mxu0 0.0
    %329 = vmatmul.mubr.f32.gmra.mrb[0].mxu0 %v229
    %v330 = vpop.f32.mrb[0].mxu0
    %v331 = vadd.f32 0.0, %v330
    %v332 = vpop.f32.mrb[0].mxu0
    %333 = vmatprep.mubr.f32.mxu0 0.0
    %334 = vmatmul.mubr.f32.gmra.mrb[0].mxu0 %v232
    %v335 = vpop.f32.mrb[0].mxu0
    %v336 = vadd.f32 0.0, %v335
    %v337 = vpop.f32.mrb[0].mxu0
    %338 = vdwg.mxu0
    %v339 = vld [vmem:[%s3] sm:$0xff]
    %v340 = vld [vmem:[%s3 + $0x8] sm:$0xff]
    %v341 = vld [vmem:[%s3 + $0x10] sm:$0xff]
    %v342 = vld [vmem:[%s3 + $0x18] sm:$0xff]
    %s343 = scalar_lea.vmem %s3, 32
    %v344 = vld [vmem:[%s343] sm:$0xff]
    %v345 = vld [vmem:[%s343 + $0x8] sm:$0xff]
    %v346 = vld [vmem:[%s343 + $0x10] sm:$0xff]
    %v347 = vld [vmem:[%s343 + $0x18] sm:$0xff]
    %vm348 = vcmask 523264
    %v350 = vsel %vm348, %v344, 0
    %v353 = vsel %vm348, %v345, 0
    %v356 = vsel %vm348, %v346, 0
    %v359 = vsel %vm348, %v347, 0
    %361 = vmatprep.subr.mxu0 0.0
    %362 = vmatpush1.msra.mxu0 %v162
    %363 = vmatprep.subr.mxu0 0.0
    %364 = vmatpush1.msra.mxu0 %v167
    %365 = vmatprep.subr.mxu0 0.0
    %366 = vmatpush1.msra.mxu0 %v172
    %367 = vmatprep.subr.mxu0 0.0
    %368 = vmatpush1.msra.mxu0 %v177
    %369 = vmatprep.subr.mxu0 0.0
    %370 = vmatpush1.msra.mxu0 %v182
    %371 = vmatprep.subr.mxu0 0.0
    %372 = vmatpush1.msra.mxu0 %v187
    %373 = vmatprep.subr.mxu0 0.0
    %374 = vmatpush1.msra.mxu0 %v192
    %375 = vmatprep.subr.mxu0 0.0
    %376 = vmatpush1.msra.mxu0 %v197
    %377 = vmatprep.subr.mxu0 0.0
    %378 = vmatpush1.msra.mxu0 0.0
    %379 = vmatprep.subr.mxu0 0.0
    %380 = vmatpush1.msra.mxu0 0.0
    %381 = vmatprep.subr.mxu0 0.0
    %382 = vmatpush1.msra.mxu0 0.0
    %383 = vmatprep.subr.mxu0 0.0
    %384 = vmatpush1.msra.mxu0 0.0
    %385 = vmatprep.subr.mxu0 0.0
    %386 = vmatpush1.msra.mxu0 0.0
    %387 = vmatprep.subr.mxu0 0.0
    %388 = vmatpush1.msra.mxu0 0.0
    %389 = vmatprep.subr.mxu0 0.0
    %390 = vmatpush1.msra.mxu0 0.0
    %391 = vmatprep.subr.mxu0 0.0
    %392 = vmatpush1.msra.mxu0 0.0
    %393 = vmatprep.subr.mxu0 0.0
    %394 = vmatpush1.msra.mxu0 0.0
    %395 = vmatprep.subr.mxu0 0.0
    %396 = vmatpush1.msra.mxu0 0.0
    %397 = vmatprep.subr.mxu0 0.0
    %398 = vmatpush1.msra.mxu0 0.0
    %399 = vmatprep.subr.mxu0 0.0
    %400 = vmatpush1.msra.mxu0 0.0
    %401 = vmatprep.subr.mxu0 0.0
    %402 = vmatpush1.msra.mxu0 0.0
    %403 = vmatprep.subr.mxu0 0.0
    %404 = vmatpush1.msra.mxu0 0.0
    %405 = vmatprep.subr.mxu0 0.0
    %406 = vmatpush1.msra.mxu0 0.0
    %407 = vmatprep.subr.mxu0 0.0
    %408 = vmatpush1.msra.mxu0 0.0
    %409 = vmatprep.subr.mxu0 0.0
    %410 = vmatpush1.msra.mxu0 0.0
    %411 = vmatprep.subr.mxu0 0.0
    %412 = vmatpush1.msra.mxu0 0.0
    %413 = vmatprep.subr.mxu0 0.0
    %414 = vmatpush1.msra.mxu0 0.0
    %415 = vmatprep.subr.mxu0 0.0
    %416 = vmatpush1.msra.mxu0 0.0
    %417 = vmatprep.subr.mxu0 0.0
    %418 = vmatpush1.msra.mxu0 0.0
    %419 = vmatprep.subr.mxu0 0.0
    %420 = vmatpush1.msra.mxu0 0.0
    %421 = vmatprep.subr.mxu0 0.0
    %422 = vmatpush1.msra.mxu0 0.0
    %423 = vmatprep.subr.mxu0 0.0
    %424 = vmatpush1.msra.mxu0 0.0
    %425 = vmatprep.mubr.f32.mxu0 0.0
    %426 = vmatmul.mubr.f32.gmra.mrb[0].mxu0 %v350
    %v427 = vpop.f32.mrb[0].mxu0
    %v428 = vadd.f32 0.0, %v427
    %v429 = vpop.f32.mrb[0].mxu0
    %430 = vmatprep.mubr.f32.mxu0 0.0
    %431 = vmatmul.mubr.f32.gmra.mrb[0].mxu0 %v353
    %v432 = vpop.f32.mrb[0].mxu0
    %v433 = vadd.f32 0.0, %v432
    %v434 = vpop.f32.mrb[0].mxu0
    %435 = vmatprep.mubr.f32.mxu0 0.0
    %436 = vmatmul.mubr.f32.gmra.mrb[0].mxu0 %v356
    %v437 = vpop.f32.mrb[0].mxu0
    %v438 = vadd.f32 0.0, %v437
    %v439 = vpop.f32.mrb[0].mxu0
    %440 = vmatprep.mubr.f32.mxu0 0.0
    %441 = vmatmul.mubr.f32.gmra.mrb[0].mxu0 %v359
    %v442 = vpop.f32.mrb[0].mxu0
    %v443 = vadd.f32 0.0, %v442
    %v444 = vpop.f32.mrb[0].mxu0
    %445 = vdwg.mxu0
    %v447 = vsel %vm348, %v339, 0
    %v450 = vsel %vm348, %v340, 0
    %v453 = vsel %vm348, %v341, 0
    %v456 = vsel %vm348, %v342, 0
    %458 = vmatprep.subr.mxu0 0.0
    %459 = vmatpush1.msra.mxu0 %v301
    %460 = vmatprep.subr.mxu0 0.0
    %461 = vmatpush1.msra.mxu0 %v306
    %462 = vmatprep.subr.mxu0 0.0
    %463 = vmatpush1.msra.mxu0 %v311
    %464 = vmatprep.subr.mxu0 0.0
    %465 = vmatpush1.msra.mxu0 %v316
    %466 = vmatprep.subr.mxu0 0.0
    %467 = vmatpush1.msra.mxu0 %v321
    %468 = vmatprep.subr.mxu0 0.0
    %469 = vmatpush1.msra.mxu0 %v326
    %470 = vmatprep.subr.mxu0 0.0
    %471 = vmatpush1.msra.mxu0 %v331
    %472 = vmatprep.subr.mxu0 0.0
    %473 = vmatpush1.msra.mxu0 %v336
    %474 = vmatprep.subr.mxu0 0.0
    %475 = vmatpush1.msra.mxu0 0.0
    %476 = vmatprep.subr.mxu0 0.0
    %477 = vmatpush1.msra.mxu0 0.0
    %478 = vmatprep.subr.mxu0 0.0
    %479 = vmatpush1.msra.mxu0 0.0
    %480 = vmatprep.subr.mxu0 0.0
    %481 = vmatpush1.msra.mxu0 0.0
    %482 = vmatprep.subr.mxu0 0.0
    %483 = vmatpush1.msra.mxu0 0.0
    %484 = vmatprep.subr.mxu0 0.0
    %485 = vmatpush1.msra.mxu0 0.0
    %486 = vmatprep.subr.mxu0 0.0
    %487 = vmatpush1.msra.mxu0 0.0
    %488 = vmatprep.subr.mxu0 0.0
    %489 = vmatpush1.msra.mxu0 0.0
    %490 = vmatprep.subr.mxu0 0.0
    %491 = vmatpush1.msra.mxu0 0.0
    %492 = vmatprep.subr.mxu0 0.0
    %493 = vmatpush1.msra.mxu0 0.0
    %494 = vmatprep.subr.mxu0 0.0
    %495 = vmatpush1.msra.mxu0 0.0
    %496 = vmatprep.subr.mxu0 0.0
    %497 = vmatpush1.msra.mxu0 0.0
    %498 = vmatprep.subr.mxu0 0.0
    %499 = vmatpush1.msra.mxu0 0.0
    %500 = vmatprep.subr.mxu0 0.0
    %501 = vmatpush1.msra.mxu0 0.0
    %502 = vmatprep.subr.mxu0 0.0
    %503 = vmatpush1.msra.mxu0 0.0
    %504 = vmatprep.subr.mxu0 0.0
    %505 = vmatpush1.msra.mxu0 0.0
    %506 = vmatprep.subr.mxu0 0.0
    %507 = vmatpush1.msra.mxu0 0.0
    %508 = vmatprep.subr.mxu0 0.0
    %509 = vmatpush1.msra.mxu0 0.0
    %510 = vmatprep.subr.mxu0 0.0
    %511 = vmatpush1.msra.mxu0 0.0
    %512 = vmatprep.subr.mxu0 0.0
    %513 = vmatpush1.msra.mxu0 0.0
    %514 = vmatprep.subr.mxu0 0.0
    %515 = vmatpush1.msra.mxu0 0.0
    %516 = vmatprep.subr.mxu0 0.0
    %517 = vmatpush1.msra.mxu0 0.0
    %518 = vmatprep.subr.mxu0 0.0
    %519 = vmatpush1.msra.mxu0 0.0
    %520 = vmatprep.subr.mxu0 0.0
    %521 = vmatpush1.msra.mxu0 0.0
    %522 = vmatprep.mubr.f32.mxu0 0.0
    %523 = vmatmul.mubr.f32.gmra.mrb[0].mxu0 %v447
    %v524 = vpop.f32.mrb[0].mxu0
    %v525 = vadd.f32 %v428, %v524
    %v526 = vpop.f32.mrb[0].mxu0
    %527 = vmatprep.mubr.f32.mxu0 0.0
    %528 = vmatmul.mubr.f32.gmra.mrb[0].mxu0 %v450
    %v529 = vpop.f32.mrb[0].mxu0
    %v530 = vadd.f32 %v433, %v529
    %v531 = vpop.f32.mrb[0].mxu0
    %532 = vmatprep.mubr.f32.mxu0 0.0
    %533 = vmatmul.mubr.f32.gmra.mrb[0].mxu0 %v453
    %v534 = vpop.f32.mrb[0].mxu0
    %v535 = vadd.f32 %v438, %v534
    %v536 = vpop.f32.mrb[0].mxu0
    %537 = vmatprep.mubr.f32.mxu0 0.0
    %538 = vmatmul.mubr.f32.gmra.mrb[0].mxu0 %v456
    %v539 = vpop.f32.mrb[0].mxu0
    %v540 = vadd.f32 %v443, %v539
    %v541 = vpop.f32.mrb[0].mxu0
    %542 = vdwg.mxu0
    %s543 = scalar_lea.vmem %s2, 96
    %v544 = vld [vmem:[%s543] sm:$0xff]
    %v545 = vld [vmem:[%s543 + $0x8] sm:$0xff]
    %v546 = vld [vmem:[%s543 + $0x10] sm:$0xff]
    %v547 = vld [vmem:[%s543 + $0x18] sm:$0xff]
    %548 = vmatprep.subr.mxu0 0.0
    %549 = vmatpush1.msra.mxu0 %v544
    %550 = vmatprep.subr.mxu0 0.0
    %551 = vmatpush1.msra.mxu0 %v545
    %552 = vmatprep.subr.mxu0 0.0
    %553 = vmatpush1.msra.mxu0 %v546
    %554 = vmatprep.subr.mxu0 0.0
    %555 = vmatpush1.msra.mxu0 %v547
    %556 = vmatprep.subr.mxu0 0.0
    %557 = vmatpush1.msra.mxu0 0.0
    %558 = vmatprep.subr.mxu0 0.0
    %559 = vmatpush1.msra.mxu0 0.0
    %560 = vmatprep.subr.mxu0 0.0
    %561 = vmatpush1.msra.mxu0 0.0
    %562 = vmatprep.subr.mxu0 0.0
    %563 = vmatpush1.msra.mxu0 0.0
    %564 = vmatprep.subr.mxu0 0.0
    %565 = vmatpush1.msra.mxu0 0.0
    %566 = vmatprep.subr.mxu0 0.0
    %567 = vmatpush1.msra.mxu0 0.0
    %568 = vmatprep.subr.mxu0 0.0
    %569 = vmatpush1.msra.mxu0 0.0
    %570 = vmatprep.subr.mxu0 0.0
    %571 = vmatpush1.msra.mxu0 0.0
    %572 = vmatprep.subr.mxu0 0.0
    %573 = vmatpush1.msra.mxu0 0.0
    %574 = vmatprep.subr.mxu0 0.0
    %575 = vmatpush1.msra.mxu0 0.0
    %576 = vmatprep.subr.mxu0 0.0
    %577 = vmatpush1.msra.mxu0 0.0
    %578 = vmatprep.subr.mxu0 0.0
    %579 = vmatpush1.msra.mxu0 0.0
    %580 = vmatprep.subr.mxu0 0.0
    %581 = vmatpush1.msra.mxu0 0.0
    %582 = vmatprep.subr.mxu0 0.0
    %583 = vmatpush1.msra.mxu0 0.0
    %584 = vmatprep.subr.mxu0 0.0
    %585 = vmatpush1.msra.mxu0 0.0
    %586 = vmatprep.subr.mxu0 0.0
    %587 = vmatpush1.msra.mxu0 0.0
    %588 = vmatprep.subr.mxu0 0.0
    %589 = vmatpush1.msra.mxu0 0.0
    %590 = vmatprep.subr.mxu0 0.0
    %591 = vmatpush1.msra.mxu0 0.0
    %592 = vmatprep.subr.mxu0 0.0
    %593 = vmatpush1.msra.mxu0 0.0
    %594 = vmatprep.subr.mxu0 0.0
    %595 = vmatpush1.msra.mxu0 0.0
    %596 = vmatprep.subr.mxu0 0.0
    %597 = vmatpush1.msra.mxu0 0.0
    %598 = vmatprep.subr.mxu0 0.0
    %599 = vmatpush1.msra.mxu0 0.0
    %600 = vmatprep.subr.mxu0 0.0
    %601 = vmatpush1.msra.mxu0 0.0
    %602 = vmatprep.subr.mxu0 0.0
    %603 = vmatpush1.msra.mxu0 0.0
    %604 = vmatprep.subr.mxu0 0.0
    %605 = vmatpush1.msra.mxu0 0.0
    %606 = vmatprep.subr.mxu0 0.0
    %607 = vmatpush1.msra.mxu0 0.0
    %608 = vmatprep.subr.mxu0 0.0
    %609 = vmatpush1.msra.mxu0 0.0
    %610 = vmatprep.subr.mxu0 0.0
    %611 = vmatpush1.msra.mxu0 0.0
    %612 = vmatprep.mubr.f32.mxu0 0.0
    %613 = vmatmul.mubr.f32.gmra.mrb[0].mxu0 %v211
    %v614 = vpop.f32.mrb[0].mxu0
    %v615 = vadd.f32 0.0, %v614
    %v616 = vpop.f32.mrb[0].mxu0
    %617 = vmatprep.mubr.f32.mxu0 0.0
    %618 = vmatmul.mubr.f32.gmra.mrb[0].mxu0 %v214
    %v619 = vpop.f32.mrb[0].mxu0
    %v620 = vadd.f32 0.0, %v619
    %v621 = vpop.f32.mrb[0].mxu0
    %622 = vmatprep.mubr.f32.mxu0 0.0
    %623 = vmatmul.mubr.f32.gmra.mrb[0].mxu0 %v217
    %v624 = vpop.f32.mrb[0].mxu0
    %v625 = vadd.f32 0.0, %v624
    %v626 = vpop.f32.mrb[0].mxu0
    %627 = vmatprep.mubr.f32.mxu0 0.0
    %628 = vmatmul.mubr.f32.gmra.mrb[0].mxu0 %v220
    %v629 = vpop.f32.mrb[0].mxu0
    %v630 = vadd.f32 0.0, %v629
    %v631 = vpop.f32.mrb[0].mxu0
    %632 = vmatprep.mubr.f32.mxu0 0.0
    %633 = vmatmul.mubr.f32.gmra.mrb[0].mxu0 %v223
    %v634 = vpop.f32.mrb[0].mxu0
    %v635 = vadd.f32 0.0, %v634
    %v636 = vpop.f32.mrb[0].mxu0
    %637 = vmatprep.mubr.f32.mxu0 0.0
    %638 = vmatmul.mubr.f32.gmra.mrb[0].mxu0 %v226
    %v639 = vpop.f32.mrb[0].mxu0
    %v640 = vadd.f32 0.0, %v639
    %v641 = vpop.f32.mrb[0].mxu0
    %642 = vmatprep.mubr.f32.mxu0 0.0
    %643 = vmatmul.mubr.f32.gmra.mrb[0].mxu0 %v229
    %v644 = vpop.f32.mrb[0].mxu0
    %v645 = vadd.f32 0.0, %v644
    %v646 = vpop.f32.mrb[0].mxu0
    %647 = vmatprep.mubr.f32.mxu0 0.0
    %648 = vmatmul.mubr.f32.gmra.mrb[0].mxu0 %v232
    %v649 = vpop.f32.mrb[0].mxu0
    %v650 = vadd.f32 0.0, %v649
    %v651 = vpop.f32.mrb[0].mxu0
    %652 = vdwg.mxu0
    %s653 = scalar_lea.vmem %s3, 64
    %v654 = vld [vmem:[%s653] sm:$0xff]
    %v655 = vld [vmem:[%s653 + $0x8] sm:$0xff]
    %v656 = vld [vmem:[%s653 + $0x10] sm:$0xff]
    %v657 = vld [vmem:[%s653 + $0x18] sm:$0xff]
    %v659 = vsel %vm348, %v654, 0
    %v662 = vsel %vm348, %v655, 0
    %v665 = vsel %vm348, %v656, 0
    %v668 = vsel %vm348, %v657, 0
    %670 = vmatprep.subr.mxu0 0.0
    %671 = vmatpush1.msra.mxu0 %v615
    %672 = vmatprep.subr.mxu0 0.0
    %673 = vmatpush1.msra.mxu0 %v620
    %674 = vmatprep.subr.mxu0 0.0
    %675 = vmatpush1.msra.mxu0 %v625
    %676 = vmatprep.subr.mxu0 0.0
    %677 = vmatpush1.msra.mxu0 %v630
    %678 = vmatprep.subr.mxu0 0.0
    %679 = vmatpush1.msra.mxu0 %v635
    %680 = vmatprep.subr.mxu0 0.0
    %681 = vmatpush1.msra.mxu0 %v640
    %682 = vmatprep.subr.mxu0 0.0
    %683 = vmatpush1.msra.mxu0 %v645
    %684 = vmatprep.subr.mxu0 0.0
    %685 = vmatpush1.msra.mxu0 %v650
    %686 = vmatprep.subr.mxu0 0.0
    %687 = vmatpush1.msra.mxu0 0.0
    %688 = vmatprep.subr.mxu0 0.0
    %689 = vmatpush1.msra.mxu0 0.0
    %690 = vmatprep.subr.mxu0 0.0
    %691 = vmatpush1.msra.mxu0 0.0
    %692 = vmatprep.subr.mxu0 0.0
    %693 = vmatpush1.msra.mxu0 0.0
    %694 = vmatprep.subr.mxu0 0.0
    %695 = vmatpush1.msra.mxu0 0.0
    %696 = vmatprep.subr.mxu0 0.0
    %697 = vmatpush1.msra.mxu0 0.0
    %698 = vmatprep.subr.mxu0 0.0
    %699 = vmatpush1.msra.mxu0 0.0
    %700 = vmatprep.subr.mxu0 0.0
    %701 = vmatpush1.msra.mxu0 0.0
    %702 = vmatprep.subr.mxu0 0.0
    %703 = vmatpush1.msra.mxu0 0.0
    %704 = vmatprep.subr.mxu0 0.0
    %705 = vmatpush1.msra.mxu0 0.0
    %706 = vmatprep.subr.mxu0 0.0
    %707 = vmatpush1.msra.mxu0 0.0
    %708 = vmatprep.subr.mxu0 0.0
    %709 = vmatpush1.msra.mxu0 0.0
    %710 = vmatprep.subr.mxu0 0.0
    %711 = vmatpush1.msra.mxu0 0.0
    %712 = vmatprep.subr.mxu0 0.0
    %713 = vmatpush1.msra.mxu0 0.0
    %714 = vmatprep.subr.mxu0 0.0
    %715 = vmatpush1.msra.mxu0 0.0
    %716 = vmatprep.subr.mxu0 0.0
    %717 = vmatpush1.msra.mxu0 0.0
    %718 = vmatprep.subr.mxu0 0.0
    %719 = vmatpush1.msra.mxu0 0.0
    %720 = vmatprep.subr.mxu0 0.0
    %721 = vmatpush1.msra.mxu0 0.0
    %722 = vmatprep.subr.mxu0 0.0
    %723 = vmatpush1.msra.mxu0 0.0
    %724 = vmatprep.subr.mxu0 0.0
    %725 = vmatpush1.msra.mxu0 0.0
    %726 = vmatprep.subr.mxu0 0.0
    %727 = vmatpush1.msra.mxu0 0.0
    %728 = vmatprep.subr.mxu0 0.0
    %729 = vmatpush1.msra.mxu0 0.0
    %730 = vmatprep.subr.mxu0 0.0
    %731 = vmatpush1.msra.mxu0 0.0
    %732 = vmatprep.subr.mxu0 0.0
    %733 = vmatpush1.msra.mxu0 0.0
    %734 = vmatprep.mubr.f32.mxu0 0.0
    %735 = vmatmul.mubr.f32.gmra.mrb[0].mxu0 %v659
    %v736 = vpop.f32.mrb[0].mxu0
    %v737 = vadd.f32 0.0, %v736
    %v738 = vpop.f32.mrb[0].mxu0
    %739 = vmatprep.mubr.f32.mxu0 0.0
    %740 = vmatmul.mubr.f32.gmra.mrb[0].mxu0 %v662
    %v741 = vpop.f32.mrb[0].mxu0
    %v742 = vadd.f32 0.0, %v741
    %v743 = vpop.f32.mrb[0].mxu0
    %744 = vmatprep.mubr.f32.mxu0 0.0
    %745 = vmatmul.mubr.f32.gmra.mrb[0].mxu0 %v665
    %v746 = vpop.f32.mrb[0].mxu0
    %v747 = vadd.f32 0.0, %v746
    %v748 = vpop.f32.mrb[0].mxu0
    %749 = vmatprep.mubr.f32.mxu0 0.0
    %750 = vmatmul.mubr.f32.gmra.mrb[0].mxu0 %v668
    %v751 = vpop.f32.mrb[0].mxu0
    %v752 = vadd.f32 0.0, %v751
    %v753 = vpop.f32.mrb[0].mxu0
    %754 = vdwg.mxu0
    %v755 = vadd.f32 %v525, %v737
    %v756 = vadd.f32 %v530, %v742
    %v757 = vadd.f32 %v535, %v747
    %v758 = vadd.f32 %v540, %v752
    %760 = vset.pattern.permute.xlu0 0
    %761 = vperm.xlu0 %760, %v200
    %v762 = vpop.permute.xlu0 %761
    %765 = vset.pattern.permute.xlu0 0
    %766 = vperm.xlu0 %765, %v201
    %v767 = vpop.permute.xlu0 %766
    %770 = vset.pattern.permute.xlu0 0
    %771 = vperm.xlu0 %770, %v202
    %v772 = vpop.permute.xlu0 %771
    %775 = vset.pattern.permute.xlu0 0
    %776 = vperm.xlu0 %775, %v203
    %v777 = vpop.permute.xlu0 %776
    %v779 = vadd.f32 %v755, %v762
    %v780 = vadd.f32 %v756, %v767
    %v781 = vadd.f32 %v757, %v772
    %v782 = vadd.f32 %v758, %v777
    %v783 = vld [vmem:[%s5 + $0x20] sm:$0xff]
    %v784 = vld [vmem:[%s5 + $0x28] sm:$0xff]
    %v785 = vld [vmem:[%s2] sm:$0xff]
    %v786 = vld [vmem:[%s2 + $0x8] sm:$0xff]
    %v787 = vld [vmem:[%s2 + $0x10] sm:$0xff]
    %v788 = vld [vmem:[%s2 + $0x18] sm:$0xff]
    %v790 = vsel %vm209, %v779, 0
    %v793 = vsel %vm209, %v780, 0
    %v796 = vsel %vm209, %v781, 0
    %v799 = vsel %vm209, %v782, 0
    %801 = vmatprep.subr.mxu0 0.0
    %802 = vmatpush1.msra.mxu0 %v785
    %803 = vmatprep.subr.mxu0 0.0
    %804 = vmatpush1.msra.mxu0 %v786
    %805 = vmatprep.subr.mxu0 0.0
    %806 = vmatpush1.msra.mxu0 %v787
    %807 = vmatprep.subr.mxu0 0.0
    %808 = vmatpush1.msra.mxu0 %v788
    %809 = vmatprep.subr.mxu0 0.0
    %810 = vmatpush1.msra.mxu0 0.0
    %811 = vmatprep.subr.mxu0 0.0
    %812 = vmatpush1.msra.mxu0 0.0
    %813 = vmatprep.subr.mxu0 0.0
    %814 = vmatpush1.msra.mxu0 0.0
    %815 = vmatprep.subr.mxu0 0.0
    %816 = vmatpush1.msra.mxu0 0.0
    %817 = vmatprep.subr.mxu0 0.0
    %818 = vmatpush1.msra.mxu0 0.0
    %819 = vmatprep.subr.mxu0 0.0
    %820 = vmatpush1.msra.mxu0 0.0
    %821 = vmatprep.subr.mxu0 0.0
    %822 = vmatpush1.msra.mxu0 0.0
    %823 = vmatprep.subr.mxu0 0.0
    %824 = vmatpush1.msra.mxu0 0.0
    %825 = vmatprep.subr.mxu0 0.0
    %826 = vmatpush1.msra.mxu0 0.0
    %827 = vmatprep.subr.mxu0 0.0
    %828 = vmatpush1.msra.mxu0 0.0
    %829 = vmatprep.subr.mxu0 0.0
    %830 = vmatpush1.msra.mxu0 0.0
    %831 = vmatprep.subr.mxu0 0.0
    %832 = vmatpush1.msra.mxu0 0.0
    %833 = vmatprep.subr.mxu0 0.0
    %834 = vmatpush1.msra.mxu0 0.0
    %835 = vmatprep.subr.mxu0 0.0
    %836 = vmatpush1.msra.mxu0 0.0
    %837 = vmatprep.subr.mxu0 0.0
    %838 = vmatpush1.msra.mxu0 0.0
    %839 = vmatprep.subr.mxu0 0.0
    %840 = vmatpush1.msra.mxu0 0.0
    %841 = vmatprep.subr.mxu0 0.0
    %842 = vmatpush1.msra.mxu0 0.0
    %843 = vmatprep.subr.mxu0 0.0
    %844 = vmatpush1.msra.mxu0 0.0
    %845 = vmatprep.subr.mxu0 0.0
    %846 = vmatpush1.msra.mxu0 0.0
    %847 = vmatprep.subr.mxu0 0.0
    %848 = vmatpush1.msra.mxu0 0.0
    %849 = vmatprep.subr.mxu0 0.0
    %850 = vmatpush1.msra.mxu0 0.0
    %851 = vmatprep.subr.mxu0 0.0
    %852 = vmatpush1.msra.mxu0 0.0
    %853 = vmatprep.subr.mxu0 0.0
    %854 = vmatpush1.msra.mxu0 0.0
    %855 = vmatprep.subr.mxu0 0.0
    %856 = vmatpush1.msra.mxu0 0.0
    %857 = vmatprep.subr.mxu0 0.0
    %858 = vmatpush1.msra.mxu0 0.0
    %859 = vmatprep.subr.mxu0 0.0
    %860 = vmatpush1.msra.mxu0 0.0
    %861 = vmatprep.subr.mxu0 0.0
    %862 = vmatpush1.msra.mxu0 0.0
    %863 = vmatprep.subr.mxu0 0.0
    %864 = vmatpush1.msra.mxu0 0.0
    %865 = vmatprep.mubr.f32.mxu0 0.0
    %866 = vmatmul.mubr.f32.gmra.mrb[0].mxu0 %v790
    %v867 = vpop.f32.mrb[0].mxu0
    %v868 = vadd.f32 0.0, %v867
    %v869 = vpop.f32.mrb[0].mxu0
    %870 = vmatprep.mubr.f32.mxu0 0.0
    %871 = vmatmul.mubr.f32.gmra.mrb[0].mxu0 %v793
    %v872 = vpop.f32.mrb[0].mxu0
    %v873 = vadd.f32 0.0, %v872
    %v874 = vpop.f32.mrb[0].mxu0
    %875 = vmatprep.mubr.f32.mxu0 0.0
    %876 = vmatmul.mubr.f32.gmra.mrb[0].mxu0 %v796
    %v877 = vpop.f32.mrb[0].mxu0
    %v878 = vadd.f32 0.0, %v877
    %v879 = vpop.f32.mrb[0].mxu0
    %880 = vmatprep.mubr.f32.mxu0 0.0
    %881 = vmatmul.mubr.f32.gmra.mrb[0].mxu0 %v799
    %v882 = vpop.f32.mrb[0].mxu0
    %v883 = vadd.f32 0.0, %v882
    %v884 = vpop.f32.mrb[0].mxu0
    %885 = vdwg.mxu0
    %v886 = vld [vmem:[%s4] sm:$0xff]
    %v887 = vld [vmem:[%s4 + $0x8] sm:$0xff]
    %888 = vmatprep.subr.mxu0 0.0
    %889 = vmatpush1.msra.mxu0 %v205
    %890 = vmatprep.subr.mxu0 0.0
    %891 = vmatpush1.msra.mxu0 %v206
    %892 = vmatprep.subr.mxu0 0.0
    %893 = vmatpush1.msra.mxu0 %v207
    %894 = vmatprep.subr.mxu0 0.0
    %895 = vmatpush1.msra.mxu0 %v208
    %896 = vmatprep.subr.mxu0 0.0
    %897 = vmatpush1.msra.mxu0 0.0
    %898 = vmatprep.subr.mxu0 0.0
    %899 = vmatpush1.msra.mxu0 0.0
    %900 = vmatprep.subr.mxu0 0.0
    %901 = vmatpush1.msra.mxu0 0.0
    %902 = vmatprep.subr.mxu0 0.0
    %903 = vmatpush1.msra.mxu0 0.0
    %904 = vmatprep.subr.mxu0 0.0
    %905 = vmatpush1.msra.mxu0 0.0
    %906 = vmatprep.subr.mxu0 0.0
    %907 = vmatpush1.msra.mxu0 0.0
    %908 = vmatprep.subr.mxu0 0.0
    %909 = vmatpush1.msra.mxu0 0.0
    %910 = vmatprep.subr.mxu0 0.0
    %911 = vmatpush1.msra.mxu0 0.0
    %912 = vmatprep.subr.mxu0 0.0
    %913 = vmatpush1.msra.mxu0 0.0
    %914 = vmatprep.subr.mxu0 0.0
    %915 = vmatpush1.msra.mxu0 0.0
    %916 = vmatprep.subr.mxu0 0.0
    %917 = vmatpush1.msra.mxu0 0.0
    %918 = vmatprep.subr.mxu0 0.0
    %919 = vmatpush1.msra.mxu0 0.0
    %920 = vmatprep.subr.mxu0 0.0
    %921 = vmatpush1.msra.mxu0 0.0
    %922 = vmatprep.subr.mxu0 0.0
    %923 = vmatpush1.msra.mxu0 0.0
    %924 = vmatprep.subr.mxu0 0.0
    %925 = vmatpush1.msra.mxu0 0.0
    %926 = vmatprep.subr.mxu0 0.0
    %927 = vmatpush1.msra.mxu0 0.0
    %928 = vmatprep.subr.mxu0 0.0
    %929 = vmatpush1.msra.mxu0 0.0
    %930 = vmatprep.subr.mxu0 0.0
    %931 = vmatpush1.msra.mxu0 0.0
    %932 = vmatprep.subr.mxu0 0.0
    %933 = vmatpush1.msra.mxu0 0.0
    %934 = vmatprep.subr.mxu0 0.0
    %935 = vmatpush1.msra.mxu0 0.0
    %936 = vmatprep.subr.mxu0 0.0
    %937 = vmatpush1.msra.mxu0 0.0
    %938 = vmatprep.subr.mxu0 0.0
    %939 = vmatpush1.msra.mxu0 0.0
    %940 = vmatprep.subr.mxu0 0.0
    %941 = vmatpush1.msra.mxu0 0.0
    %942 = vmatprep.subr.mxu0 0.0
    %943 = vmatpush1.msra.mxu0 0.0
    %944 = vmatprep.subr.mxu0 0.0
    %945 = vmatpush1.msra.mxu0 0.0
    %946 = vmatprep.subr.mxu0 0.0
    %947 = vmatpush1.msra.mxu0 0.0
    %948 = vmatprep.subr.mxu0 0.0
    %949 = vmatpush1.msra.mxu0 0.0
    %950 = vmatprep.subr.mxu0 0.0
    %951 = vmatpush1.msra.mxu0 0.0
    %952 = vmatprep.mubr.f32.mxu0 0.0
    %953 = vmatmul.mubr.f32.gmra.mrb[0].mxu0 %v790
    %v954 = vpop.f32.mrb[0].mxu0
    %v955 = vadd.f32 0.0, %v954
    %v956 = vpop.f32.mrb[0].mxu0
    %957 = vmatprep.mubr.f32.mxu0 0.0
    %958 = vmatmul.mubr.f32.gmra.mrb[0].mxu0 %v793
    %v959 = vpop.f32.mrb[0].mxu0
    %v960 = vadd.f32 0.0, %v959
    %v961 = vpop.f32.mrb[0].mxu0
    %962 = vmatprep.mubr.f32.mxu0 0.0
    %963 = vmatmul.mubr.f32.gmra.mrb[0].mxu0 %v796
    %v964 = vpop.f32.mrb[0].mxu0
    %v965 = vadd.f32 0.0, %v964
    %v966 = vpop.f32.mrb[0].mxu0
    %967 = vmatprep.mubr.f32.mxu0 0.0
    %968 = vmatmul.mubr.f32.gmra.mrb[0].mxu0 %v799
    %v969 = vpop.f32.mrb[0].mxu0
    %v970 = vadd.f32 0.0, %v969
    %v971 = vpop.f32.mrb[0].mxu0
    %972 = vdwg.mxu0
    %s973 = scalar_lea.vmem %s4, 16
    %v974 = vld [vmem:[%s973] sm:$0xff]
    %v975 = vld [vmem:[%s973 + $0x8] sm:$0xff]
    %v977 = vsel %vm209, %v974, 0
    %v980 = vsel %vm209, %v975, 0
    %982 = vmatprep.subr.mxu0 0.0
    %983 = vmatpush1.msra.mxu0 %v955
    %984 = vmatprep.subr.mxu0 0.0
    %985 = vmatpush1.msra.mxu0 %v960
    %986 = vmatprep.subr.mxu0 0.0
    %987 = vmatpush1.msra.mxu0 %v965
    %988 = vmatprep.subr.mxu0 0.0
    %989 = vmatpush1.msra.mxu0 %v970
    %990 = vmatprep.subr.mxu0 0.0
    %991 = vmatpush1.msra.mxu0 0.0
    %992 = vmatprep.subr.mxu0 0.0
    %993 = vmatpush1.msra.mxu0 0.0
    %994 = vmatprep.subr.mxu0 0.0
    %995 = vmatpush1.msra.mxu0 0.0
    %996 = vmatprep.subr.mxu0 0.0
    %997 = vmatpush1.msra.mxu0 0.0
    %998 = vmatprep.subr.mxu0 0.0
    %999 = vmatpush1.msra.mxu0 0.0
    %1000 = vmatprep.subr.mxu0 0.0
    %1001 = vmatpush1.msra.mxu0 0.0
    %1002 = vmatprep.subr.mxu0 0.0
    %1003 = vmatpush1.msra.mxu0 0.0
    %1004 = vmatprep.subr.mxu0 0.0
    %1005 = vmatpush1.msra.mxu0 0.0
    %1006 = vmatprep.subr.mxu0 0.0
    %1007 = vmatpush1.msra.mxu0 0.0
    %1008 = vmatprep.subr.mxu0 0.0
    %1009 = vmatpush1.msra.mxu0 0.0
    %1010 = vmatprep.subr.mxu0 0.0
    %1011 = vmatpush1.msra.mxu0 0.0
    %1012 = vmatprep.subr.mxu0 0.0
    %1013 = vmatpush1.msra.mxu0 0.0
    %1014 = vmatprep.subr.mxu0 0.0
    %1015 = vmatpush1.msra.mxu0 0.0
    %1016 = vmatprep.subr.mxu0 0.0
    %1017 = vmatpush1.msra.mxu0 0.0
    %1018 = vmatprep.subr.mxu0 0.0
    %1019 = vmatpush1.msra.mxu0 0.0
    %1020 = vmatprep.subr.mxu0 0.0
    %1021 = vmatpush1.msra.mxu0 0.0
    %1022 = vmatprep.subr.mxu0 0.0
    %1023 = vmatpush1.msra.mxu0 0.0
    %1024 = vmatprep.subr.mxu0 0.0
    %1025 = vmatpush1.msra.mxu0 0.0
    %1026 = vmatprep.subr.mxu0 0.0
    %1027 = vmatpush1.msra.mxu0 0.0
    %1028 = vmatprep.subr.mxu0 0.0
    %1029 = vmatpush1.msra.mxu0 0.0
    %1030 = vmatprep.subr.mxu0 0.0
    %1031 = vmatpush1.msra.mxu0 0.0
    %1032 = vmatprep.subr.mxu0 0.0
    %1033 = vmatpush1.msra.mxu0 0.0
    %1034 = vmatprep.subr.mxu0 0.0
    %1035 = vmatpush1.msra.mxu0 0.0
    %1036 = vmatprep.subr.mxu0 0.0
    %1037 = vmatpush1.msra.mxu0 0.0
    %1038 = vmatprep.subr.mxu0 0.0
    %1039 = vmatpush1.msra.mxu0 0.0
    %1040 = vmatprep.subr.mxu0 0.0
    %1041 = vmatpush1.msra.mxu0 0.0
    %1042 = vmatprep.subr.mxu0 0.0
    %1043 = vmatpush1.msra.mxu0 0.0
    %1044 = vmatprep.subr.mxu0 0.0
    %1045 = vmatpush1.msra.mxu0 0.0
    %1046 = vmatprep.mubr.f32.mxu0 0.0
    %1047 = vmatmul.mubr.f32.gmra.mrb[0].mxu0 %v977
    %v1048 = vpop.f32.mrb[0].mxu0
    %v1049 = vadd.f32 0.0, %v1048
    %v1050 = vpop.f32.mrb[0].mxu0
    %1051 = vmatprep.mubr.f32.mxu0 0.0
    %1052 = vmatmul.mubr.f32.gmra.mrb[0].mxu0 %v980
    %v1053 = vpop.f32.mrb[0].mxu0
    %v1054 = vadd.f32 0.0, %v1053
    %v1055 = vpop.f32.mrb[0].mxu0
    %1056 = vdwg.mxu0
    %v1058 = vsel %vm209, %v886, 0
    %v1061 = vsel %vm209, %v887, 0
    %1063 = vmatprep.subr.mxu0 0.0
    %1064 = vmatpush1.msra.mxu0 %v868
    %1065 = vmatprep.subr.mxu0 0.0
    %1066 = vmatpush1.msra.mxu0 %v873
    %1067 = vmatprep.subr.mxu0 0.0
    %1068 = vmatpush1.msra.mxu0 %v878
    %1069 = vmatprep.subr.mxu0 0.0
    %1070 = vmatpush1.msra.mxu0 %v883
    %1071 = vmatprep.subr.mxu0 0.0
    %1072 = vmatpush1.msra.mxu0 0.0
    %1073 = vmatprep.subr.mxu0 0.0
    %1074 = vmatpush1.msra.mxu0 0.0
    %1075 = vmatprep.subr.mxu0 0.0
    %1076 = vmatpush1.msra.mxu0 0.0
    %1077 = vmatprep.subr.mxu0 0.0
    %1078 = vmatpush1.msra.mxu0 0.0
    %1079 = vmatprep.subr.mxu0 0.0
    %1080 = vmatpush1.msra.mxu0 0.0
    %1081 = vmatprep.subr.mxu0 0.0
    %1082 = vmatpush1.msra.mxu0 0.0
    %1083 = vmatprep.subr.mxu0 0.0
    %1084 = vmatpush1.msra.mxu0 0.0
    %1085 = vmatprep.subr.mxu0 0.0
    %1086 = vmatpush1.msra.mxu0 0.0
    %1087 = vmatprep.subr.mxu0 0.0
    %1088 = vmatpush1.msra.mxu0 0.0
    %1089 = vmatprep.subr.mxu0 0.0
    %1090 = vmatpush1.msra.mxu0 0.0
    %1091 = vmatprep.subr.mxu0 0.0
    %1092 = vmatpush1.msra.mxu0 0.0
    %1093 = vmatprep.subr.mxu0 0.0
    %1094 = vmatpush1.msra.mxu0 0.0
    %1095 = vmatprep.subr.mxu0 0.0
    %1096 = vmatpush1.msra.mxu0 0.0
    %1097 = vmatprep.subr.mxu0 0.0
    %1098 = vmatpush1.msra.mxu0 0.0
    %1099 = vmatprep.subr.mxu0 0.0
    %1100 = vmatpush1.msra.mxu0 0.0
    %1101 = vmatprep.subr.mxu0 0.0
    %1102 = vmatpush1.msra.mxu0 0.0
    %1103 = vmatprep.subr.mxu0 0.0
    %1104 = vmatpush1.msra.mxu0 0.0
    %1105 = vmatprep.subr.mxu0 0.0
    %1106 = vmatpush1.msra.mxu0 0.0
    %1107 = vmatprep.subr.mxu0 0.0
    %1108 = vmatpush1.msra.mxu0 0.0
    %1109 = vmatprep.subr.mxu0 0.0
    %1110 = vmatpush1.msra.mxu0 0.0
    %1111 = vmatprep.subr.mxu0 0.0
    %1112 = vmatpush1.msra.mxu0 0.0
    %1113 = vmatprep.subr.mxu0 0.0
    %1114 = vmatpush1.msra.mxu0 0.0
    %1115 = vmatprep.subr.mxu0 0.0
    %1116 = vmatpush1.msra.mxu0 0.0
    %1117 = vmatprep.subr.mxu0 0.0
    %1118 = vmatpush1.msra.mxu0 0.0
    %1119 = vmatprep.subr.mxu0 0.0
    %1120 = vmatpush1.msra.mxu0 0.0
    %1121 = vmatprep.subr.mxu0 0.0
    %1122 = vmatpush1.msra.mxu0 0.0
    %1123 = vmatprep.subr.mxu0 0.0
    %1124 = vmatpush1.msra.mxu0 0.0
    %1125 = vmatprep.subr.mxu0 0.0
    %1126 = vmatpush1.msra.mxu0 0.0
    %1127 = vmatprep.mubr.f32.mxu0 0.0
    %1128 = vmatmul.mubr.f32.gmra.mrb[0].mxu0 %v1058
    %v1129 = vpop.f32.mrb[0].mxu0
    %v1130 = vadd.f32 %v1049, %v1129
    %v1131 = vpop.f32.mrb[0].mxu0
    %1132 = vmatprep.mubr.f32.mxu0 0.0
    %1133 = vmatmul.mubr.f32.gmra.mrb[0].mxu0 %v1061
    %v1134 = vpop.f32.mrb[0].mxu0
    %v1135 = vadd.f32 %v1054, %v1134
    %v1136 = vpop.f32.mrb[0].mxu0
    %1137 = vdwg.mxu0
    %s1138 = scalar_lea.vmem %s4, 32
    %v1139 = vld [vmem:[%s1138] sm:$0xff]
    %v1140 = vld [vmem:[%s1138 + $0x8] sm:$0xff]
    %v1142 = vsel %vm209, %v1139, 0
    %v1145 = vsel %vm209, %v1140, 0
    %1147 = vmatprep.subr.mxu0 0.0
    %1148 = vmatpush1.msra.mxu0 %v779
    %1149 = vmatprep.subr.mxu0 0.0
    %1150 = vmatpush1.msra.mxu0 %v780
    %1151 = vmatprep.subr.mxu0 0.0
    %1152 = vmatpush1.msra.mxu0 %v781
    %1153 = vmatprep.subr.mxu0 0.0
    %1154 = vmatpush1.msra.mxu0 %v782
    %1155 = vmatprep.subr.mxu0 0.0
    %1156 = vmatpush1.msra.mxu0 0.0
    %1157 = vmatprep.subr.mxu0 0.0
    %1158 = vmatpush1.msra.mxu0 0.0
    %1159 = vmatprep.subr.mxu0 0.0
    %1160 = vmatpush1.msra.mxu0 0.0
    %1161 = vmatprep.subr.mxu0 0.0
    %1162 = vmatpush1.msra.mxu0 0.0
    %1163 = vmatprep.subr.mxu0 0.0
    %1164 = vmatpush1.msra.mxu0 0.0
    %1165 = vmatprep.subr.mxu0 0.0
    %1166 = vmatpush1.msra.mxu0 0.0
    %1167 = vmatprep.subr.mxu0 0.0
    %1168 = vmatpush1.msra.mxu0 0.0
    %1169 = vmatprep.subr.mxu0 0.0
    %1170 = vmatpush1.msra.mxu0 0.0
    %1171 = vmatprep.subr.mxu0 0.0
    %1172 = vmatpush1.msra.mxu0 0.0
    %1173 = vmatprep.subr.mxu0 0.0
    %1174 = vmatpush1.msra.mxu0 0.0
    %1175 = vmatprep.subr.mxu0 0.0
    %1176 = vmatpush1.msra.mxu0 0.0
    %1177 = vmatprep.subr.mxu0 0.0
    %1178 = vmatpush1.msra.mxu0 0.0
    %1179 = vmatprep.subr.mxu0 0.0
    %1180 = vmatpush1.msra.mxu0 0.0
    %1181 = vmatprep.subr.mxu0 0.0
    %1182 = vmatpush1.msra.mxu0 0.0
    %1183 = vmatprep.subr.mxu0 0.0
    %1184 = vmatpush1.msra.mxu0 0.0
    %1185 = vmatprep.subr.mxu0 0.0
    %1186 = vmatpush1.msra.mxu0 0.0
    %1187 = vmatprep.subr.mxu0 0.0
    %1188 = vmatpush1.msra.mxu0 0.0
    %1189 = vmatprep.subr.mxu0 0.0
    %1190 = vmatpush1.msra.mxu0 0.0
    %1191 = vmatprep.subr.mxu0 0.0
    %1192 = vmatpush1.msra.mxu0 0.0
    %1193 = vmatprep.subr.mxu0 0.0
    %1194 = vmatpush1.msra.mxu0 0.0
    %1195 = vmatprep.subr.mxu0 0.0
    %1196 = vmatpush1.msra.mxu0 0.0
    %1197 = vmatprep.subr.mxu0 0.0
    %1198 = vmatpush1.msra.mxu0 0.0
    %1199 = vmatprep.subr.mxu0 0.0
    %1200 = vmatpush1.msra.mxu0 0.0
    %1201 = vmatprep.subr.mxu0 0.0
    %1202 = vmatpush1.msra.mxu0 0.0
    %1203 = vmatprep.subr.mxu0 0.0
    %1204 = vmatpush1.msra.mxu0 0.0
    %1205 = vmatprep.subr.mxu0 0.0
    %1206 = vmatpush1.msra.mxu0 0.0
    %1207 = vmatprep.subr.mxu0 0.0
    %1208 = vmatpush1.msra.mxu0 0.0
    %1209 = vmatprep.subr.mxu0 0.0
    %1210 = vmatpush1.msra.mxu0 0.0
    %1211 = vmatprep.mubr.f32.mxu0 0.0
    %1212 = vmatmul.mubr.f32.gmra.mrb[0].mxu0 %v1142
    %v1213 = vpop.f32.mrb[0].mxu0
    %v1214 = vadd.f32 0.0, %v1213
    %v1215 = vpop.f32.mrb[0].mxu0
    %1216 = vmatprep.mubr.f32.mxu0 0.0
    %1217 = vmatmul.mubr.f32.gmra.mrb[0].mxu0 %v1145
    %v1218 = vpop.f32.mrb[0].mxu0
    %v1219 = vadd.f32 0.0, %v1218
    %v1220 = vpop.f32.mrb[0].mxu0
    %1221 = vdwg.mxu0
    %v1222 = vadd.f32 %v1130, %v1214
    %v1223 = vadd.f32 %v1135, %v1219
    %1224 = vmatprep.subr.mxu0 0.0
    %1225 = vmatpush1.msra.mxu0 %v544
    %1226 = vmatprep.subr.mxu0 0.0
    %1227 = vmatpush1.msra.mxu0 %v545
    %1228 = vmatprep.subr.mxu0 0.0
    %1229 = vmatpush1.msra.mxu0 %v546
    %1230 = vmatprep.subr.mxu0 0.0
    %1231 = vmatpush1.msra.mxu0 %v547
    %1232 = vmatprep.subr.mxu0 0.0
    %1233 = vmatpush1.msra.mxu0 0.0
    %1234 = vmatprep.subr.mxu0 0.0
    %1235 = vmatpush1.msra.mxu0 0.0
    %1236 = vmatprep.subr.mxu0 0.0
    %1237 = vmatpush1.msra.mxu0 0.0
    %1238 = vmatprep.subr.mxu0 0.0
    %1239 = vmatpush1.msra.mxu0 0.0
    %1240 = vmatprep.subr.mxu0 0.0
    %1241 = vmatpush1.msra.mxu0 0.0
    %1242 = vmatprep.subr.mxu0 0.0
    %1243 = vmatpush1.msra.mxu0 0.0
    %1244 = vmatprep.subr.mxu0 0.0
    %1245 = vmatpush1.msra.mxu0 0.0
    %1246 = vmatprep.subr.mxu0 0.0
    %1247 = vmatpush1.msra.mxu0 0.0
    %1248 = vmatprep.subr.mxu0 0.0
    %1249 = vmatpush1.msra.mxu0 0.0
    %1250 = vmatprep.subr.mxu0 0.0
    %1251 = vmatpush1.msra.mxu0 0.0
    %1252 = vmatprep.subr.mxu0 0.0
    %1253 = vmatpush1.msra.mxu0 0.0
    %1254 = vmatprep.subr.mxu0 0.0
    %1255 = vmatpush1.msra.mxu0 0.0
    %1256 = vmatprep.subr.mxu0 0.0
    %1257 = vmatpush1.msra.mxu0 0.0
    %1258 = vmatprep.subr.mxu0 0.0
    %1259 = vmatpush1.msra.mxu0 0.0
    %1260 = vmatprep.subr.mxu0 0.0
    %1261 = vmatpush1.msra.mxu0 0.0
    %1262 = vmatprep.subr.mxu0 0.0
    %1263 = vmatpush1.msra.mxu0 0.0
    %1264 = vmatprep.subr.mxu0 0.0
    %1265 = vmatpush1.msra.mxu0 0.0
    %1266 = vmatprep.subr.mxu0 0.0
    %1267 = vmatpush1.msra.mxu0 0.0
    %1268 = vmatprep.subr.mxu0 0.0
    %1269 = vmatpush1.msra.mxu0 0.0
    %1270 = vmatprep.subr.mxu0 0.0
    %1271 = vmatpush1.msra.mxu0 0.0
    %1272 = vmatprep.subr.mxu0 0.0
    %1273 = vmatpush1.msra.mxu0 0.0
    %1274 = vmatprep.subr.mxu0 0.0
    %1275 = vmatpush1.msra.mxu0 0.0
    %1276 = vmatprep.subr.mxu0 0.0
    %1277 = vmatpush1.msra.mxu0 0.0
    %1278 = vmatprep.subr.mxu0 0.0
    %1279 = vmatpush1.msra.mxu0 0.0
    %1280 = vmatprep.subr.mxu0 0.0
    %1281 = vmatpush1.msra.mxu0 0.0
    %1282 = vmatprep.subr.mxu0 0.0
    %1283 = vmatpush1.msra.mxu0 0.0
    %1284 = vmatprep.subr.mxu0 0.0
    %1285 = vmatpush1.msra.mxu0 0.0
    %1286 = vmatprep.subr.mxu0 0.0
    %1287 = vmatpush1.msra.mxu0 0.0
    %1288 = vmatprep.mubr.f32.mxu0 0.0
    %1289 = vmatmul.mubr.f32.gmra.mrb[0].mxu0 %v790
    %v1290 = vpop.f32.mrb[0].mxu0
    %v1291 = vadd.f32 0.0, %v1290
    %v1292 = vpop.f32.mrb[0].mxu0
    %1293 = vmatprep.mubr.f32.mxu0 0.0
    %1294 = vmatmul.mubr.f32.gmra.mrb[0].mxu0 %v793
    %v1295 = vpop.f32.mrb[0].mxu0
    %v1296 = vadd.f32 0.0, %v1295
    %v1297 = vpop.f32.mrb[0].mxu0
    %1298 = vmatprep.mubr.f32.mxu0 0.0
    %1299 = vmatmul.mubr.f32.gmra.mrb[0].mxu0 %v796
    %v1300 = vpop.f32.mrb[0].mxu0
    %v1301 = vadd.f32 0.0, %v1300
    %v1302 = vpop.f32.mrb[0].mxu0
    %1303 = vmatprep.mubr.f32.mxu0 0.0
    %1304 = vmatmul.mubr.f32.gmra.mrb[0].mxu0 %v799
    %v1305 = vpop.f32.mrb[0].mxu0
    %v1306 = vadd.f32 0.0, %v1305
    %v1307 = vpop.f32.mrb[0].mxu0
    %1308 = vdwg.mxu0
    %s1309 = scalar_lea.vmem %s4, 48
    %v1310 = vld [vmem:[%s1309] sm:$0xff]
    %v1311 = vld [vmem:[%s1309 + $0x8] sm:$0xff]
    %v1313 = vsel %vm209, %v1310, 0
    %v1316 = vsel %vm209, %v1311, 0
    %1318 = vmatprep.subr.mxu0 0.0
    %1319 = vmatpush1.msra.mxu0 %v1291
    %1320 = vmatprep.subr.mxu0 0.0
    %1321 = vmatpush1.msra.mxu0 %v1296
    %1322 = vmatprep.subr.mxu0 0.0
    %1323 = vmatpush1.msra.mxu0 %v1301
    %1324 = vmatprep.subr.mxu0 0.0
    %1325 = vmatpush1.msra.mxu0 %v1306
    %1326 = vmatprep.subr.mxu0 0.0
    %1327 = vmatpush1.msra.mxu0 0.0
    %1328 = vmatprep.subr.mxu0 0.0
    %1329 = vmatpush1.msra.mxu0 0.0
    %1330 = vmatprep.subr.mxu0 0.0
    %1331 = vmatpush1.msra.mxu0 0.0
    %1332 = vmatprep.subr.mxu0 0.0
    %1333 = vmatpush1.msra.mxu0 0.0
    %1334 = vmatprep.subr.mxu0 0.0
    %1335 = vmatpush1.msra.mxu0 0.0
    %1336 = vmatprep.subr.mxu0 0.0
    %1337 = vmatpush1.msra.mxu0 0.0
    %1338 = vmatprep.subr.mxu0 0.0
    %1339 = vmatpush1.msra.mxu0 0.0
    %1340 = vmatprep.subr.mxu0 0.0
    %1341 = vmatpush1.msra.mxu0 0.0
    %1342 = vmatprep.subr.mxu0 0.0
    %1343 = vmatpush1.msra.mxu0 0.0
    %1344 = vmatprep.subr.mxu0 0.0
    %1345 = vmatpush1.msra.mxu0 0.0
    %1346 = vmatprep.subr.mxu0 0.0
    %1347 = vmatpush1.msra.mxu0 0.0
    %1348 = vmatprep.subr.mxu0 0.0
    %1349 = vmatpush1.msra.mxu0 0.0
    %1350 = vmatprep.subr.mxu0 0.0
    %1351 = vmatpush1.msra.mxu0 0.0
    %1352 = vmatprep.subr.mxu0 0.0
    %1353 = vmatpush1.msra.mxu0 0.0
    %1354 = vmatprep.subr.mxu0 0.0
    %1355 = vmatpush1.msra.mxu0 0.0
    %1356 = vmatprep.subr.mxu0 0.0
    %1357 = vmatpush1.msra.mxu0 0.0
    %1358 = vmatprep.subr.mxu0 0.0
    %1359 = vmatpush1.msra.mxu0 0.0
    %1360 = vmatprep.subr.mxu0 0.0
    %1361 = vmatpush1.msra.mxu0 0.0
    %1362 = vmatprep.subr.mxu0 0.0
    %1363 = vmatpush1.msra.mxu0 0.0
    %1364 = vmatprep.subr.mxu0 0.0
    %1365 = vmatpush1.msra.mxu0 0.0
    %1366 = vmatprep.subr.mxu0 0.0
    %1367 = vmatpush1.msra.mxu0 0.0
    %1368 = vmatprep.subr.mxu0 0.0
    %1369 = vmatpush1.msra.mxu0 0.0
    %1370 = vmatprep.subr.mxu0 0.0
    %1371 = vmatpush1.msra.mxu0 0.0
    %1372 = vmatprep.subr.mxu0 0.0
    %1373 = vmatpush1.msra.mxu0 0.0
    %1374 = vmatprep.subr.mxu0 0.0
    %1375 = vmatpush1.msra.mxu0 0.0
    %1376 = vmatprep.subr.mxu0 0.0
    %1377 = vmatpush1.msra.mxu0 0.0
    %1378 = vmatprep.subr.mxu0 0.0
    %1379 = vmatpush1.msra.mxu0 0.0
    %1380 = vmatprep.subr.mxu0 0.0
    %1381 = vmatpush1.msra.mxu0 0.0
    %1382 = vmatprep.mubr.f32.mxu0 0.0
    %1383 = vmatmul.mubr.f32.gmra.mrb[0].mxu0 %v1313
    %v1384 = vpop.f32.mrb[0].mxu0
    %v1385 = vadd.f32 0.0, %v1384
    %v1386 = vpop.f32.mrb[0].mxu0
    %1387 = vmatprep.mubr.f32.mxu0 0.0
    %1388 = vmatmul.mubr.f32.gmra.mrb[0].mxu0 %v1316
    %v1389 = vpop.f32.mrb[0].mxu0
    %v1390 = vadd.f32 0.0, %v1389
    %v1391 = vpop.f32.mrb[0].mxu0
    %1392 = vdwg.mxu0
    %v1393 = vadd.f32 %v1222, %v1385
    %v1394 = vadd.f32 %v1223, %v1390
    %s1395 = scalar_lea.vmem %s2, 128
    %v1396 = vld [vmem:[%s1395] sm:$0xff]
    %v1397 = vld [vmem:[%s1395 + $0x8] sm:$0xff]
    %v1398 = vld [vmem:[%s1395 + $0x10] sm:$0xff]
    %v1399 = vld [vmem:[%s1395 + $0x18] sm:$0xff]
    %1400 = vmatprep.subr.mxu0 0.0
    %1401 = vmatpush1.msra.mxu0 %v1396
    %1402 = vmatprep.subr.mxu0 0.0
    %1403 = vmatpush1.msra.mxu0 %v1397
    %1404 = vmatprep.subr.mxu0 0.0
    %1405 = vmatpush1.msra.mxu0 %v1398
    %1406 = vmatprep.subr.mxu0 0.0
    %1407 = vmatpush1.msra.mxu0 %v1399
    %1408 = vmatprep.subr.mxu0 0.0
    %1409 = vmatpush1.msra.mxu0 0.0
    %1410 = vmatprep.subr.mxu0 0.0
    %1411 = vmatpush1.msra.mxu0 0.0
    %1412 = vmatprep.subr.mxu0 0.0
    %1413 = vmatpush1.msra.mxu0 0.0
    %1414 = vmatprep.subr.mxu0 0.0
    %1415 = vmatpush1.msra.mxu0 0.0
    %1416 = vmatprep.subr.mxu0 0.0
    %1417 = vmatpush1.msra.mxu0 0.0
    %1418 = vmatprep.subr.mxu0 0.0
    %1419 = vmatpush1.msra.mxu0 0.0
    %1420 = vmatprep.subr.mxu0 0.0
    %1421 = vmatpush1.msra.mxu0 0.0
    %1422 = vmatprep.subr.mxu0 0.0
    %1423 = vmatpush1.msra.mxu0 0.0
    %1424 = vmatprep.subr.mxu0 0.0
    %1425 = vmatpush1.msra.mxu0 0.0
    %1426 = vmatprep.subr.mxu0 0.0
    %1427 = vmatpush1.msra.mxu0 0.0
    %1428 = vmatprep.subr.mxu0 0.0
    %1429 = vmatpush1.msra.mxu0 0.0
    %1430 = vmatprep.subr.mxu0 0.0
    %1431 = vmatpush1.msra.mxu0 0.0
    %1432 = vmatprep.subr.mxu0 0.0
    %1433 = vmatpush1.msra.mxu0 0.0
    %1434 = vmatprep.subr.mxu0 0.0
    %1435 = vmatpush1.msra.mxu0 0.0
    %1436 = vmatprep.subr.mxu0 0.0
    %1437 = vmatpush1.msra.mxu0 0.0
    %1438 = vmatprep.subr.mxu0 0.0
    %1439 = vmatpush1.msra.mxu0 0.0
    %1440 = vmatprep.subr.mxu0 0.0
    %1441 = vmatpush1.msra.mxu0 0.0
    %1442 = vmatprep.subr.mxu0 0.0
    %1443 = vmatpush1.msra.mxu0 0.0
    %1444 = vmatprep.subr.mxu0 0.0
    %1445 = vmatpush1.msra.mxu0 0.0
    %1446 = vmatprep.subr.mxu0 0.0
    %1447 = vmatpush1.msra.mxu0 0.0
    %1448 = vmatprep.subr.mxu0 0.0
    %1449 = vmatpush1.msra.mxu0 0.0
    %1450 = vmatprep.subr.mxu0 0.0
    %1451 = vmatpush1.msra.mxu0 0.0
    %1452 = vmatprep.subr.mxu0 0.0
    %1453 = vmatpush1.msra.mxu0 0.0
    %1454 = vmatprep.subr.mxu0 0.0
    %1455 = vmatpush1.msra.mxu0 0.0
    %1456 = vmatprep.subr.mxu0 0.0
    %1457 = vmatpush1.msra.mxu0 0.0
    %1458 = vmatprep.subr.mxu0 0.0
    %1459 = vmatpush1.msra.mxu0 0.0
    %1460 = vmatprep.subr.mxu0 0.0
    %1461 = vmatpush1.msra.mxu0 0.0
    %1462 = vmatprep.subr.mxu0 0.0
    %1463 = vmatpush1.msra.mxu0 0.0
    %1464 = vmatprep.mubr.f32.mxu0 0.0
    %1465 = vmatmul.mubr.f32.gmra.mrb[0].mxu0 %v790
    %v1466 = vpop.f32.mrb[0].mxu0
    %v1467 = vadd.f32 0.0, %v1466
    %v1468 = vpop.f32.mrb[0].mxu0
    %1469 = vmatprep.mubr.f32.mxu0 0.0
    %1470 = vmatmul.mubr.f32.gmra.mrb[0].mxu0 %v793
    %v1471 = vpop.f32.mrb[0].mxu0
    %v1472 = vadd.f32 0.0, %v1471
    %v1473 = vpop.f32.mrb[0].mxu0
    %1474 = vmatprep.mubr.f32.mxu0 0.0
    %1475 = vmatmul.mubr.f32.gmra.mrb[0].mxu0 %v796
    %v1476 = vpop.f32.mrb[0].mxu0
    %v1477 = vadd.f32 0.0, %v1476
    %v1478 = vpop.f32.mrb[0].mxu0
    %1479 = vmatprep.mubr.f32.mxu0 0.0
    %1480 = vmatmul.mubr.f32.gmra.mrb[0].mxu0 %v799
    %v1481 = vpop.f32.mrb[0].mxu0
    %v1482 = vadd.f32 0.0, %v1481
    %v1483 = vpop.f32.mrb[0].mxu0
    %1484 = vdwg.mxu0
    %s1485 = scalar_lea.vmem %s4, 64
    %v1486 = vld [vmem:[%s1485] sm:$0xff]
    %v1487 = vld [vmem:[%s1485 + $0x8] sm:$0xff]
    %v1489 = vsel %vm209, %v1486, 0
    %v1492 = vsel %vm209, %v1487, 0
    %1494 = vmatprep.subr.mxu0 0.0
    %1495 = vmatpush1.msra.mxu0 %v1467
    %1496 = vmatprep.subr.mxu0 0.0
    %1497 = vmatpush1.msra.mxu0 %v1472
    %1498 = vmatprep.subr.mxu0 0.0
    %1499 = vmatpush1.msra.mxu0 %v1477
    %1500 = vmatprep.subr.mxu0 0.0
    %1501 = vmatpush1.msra.mxu0 %v1482
    %1502 = vmatprep.subr.mxu0 0.0
    %1503 = vmatpush1.msra.mxu0 0.0
    %1504 = vmatprep.subr.mxu0 0.0
    %1505 = vmatpush1.msra.mxu0 0.0
    %1506 = vmatprep.subr.mxu0 0.0
    %1507 = vmatpush1.msra.mxu0 0.0
    %1508 = vmatprep.subr.mxu0 0.0
    %1509 = vmatpush1.msra.mxu0 0.0
    %1510 = vmatprep.subr.mxu0 0.0
    %1511 = vmatpush1.msra.mxu0 0.0
    %1512 = vmatprep.subr.mxu0 0.0
    %1513 = vmatpush1.msra.mxu0 0.0
    %1514 = vmatprep.subr.mxu0 0.0
    %1515 = vmatpush1.msra.mxu0 0.0
    %1516 = vmatprep.subr.mxu0 0.0
    %1517 = vmatpush1.msra.mxu0 0.0
    %1518 = vmatprep.subr.mxu0 0.0
    %1519 = vmatpush1.msra.mxu0 0.0
    %1520 = vmatprep.subr.mxu0 0.0
    %1521 = vmatpush1.msra.mxu0 0.0
    %1522 = vmatprep.subr.mxu0 0.0
    %1523 = vmatpush1.msra.mxu0 0.0
    %1524 = vmatprep.subr.mxu0 0.0
    %1525 = vmatpush1.msra.mxu0 0.0
    %1526 = vmatprep.subr.mxu0 0.0
    %1527 = vmatpush1.msra.mxu0 0.0
    %1528 = vmatprep.subr.mxu0 0.0
    %1529 = vmatpush1.msra.mxu0 0.0
    %1530 = vmatprep.subr.mxu0 0.0
    %1531 = vmatpush1.msra.mxu0 0.0
    %1532 = vmatprep.subr.mxu0 0.0
    %1533 = vmatpush1.msra.mxu0 0.0
    %1534 = vmatprep.subr.mxu0 0.0
    %1535 = vmatpush1.msra.mxu0 0.0
    %1536 = vmatprep.subr.mxu0 0.0
    %1537 = vmatpush1.msra.mxu0 0.0
    %1538 = vmatprep.subr.mxu0 0.0
    %1539 = vmatpush1.msra.mxu0 0.0
    %1540 = vmatprep.subr.mxu0 0.0
    %1541 = vmatpush1.msra.mxu0 0.0
    %1542 = vmatprep.subr.mxu0 0.0
    %1543 = vmatpush1.msra.mxu0 0.0
    %1544 = vmatprep.subr.mxu0 0.0
    %1545 = vmatpush1.msra.mxu0 0.0
    %1546 = vmatprep.subr.mxu0 0.0
    %1547 = vmatpush1.msra.mxu0 0.0
    %1548 = vmatprep.subr.mxu0 0.0
    %1549 = vmatpush1.msra.mxu0 0.0
    %1550 = vmatprep.subr.mxu0 0.0
    %1551 = vmatpush1.msra.mxu0 0.0
    %1552 = vmatprep.subr.mxu0 0.0
    %1553 = vmatpush1.msra.mxu0 0.0
    %1554 = vmatprep.subr.mxu0 0.0
    %1555 = vmatpush1.msra.mxu0 0.0
    %1556 = vmatprep.subr.mxu0 0.0
    %1557 = vmatpush1.msra.mxu0 0.0
    %1558 = vmatprep.mubr.f32.mxu0 0.0
    %1559 = vmatmul.mubr.f32.gmra.mrb[0].mxu0 %v1489
    %v1560 = vpop.f32.mrb[0].mxu0
    %v1561 = vadd.f32 0.0, %v1560
    %v1562 = vpop.f32.mrb[0].mxu0
    %1563 = vmatprep.mubr.f32.mxu0 0.0
    %1564 = vmatmul.mubr.f32.gmra.mrb[0].mxu0 %v1492
    %v1565 = vpop.f32.mrb[0].mxu0
    %v1566 = vadd.f32 0.0, %v1565
    %v1567 = vpop.f32.mrb[0].mxu0
    %1568 = vdwg.mxu0
    %v1569 = vadd.f32 %v1393, %v1561
    %v1570 = vadd.f32 %v1394, %v1566
    %1572 = vset.pattern.permute.xlu0 0
    %1573 = vperm.xlu0 %1572, %v783
    %v1574 = vpop.permute.xlu0 %1573
    %1577 = vset.pattern.permute.xlu0 0
    %1578 = vperm.xlu0 %1577, %v784
    %v1579 = vpop.permute.xlu0 %1578
    %v1581 = vadd.f32 %v1569, %v1574
    %v1582 = vadd.f32 %v1570, %v1579
    %1583 = vst.msk [vmem:[#allocation2] sm:$0xff] %vm209, %v162
    %1584 = vst.msk [vmem:[#allocation2 + $0x8] sm:$0xff] %vm209, %v167
    %1585 = vst.msk [vmem:[#allocation2 + $0x10] sm:$0xff] %vm209, %v172
    %1586 = vst.msk [vmem:[#allocation2 + $0x18] sm:$0xff] %vm209, %v177
    %1587 = vst.msk [vmem:[#allocation2 + $0x20] sm:$0xff] %vm209, %v779
    %1588 = vst.msk [vmem:[#allocation2 + $0x28] sm:$0xff] %vm209, %v780
    %1589 = vst.msk [vmem:[#allocation2 + $0x30] sm:$0xff] %vm209, %v1581
    %1590 = vst.msk [vmem:[#allocation2 + $0x38] sm:$0xff] %vm209, %v182
    %1591 = vst.msk [vmem:[#allocation2 + $0x40] sm:$0xff] %vm209, %v187
    %1592 = vst.msk [vmem:[#allocation2 + $0x48] sm:$0xff] %vm209, %v192
    %1593 = vst.msk [vmem:[#allocation2 + $0x50] sm:$0xff] %vm209, %v197
    %1594 = vst.msk [vmem:[#allocation2 + $0x58] sm:$0xff] %vm209, %v781
    %1595 = vst.msk [vmem:[#allocation2 + $0x60] sm:$0xff] %vm209, %v782
    %1596 = vst.msk [vmem:[#allocation2 + $0x68] sm:$0xff] %vm209, %v1582
    %v1597 = vld [vmem:[#allocation2] sm:$0xff]
    %v1598 = vld [vmem:[#allocation2 + $0x8] sm:$0xff]
    %v1599 = vld [vmem:[#allocation2 + $0x10] sm:$0xff]
    %v1600 = vld [vmem:[#allocation2 + $0x18] sm:$0xff]
    %v1601 = vld [vmem:[#allocation2 + $0x20] sm:$0xff]
    %v1602 = vld [vmem:[#allocation2 + $0x28] sm:$0xff]
    %v1603 = vld [vmem:[#allocation2 + $0x30] sm:$0xff]
    %v1604 = vld [vmem:[#allocation2 + $0x38] sm:$0xff]
    %v1605 = vld [vmem:[#allocation2 + $0x40] sm:$0xff]
    %v1606 = vld [vmem:[#allocation2 + $0x48] sm:$0xff]
    %v1607 = vld [vmem:[#allocation2 + $0x50] sm:$0xff]
    %v1608 = vld [vmem:[#allocation2 + $0x58] sm:$0xff]
    %v1609 = vld [vmem:[#allocation2 + $0x60] sm:$0xff]
    %v1610 = vld [vmem:[#allocation2 + $0x68] sm:$0xff]
    %v1611 = vld [vmem:[%s6] sm:$0xff]
    %v1612 = vld [vmem:[%s6 + $0x8] sm:$0xff]
    %v1613 = vld [vmem:[%s6 + $0x10] sm:$0xff]
    %v1614 = vld [vmem:[%s6 + $0x18] sm:$0xff]
    %v1615 = vld [vmem:[%s6 + $0x20] sm:$0xff]
    %v1616 = vld [vmem:[%s6 + $0x28] sm:$0xff]
    %v1617 = vld [vmem:[%s6 + $0x30] sm:$0xff]
    %v1618 = vld [vmem:[%s6 + $0x38] sm:$0xff]
    %v1619 = vld [vmem:[%s6 + $0x40] sm:$0xff]
    %v1620 = vld [vmem:[%s6 + $0x48] sm:$0xff]
    %v1621 = vld [vmem:[%s6 + $0x50] sm:$0xff]
    %v1622 = vld [vmem:[%s6 + $0x58] sm:$0xff]
    %v1623 = vld [vmem:[%s6 + $0x60] sm:$0xff]
    %v1624 = vld [vmem:[%s6 + $0x68] sm:$0xff]
    %v1625 = vlaneseq
    %v1626 = vshrl.u32 %v1625, 7
    %v1627 = vadd.s32 %v1626, 8
    %v1628 = vadd.s32 %v1626, 16
    %v1629 = vadd.s32 %v1626, 24
    %v1630 = vadd.s32 %v1626, 32
    %v1631 = vadd.s32 %v1626, 40
    %v1632 = vadd.s32 %v1626, 48
    %v1633 = vadd.s32 %v1626, 56
    %v1634 = vadd.s32 %v1626, 64
    %v1635 = vadd.s32 %v1626, 72
    %v1636 = vadd.s32 %v1626, 80
    %v1637 = vadd.s32 %v1626, 88
    %v1638 = vadd.s32 %v1626, 96
    %v1639 = vadd.s32 %v1626, 104
    %vm1640 = vcmp.ge.s32.totalorder %v1626, 0
    %vm1641 = vcmp.ge.s32.totalorder %v1627, 0
    %vm1642 = vcmp.ge.s32.totalorder %v1628, 0
    %vm1643 = vcmp.ge.s32.totalorder %v1629, 0
    %vm1644 = vcmp.ge.s32.totalorder %v1630, 0
    %vm1645 = vcmp.ge.s32.totalorder %v1631, 0
    %vm1646 = vcmp.ge.s32.totalorder %v1632, 0
    %vm1647 = vcmp.ge.s32.totalorder %v1633, 0
    %vm1648 = vcmp.ge.s32.totalorder %v1634, 0
    %vm1649 = vcmp.ge.s32.totalorder %v1635, 0
    %vm1650 = vcmp.ge.s32.totalorder %v1636, 0
    %vm1651 = vcmp.ge.s32.totalorder %v1637, 0
    %vm1652 = vcmp.ge.s32.totalorder %v1638, 0
    %vm1653 = vcmp.ge.s32.totalorder %v1639, 0
    %vm1654 = vcmp.lt.s32.totalorder %v1626, 1
    %vm1655 = vcmp.lt.s32.totalorder %v1627, 1
    %vm1656 = vcmp.lt.s32.totalorder %v1628, 1
    %vm1657 = vcmp.lt.s32.totalorder %v1629, 1
    %vm1658 = vcmp.lt.s32.totalorder %v1630, 1
    %vm1659 = vcmp.lt.s32.totalorder %v1631, 1
    %vm1660 = vcmp.lt.s32.totalorder %v1632, 1
    %vm1661 = vcmp.lt.s32.totalorder %v1633, 1
    %vm1662 = vcmp.lt.s32.totalorder %v1634, 1
    %vm1663 = vcmp.lt.s32.totalorder %v1635, 1
    %vm1664 = vcmp.lt.s32.totalorder %v1636, 1
    %vm1665 = vcmp.lt.s32.totalorder %v1637, 1
    %vm1666 = vcmp.lt.s32.totalorder %v1638, 1
    %vm1667 = vcmp.lt.s32.totalorder %v1639, 1
    %vm1668 = vmand %vm1640, %vm1654
    %vm1669 = vmand %vm1641, %vm1655
    %vm1670 = vmand %vm1642, %vm1656
    %vm1671 = vmand %vm1643, %vm1657
    %vm1672 = vmand %vm1644, %vm1658
    %vm1673 = vmand %vm1645, %vm1659
    %vm1674 = vmand %vm1646, %vm1660
    %vm1675 = vmand %vm1647, %vm1661
    %vm1676 = vmand %vm1648, %vm1662
    %vm1677 = vmand %vm1649, %vm1663
    %vm1678 = vmand %vm1650, %vm1664
    %vm1679 = vmand %vm1651, %vm1665
    %vm1680 = vmand %vm1652, %vm1666
    %vm1681 = vmand %vm1653, %vm1667
    %vm1682 = vcmp.ge.s32.totalorder %v1626, 56
    %vm1683 = vcmp.ge.s32.totalorder %v1627, 56
    %vm1684 = vcmp.ge.s32.totalorder %v1628, 56
    %vm1685 = vcmp.ge.s32.totalorder %v1629, 56
    %vm1686 = vcmp.ge.s32.totalorder %v1630, 56
    %vm1687 = vcmp.ge.s32.totalorder %v1631, 56
    %vm1688 = vcmp.ge.s32.totalorder %v1632, 56
    %vm1689 = vcmp.ge.s32.totalorder %v1633, 56
    %vm1690 = vcmp.ge.s32.totalorder %v1634, 56
    %vm1691 = vcmp.ge.s32.totalorder %v1635, 56
    %vm1692 = vcmp.ge.s32.totalorder %v1636, 56
    %vm1693 = vcmp.ge.s32.totalorder %v1637, 56
    %vm1694 = vcmp.ge.s32.totalorder %v1638, 56
    %vm1695 = vcmp.ge.s32.totalorder %v1639, 56
    %vm1696 = vcmp.lt.s32.totalorder %v1626, 57
    %vm1697 = vcmp.lt.s32.totalorder %v1627, 57
    %vm1698 = vcmp.lt.s32.totalorder %v1628, 57
    %vm1699 = vcmp.lt.s32.totalorder %v1629, 57
    %vm1700 = vcmp.lt.s32.totalorder %v1630, 57
    %vm1701 = vcmp.lt.s32.totalorder %v1631, 57
    %vm1702 = vcmp.lt.s32.totalorder %v1632, 57
    %vm1703 = vcmp.lt.s32.totalorder %v1633, 57
    %vm1704 = vcmp.lt.s32.totalorder %v1634, 57
    %vm1705 = vcmp.lt.s32.totalorder %v1635, 57
    %vm1706 = vcmp.lt.s32.totalorder %v1636, 57
    %vm1707 = vcmp.lt.s32.totalorder %v1637, 57
    %vm1708 = vcmp.lt.s32.totalorder %v1638, 57
    %vm1709 = vcmp.lt.s32.totalorder %v1639, 57
    %vm1710 = vmand %vm1682, %vm1696
    %vm1711 = vmand %vm1683, %vm1697
    %vm1712 = vmand %vm1684, %vm1698
    %vm1713 = vmand %vm1685, %vm1699
    %vm1714 = vmand %vm1686, %vm1700
    %vm1715 = vmand %vm1687, %vm1701
    %vm1716 = vmand %vm1688, %vm1702
    %vm1717 = vmand %vm1689, %vm1703
    %vm1718 = vmand %vm1690, %vm1704
    %vm1719 = vmand %vm1691, %vm1705
    %vm1720 = vmand %vm1692, %vm1706
    %vm1721 = vmand %vm1693, %vm1707
    %vm1722 = vmand %vm1694, %vm1708
    %vm1723 = vmand %vm1695, %vm1709
    %vm1724 = vmor %vm1668, %vm1710
    %vm1725 = vmor %vm1669, %vm1711
    %vm1726 = vmor %vm1670, %vm1712
    %vm1727 = vmor %vm1671, %vm1713
    %vm1728 = vmor %vm1672, %vm1714
    %vm1729 = vmor %vm1673, %vm1715
    %vm1730 = vmor %vm1674, %vm1716
    %vm1731 = vmor %vm1675, %vm1717
    %vm1732 = vmor %vm1676, %vm1718
    %vm1733 = vmor %vm1677, %vm1719
    %vm1734 = vmor %vm1678, %vm1720
    %vm1735 = vmor %vm1679, %vm1721
    %vm1736 = vmor %vm1680, %vm1722
    %vm1737 = vmor %vm1681, %vm1723
    %v1738 = vsel %vm1724, 1, 0
    %v1739 = vsel %vm1725, 1, 0
    %v1740 = vsel %vm1726, 1, 0
    %v1741 = vsel %vm1727, 1, 0
    %v1742 = vsel %vm1728, 1, 0
    %v1743 = vsel %vm1729, 1, 0
    %v1744 = vsel %vm1730, 1, 0
    %v1745 = vsel %vm1731, 1, 0
    %v1746 = vsel %vm1732, 1, 0
    %v1747 = vsel %vm1733, 1, 0
    %v1748 = vsel %vm1734, 1, 0
    %v1749 = vsel %vm1735, 1, 0
    %v1750 = vsel %vm1736, 1, 0
    %v1751 = vsel %vm1737, 1, 0
    %v1752 = vcvt.s32.f32 %v1738
    %v1753 = vcvt.s32.f32 %v1739
    %v1754 = vcvt.s32.f32 %v1740
    %v1755 = vcvt.s32.f32 %v1741
    %v1756 = vcvt.s32.f32 %v1742
    %v1757 = vcvt.s32.f32 %v1743
    %v1758 = vcvt.s32.f32 %v1744
    %v1759 = vcvt.s32.f32 %v1745
    %v1760 = vcvt.s32.f32 %v1746
    %v1761 = vcvt.s32.f32 %v1747
    %v1762 = vcvt.s32.f32 %v1748
    %v1763 = vcvt.s32.f32 %v1749
    %v1764 = vcvt.s32.f32 %v1750
    %v1765 = vcvt.s32.f32 %v1751
    %v1766 = vsub.f32 1.0, %v1752
    %v1767 = vsub.f32 1.0, %v1753
    %v1768 = vsub.f32 1.0, %v1754
    %v1769 = vsub.f32 1.0, %v1755
    %v1770 = vsub.f32 1.0, %v1756
    %v1771 = vsub.f32 1.0, %v1757
    %v1772 = vsub.f32 1.0, %v1758
    %v1773 = vsub.f32 1.0, %v1759
    %v1774 = vsub.f32 1.0, %v1760
    %v1775 = vsub.f32 1.0, %v1761
    %v1776 = vsub.f32 1.0, %v1762
    %v1777 = vsub.f32 1.0, %v1763
    %v1778 = vsub.f32 1.0, %v1764
    %v1779 = vsub.f32 1.0, %v1765
    %vm1780 = vcmp.lt.s32.totalorder %v1626, 2
    %vm1781 = vcmp.lt.s32.totalorder %v1627, 2
    %vm1782 = vcmp.lt.s32.totalorder %v1628, 2
    %vm1783 = vcmp.lt.s32.totalorder %v1629, 2
    %vm1784 = vcmp.lt.s32.totalorder %v1630, 2
    %vm1785 = vcmp.lt.s32.totalorder %v1631, 2
    %vm1786 = vcmp.lt.s32.totalorder %v1632, 2
    %vm1787 = vcmp.lt.s32.totalorder %v1633, 2
    %vm1788 = vcmp.lt.s32.totalorder %v1634, 2
    %vm1789 = vcmp.lt.s32.totalorder %v1635, 2
    %vm1790 = vcmp.lt.s32.totalorder %v1636, 2
    %vm1791 = vcmp.lt.s32.totalorder %v1637, 2
    %vm1792 = vcmp.lt.s32.totalorder %v1638, 2
    %vm1793 = vcmp.lt.s32.totalorder %v1639, 2
    %vm1794 = vmand %vm1640, %vm1780
    %vm1795 = vmand %vm1641, %vm1781
    %vm1796 = vmand %vm1642, %vm1782
    %vm1797 = vmand %vm1643, %vm1783
    %vm1798 = vmand %vm1644, %vm1784
    %vm1799 = vmand %vm1645, %vm1785
    %vm1800 = vmand %vm1646, %vm1786
    %vm1801 = vmand %vm1647, %vm1787
    %vm1802 = vmand %vm1648, %vm1788
    %vm1803 = vmand %vm1649, %vm1789
    %vm1804 = vmand %vm1650, %vm1790
    %vm1805 = vmand %vm1651, %vm1791
    %vm1806 = vmand %vm1652, %vm1792
    %vm1807 = vmand %vm1653, %vm1793
    %vm1808 = vcmp.lt.s32.totalorder %v1626, 58
    %vm1809 = vcmp.lt.s32.totalorder %v1627, 58
    %vm1810 = vcmp.lt.s32.totalorder %v1628, 58
    %vm1811 = vcmp.lt.s32.totalorder %v1629, 58
    %vm1812 = vcmp.lt.s32.totalorder %v1630, 58
    %vm1813 = vcmp.lt.s32.totalorder %v1631, 58
    %vm1814 = vcmp.lt.s32.totalorder %v1632, 58
    %vm1815 = vcmp.lt.s32.totalorder %v1633, 58
    %vm1816 = vcmp.lt.s32.totalorder %v1634, 58
    %vm1817 = vcmp.lt.s32.totalorder %v1635, 58
    %vm1818 = vcmp.lt.s32.totalorder %v1636, 58
    %vm1819 = vcmp.lt.s32.totalorder %v1637, 58
    %vm1820 = vcmp.lt.s32.totalorder %v1638, 58
    %vm1821 = vcmp.lt.s32.totalorder %v1639, 58
    %vm1822 = vmand %vm1682, %vm1808
    %vm1823 = vmand %vm1683, %vm1809
    %vm1824 = vmand %vm1684, %vm1810
    %vm1825 = vmand %vm1685, %vm1811
    %vm1826 = vmand %vm1686, %vm1812
    %vm1827 = vmand %vm1687, %vm1813
    %vm1828 = vmand %vm1688, %vm1814
    %vm1829 = vmand %vm1689, %vm1815
    %vm1830 = vmand %vm1690, %vm1816
    %vm1831 = vmand %vm1691, %vm1817
    %vm1832 = vmand %vm1692, %vm1818
    %vm1833 = vmand %vm1693, %vm1819
    %vm1834 = vmand %vm1694, %vm1820
    %vm1835 = vmand %vm1695, %vm1821
    %vm1836 = vmor %vm1794, %vm1822
    %vm1837 = vmor %vm1795, %vm1823
    %vm1838 = vmor %vm1796, %vm1824
    %vm1839 = vmor %vm1797, %vm1825
    %vm1840 = vmor %vm1798, %vm1826
    %vm1841 = vmor %vm1799, %vm1827
    %vm1842 = vmor %vm1800, %vm1828
    %vm1843 = vmor %vm1801, %vm1829
    %vm1844 = vmor %vm1802, %vm1830
    %vm1845 = vmor %vm1803, %vm1831
    %vm1846 = vmor %vm1804, %vm1832
    %vm1847 = vmor %vm1805, %vm1833
    %vm1848 = vmor %vm1806, %vm1834
    %vm1849 = vmor %vm1807, %vm1835
    %v1850 = vsel %vm1836, 1, 0
    %v1851 = vsel %vm1837, 1, 0
    %v1852 = vsel %vm1838, 1, 0
    %v1853 = vsel %vm1839, 1, 0
    %v1854 = vsel %vm1840, 1, 0
    %v1855 = vsel %vm1841, 1, 0
    %v1856 = vsel %vm1842, 1, 0
    %v1857 = vsel %vm1843, 1, 0
    %v1858 = vsel %vm1844, 1, 0
    %v1859 = vsel %vm1845, 1, 0
    %v1860 = vsel %vm1846, 1, 0
    %v1861 = vsel %vm1847, 1, 0
    %v1862 = vsel %vm1848, 1, 0
    %v1863 = vsel %vm1849, 1, 0
    %v1864 = vcvt.s32.f32 %v1850
    %v1865 = vcvt.s32.f32 %v1851
    %v1866 = vcvt.s32.f32 %v1852
    %v1867 = vcvt.s32.f32 %v1853
    %v1868 = vcvt.s32.f32 %v1854
    %v1869 = vcvt.s32.f32 %v1855
    %v1870 = vcvt.s32.f32 %v1856
    %v1871 = vcvt.s32.f32 %v1857
    %v1872 = vcvt.s32.f32 %v1858
    %v1873 = vcvt.s32.f32 %v1859
    %v1874 = vcvt.s32.f32 %v1860
    %v1875 = vcvt.s32.f32 %v1861
    %v1876 = vcvt.s32.f32 %v1862
    %v1877 = vcvt.s32.f32 %v1863
    %v1878 = vsub.f32 1.0, %v1864
    %v1879 = vsub.f32 1.0, %v1865
    %v1880 = vsub.f32 1.0, %v1866
    %v1881 = vsub.f32 1.0, %v1867
    %v1882 = vsub.f32 1.0, %v1868
    %v1883 = vsub.f32 1.0, %v1869
    %v1884 = vsub.f32 1.0, %v1870
    %v1885 = vsub.f32 1.0, %v1871
    %v1886 = vsub.f32 1.0, %v1872
    %v1887 = vsub.f32 1.0, %v1873
    %v1888 = vsub.f32 1.0, %v1874
    %v1889 = vsub.f32 1.0, %v1875
    %v1890 = vsub.f32 1.0, %v1876
    %v1891 = vsub.f32 1.0, %v1877
    %vm1892 = vcmp.lt.s32.totalorder %v1626, 3
    %vm1893 = vcmp.lt.s32.totalorder %v1627, 3
    %vm1894 = vcmp.lt.s32.totalorder %v1628, 3
    %vm1895 = vcmp.lt.s32.totalorder %v1629, 3
    %vm1896 = vcmp.lt.s32.totalorder %v1630, 3
    %vm1897 = vcmp.lt.s32.totalorder %v1631, 3
    %vm1898 = vcmp.lt.s32.totalorder %v1632, 3
    %vm1899 = vcmp.lt.s32.totalorder %v1633, 3
    %vm1900 = vcmp.lt.s32.totalorder %v1634, 3
    %vm1901 = vcmp.lt.s32.totalorder %v1635, 3
    %vm1902 = vcmp.lt.s32.totalorder %v1636, 3
    %vm1903 = vcmp.lt.s32.totalorder %v1637, 3
    %vm1904 = vcmp.lt.s32.totalorder %v1638, 3
    %vm1905 = vcmp.lt.s32.totalorder %v1639, 3
    %vm1906 = vmand %vm1640, %vm1892
    %vm1907 = vmand %vm1641, %vm1893
    %vm1908 = vmand %vm1642, %vm1894
    %vm1909 = vmand %vm1643, %vm1895
    %vm1910 = vmand %vm1644, %vm1896
    %vm1911 = vmand %vm1645, %vm1897
    %vm1912 = vmand %vm1646, %vm1898
    %vm1913 = vmand %vm1647, %vm1899
    %vm1914 = vmand %vm1648, %vm1900
    %vm1915 = vmand %vm1649, %vm1901
    %vm1916 = vmand %vm1650, %vm1902
    %vm1917 = vmand %vm1651, %vm1903
    %vm1918 = vmand %vm1652, %vm1904
    %vm1919 = vmand %vm1653, %vm1905
    %vm1920 = vcmp.lt.s32.totalorder %v1626, 59
    %vm1921 = vcmp.lt.s32.totalorder %v1627, 59
    %vm1922 = vcmp.lt.s32.totalorder %v1628, 59
    %vm1923 = vcmp.lt.s32.totalorder %v1629, 59
    %vm1924 = vcmp.lt.s32.totalorder %v1630, 59
    %vm1925 = vcmp.lt.s32.totalorder %v1631, 59
    %vm1926 = vcmp.lt.s32.totalorder %v1632, 59
    %vm1927 = vcmp.lt.s32.totalorder %v1633, 59
    %vm1928 = vcmp.lt.s32.totalorder %v1634, 59
    %vm1929 = vcmp.lt.s32.totalorder %v1635, 59
    %vm1930 = vcmp.lt.s32.totalorder %v1636, 59
    %vm1931 = vcmp.lt.s32.totalorder %v1637, 59
    %vm1932 = vcmp.lt.s32.totalorder %v1638, 59
    %vm1933 = vcmp.lt.s32.totalorder %v1639, 59
    %vm1934 = vmand %vm1682, %vm1920
    %vm1935 = vmand %vm1683, %vm1921
    %vm1936 = vmand %vm1684, %vm1922
    %vm1937 = vmand %vm1685, %vm1923
    %vm1938 = vmand %vm1686, %vm1924
    %vm1939 = vmand %vm1687, %vm1925
    %vm1940 = vmand %vm1688, %vm1926
    %vm1941 = vmand %vm1689, %vm1927
    %vm1942 = vmand %vm1690, %vm1928
    %vm1943 = vmand %vm1691, %vm1929
    %vm1944 = vmand %vm1692, %vm1930
    %vm1945 = vmand %vm1693, %vm1931
    %vm1946 = vmand %vm1694, %vm1932
    %vm1947 = vmand %vm1695, %vm1933
    %vm1948 = vmor %vm1906, %vm1934
    %vm1949 = vmor %vm1907, %vm1935
    %vm1950 = vmor %vm1908, %vm1936
    %vm1951 = vmor %vm1909, %vm1937
    %vm1952 = vmor %vm1910, %vm1938
    %vm1953 = vmor %vm1911, %vm1939
    %vm1954 = vmor %vm1912, %vm1940
    %vm1955 = vmor %vm1913, %vm1941
    %vm1956 = vmor %vm1914, %vm1942
    %vm1957 = vmor %vm1915, %vm1943
    %vm1958 = vmor %vm1916, %vm1944
    %vm1959 = vmor %vm1917, %vm1945
    %vm1960 = vmor %vm1918, %vm1946
    %vm1961 = vmor %vm1919, %vm1947
    %v1962 = vsel %vm1948, 1, 0
    %v1963 = vsel %vm1949, 1, 0
    %v1964 = vsel %vm1950, 1, 0
    %v1965 = vsel %vm1951, 1, 0
    %v1966 = vsel %vm1952, 1, 0
    %v1967 = vsel %vm1953, 1, 0
    %v1968 = vsel %vm1954, 1, 0
    %v1969 = vsel %vm1955, 1, 0
    %v1970 = vsel %vm1956, 1, 0
    %v1971 = vsel %vm1957, 1, 0
    %v1972 = vsel %vm1958, 1, 0
    %v1973 = vsel %vm1959, 1, 0
    %v1974 = vsel %vm1960, 1, 0
    %v1975 = vsel %vm1961, 1, 0
    %v1976 = vcvt.s32.f32 %v1962
    %v1977 = vcvt.s32.f32 %v1963
    %v1978 = vcvt.s32.f32 %v1964
    %v1979 = vcvt.s32.f32 %v1965
    %v1980 = vcvt.s32.f32 %v1966
    %v1981 = vcvt.s32.f32 %v1967
    %v1982 = vcvt.s32.f32 %v1968
    %v1983 = vcvt.s32.f32 %v1969
    %v1984 = vcvt.s32.f32 %v1970
    %v1985 = vcvt.s32.f32 %v1971
    %v1986 = vcvt.s32.f32 %v1972
    %v1987 = vcvt.s32.f32 %v1973
    %v1988 = vcvt.s32.f32 %v1974
    %v1989 = vcvt.s32.f32 %v1975
    %v1990 = vsub.f32 1.0, %v1976
    %v1991 = vsub.f32 1.0, %v1977
    %v1992 = vsub.f32 1.0, %v1978
    %v1993 = vsub.f32 1.0, %v1979
    %v1994 = vsub.f32 1.0, %v1980
    %v1995 = vsub.f32 1.0, %v1981
    %v1996 = vsub.f32 1.0, %v1982
    %v1997 = vsub.f32 1.0, %v1983
    %v1998 = vsub.f32 1.0, %v1984
    %v1999 = vsub.f32 1.0, %v1985
    %v2000 = vsub.f32 1.0, %v1986
    %v2001 = vsub.f32 1.0, %v1987
    %v2002 = vsub.f32 1.0, %v1988
    %v2003 = vsub.f32 1.0, %v1989
    %v2004 = vld [vmem:[%s10] sm:$0x3]
    %v2005 = vpack.c.bf16 %v1598, %v1597
    %v2006 = vpack.c.bf16 %v1600, %v1599
    %v2007 = vpack.c.bf16 %v1602, %v1601
    %v2008 = vpack.c.bf16 %v1604, %v1603
    %v2009 = vpack.c.bf16 %v1606, %v1605
    %v2010 = vpack.c.bf16 %v1608, %v1607
    %v2011 = vpack.c.bf16 %v1610, %v1609
    %v2012 = vld [vmem:[%s7] sm:$0xff]
    %v2013 = vld [vmem:[%s7 + $0x8] sm:$0xff]
    %v2014 = vld [vmem:[%s7 + $0x10] sm:$0xff]
    %v2015 = vld [vmem:[%s7 + $0x18] sm:$0xff]
    %v2020 = vunpack.c.l.b16 %v2012
    %v2021 = vunpack.c.h.b16 %v2012
    %v2022 = vunpack.c.l.b16 %v2013
    %v2023 = vunpack.c.h.b16 %v2013
    %v2024 = vunpack.c.l.b16 %v2014
    %v2025 = vunpack.c.h.b16 %v2014
    %v2026 = vunpack.c.l.b16 %v2015
    %v2027 = vunpack.c.h.b16 %v2015
    %v2028 = vpack.c.b16 %v2022, %v2020
    %v2029 = vpack.c.b16 %v2023, %v2021
    %v2030 = vpack.c.b16 %v2026, %v2024
    %v2031 = vpack.c.b16 %v2027, %v2025
    %v2037 = vsel %vm209, %v2005, 0
    %v2040 = vsel %vm209, %v2006, 0
    %v2043 = vsel %vm209, %v2007, 0
    %v2046 = vsel %vm209, %v2008, 0
    %v2049 = vsel %vm209, %v2009, 0
    %v2052 = vsel %vm209, %v2010, 0
    %v2055 = vsel %vm209, %v2011, 0
    %2057 = vmatprep.subr.bf16.mxu0 %v2029
    %2058 = vmatpush1.bf16.msra.mxu0 %v2028
    %2059 = vmatprep.subr.bf16.mxu0 %v2031
    %2060 = vmatpush1.bf16.msra.mxu0 %v2030
    %2061 = vmatprep.subr.bf16.mxu0 0
    %2062 = vmatpush1.bf16.msra.mxu0 0
    %2063 = vmatprep.subr.bf16.mxu0 0
    %2064 = vmatpush1.bf16.msra.mxu0 0
    %2065 = vmatprep.subr.bf16.mxu0 0
    %2066 = vmatpush1.bf16.msra.mxu0 0
    %2067 = vmatprep.subr.bf16.mxu0 0
    %2068 = vmatpush1.bf16.msra.mxu0 0
    %2069 = vmatprep.subr.bf16.mxu0 0
    %2070 = vmatpush1.bf16.msra.mxu0 0
    %2071 = vmatprep.subr.bf16.mxu0 0
    %2072 = vmatpush1.bf16.msra.mxu0 0
    %2073 = vmatprep.subr.bf16.mxu0 0
    %2074 = vmatpush1.bf16.msra.mxu0 0
    %2075 = vmatprep.subr.bf16.mxu0 0
    %2076 = vmatpush1.bf16.msra.mxu0 0
    %2077 = vmatprep.subr.bf16.mxu0 0
    %2078 = vmatpush1.bf16.msra.mxu0 0
    %2079 = vmatprep.subr.bf16.mxu0 0
    %2080 = vmatpush1.bf16.msra.mxu0 0
    %2081 = vmatprep.subr.bf16.mxu0 0
    %2082 = vmatpush1.bf16.msra.mxu0 0
    %2083 = vmatprep.subr.bf16.mxu0 0
    %2084 = vmatpush1.bf16.msra.mxu0 0
    %2085 = vmatprep.subr.bf16.mxu0 0
    %2086 = vmatpush1.bf16.msra.mxu0 0
    %2087 = vmatprep.subr.bf16.mxu0 0
    %2088 = vmatpush1.bf16.msra.mxu0 0
    %2089 = vmatprep.mubr.bf16.mxu0 0
    %2090 = vmatmul.mubr.bf16.gmra.mrb[0].mxu0 %v2037
    %v2091 = vpop.f32.mrb[0].mxu0
    %v2092 = vadd.f32 0.0, %v2091
    %v2093 = vpop.f32.mrb[0].mxu0
    %v2094 = vadd.f32 0.0, %v2093
    %v2095 = vpop.f32.mrb[0].mxu0
    %v2096 = vadd.f32 0.0, %v2095
    %v2097 = vpop.f32.mrb[0].mxu0
    %v2098 = vadd.f32 0.0, %v2097
    %2099 = vmatprep.mubr.bf16.mxu0 0
    %2100 = vmatmul.mubr.bf16.gmra.mrb[0].mxu0 %v2040
    %v2101 = vpop.f32.mrb[0].mxu0
    %v2102 = vadd.f32 0.0, %v2101
    %v2103 = vpop.f32.mrb[0].mxu0
    %v2104 = vadd.f32 0.0, %v2103
    %v2105 = vpop.f32.mrb[0].mxu0
    %v2106 = vadd.f32 0.0, %v2105
    %v2107 = vpop.f32.mrb[0].mxu0
    %v2108 = vadd.f32 0.0, %v2107
    %2109 = vmatprep.mubr.bf16.mxu0 0
    %2110 = vmatmul.mubr.bf16.gmra.mrb[0].mxu0 %v2043
    %v2111 = vpop.f32.mrb[0].mxu0
    %v2112 = vadd.f32 0.0, %v2111
    %v2113 = vpop.f32.mrb[0].mxu0
    %v2114 = vadd.f32 0.0, %v2113
    %v2115 = vpop.f32.mrb[0].mxu0
    %v2116 = vadd.f32 0.0, %v2115
    %v2117 = vpop.f32.mrb[0].mxu0
    %v2118 = vadd.f32 0.0, %v2117
    %2119 = vmatprep.mubr.bf16.mxu0 0
    %2120 = vmatmul.mubr.bf16.gmra.mrb[0].mxu0 %v2046
    %v2121 = vpop.f32.mrb[0].mxu0
    %v2122 = vadd.f32 0.0, %v2121
    %v2123 = vpop.f32.mrb[0].mxu0
    %v2124 = vadd.f32 0.0, %v2123
    %v2125 = vpop.f32.mrb[0].mxu0
    %v2126 = vadd.f32 0.0, %v2125
    %v2127 = vpop.f32.mrb[0].mxu0
    %v2128 = vadd.f32 0.0, %v2127
    %2129 = vmatprep.mubr.bf16.mxu0 0
    %2130 = vmatmul.mubr.bf16.gmra.mrb[0].mxu0 %v2049
    %v2131 = vpop.f32.mrb[0].mxu0
    %v2132 = vadd.f32 0.0, %v2131
    %v2133 = vpop.f32.mrb[0].mxu0
    %v2134 = vadd.f32 0.0, %v2133
    %v2135 = vpop.f32.mrb[0].mxu0
    %v2136 = vadd.f32 0.0, %v2135
    %v2137 = vpop.f32.mrb[0].mxu0
    %v2138 = vadd.f32 0.0, %v2137
    %2139 = vmatprep.mubr.bf16.mxu0 0
    %2140 = vmatmul.mubr.bf16.gmra.mrb[0].mxu0 %v2052
    %v2141 = vpop.f32.mrb[0].mxu0
    %v2142 = vadd.f32 0.0, %v2141
    %v2143 = vpop.f32.mrb[0].mxu0
    %v2144 = vadd.f32 0.0, %v2143
    %v2145 = vpop.f32.mrb[0].mxu0
    %v2146 = vadd.f32 0.0, %v2145
    %v2147 = vpop.f32.mrb[0].mxu0
    %v2148 = vadd.f32 0.0, %v2147
    %2149 = vmatprep.mubr.bf16.mxu0 0
    %2150 = vmatmul.mubr.bf16.gmra.mrb[0].mxu0 %v2055
    %v2151 = vpop.f32.mrb[0].mxu0
    %v2152 = vadd.f32 0.0, %v2151
    %v2153 = vpop.f32.mrb[0].mxu0
    %v2154 = vadd.f32 0.0, %v2153
    %v2155 = vpop.f32.mrb[0].mxu0
    %v2156 = vadd.f32 0.0, %v2155
    %v2157 = vpop.f32.mrb[0].mxu0
    %v2158 = vadd.f32 0.0, %v2157
    %2159 = vdwg.mxu0
    %v2161 = vlaneseq
    %v2162 = vshrl.u32 %v2161, 7
    %v2163 = vsub.s32 0, %v2162
    %v2164 = vrot.slane %v2004, %v2163
    %2165 = vrot.lane.b32.xlu0 %v2164, 64
    %v2166 = vpop.permute.xlu0 %2165
    %v2168 = vadd.f32 %v2094, %v2166
    %v2169 = vadd.f32 %v2098, %v2166
    %v2170 = vadd.f32 %v2104, %v2166
    %v2171 = vadd.f32 %v2108, %v2166
    %v2172 = vadd.f32 %v2114, %v2166
    %v2173 = vadd.f32 %v2118, %v2166
    %v2174 = vadd.f32 %v2124, %v2166
    %v2175 = vadd.f32 %v2128, %v2166
    %v2176 = vadd.f32 %v2134, %v2166
    %v2177 = vadd.f32 %v2138, %v2166
    %v2178 = vadd.f32 %v2144, %v2166
    %v2179 = vadd.f32 %v2148, %v2166
    %v2180 = vadd.f32 %v2154, %v2166
    %v2181 = vadd.f32 %v2158, %v2166
    %v2182 = vmax.f32 %v2168, 0.0
    %v2183 = vmax.f32 %v2169, 0.0
    %v2184 = vmax.f32 %v2170, 0.0
    %v2185 = vmax.f32 %v2171, 0.0
    %v2186 = vmax.f32 %v2172, 0.0
    %v2187 = vmax.f32 %v2173, 0.0
    %v2188 = vmax.f32 %v2174, 0.0
    %v2189 = vmax.f32 %v2175, 0.0
    %v2190 = vmax.f32 %v2176, 0.0
    %v2191 = vmax.f32 %v2177, 0.0
    %v2192 = vmax.f32 %v2178, 0.0
    %v2193 = vmax.f32 %v2179, 0.0
    %v2194 = vmax.f32 %v2180, 0.0
    %v2195 = vmax.f32 %v2181, 0.0
    %v2196 = vand.u32 2147483647, %v2168
    %v2197 = vand.u32 2147483647, %v2169
    %v2198 = vand.u32 2147483647, %v2170
    %v2199 = vand.u32 2147483647, %v2171
    %v2200 = vand.u32 2147483647, %v2172
    %v2201 = vand.u32 2147483647, %v2173
    %v2202 = vand.u32 2147483647, %v2174
    %v2203 = vand.u32 2147483647, %v2175
    %v2204 = vand.u32 2147483647, %v2176
    %v2205 = vand.u32 2147483647, %v2177
    %v2206 = vand.u32 2147483647, %v2178
    %v2207 = vand.u32 2147483647, %v2179
    %v2208 = vand.u32 2147483647, %v2180
    %v2209 = vand.u32 2147483647, %v2181
    %v2210 = vsub.f32 0.0, %v2196
    %v2211 = vsub.f32 0.0, %v2197
    %v2212 = vsub.f32 0.0, %v2198
    %v2213 = vsub.f32 0.0, %v2199
    %v2214 = vsub.f32 0.0, %v2200
    %v2215 = vsub.f32 0.0, %v2201
    %v2216 = vsub.f32 0.0, %v2202
    %v2217 = vsub.f32 0.0, %v2203
    %v2218 = vsub.f32 0.0, %v2204
    %v2219 = vsub.f32 0.0, %v2205
    %v2220 = vsub.f32 0.0, %v2206
    %v2221 = vsub.f32 0.0, %v2207
    %v2222 = vsub.f32 0.0, %v2208
    %v2223 = vsub.f32 0.0, %v2209
    %v2224 = vmul.f32 %v2210, 1.442695
    %v2225 = vpow.pop %v2224
    %v2226 = vmul.f32 %v2211, 1.442695
    %v2227 = vpow.pop %v2226
    %v2228 = vmul.f32 %v2212, 1.442695
    %v2229 = vpow.pop %v2228
    %v2230 = vmul.f32 %v2213, 1.442695
    %v2231 = vpow.pop %v2230
    %v2232 = vmul.f32 %v2214, 1.442695
    %v2233 = vpow.pop %v2232
    %v2234 = vmul.f32 %v2215, 1.442695
    %v2235 = vpow.pop %v2234
    %v2236 = vmul.f32 %v2216, 1.442695
    %v2237 = vpow.pop %v2236
    %v2238 = vmul.f32 %v2217, 1.442695
    %v2239 = vpow.pop %v2238
    %v2240 = vmul.f32 %v2218, 1.442695
    %v2241 = vpow.pop %v2240
    %v2242 = vmul.f32 %v2219, 1.442695
    %v2243 = vpow.pop %v2242
    %v2244 = vmul.f32 %v2220, 1.442695
    %v2245 = vpow.pop %v2244
    %v2246 = vmul.f32 %v2221, 1.442695
    %v2247 = vpow.pop %v2246
    %v2248 = vmul.f32 %v2222, 1.442695
    %v2249 = vpow.pop %v2248
    %v2250 = vmul.f32 %v2223, 1.442695
    %v2251 = vpow.pop %v2250
    %v2252 = vadd.f32 %v2225, 1.0
    %v2253 = vadd.f32 %v2227, 1.0
    %v2254 = vadd.f32 %v2229, 1.0
    %v2255 = vadd.f32 %v2231, 1.0
    %v2256 = vadd.f32 %v2233, 1.0
    %v2257 = vadd.f32 %v2235, 1.0
    %v2258 = vadd.f32 %v2237, 1.0
    %v2259 = vadd.f32 %v2239, 1.0
    %v2260 = vadd.f32 %v2241, 1.0
    %v2261 = vadd.f32 %v2243, 1.0
    %v2262 = vadd.f32 %v2245, 1.0
    %v2263 = vadd.f32 %v2247, 1.0
    %v2264 = vadd.f32 %v2249, 1.0
    %v2265 = vadd.f32 %v2251, 1.0
    %v2266 = vlog2.pop %v2252
    %v2267 = vmul.f32 %v2266, 0.6931472
    %v2268 = vlog2.pop %v2253
    %v2269 = vmul.f32 %v2268, 0.6931472
    %v2270 = vlog2.pop %v2254
    %v2271 = vmul.f32 %v2270, 0.6931472
    %v2272 = vlog2.pop %v2255
    %v2273 = vmul.f32 %v2272, 0.6931472
    %v2274 = vlog2.pop %v2256
    %v2275 = vmul.f32 %v2274, 0.6931472
    %v2276 = vlog2.pop %v2257
    %v2277 = vmul.f32 %v2276, 0.6931472
    %v2278 = vlog2.pop %v2258
    %v2279 = vmul.f32 %v2278, 0.6931472
    %v2280 = vlog2.pop %v2259
    %v2281 = vmul.f32 %v2280, 0.6931472
    %v2282 = vlog2.pop %v2260
    %v2283 = vmul.f32 %v2282, 0.6931472
    %v2284 = vlog2.pop %v2261
    %v2285 = vmul.f32 %v2284, 0.6931472
    %v2286 = vlog2.pop %v2262
    %v2287 = vmul.f32 %v2286, 0.6931472
    %v2288 = vlog2.pop %v2263
    %v2289 = vmul.f32 %v2288, 0.6931472
    %v2290 = vlog2.pop %v2264
    %v2291 = vmul.f32 %v2290, 0.6931472
    %v2292 = vlog2.pop %v2265
    %v2293 = vmul.f32 %v2292, 0.6931472
    %v2294 = vadd.f32 %v2182, %v2267
    %v2295 = vadd.f32 %v2183, %v2269
    %v2296 = vadd.f32 %v2184, %v2271
    %v2297 = vadd.f32 %v2185, %v2273
    %v2298 = vadd.f32 %v2186, %v2275
    %v2299 = vadd.f32 %v2187, %v2277
    %v2300 = vadd.f32 %v2188, %v2279
    %v2301 = vadd.f32 %v2189, %v2281
    %v2302 = vadd.f32 %v2190, %v2283
    %v2303 = vadd.f32 %v2191, %v2285
    %v2304 = vadd.f32 %v2192, %v2287
    %v2305 = vadd.f32 %v2193, %v2289
    %v2306 = vadd.f32 %v2194, %v2291
    %v2307 = vadd.f32 %v2195, %v2293
    %v2308 = vld [vmem:[%s8] sm:$0xf]
    %v2309 = vlaneseq
    %v2310 = vshrl.u32 %v2309, 7
    %v2311 = vsub.s32 3, %v2310
    %v2312 = vrot.slane %v2308, %v2311
    %v2313 = vmul.f32 %v2092, %v2312
    %v2314 = vmul.f32 %v2096, %v2312
    %v2315 = vmul.f32 %v2102, %v2312
    %v2316 = vmul.f32 %v2106, %v2312
    %v2317 = vmul.f32 %v2112, %v2312
    %v2318 = vmul.f32 %v2116, %v2312
    %v2319 = vmul.f32 %v2122, %v2312
    %v2320 = vmul.f32 %v2126, %v2312
    %v2321 = vmul.f32 %v2132, %v2312
    %v2322 = vmul.f32 %v2136, %v2312
    %v2323 = vmul.f32 %v2142, %v2312
    %v2324 = vmul.f32 %v2146, %v2312
    %v2325 = vmul.f32 %v2152, %v2312
    %v2326 = vmul.f32 %v2156, %v2312
    %v2327 = vrot.slane %v2092, 7
    %v2328 = vrot.slane %v2096, 7
    %v2329 = vrot.slane %v2102, 7
    %v2330 = vrot.slane %v2106, 7
    %v2331 = vrot.slane %v2112, 7
    %v2332 = vrot.slane %v2116, 7
    %v2333 = vrot.slane %v2122, 7
    %v2334 = vrot.slane %v2126, 7
    %v2335 = vrot.slane %v2132, 7
    %v2336 = vrot.slane %v2136, 7
    %v2337 = vrot.slane %v2142, 7
    %v2338 = vrot.slane %v2146, 7
    %v2339 = vrot.slane %v2152, 7
    %v2340 = vrot.slane %v2156, 7
    %v2341 = vsel %vm1654, %v2339, %v2340
    %v2342 = vsel %vm1654, %v2338, %v2339
    %v2343 = vsel %vm1654, %v2337, %v2338
    %v2344 = vsel %vm1654, %v2336, %v2337
    %v2345 = vsel %vm1654, %v2335, %v2336
    %v2346 = vsel %vm1654, %v2334, %v2335
    %v2347 = vsel %vm1654, %v2333, %v2334
    %v2348 = vsel %vm1654, %v2332, %v2333
    %v2349 = vsel %vm1654, %v2331, %v2332
    %v2350 = vsel %vm1654, %v2330, %v2331
    %v2351 = vsel %vm1654, %v2329, %v2330
    %v2352 = vsel %vm1654, %v2328, %v2329
    %v2353 = vsel %vm1654, %v2327, %v2328
    %v2354 = vsel %vm1654, %v2340, %v2327
    %v2355 = vmul.f32 %v2354, %v1766
    %v2356 = vmul.f32 %v2353, %v1767
    %v2357 = vmul.f32 %v2352, %v1768
    %v2358 = vmul.f32 %v2351, %v1769
    %v2359 = vmul.f32 %v2350, %v1770
    %v2360 = vmul.f32 %v2349, %v1771
    %v2361 = vmul.f32 %v2348, %v1772
    %v2362 = vmul.f32 %v2347, %v1773
    %v2363 = vmul.f32 %v2346, %v1774
    %v2364 = vmul.f32 %v2345, %v1775
    %v2365 = vmul.f32 %v2344, %v1776
    %v2366 = vmul.f32 %v2343, %v1777
    %v2367 = vmul.f32 %v2342, %v1778
    %v2368 = vmul.f32 %v2341, %v1779
    %v2369 = vlaneseq
    %v2370 = vshrl.u32 %v2369, 7
    %v2371 = vsub.s32 2, %v2370
    %v2372 = vrot.slane %v2308, %v2371
    %v2373 = vmul.f32 %v2355, %v2372
    %v2374 = vmul.f32 %v2356, %v2372
    %v2375 = vmul.f32 %v2357, %v2372
    %v2376 = vmul.f32 %v2358, %v2372
    %v2377 = vmul.f32 %v2359, %v2372
    %v2378 = vmul.f32 %v2360, %v2372
    %v2379 = vmul.f32 %v2361, %v2372
    %v2380 = vmul.f32 %v2362, %v2372
    %v2381 = vmul.f32 %v2363, %v2372
    %v2382 = vmul.f32 %v2364, %v2372
    %v2383 = vmul.f32 %v2365, %v2372
    %v2384 = vmul.f32 %v2366, %v2372
    %v2385 = vmul.f32 %v2367, %v2372
    %v2386 = vmul.f32 %v2368, %v2372
    %v2387 = vadd.f32 %v2313, %v2373
    %v2388 = vadd.f32 %v2314, %v2374
    %v2389 = vadd.f32 %v2315, %v2375
    %v2390 = vadd.f32 %v2316, %v2376
    %v2391 = vadd.f32 %v2317, %v2377
    %v2392 = vadd.f32 %v2318, %v2378
    %v2393 = vadd.f32 %v2319, %v2379
    %v2394 = vadd.f32 %v2320, %v2380
    %v2395 = vadd.f32 %v2321, %v2381
    %v2396 = vadd.f32 %v2322, %v2382
    %v2397 = vadd.f32 %v2323, %v2383
    %v2398 = vadd.f32 %v2324, %v2384
    %v2399 = vadd.f32 %v2325, %v2385
    %v2400 = vadd.f32 %v2326, %v2386
    %v2401 = vrot.slane %v2092, 6
    %v2402 = vrot.slane %v2096, 6
    %v2403 = vrot.slane %v2102, 6
    %v2404 = vrot.slane %v2106, 6
    %v2405 = vrot.slane %v2112, 6
    %v2406 = vrot.slane %v2116, 6
    %v2407 = vrot.slane %v2122, 6
    %v2408 = vrot.slane %v2126, 6
    %v2409 = vrot.slane %v2132, 6
    %v2410 = vrot.slane %v2136, 6
    %v2411 = vrot.slane %v2142, 6
    %v2412 = vrot.slane %v2146, 6
    %v2413 = vrot.slane %v2152, 6
    %v2414 = vrot.slane %v2156, 6
    %v2415 = vsel %vm1780, %v2413, %v2414
    %v2416 = vsel %vm1780, %v2412, %v2413
    %v2417 = vsel %vm1780, %v2411, %v2412
    %v2418 = vsel %vm1780, %v2410, %v2411
    %v2419 = vsel %vm1780, %v2409, %v2410
    %v2420 = vsel %vm1780, %v2408, %v2409
    %v2421 = vsel %vm1780, %v2407, %v2408
    %v2422 = vsel %vm1780, %v2406, %v2407
    %v2423 = vsel %vm1780, %v2405, %v2406
    %v2424 = vsel %vm1780, %v2404, %v2405
    %v2425 = vsel %vm1780, %v2403, %v2404
    %v2426 = vsel %vm1780, %v2402, %v2403
    %v2427 = vsel %vm1780, %v2401, %v2402
    %v2428 = vsel %vm1780, %v2414, %v2401
    %v2429 = vmul.f32 %v2428, %v1878
    %v2430 = vmul.f32 %v2427, %v1879
    %v2431 = vmul.f32 %v2426, %v1880
    %v2432 = vmul.f32 %v2425, %v1881
    %v2433 = vmul.f32 %v2424, %v1882
    %v2434 = vmul.f32 %v2423, %v1883
    %v2435 = vmul.f32 %v2422, %v1884
    %v2436 = vmul.f32 %v2421, %v1885
    %v2437 = vmul.f32 %v2420, %v1886
    %v2438 = vmul.f32 %v2419, %v1887
    %v2439 = vmul.f32 %v2418, %v1888
    %v2440 = vmul.f32 %v2417, %v1889
    %v2441 = vmul.f32 %v2416, %v1890
    %v2442 = vmul.f32 %v2415, %v1891
    %v2443 = vlaneseq
    %v2444 = vshrl.u32 %v2443, 7
    %v2445 = vsub.s32 1, %v2444
    %v2446 = vrot.slane %v2308, %v2445
    %v2447 = vmul.f32 %v2429, %v2446
    %v2448 = vmul.f32 %v2430, %v2446
    %v2449 = vmul.f32 %v2431, %v2446
    %v2450 = vmul.f32 %v2432, %v2446
    %v2451 = vmul.f32 %v2433, %v2446
    %v2452 = vmul.f32 %v2434, %v2446
    %v2453 = vmul.f32 %v2435, %v2446
    %v2454 = vmul.f32 %v2436, %v2446
    %v2455 = vmul.f32 %v2437, %v2446
    %v2456 = vmul.f32 %v2438, %v2446
    %v2457 = vmul.f32 %v2439, %v2446
    %v2458 = vmul.f32 %v2440, %v2446
    %v2459 = vmul.f32 %v2441, %v2446
    %v2460 = vmul.f32 %v2442, %v2446
    %v2461 = vadd.f32 %v2387, %v2447
    %v2462 = vadd.f32 %v2388, %v2448
    %v2463 = vadd.f32 %v2389, %v2449
    %v2464 = vadd.f32 %v2390, %v2450
    %v2465 = vadd.f32 %v2391, %v2451
    %v2466 = vadd.f32 %v2392, %v2452
    %v2467 = vadd.f32 %v2393, %v2453
    %v2468 = vadd.f32 %v2394, %v2454
    %v2469 = vadd.f32 %v2395, %v2455
    %v2470 = vadd.f32 %v2396, %v2456
    %v2471 = vadd.f32 %v2397, %v2457
    %v2472 = vadd.f32 %v2398, %v2458
    %v2473 = vadd.f32 %v2399, %v2459
    %v2474 = vadd.f32 %v2400, %v2460
    %v2475 = vrot.slane %v2092, 5
    %v2476 = vrot.slane %v2096, 5
    %v2477 = vrot.slane %v2102, 5
    %v2478 = vrot.slane %v2106, 5
    %v2479 = vrot.slane %v2112, 5
    %v2480 = vrot.slane %v2116, 5
    %v2481 = vrot.slane %v2122, 5
    %v2482 = vrot.slane %v2126, 5
    %v2483 = vrot.slane %v2132, 5
    %v2484 = vrot.slane %v2136, 5
    %v2485 = vrot.slane %v2142, 5
    %v2486 = vrot.slane %v2146, 5
    %v2487 = vrot.slane %v2152, 5
    %v2488 = vrot.slane %v2156, 5
    %v2489 = vsel %vm1892, %v2487, %v2488
    %v2490 = vsel %vm1892, %v2486, %v2487
    %v2491 = vsel %vm1892, %v2485, %v2486
    %v2492 = vsel %vm1892, %v2484, %v2485
    %v2493 = vsel %vm1892, %v2483, %v2484
    %v2494 = vsel %vm1892, %v2482, %v2483
    %v2495 = vsel %vm1892, %v2481, %v2482
    %v2496 = vsel %vm1892, %v2480, %v2481
    %v2497 = vsel %vm1892, %v2479, %v2480
    %v2498 = vsel %vm1892, %v2478, %v2479
    %v2499 = vsel %vm1892, %v2477, %v2478
    %v2500 = vsel %vm1892, %v2476, %v2477
    %v2501 = vsel %vm1892, %v2475, %v2476
    %v2502 = vsel %vm1892, %v2488, %v2475
    %v2503 = vmul.f32 %v2502, %v1990
    %v2504 = vmul.f32 %v2501, %v1991
    %v2505 = vmul.f32 %v2500, %v1992
    %v2506 = vmul.f32 %v2499, %v1993
    %v2507 = vmul.f32 %v2498, %v1994
    %v2508 = vmul.f32 %v2497, %v1995
    %v2509 = vmul.f32 %v2496, %v1996
    %v2510 = vmul.f32 %v2495, %v1997
    %v2511 = vmul.f32 %v2494, %v1998
    %v2512 = vmul.f32 %v2493, %v1999
    %v2513 = vmul.f32 %v2492, %v2000
    %v2514 = vmul.f32 %v2491, %v2001
    %v2515 = vmul.f32 %v2490, %v2002
    %v2516 = vmul.f32 %v2489, %v2003
    %v2517 = vlaneseq
    %v2518 = vshrl.u32 %v2517, 7
    %v2519 = vsub.s32 0, %v2518
    %v2520 = vrot.slane %v2308, %v2519
    %v2521 = vmul.f32 %v2503, %v2520
    %v2522 = vmul.f32 %v2504, %v2520
    %v2523 = vmul.f32 %v2505, %v2520
    %v2524 = vmul.f32 %v2506, %v2520
    %v2525 = vmul.f32 %v2507, %v2520
    %v2526 = vmul.f32 %v2508, %v2520
    %v2527 = vmul.f32 %v2509, %v2520
    %v2528 = vmul.f32 %v2510, %v2520
    %v2529 = vmul.f32 %v2511, %v2520
    %v2530 = vmul.f32 %v2512, %v2520
    %v2531 = vmul.f32 %v2513, %v2520
    %v2532 = vmul.f32 %v2514, %v2520
    %v2533 = vmul.f32 %v2515, %v2520
    %v2534 = vmul.f32 %v2516, %v2520
    %v2535 = vadd.f32 %v2461, %v2521
    %v2536 = vadd.f32 %v2462, %v2522
    %v2537 = vadd.f32 %v2463, %v2523
    %v2538 = vadd.f32 %v2464, %v2524
    %v2539 = vadd.f32 %v2465, %v2525
    %v2540 = vadd.f32 %v2466, %v2526
    %v2541 = vadd.f32 %v2467, %v2527
    %v2542 = vadd.f32 %v2468, %v2528
    %v2543 = vadd.f32 %v2469, %v2529
    %v2544 = vadd.f32 %v2470, %v2530
    %v2545 = vadd.f32 %v2471, %v2531
    %v2546 = vadd.f32 %v2472, %v2532
    %v2547 = vadd.f32 %v2473, %v2533
    %v2548 = vadd.f32 %v2474, %v2534
    %v2549 = vld [vmem:[%s9] sm:$0x1]
    %v2551 = vlaneseq
    %v2552 = vshrl.u32 %v2551, 7
    %v2553 = vsub.s32 0, %v2552
    %v2554 = vrot.slane %v2549, %v2553
    %v2556 = vadd.f32 %v2535, %v2554
    %v2557 = vadd.f32 %v2536, %v2554
    %v2558 = vadd.f32 %v2537, %v2554
    %v2559 = vadd.f32 %v2538, %v2554
    %v2560 = vadd.f32 %v2539, %v2554
    %v2561 = vadd.f32 %v2540, %v2554
    %v2562 = vadd.f32 %v2541, %v2554
    %v2563 = vadd.f32 %v2542, %v2554
    %v2564 = vadd.f32 %v2543, %v2554
    %v2565 = vadd.f32 %v2544, %v2554
    %v2566 = vadd.f32 %v2545, %v2554
    %v2567 = vadd.f32 %v2546, %v2554
    %v2568 = vadd.f32 %v2547, %v2554
    %v2569 = vadd.f32 %v2548, %v2554
    %v2570 = vsub.f32 0.0, %v2556
    %v2571 = vsub.f32 0.0, %v2557
    %v2572 = vsub.f32 0.0, %v2558
    %v2573 = vsub.f32 0.0, %v2559
    %v2574 = vsub.f32 0.0, %v2560
    %v2575 = vsub.f32 0.0, %v2561
    %v2576 = vsub.f32 0.0, %v2562
    %v2577 = vsub.f32 0.0, %v2563
    %v2578 = vsub.f32 0.0, %v2564
    %v2579 = vsub.f32 0.0, %v2565
    %v2580 = vsub.f32 0.0, %v2566
    %v2581 = vsub.f32 0.0, %v2567
    %v2582 = vsub.f32 0.0, %v2568
    %v2583 = vsub.f32 0.0, %v2569
    %v2584 = vmul.f32 %v2570, 1.442695
    %v2585 = vpow.pop %v2584
    %v2586 = vmul.f32 %v2571, 1.442695
    %v2587 = vpow.pop %v2586
    %v2588 = vmul.f32 %v2572, 1.442695
    %v2589 = vpow.pop %v2588
    %v2590 = vmul.f32 %v2573, 1.442695
    %v2591 = vpow.pop %v2590
    %v2592 = vmul.f32 %v2574, 1.442695
    %v2593 = vpow.pop %v2592
    %v2594 = vmul.f32 %v2575, 1.442695
    %v2595 = vpow.pop %v2594
    %v2596 = vmul.f32 %v2576, 1.442695
    %v2597 = vpow.pop %v2596
    %v2598 = vmul.f32 %v2577, 1.442695
    %v2599 = vpow.pop %v2598
    %v2600 = vmul.f32 %v2578, 1.442695
    %v2601 = vpow.pop %v2600
    %v2602 = vmul.f32 %v2579, 1.442695
    %v2603 = vpow.pop %v2602
    %v2604 = vmul.f32 %v2580, 1.442695
    %v2605 = vpow.pop %v2604
    %v2606 = vmul.f32 %v2581, 1.442695
    %v2607 = vpow.pop %v2606
    %v2608 = vmul.f32 %v2582, 1.442695
    %v2609 = vpow.pop %v2608
    %v2610 = vmul.f32 %v2583, 1.442695
    %v2611 = vpow.pop %v2610
    %v2612 = vadd.f32 %v2585, 1.0
    %v2613 = vadd.f32 %v2587, 1.0
    %v2614 = vadd.f32 %v2589, 1.0
    %v2615 = vadd.f32 %v2591, 1.0
    %v2616 = vadd.f32 %v2593, 1.0
    %v2617 = vadd.f32 %v2595, 1.0
    %v2618 = vadd.f32 %v2597, 1.0
    %v2619 = vadd.f32 %v2599, 1.0
    %v2620 = vadd.f32 %v2601, 1.0
    %v2621 = vadd.f32 %v2603, 1.0
    %v2622 = vadd.f32 %v2605, 1.0
    %v2623 = vadd.f32 %v2607, 1.0
    %v2624 = vadd.f32 %v2609, 1.0
    %v2625 = vadd.f32 %v2611, 1.0
    %v2626 = vrcp.pop %v2612
    %v2627 = vmul.f32 1.0, %v2626
    %v2628 = vrcp.pop %v2613
    %v2629 = vmul.f32 1.0, %v2628
    %v2630 = vrcp.pop %v2614
    %v2631 = vmul.f32 1.0, %v2630
    %v2632 = vrcp.pop %v2615
    %v2633 = vmul.f32 1.0, %v2632
    %v2634 = vrcp.pop %v2616
    %v2635 = vmul.f32 1.0, %v2634
    %v2636 = vrcp.pop %v2617
    %v2637 = vmul.f32 1.0, %v2636
    %v2638 = vrcp.pop %v2618
    %v2639 = vmul.f32 1.0, %v2638
    %v2640 = vrcp.pop %v2619
    %v2641 = vmul.f32 1.0, %v2640
    %v2642 = vrcp.pop %v2620
    %v2643 = vmul.f32 1.0, %v2642
    %v2644 = vrcp.pop %v2621
    %v2645 = vmul.f32 1.0, %v2644
    %v2646 = vrcp.pop %v2622
    %v2647 = vmul.f32 1.0, %v2646
    %v2648 = vrcp.pop %v2623
    %v2649 = vmul.f32 1.0, %v2648
    %v2650 = vrcp.pop %v2624
    %v2651 = vmul.f32 1.0, %v2650
    %v2652 = vrcp.pop %v2625
    %v2653 = vmul.f32 1.0, %v2652
    %v2654 = vmul.f32 %v2556, %v2627
    %v2655 = vmul.f32 %v2557, %v2629
    %v2656 = vmul.f32 %v2558, %v2631
    %v2657 = vmul.f32 %v2559, %v2633
    %v2658 = vmul.f32 %v2560, %v2635
    %v2659 = vmul.f32 %v2561, %v2637
    %v2660 = vmul.f32 %v2562, %v2639
    %v2661 = vmul.f32 %v2563, %v2641
    %v2662 = vmul.f32 %v2564, %v2643
    %v2663 = vmul.f32 %v2565, %v2645
    %v2664 = vmul.f32 %v2566, %v2647
    %v2665 = vmul.f32 %v2567, %v2649
    %v2666 = vmul.f32 %v2568, %v2651
    %v2667 = vmul.f32 %v2569, %v2653
    %2682 = vrot.lane.b32.xlu0 %v2654, 48
    %v2683 = vpop.permute.xlu0 %2682
    %2684 = vrot.lane.b32.xlu0 %v2655, 48
    %v2685 = vpop.permute.xlu0 %2684
    %2686 = vrot.lane.b32.xlu0 %v2656, 48
    %v2687 = vpop.permute.xlu0 %2686
    %2688 = vrot.lane.b32.xlu0 %v2657, 48
    %v2689 = vpop.permute.xlu0 %2688
    %2690 = vrot.lane.b32.xlu0 %v2658, 48
    %v2691 = vpop.permute.xlu0 %2690
    %2692 = vrot.lane.b32.xlu0 %v2659, 48
    %v2693 = vpop.permute.xlu0 %2692
    %2694 = vrot.lane.b32.xlu0 %v2660, 48
    %v2695 = vpop.permute.xlu0 %2694
    %2696 = vrot.lane.b32.xlu0 %v2661, 48
    %v2697 = vpop.permute.xlu0 %2696
    %2698 = vrot.lane.b32.xlu0 %v2662, 48
    %v2699 = vpop.permute.xlu0 %2698
    %2700 = vrot.lane.b32.xlu0 %v2663, 48
    %v2701 = vpop.permute.xlu0 %2700
    %2702 = vrot.lane.b32.xlu0 %v2664, 48
    %v2703 = vpop.permute.xlu0 %2702
    %2704 = vrot.lane.b32.xlu0 %v2665, 48
    %v2705 = vpop.permute.xlu0 %2704
    %2706 = vrot.lane.b32.xlu0 %v2666, 48
    %v2707 = vpop.permute.xlu0 %2706
    %2708 = vrot.lane.b32.xlu0 %v2667, 48
    %v2709 = vpop.permute.xlu0 %2708
    %2710 = vrot.lane.b32.xlu0 %v2654, 64
    %v2711 = vpop.permute.xlu0 %2710
    %2712 = vrot.lane.b32.xlu0 %v2655, 64
    %v2713 = vpop.permute.xlu0 %2712
    %2714 = vrot.lane.b32.xlu0 %v2656, 64
    %v2715 = vpop.permute.xlu0 %2714
    %2716 = vrot.lane.b32.xlu0 %v2657, 64
    %v2717 = vpop.permute.xlu0 %2716
    %2718 = vrot.lane.b32.xlu0 %v2658, 64
    %v2719 = vpop.permute.xlu0 %2718
    %2720 = vrot.lane.b32.xlu0 %v2659, 64
    %v2721 = vpop.permute.xlu0 %2720
    %2722 = vrot.lane.b32.xlu0 %v2660, 64
    %v2723 = vpop.permute.xlu0 %2722
    %2724 = vrot.lane.b32.xlu0 %v2661, 64
    %v2725 = vpop.permute.xlu0 %2724
    %2726 = vrot.lane.b32.xlu0 %v2662, 64
    %v2727 = vpop.permute.xlu0 %2726
    %2728 = vrot.lane.b32.xlu0 %v2663, 64
    %v2729 = vpop.permute.xlu0 %2728
    %2730 = vrot.lane.b32.xlu0 %v2664, 64
    %v2731 = vpop.permute.xlu0 %2730
    %2732 = vrot.lane.b32.xlu0 %v2665, 64
    %v2733 = vpop.permute.xlu0 %2732
    %2734 = vrot.lane.b32.xlu0 %v2666, 64
    %v2735 = vpop.permute.xlu0 %2734
    %2736 = vrot.lane.b32.xlu0 %v2667, 64
    %v2737 = vpop.permute.xlu0 %2736
    %vm2738 = vcmask 130048
    %v2739 = vsel %vm2738, %v2683, 0
    %v2741 = vsel %vm2738, %v2685, 0
    %v2743 = vsel %vm2738, %v2687, 0
    %v2745 = vsel %vm2738, %v2689, 0
    %v2747 = vsel %vm2738, %v2691, 0
    %v2749 = vsel %vm2738, %v2693, 0
    %v2751 = vsel %vm2738, %v2695, 0
    %v2753 = vsel %vm2738, %v2697, 0
    %v2755 = vsel %vm2738, %v2699, 0
    %v2757 = vsel %vm2738, %v2701, 0
    %v2759 = vsel %vm2738, %v2703, 0
    %v2761 = vsel %vm2738, %v2705, 0
    %v2763 = vsel %vm2738, %v2707, 0
    %v2765 = vsel %vm2738, %v2709, 0
    %v2767 = vsel %vm2738, %v2711, 0
    %v2769 = vsel %vm2738, %v2713, 0
    %v2771 = vsel %vm2738, %v2715, 0
    %v2773 = vsel %vm2738, %v2717, 0
    %v2775 = vsel %vm2738, %v2719, 0
    %v2777 = vsel %vm2738, %v2721, 0
    %v2779 = vsel %vm2738, %v2723, 0
    %v2781 = vsel %vm2738, %v2725, 0
    %v2783 = vsel %vm2738, %v2727, 0
    %v2785 = vsel %vm2738, %v2729, 0
    %v2787 = vsel %vm2738, %v2731, 0
    %v2789 = vsel %vm2738, %v2733, 0
    %v2791 = vsel %vm2738, %v2735, 0
    %v2793 = vsel %vm2738, %v2737, 0
    %2795 = vmatprep.subr.mxu0 0.0
    %2796 = vmatpush1.xpose.msra.mxu0 %v2767
    %2797 = vmatprep.subr.mxu0 0.0
    %2798 = vmatpush1.xpose.msra.mxu0 %v2769
    %2799 = vmatprep.subr.mxu0 0.0
    %2800 = vmatpush1.xpose.msra.mxu0 %v2771
    %2801 = vmatprep.subr.mxu0 0.0
    %2802 = vmatpush1.xpose.msra.mxu0 %v2773
    %2803 = vmatprep.subr.mxu0 0.0
    %2804 = vmatpush1.xpose.msra.mxu0 %v2775
    %2805 = vmatprep.subr.mxu0 0.0
    %2806 = vmatpush1.xpose.msra.mxu0 %v2777
    %2807 = vmatprep.subr.mxu0 0.0
    %2808 = vmatpush1.xpose.msra.mxu0 %v2779
    %2809 = vmatprep.subr.mxu0 0.0
    %2810 = vmatpush1.xpose.msra.mxu0 %v2781
    %2811 = vmatprep.subr.mxu0 0.0
    %2812 = vmatpush1.xpose.msra.mxu0 %v2783
    %2813 = vmatprep.subr.mxu0 0.0
    %2814 = vmatpush1.xpose.msra.mxu0 %v2785
    %2815 = vmatprep.subr.mxu0 0.0
    %2816 = vmatpush1.xpose.msra.mxu0 %v2787
    %2817 = vmatprep.subr.mxu0 0.0
    %2818 = vmatpush1.xpose.msra.mxu0 %v2789
    %2819 = vmatprep.subr.mxu0 0.0
    %2820 = vmatpush1.xpose.msra.mxu0 %v2791
    %2821 = vmatprep.subr.mxu0 0.0
    %2822 = vmatpush1.xpose.msra.mxu0 %v2793
    %2823 = vmatprep.subr.mxu0 0.0
    %2824 = vmatpush1.xpose.msra.mxu0 0.0
    %2825 = vmatprep.subr.mxu0 0.0
    %2826 = vmatpush1.xpose.msra.mxu0 0.0
    %2827 = vmatprep.subr.mxu0 0.0
    %2828 = vmatpush1.xpose.msra.mxu0 0.0
    %2829 = vmatprep.subr.mxu0 0.0
    %2830 = vmatpush1.xpose.msra.mxu0 0.0
    %2831 = vmatprep.subr.mxu0 0.0
    %2832 = vmatpush1.xpose.msra.mxu0 0.0
    %2833 = vmatprep.subr.mxu0 0.0
    %2834 = vmatpush1.xpose.msra.mxu0 0.0
    %2835 = vmatprep.subr.mxu0 0.0
    %2836 = vmatpush1.xpose.msra.mxu0 0.0
    %2837 = vmatprep.subr.mxu0 0.0
    %2838 = vmatpush1.xpose.msra.mxu0 0.0
    %2839 = vmatprep.subr.mxu0 0.0
    %2840 = vmatpush1.xpose.msra.mxu0 0.0
    %2841 = vmatprep.subr.mxu0 0.0
    %2842 = vmatpush1.xpose.msra.mxu0 0.0
    %2843 = vmatprep.subr.mxu0 0.0
    %2844 = vmatpush1.xpose.msra.mxu0 0.0
    %2845 = vmatprep.subr.mxu0 0.0
    %2846 = vmatpush1.xpose.msra.mxu0 0.0
    %2847 = vmatprep.subr.mxu0 0.0
    %2848 = vmatpush1.xpose.msra.mxu0 0.0
    %2849 = vmatprep.subr.mxu0 0.0
    %2850 = vmatpush1.xpose.msra.mxu0 0.0
    %2851 = vmatprep.subr.mxu0 0.0
    %2852 = vmatpush1.xpose.msra.mxu0 0.0
    %2853 = vmatprep.subr.mxu0 0.0
    %2854 = vmatpush1.xpose.msra.mxu0 0.0
    %2855 = vmatprep.subr.mxu0 0.0
    %2856 = vmatpush1.xpose.msra.mxu0 0.0
    %2857 = vmatprep.subr.mxu0 0.0
    %2858 = vmatpush1.xpose.msra.mxu0 0.0
    %2859 = vmatprep.mubr.f32.mxu0 0.0
    %2860 = vmatmul.mubr.f32.gmra.mrb[0].mxu0 %v2739
    %v2861 = vpop.f32.mrb[0].mxu0
    %v2862 = vadd.f32 0.0, %v2861
    %v2863 = vpop.f32.mrb[0].mxu0
    %2864 = vmatprep.mubr.f32.mxu0 0.0
    %2865 = vmatmul.mubr.f32.gmra.mrb[0].mxu0 %v2741
    %v2866 = vpop.f32.mrb[0].mxu0
    %v2867 = vadd.f32 0.0, %v2866
    %v2868 = vpop.f32.mrb[0].mxu0
    %2869 = vmatprep.mubr.f32.mxu0 0.0
    %2870 = vmatmul.mubr.f32.gmra.mrb[0].mxu0 %v2743
    %v2871 = vpop.f32.mrb[0].mxu0
    %v2872 = vadd.f32 0.0, %v2871
    %v2873 = vpop.f32.mrb[0].mxu0
    %2874 = vmatprep.mubr.f32.mxu0 0.0
    %2875 = vmatmul.mubr.f32.gmra.mrb[0].mxu0 %v2745
    %v2876 = vpop.f32.mrb[0].mxu0
    %v2877 = vadd.f32 0.0, %v2876
    %v2878 = vpop.f32.mrb[0].mxu0
    %2879 = vmatprep.mubr.f32.mxu0 0.0
    %2880 = vmatmul.mubr.f32.gmra.mrb[0].mxu0 %v2747
    %v2881 = vpop.f32.mrb[0].mxu0
    %v2882 = vadd.f32 0.0, %v2881
    %v2883 = vpop.f32.mrb[0].mxu0
    %2884 = vmatprep.mubr.f32.mxu0 0.0
    %2885 = vmatmul.mubr.f32.gmra.mrb[0].mxu0 %v2749
    %v2886 = vpop.f32.mrb[0].mxu0
    %v2887 = vadd.f32 0.0, %v2886
    %v2888 = vpop.f32.mrb[0].mxu0
    %2889 = vmatprep.mubr.f32.mxu0 0.0
    %2890 = vmatmul.mubr.f32.gmra.mrb[0].mxu0 %v2751
    %v2891 = vpop.f32.mrb[0].mxu0
    %v2892 = vadd.f32 0.0, %v2891
    %v2893 = vpop.f32.mrb[0].mxu0
    %2894 = vmatprep.mubr.f32.mxu0 0.0
    %2895 = vmatmul.mubr.f32.gmra.mrb[0].mxu0 %v2753
    %v2896 = vpop.f32.mrb[0].mxu0
    %v2897 = vadd.f32 0.0, %v2896
    %v2898 = vpop.f32.mrb[0].mxu0
    %2899 = vmatprep.mubr.f32.mxu0 0.0
    %2900 = vmatmul.mubr.f32.gmra.mrb[0].mxu0 %v2755
    %v2901 = vpop.f32.mrb[0].mxu0
    %v2902 = vadd.f32 0.0, %v2901
    %v2903 = vpop.f32.mrb[0].mxu0
    %2904 = vmatprep.mubr.f32.mxu0 0.0
    %2905 = vmatmul.mubr.f32.gmra.mrb[0].mxu0 %v2757
    %v2906 = vpop.f32.mrb[0].mxu0
    %v2907 = vadd.f32 0.0, %v2906
    %v2908 = vpop.f32.mrb[0].mxu0
    %2909 = vmatprep.mubr.f32.mxu0 0.0
    %2910 = vmatmul.mubr.f32.gmra.mrb[0].mxu0 %v2759
    %v2911 = vpop.f32.mrb[0].mxu0
    %v2912 = vadd.f32 0.0, %v2911
    %v2913 = vpop.f32.mrb[0].mxu0
    %2914 = vmatprep.mubr.f32.mxu0 0.0
    %2915 = vmatmul.mubr.f32.gmra.mrb[0].mxu0 %v2761
    %v2916 = vpop.f32.mrb[0].mxu0
    %v2917 = vadd.f32 0.0, %v2916
    %v2918 = vpop.f32.mrb[0].mxu0
    %2919 = vmatprep.mubr.f32.mxu0 0.0
    %2920 = vmatmul.mubr.f32.gmra.mrb[0].mxu0 %v2763
    %v2921 = vpop.f32.mrb[0].mxu0
    %v2922 = vadd.f32 0.0, %v2921
    %v2923 = vpop.f32.mrb[0].mxu0
    %2924 = vmatprep.mubr.f32.mxu0 0.0
    %2925 = vmatmul.mubr.f32.gmra.mrb[0].mxu0 %v2765
    %v2926 = vpop.f32.mrb[0].mxu0
    %v2927 = vadd.f32 0.0, %v2926
    %v2928 = vpop.f32.mrb[0].mxu0
    %2929 = vdwg.mxu0
    %2944 = vrot.lane.b32.xlu0 %v2294, 64
    %v2945 = vpop.permute.xlu0 %2944
    %2946 = vrot.lane.b32.xlu0 %v2295, 64
    %v2947 = vpop.permute.xlu0 %2946
    %2948 = vrot.lane.b32.xlu0 %v2296, 64
    %v2949 = vpop.permute.xlu0 %2948
    %2950 = vrot.lane.b32.xlu0 %v2297, 64
    %v2951 = vpop.permute.xlu0 %2950
    %2952 = vrot.lane.b32.xlu0 %v2298, 64
    %v2953 = vpop.permute.xlu0 %2952
    %2954 = vrot.lane.b32.xlu0 %v2299, 64
    %v2955 = vpop.permute.xlu0 %2954
    %2956 = vrot.lane.b32.xlu0 %v2300, 64
    %v2957 = vpop.permute.xlu0 %2956
    %2958 = vrot.lane.b32.xlu0 %v2301, 64
    %v2959 = vpop.permute.xlu0 %2958
    %2960 = vrot.lane.b32.xlu0 %v2302, 64
    %v2961 = vpop.permute.xlu0 %2960
    %2962 = vrot.lane.b32.xlu0 %v2303, 64
    %v2963 = vpop.permute.xlu0 %2962
    %2964 = vrot.lane.b32.xlu0 %v2304, 64
    %v2965 = vpop.permute.xlu0 %2964
    %2966 = vrot.lane.b32.xlu0 %v2305, 64
    %v2967 = vpop.permute.xlu0 %2966
    %2968 = vrot.lane.b32.xlu0 %v2306, 64
    %v2969 = vpop.permute.xlu0 %2968
    %2970 = vrot.lane.b32.xlu0 %v2307, 64
    %v2971 = vpop.permute.xlu0 %2970
    %vm2986 = vcmask 916480
    %v2988 = vsel %vm2986, %v1611, 0
    %v2991 = vsel %vm2986, %v1612, 0
    %v2994 = vsel %vm2986, %v1613, 0
    %v2997 = vsel %vm2986, %v1614, 0
    %v3000 = vsel %vm2986, %v1615, 0
    %v3003 = vsel %vm2986, %v1616, 0
    %v3006 = vsel %vm2986, %v1617, 0
    %v3009 = vsel %vm2986, %v1618, 0
    %v3012 = vsel %vm2986, %v1619, 0
    %v3015 = vsel %vm2986, %v1620, 0
    %v3018 = vsel %vm2986, %v1621, 0
    %v3021 = vsel %vm2986, %v1622, 0
    %v3024 = vsel %vm2986, %v1623, 0
    %v3027 = vsel %vm2986, %v1624, 0
    %3029 = vmatprep.subr.mxu0 0.0
    %3030 = vmatpush1.msra.mxu0 %v2945
    %3031 = vmatprep.subr.mxu0 0.0
    %3032 = vmatpush1.msra.mxu0 %v2947
    %3033 = vmatprep.subr.mxu0 0.0
    %3034 = vmatpush1.msra.mxu0 %v2949
    %3035 = vmatprep.subr.mxu0 0.0
    %3036 = vmatpush1.msra.mxu0 %v2951
    %3037 = vmatprep.subr.mxu0 0.0
    %3038 = vmatpush1.msra.mxu0 %v2953
    %3039 = vmatprep.subr.mxu0 0.0
    %3040 = vmatpush1.msra.mxu0 %v2955
    %3041 = vmatprep.subr.mxu0 0.0
    %3042 = vmatpush1.msra.mxu0 %v2957
    %3043 = vmatprep.subr.mxu0 0.0
    %3044 = vmatpush1.msra.mxu0 %v2959
    %3045 = vmatprep.subr.mxu0 0.0
    %3046 = vmatpush1.msra.mxu0 %v2961
    %3047 = vmatprep.subr.mxu0 0.0
    %3048 = vmatpush1.msra.mxu0 %v2963
    %3049 = vmatprep.subr.mxu0 0.0
    %3050 = vmatpush1.msra.mxu0 %v2965
    %3051 = vmatprep.subr.mxu0 0.0
    %3052 = vmatpush1.msra.mxu0 %v2967
    %3053 = vmatprep.subr.mxu0 0.0
    %3054 = vmatpush1.msra.mxu0 %v2969
    %3055 = vmatprep.subr.mxu0 0.0
    %3056 = vmatpush1.msra.mxu0 %v2971
    %3057 = vmatprep.subr.mxu0 0.0
    %3058 = vmatpush1.msra.mxu0 0.0
    %3059 = vmatprep.subr.mxu0 0.0
    %3060 = vmatpush1.msra.mxu0 0.0
    %3061 = vmatprep.subr.mxu0 0.0
    %3062 = vmatpush1.msra.mxu0 0.0
    %3063 = vmatprep.subr.mxu0 0.0
    %3064 = vmatpush1.msra.mxu0 0.0
    %3065 = vmatprep.subr.mxu0 0.0
    %3066 = vmatpush1.msra.mxu0 0.0
    %3067 = vmatprep.subr.mxu0 0.0
    %3068 = vmatpush1.msra.mxu0 0.0
    %3069 = vmatprep.subr.mxu0 0.0
    %3070 = vmatpush1.msra.mxu0 0.0
    %3071 = vmatprep.subr.mxu0 0.0
    %3072 = vmatpush1.msra.mxu0 0.0
    %3073 = vmatprep.subr.mxu0 0.0
    %3074 = vmatpush1.msra.mxu0 0.0
    %3075 = vmatprep.subr.mxu0 0.0
    %3076 = vmatpush1.msra.mxu0 0.0
    %3077 = vmatprep.subr.mxu0 0.0
    %3078 = vmatpush1.msra.mxu0 0.0
    %3079 = vmatprep.subr.mxu0 0.0
    %3080 = vmatpush1.msra.mxu0 0.0
    %3081 = vmatprep.subr.mxu0 0.0
    %3082 = vmatpush1.msra.mxu0 0.0
    %3083 = vmatprep.subr.mxu0 0.0
    %3084 = vmatpush1.msra.mxu0 0.0
    %3085 = vmatprep.subr.mxu0 0.0
    %3086 = vmatpush1.msra.mxu0 0.0
    %3087 = vmatprep.subr.mxu0 0.0
    %3088 = vmatpush1.msra.mxu0 0.0
    %3089 = vmatprep.subr.mxu0 0.0
    %3090 = vmatpush1.msra.mxu0 0.0
    %3091 = vmatprep.subr.mxu0 0.0
    %3092 = vmatpush1.msra.mxu0 0.0
    %3093 = vmatprep.mubr.f32.mxu0 0.0
    %3094 = vmatmul.mubr.f32.gmra.mrb[0].mxu0 %v2988
    %v3095 = vpop.f32.mrb[0].mxu0
    %v3096 = vadd.f32 0.0, %v3095
    %v3097 = vpop.f32.mrb[0].mxu0
    %3098 = vmatprep.mubr.f32.mxu0 0.0
    %3099 = vmatmul.mubr.f32.gmra.mrb[0].mxu0 %v2991
    %v3100 = vpop.f32.mrb[0].mxu0
    %v3101 = vadd.f32 0.0, %v3100
    %v3102 = vpop.f32.mrb[0].mxu0
    %3103 = vmatprep.mubr.f32.mxu0 0.0
    %3104 = vmatmul.mubr.f32.gmra.mrb[0].mxu0 %v2994
    %v3105 = vpop.f32.mrb[0].mxu0
    %v3106 = vadd.f32 0.0, %v3105
    %v3107 = vpop.f32.mrb[0].mxu0
    %3108 = vmatprep.mubr.f32.mxu0 0.0
    %3109 = vmatmul.mubr.f32.gmra.mrb[0].mxu0 %v2997
    %v3110 = vpop.f32.mrb[0].mxu0
    %v3111 = vadd.f32 0.0, %v3110
    %v3112 = vpop.f32.mrb[0].mxu0
    %3113 = vmatprep.mubr.f32.mxu0 0.0
    %3114 = vmatmul.mubr.f32.gmra.mrb[0].mxu0 %v3000
    %v3115 = vpop.f32.mrb[0].mxu0
    %v3116 = vadd.f32 0.0, %v3115
    %v3117 = vpop.f32.mrb[0].mxu0
    %3118 = vmatprep.mubr.f32.mxu0 0.0
    %3119 = vmatmul.mubr.f32.gmra.mrb[0].mxu0 %v3003
    %v3120 = vpop.f32.mrb[0].mxu0
    %v3121 = vadd.f32 0.0, %v3120
    %v3122 = vpop.f32.mrb[0].mxu0
    %3123 = vmatprep.mubr.f32.mxu0 0.0
    %3124 = vmatmul.mubr.f32.gmra.mrb[0].mxu0 %v3006
    %v3125 = vpop.f32.mrb[0].mxu0
    %v3126 = vadd.f32 0.0, %v3125
    %v3127 = vpop.f32.mrb[0].mxu0
    %3128 = vmatprep.mubr.f32.mxu0 0.0
    %3129 = vmatmul.mubr.f32.gmra.mrb[0].mxu0 %v3009
    %v3130 = vpop.f32.mrb[0].mxu0
    %v3131 = vadd.f32 0.0, %v3130
    %v3132 = vpop.f32.mrb[0].mxu0
    %3133 = vmatprep.mubr.f32.mxu0 0.0
    %3134 = vmatmul.mubr.f32.gmra.mrb[0].mxu0 %v3012
    %v3135 = vpop.f32.mrb[0].mxu0
    %v3136 = vadd.f32 0.0, %v3135
    %v3137 = vpop.f32.mrb[0].mxu0
    %3138 = vmatprep.mubr.f32.mxu0 0.0
    %3139 = vmatmul.mubr.f32.gmra.mrb[0].mxu0 %v3015
    %v3140 = vpop.f32.mrb[0].mxu0
    %v3141 = vadd.f32 0.0, %v3140
    %v3142 = vpop.f32.mrb[0].mxu0
    %3143 = vmatprep.mubr.f32.mxu0 0.0
    %3144 = vmatmul.mubr.f32.gmra.mrb[0].mxu0 %v3018
    %v3145 = vpop.f32.mrb[0].mxu0
    %v3146 = vadd.f32 0.0, %v3145
    %v3147 = vpop.f32.mrb[0].mxu0
    %3148 = vmatprep.mubr.f32.mxu0 0.0
    %3149 = vmatmul.mubr.f32.gmra.mrb[0].mxu0 %v3021
    %v3150 = vpop.f32.mrb[0].mxu0
    %v3151 = vadd.f32 0.0, %v3150
    %v3152 = vpop.f32.mrb[0].mxu0
    %3153 = vmatprep.mubr.f32.mxu0 0.0
    %3154 = vmatmul.mubr.f32.gmra.mrb[0].mxu0 %v3024
    %v3155 = vpop.f32.mrb[0].mxu0
    %v3156 = vadd.f32 0.0, %v3155
    %v3157 = vpop.f32.mrb[0].mxu0
    %3158 = vmatprep.mubr.f32.mxu0 0.0
    %3159 = vmatmul.mubr.f32.gmra.mrb[0].mxu0 %v3027
    %v3160 = vpop.f32.mrb[0].mxu0
    %v3161 = vadd.f32 0.0, %v3160
    %v3162 = vpop.f32.mrb[0].mxu0
    %3163 = vdwg.mxu0
    %3164 = vxpose.xlu0.b32.start [1/16] %v2945, 128
    %3165 = vxpose.xlu0.b32.cont [2/16] %v2947, 128
    %3166 = vxpose.xlu0.b32.cont [3/16] %v2949, 128
    %3167 = vxpose.xlu0.b32.cont [4/16] %v2951, 128
    %3168 = vxpose.xlu0.b32.cont [5/16] %v2953, 128
    %3169 = vxpose.xlu0.b32.cont [6/16] %v2955, 128
    %3170 = vxpose.xlu0.b32.cont [7/16] %v2957, 128
    %3171 = vxpose.xlu0.b32.cont [8/16] %v2959, 128
    %3172 = vxpose.xlu0.b32.cont [9/16] %v2961, 128
    %3173 = vxpose.xlu0.b32.cont [10/16] %v2963, 128
    %3174 = vxpose.xlu0.b32.cont [11/16] %v2965, 128
    %3175 = vxpose.xlu0.b32.cont [12/16] %v2967, 128
    %3176 = vxpose.xlu0.b32.cont [13/16] %v2969, 128
    %3177 = vxpose.xlu0.b32.cont [14/16] %v2971, 128
    %3178 = vxpose.xlu0.b32.cont [15/16] 0.0, 128
    %3179 = vxpose.xlu0.b32.end [16/16] 0.0, 128
    %v3180 = vpop.trf.xlu0
    %v3181 = vpop.trf.xlu0
    %v3182 = vpop.trf.xlu0
    %v3183 = vpop.trf.xlu0
    %v3184 = vpop.trf.xlu0
    %v3185 = vpop.trf.xlu0
    %v3186 = vpop.trf.xlu0
    %v3187 = vpop.trf.xlu0
    %v3188 = vpop.trf.xlu0
    %v3189 = vpop.trf.xlu0
    %v3190 = vpop.trf.xlu0
    %v3191 = vpop.trf.xlu0
    %v3192 = vpop.trf.xlu0
    %v3193 = vpop.trf.xlu0
    %v3194 = vpop.trf.xlu0
    %v3195 = vpop.trf.xlu0
    %v3197 = vsel %vm2986, %v3180, 0
    %3199 = vmatprep.subr.mxu0 0.0
    %3200 = vmatpush1.xpose.msra.mxu0 %v2988
    %3201 = vmatprep.subr.mxu0 0.0
    %3202 = vmatpush1.xpose.msra.mxu0 %v2991
    %3203 = vmatprep.subr.mxu0 0.0
    %3204 = vmatpush1.xpose.msra.mxu0 %v2994
    %3205 = vmatprep.subr.mxu0 0.0
    %3206 = vmatpush1.xpose.msra.mxu0 %v2997
    %3207 = vmatprep.subr.mxu0 0.0
    %3208 = vmatpush1.xpose.msra.mxu0 %v3000
    %3209 = vmatprep.subr.mxu0 0.0
    %3210 = vmatpush1.xpose.msra.mxu0 %v3003
    %3211 = vmatprep.subr.mxu0 0.0
    %3212 = vmatpush1.xpose.msra.mxu0 %v3006
    %3213 = vmatprep.subr.mxu0 0.0
    %3214 = vmatpush1.xpose.msra.mxu0 %v3009
    %3215 = vmatprep.subr.mxu0 0.0
    %3216 = vmatpush1.xpose.msra.mxu0 %v3012
    %3217 = vmatprep.subr.mxu0 0.0
    %3218 = vmatpush1.xpose.msra.mxu0 %v3015
    %3219 = vmatprep.subr.mxu0 0.0
    %3220 = vmatpush1.xpose.msra.mxu0 %v3018
    %3221 = vmatprep.subr.mxu0 0.0
    %3222 = vmatpush1.xpose.msra.mxu0 %v3021
    %3223 = vmatprep.subr.mxu0 0.0
    %3224 = vmatpush1.xpose.msra.mxu0 %v3024
    %3225 = vmatprep.subr.mxu0 0.0
    %3226 = vmatpush1.xpose.msra.mxu0 %v3027
    %3227 = vmatprep.subr.mxu0 0.0
    %3228 = vmatpush1.xpose.msra.mxu0 0.0
    %3229 = vmatprep.subr.mxu0 0.0
    %3230 = vmatpush1.xpose.msra.mxu0 0.0
    %3231 = vmatprep.subr.mxu0 0.0
    %3232 = vmatpush1.xpose.msra.mxu0 0.0
    %3233 = vmatprep.subr.mxu0 0.0
    %3234 = vmatpush1.xpose.msra.mxu0 0.0
    %3235 = vmatprep.subr.mxu0 0.0
    %3236 = vmatpush1.xpose.msra.mxu0 0.0
    %3237 = vmatprep.subr.mxu0 0.0
    %3238 = vmatpush1.xpose.msra.mxu0 0.0
    %3239 = vmatprep.subr.mxu0 0.0
    %3240 = vmatpush1.xpose.msra.mxu0 0.0
    %3241 = vmatprep.subr.mxu0 0.0
    %3242 = vmatpush1.xpose.msra.mxu0 0.0
    %3243 = vmatprep.subr.mxu0 0.0
    %3244 = vmatpush1.xpose.msra.mxu0 0.0
    %3245 = vmatprep.subr.mxu0 0.0
    %3246 = vmatpush1.xpose.msra.mxu0 0.0
    %3247 = vmatprep.subr.mxu0 0.0
    %3248 = vmatpush1.xpose.msra.mxu0 0.0
    %3249 = vmatprep.subr.mxu0 0.0
    %3250 = vmatpush1.xpose.msra.mxu0 0.0
    %3251 = vmatprep.subr.mxu0 0.0
    %3252 = vmatpush1.xpose.msra.mxu0 0.0
    %3253 = vmatprep.subr.mxu0 0.0
    %3254 = vmatpush1.xpose.msra.mxu0 0.0
    %3255 = vmatprep.subr.mxu0 0.0
    %3256 = vmatpush1.xpose.msra.mxu0 0.0
    %3257 = vmatprep.subr.mxu0 0.0
    %3258 = vmatpush1.xpose.msra.mxu0 0.0
    %3259 = vmatprep.subr.mxu0 0.0
    %3260 = vmatpush1.xpose.msra.mxu0 0.0
    %3261 = vmatprep.subr.mxu0 0.0
    %3262 = vmatpush1.xpose.msra.mxu0 0.0
    %3263 = vmatprep.mubr.f32.mxu0 0.0
    %3264 = vmatmul.mubr.f32.gmra.mrb[0].mxu0 %v3197
    %v3265 = vpop.f32.mrb[0].mxu0
    %v3266 = vadd.f32 0.0, %v3265
    %v3267 = vpop.f32.mrb[0].mxu0
    %3268 = vdwg.mxu0
    %3270 = vset.pattern.permute.xlu0 0
    %3271 = vperm.xlu0 %3270, %v3096
    %v3272 = vpop.permute.xlu0 %3271
    %3275 = vset.pattern.permute.xlu0 0
    %3276 = vperm.xlu0 %3275, %v3101
    %v3277 = vpop.permute.xlu0 %3276
    %3280 = vset.pattern.permute.xlu0 0
    %3281 = vperm.xlu0 %3280, %v3106
    %v3282 = vpop.permute.xlu0 %3281
    %3285 = vset.pattern.permute.xlu0 0
    %3286 = vperm.xlu0 %3285, %v3111
    %v3287 = vpop.permute.xlu0 %3286
    %3290 = vset.pattern.permute.xlu0 0
    %3291 = vperm.xlu0 %3290, %v3116
    %v3292 = vpop.permute.xlu0 %3291
    %3295 = vset.pattern.permute.xlu0 0
    %3296 = vperm.xlu0 %3295, %v3121
    %v3297 = vpop.permute.xlu0 %3296
    %3300 = vset.pattern.permute.xlu0 0
    %3301 = vperm.xlu0 %3300, %v3126
    %v3302 = vpop.permute.xlu0 %3301
    %3305 = vset.pattern.permute.xlu0 0
    %3306 = vperm.xlu0 %3305, %v3131
    %v3307 = vpop.permute.xlu0 %3306
    %3310 = vset.pattern.permute.xlu0 0
    %3311 = vperm.xlu0 %3310, %v3136
    %v3312 = vpop.permute.xlu0 %3311
    %3315 = vset.pattern.permute.xlu0 0
    %3316 = vperm.xlu0 %3315, %v3141
    %v3317 = vpop.permute.xlu0 %3316
    %3320 = vset.pattern.permute.xlu0 0
    %3321 = vperm.xlu0 %3320, %v3146
    %v3322 = vpop.permute.xlu0 %3321
    %3325 = vset.pattern.permute.xlu0 0
    %3326 = vperm.xlu0 %3325, %v3151
    %v3327 = vpop.permute.xlu0 %3326
    %3330 = vset.pattern.permute.xlu0 0
    %3331 = vperm.xlu0 %3330, %v3156
    %v3332 = vpop.permute.xlu0 %3331
    %3335 = vset.pattern.permute.xlu0 0
    %3336 = vperm.xlu0 %3335, %v3161
    %v3337 = vpop.permute.xlu0 %3336
    %v3339 = vlaneseq
    %v3340 = vshrl.u32 %v3339, 7
    %v3341 = vsub.s32 0, %v3340
    %v3342 = vrot.slane %v3266, %v3341
    %v3343 = vsub.f32 %v3272, %v3342
    %v3344 = vsub.f32 %v3277, %v3342
    %v3345 = vsub.f32 %v3282, %v3342
    %v3346 = vsub.f32 %v3287, %v3342
    %v3347 = vsub.f32 %v3292, %v3342
    %v3348 = vsub.f32 %v3297, %v3342
    %v3349 = vsub.f32 %v3302, %v3342
    %v3350 = vsub.f32 %v3307, %v3342
    %v3351 = vsub.f32 %v3312, %v3342
    %v3352 = vsub.f32 %v3317, %v3342
    %v3353 = vsub.f32 %v3322, %v3342
    %v3354 = vsub.f32 %v3327, %v3342
    %v3355 = vsub.f32 %v3332, %v3342
    %v3356 = vsub.f32 %v3337, %v3342
    %v3357 = vmul.f32 %v3343, %v1611
    %v3358 = vmul.f32 %v3344, %v1612
    %v3359 = vmul.f32 %v3345, %v1613
    %v3360 = vmul.f32 %v3346, %v1614
    %v3361 = vmul.f32 %v3347, %v1615
    %v3362 = vmul.f32 %v3348, %v1616
    %v3363 = vmul.f32 %v3349, %v1617
    %v3364 = vmul.f32 %v3350, %v1618
    %v3365 = vmul.f32 %v3351, %v1619
    %v3366 = vmul.f32 %v3352, %v1620
    %v3367 = vmul.f32 %v3353, %v1621
    %v3368 = vmul.f32 %v3354, %v1622
    %v3369 = vmul.f32 %v3355, %v1623
    %v3370 = vmul.f32 %v3356, %v1624
    %3371 = vset.pattern.permute.xlu0 2
    %3372 = vperm.xlu0 %3371, %v2164
    %v3373 = vpop.permute.xlu0 %3372
    %v3375 = vmul.f32 %v3373, %v3357
    %v3376 = vmul.f32 %v3373, %v3358
    %v3377 = vmul.f32 %v3373, %v3359
    %v3378 = vmul.f32 %v3373, %v3360
    %v3379 = vmul.f32 %v3373, %v3361
    %v3380 = vmul.f32 %v3373, %v3362
    %v3381 = vmul.f32 %v3373, %v3363
    %v3382 = vmul.f32 %v3373, %v3364
    %v3383 = vmul.f32 %v3373, %v3365
    %v3384 = vmul.f32 %v3373, %v3366
    %v3385 = vmul.f32 %v3373, %v3367
    %v3386 = vmul.f32 %v3373, %v3368
    %v3387 = vmul.f32 %v3373, %v3369
    %v3388 = vmul.f32 %v3373, %v3370
    %v3389 = vmul.f32 %v3375, 1.442695
    %v3390 = vpow.pop %v3389
    %v3391 = vmul.f32 %v3376, 1.442695
    %v3392 = vpow.pop %v3391
    %v3393 = vmul.f32 %v3377, 1.442695
    %v3394 = vpow.pop %v3393
    %v3395 = vmul.f32 %v3378, 1.442695
    %v3396 = vpow.pop %v3395
    %v3397 = vmul.f32 %v3379, 1.442695
    %v3398 = vpow.pop %v3397
    %v3399 = vmul.f32 %v3380, 1.442695
    %v3400 = vpow.pop %v3399
    %v3401 = vmul.f32 %v3381, 1.442695
    %v3402 = vpow.pop %v3401
    %v3403 = vmul.f32 %v3382, 1.442695
    %v3404 = vpow.pop %v3403
    %v3405 = vmul.f32 %v3383, 1.442695
    %v3406 = vpow.pop %v3405
    %v3407 = vmul.f32 %v3384, 1.442695
    %v3408 = vpow.pop %v3407
    %v3409 = vmul.f32 %v3385, 1.442695
    %v3410 = vpow.pop %v3409
    %v3411 = vmul.f32 %v3386, 1.442695
    %v3412 = vpow.pop %v3411
    %v3413 = vmul.f32 %v3387, 1.442695
    %v3414 = vpow.pop %v3413
    %v3415 = vmul.f32 %v3388, 1.442695
    %v3416 = vpow.pop %v3415
    %v3417 = vmul.f32 %v3390, %v1611
    %v3418 = vmul.f32 %v3392, %v1612
    %v3419 = vmul.f32 %v3394, %v1613
    %v3420 = vmul.f32 %v3396, %v1614
    %v3421 = vmul.f32 %v3398, %v1615
    %v3422 = vmul.f32 %v3400, %v1616
    %v3423 = vmul.f32 %v3402, %v1617
    %v3424 = vmul.f32 %v3404, %v1618
    %v3425 = vmul.f32 %v3406, %v1619
    %v3426 = vmul.f32 %v3408, %v1620
    %v3427 = vmul.f32 %v3410, %v1621
    %v3428 = vmul.f32 %v3412, %v1622
    %v3429 = vmul.f32 %v3414, %v1623
    %v3430 = vmul.f32 %v3416, %v1624
    %v3431 = vmul.f32 %v2862, %v3417
    %v3432 = vmul.f32 %v2867, %v3418
    %v3433 = vmul.f32 %v2872, %v3419
    %v3434 = vmul.f32 %v2877, %v3420
    %v3435 = vmul.f32 %v2882, %v3421
    %v3436 = vmul.f32 %v2887, %v3422
    %v3437 = vmul.f32 %v2892, %v3423
    %v3438 = vmul.f32 %v2897, %v3424
    %v3439 = vmul.f32 %v2902, %v3425
    %v3440 = vmul.f32 %v2907, %v3426
    %v3441 = vmul.f32 %v2912, %v3427
    %v3442 = vmul.f32 %v2917, %v3428
    %v3443 = vmul.f32 %v2922, %v3429
    %v3444 = vmul.f32 %v2927, %v3430
    %3445 = vset.pattern.permute.xlu0 64
    %3446 = vperm.xlu0 %3445, %v2294
    %v3447 = vpop.permute.xlu0 %3446
    %3449 = vset.pattern.permute.xlu0 64
    %3450 = vperm.xlu0 %3449, %v2295
    %v3451 = vpop.permute.xlu0 %3450
    %3453 = vset.pattern.permute.xlu0 64
    %3454 = vperm.xlu0 %3453, %v2296
    %v3455 = vpop.permute.xlu0 %3454
    %3457 = vset.pattern.permute.xlu0 64
    %3458 = vperm.xlu0 %3457, %v2297
    %v3459 = vpop.permute.xlu0 %3458
    %3461 = vset.pattern.permute.xlu0 64
    %3462 = vperm.xlu0 %3461, %v2298
    %v3463 = vpop.permute.xlu0 %3462
    %3465 = vset.pattern.permute.xlu0 64
    %3466 = vperm.xlu0 %3465, %v2299
    %v3467 = vpop.permute.xlu0 %3466
    %3469 = vset.pattern.permute.xlu0 64
    %3470 = vperm.xlu0 %3469, %v2300
    %v3471 = vpop.permute.xlu0 %3470
    %3473 = vset.pattern.permute.xlu0 64
    %3474 = vperm.xlu0 %3473, %v2301
    %v3475 = vpop.permute.xlu0 %3474
    %3477 = vset.pattern.permute.xlu0 64
    %3478 = vperm.xlu0 %3477, %v2302
    %v3479 = vpop.permute.xlu0 %3478
    %3481 = vset.pattern.permute.xlu0 64
    %3482 = vperm.xlu0 %3481, %v2303
    %v3483 = vpop.permute.xlu0 %3482
    %3485 = vset.pattern.permute.xlu0 64
    %3486 = vperm.xlu0 %3485, %v2304
    %v3487 = vpop.permute.xlu0 %3486
    %3489 = vset.pattern.permute.xlu0 64
    %3490 = vperm.xlu0 %3489, %v2305
    %v3491 = vpop.permute.xlu0 %3490
    %3493 = vset.pattern.permute.xlu0 64
    %3494 = vperm.xlu0 %3493, %v2306
    %v3495 = vpop.permute.xlu0 %3494
    %3497 = vset.pattern.permute.xlu0 64
    %3498 = vperm.xlu0 %3497, %v2307
    %v3499 = vpop.permute.xlu0 %3498
    %v3501 = vmul.f32 %v2654, %v3447
    %v3502 = vmul.f32 %v2655, %v3451
    %v3503 = vmul.f32 %v2656, %v3455
    %v3504 = vmul.f32 %v2657, %v3459
    %v3505 = vmul.f32 %v2658, %v3463
    %v3506 = vmul.f32 %v2659, %v3467
    %v3507 = vmul.f32 %v2660, %v3471
    %v3508 = vmul.f32 %v2661, %v3475
    %v3509 = vmul.f32 %v2662, %v3479
    %v3510 = vmul.f32 %v2663, %v3483
    %v3511 = vmul.f32 %v2664, %v3487
    %v3512 = vmul.f32 %v2665, %v3491
    %v3513 = vmul.f32 %v2666, %v3495
    %v3514 = vmul.f32 %v2667, %v3499
    %3515 = vset.pattern.permute.xlu0 4
    %3516 = vperm.xlu0 %3515, %v2164
    %v3517 = vpop.permute.xlu0 %3516
    %v3519 = vmul.f32 %v3517, %v2654
    %v3520 = vmul.f32 %v3517, %v2655
    %v3521 = vmul.f32 %v3517, %v2656
    %v3522 = vmul.f32 %v3517, %v2657
    %v3523 = vmul.f32 %v3517, %v2658
    %v3524 = vmul.f32 %v3517, %v2659
    %v3525 = vmul.f32 %v3517, %v2660
    %v3526 = vmul.f32 %v3517, %v2661
    %v3527 = vmul.f32 %v3517, %v2662
    %v3528 = vmul.f32 %v3517, %v2663
    %v3529 = vmul.f32 %v3517, %v2664
    %v3530 = vmul.f32 %v3517, %v2665
    %v3531 = vmul.f32 %v3517, %v2666
    %v3532 = vmul.f32 %v3517, %v2667
    %v3534 = vsel %vm2986, %v3431, 0
    %v3537 = vsel %vm2986, %v3432, 0
    %v3540 = vsel %vm2986, %v3433, 0
    %v3543 = vsel %vm2986, %v3434, 0
    %v3546 = vsel %vm2986, %v3435, 0
    %v3549 = vsel %vm2986, %v3436, 0
    %v3552 = vsel %vm2986, %v3437, 0
    %v3555 = vsel %vm2986, %v3438, 0
    %v3558 = vsel %vm2986, %v3439, 0
    %v3561 = vsel %vm2986, %v3440, 0
    %v3564 = vsel %vm2986, %v3441, 0
    %v3567 = vsel %vm2986, %v3442, 0
    %v3570 = vsel %vm2986, %v3443, 0
    %v3573 = vsel %vm2986, %v3444, 0
    %3575 = vmatprep.subr.mxu0 0.0
    %3576 = vmatpush1.msra.mxu0 %v3501
    %3577 = vmatprep.subr.mxu0 0.0
    %3578 = vmatpush1.msra.mxu0 %v3502
    %3579 = vmatprep.subr.mxu0 0.0
    %3580 = vmatpush1.msra.mxu0 %v3503
    %3581 = vmatprep.subr.mxu0 0.0
    %3582 = vmatpush1.msra.mxu0 %v3504
    %3583 = vmatprep.subr.mxu0 0.0
    %3584 = vmatpush1.msra.mxu0 %v3505
    %3585 = vmatprep.subr.mxu0 0.0
    %3586 = vmatpush1.msra.mxu0 %v3506
    %3587 = vmatprep.subr.mxu0 0.0
    %3588 = vmatpush1.msra.mxu0 %v3507
    %3589 = vmatprep.subr.mxu0 0.0
    %3590 = vmatpush1.msra.mxu0 %v3508
    %3591 = vmatprep.subr.mxu0 0.0
    %3592 = vmatpush1.msra.mxu0 %v3509
    %3593 = vmatprep.subr.mxu0 0.0
    %3594 = vmatpush1.msra.mxu0 %v3510
    %3595 = vmatprep.subr.mxu0 0.0
    %3596 = vmatpush1.msra.mxu0 %v3511
    %3597 = vmatprep.subr.mxu0 0.0
    %3598 = vmatpush1.msra.mxu0 %v3512
    %3599 = vmatprep.subr.mxu0 0.0
    %3600 = vmatpush1.msra.mxu0 %v3513
    %3601 = vmatprep.subr.mxu0 0.0
    %3602 = vmatpush1.msra.mxu0 %v3514
    %3603 = vmatprep.subr.mxu0 0.0
    %3604 = vmatpush1.msra.mxu0 0.0
    %3605 = vmatprep.subr.mxu0 0.0
    %3606 = vmatpush1.msra.mxu0 0.0
    %3607 = vmatprep.subr.mxu0 0.0
    %3608 = vmatpush1.msra.mxu0 0.0
    %3609 = vmatprep.subr.mxu0 0.0
    %3610 = vmatpush1.msra.mxu0 0.0
    %3611 = vmatprep.subr.mxu0 0.0
    %3612 = vmatpush1.msra.mxu0 0.0
    %3613 = vmatprep.subr.mxu0 0.0
    %3614 = vmatpush1.msra.mxu0 0.0
    %3615 = vmatprep.subr.mxu0 0.0
    %3616 = vmatpush1.msra.mxu0 0.0
    %3617 = vmatprep.subr.mxu0 0.0
    %3618 = vmatpush1.msra.mxu0 0.0
    %3619 = vmatprep.subr.mxu0 0.0
    %3620 = vmatpush1.msra.mxu0 0.0
    %3621 = vmatprep.subr.mxu0 0.0
    %3622 = vmatpush1.msra.mxu0 0.0
    %3623 = vmatprep.subr.mxu0 0.0
    %3624 = vmatpush1.msra.mxu0 0.0
    %3625 = vmatprep.subr.mxu0 0.0
    %3626 = vmatpush1.msra.mxu0 0.0
    %3627 = vmatprep.subr.mxu0 0.0
    %3628 = vmatpush1.msra.mxu0 0.0
    %3629 = vmatprep.subr.mxu0 0.0
    %3630 = vmatpush1.msra.mxu0 0.0
    %3631 = vmatprep.subr.mxu0 0.0
    %3632 = vmatpush1.msra.mxu0 0.0
    %3633 = vmatprep.subr.mxu0 0.0
    %3634 = vmatpush1.msra.mxu0 0.0
    %3635 = vmatprep.subr.mxu0 0.0
    %3636 = vmatpush1.msra.mxu0 0.0
    %3637 = vmatprep.subr.mxu0 0.0
    %3638 = vmatpush1.msra.mxu0 0.0
    %3639 = vmatprep.mubr.f32.mxu0 0.0
    %3640 = vmatmul.mubr.f32.gmra.mrb[0].mxu0 %v3534
    %v3641 = vpop.f32.mrb[0].mxu0
    %v3642 = vadd.f32 %v3519, %v3641
    %v3643 = vpop.f32.mrb[0].mxu0
    %3644 = vmatprep.mubr.f32.mxu0 0.0
    %3645 = vmatmul.mubr.f32.gmra.mrb[0].mxu0 %v3537
    %v3646 = vpop.f32.mrb[0].mxu0
    %v3647 = vadd.f32 %v3520, %v3646
    %v3648 = vpop.f32.mrb[0].mxu0
    %3649 = vmatprep.mubr.f32.mxu0 0.0
    %3650 = vmatmul.mubr.f32.gmra.mrb[0].mxu0 %v3540
    %v3651 = vpop.f32.mrb[0].mxu0
    %v3652 = vadd.f32 %v3521, %v3651
    %v3653 = vpop.f32.mrb[0].mxu0
    %3654 = vmatprep.mubr.f32.mxu0 0.0
    %3655 = vmatmul.mubr.f32.gmra.mrb[0].mxu0 %v3543
    %v3656 = vpop.f32.mrb[0].mxu0
    %v3657 = vadd.f32 %v3522, %v3656
    %v3658 = vpop.f32.mrb[0].mxu0
    %3659 = vmatprep.mubr.f32.mxu0 0.0
    %3660 = vmatmul.mubr.f32.gmra.mrb[0].mxu0 %v3546
    %v3661 = vpop.f32.mrb[0].mxu0
    %v3662 = vadd.f32 %v3523, %v3661
    %v3663 = vpop.f32.mrb[0].mxu0
    %3664 = vmatprep.mubr.f32.mxu0 0.0
    %3665 = vmatmul.mubr.f32.gmra.mrb[0].mxu0 %v3549
    %v3666 = vpop.f32.mrb[0].mxu0
    %v3667 = vadd.f32 %v3524, %v3666
    %v3668 = vpop.f32.mrb[0].mxu0
    %3669 = vmatprep.mubr.f32.mxu0 0.0
    %3670 = vmatmul.mubr.f32.gmra.mrb[0].mxu0 %v3552
    %v3671 = vpop.f32.mrb[0].mxu0
    %v3672 = vadd.f32 %v3525, %v3671
    %v3673 = vpop.f32.mrb[0].mxu0
    %3674 = vmatprep.mubr.f32.mxu0 0.0
    %3675 = vmatmul.mubr.f32.gmra.mrb[0].mxu0 %v3555
    %v3676 = vpop.f32.mrb[0].mxu0
    %v3677 = vadd.f32 %v3526, %v3676
    %v3678 = vpop.f32.mrb[0].mxu0
    %3679 = vmatprep.mubr.f32.mxu0 0.0
    %3680 = vmatmul.mubr.f32.gmra.mrb[0].mxu0 %v3558
    %v3681 = vpop.f32.mrb[0].mxu0
    %v3682 = vadd.f32 %v3527, %v3681
    %v3683 = vpop.f32.mrb[0].mxu0
    %3684 = vmatprep.mubr.f32.mxu0 0.0
    %3685 = vmatmul.mubr.f32.gmra.mrb[0].mxu0 %v3561
    %v3686 = vpop.f32.mrb[0].mxu0
    %v3687 = vadd.f32 %v3528, %v3686
    %v3688 = vpop.f32.mrb[0].mxu0
    %3689 = vmatprep.mubr.f32.mxu0 0.0
    %3690 = vmatmul.mubr.f32.gmra.mrb[0].mxu0 %v3564
    %v3691 = vpop.f32.mrb[0].mxu0
    %v3692 = vadd.f32 %v3529, %v3691
    %v3693 = vpop.f32.mrb[0].mxu0
    %3694 = vmatprep.mubr.f32.mxu0 0.0
    %3695 = vmatmul.mubr.f32.gmra.mrb[0].mxu0 %v3567
    %v3696 = vpop.f32.mrb[0].mxu0
    %v3697 = vadd.f32 %v3530, %v3696
    %v3698 = vpop.f32.mrb[0].mxu0
    %3699 = vmatprep.mubr.f32.mxu0 0.0
    %3700 = vmatmul.mubr.f32.gmra.mrb[0].mxu0 %v3570
    %v3701 = vpop.f32.mrb[0].mxu0
    %v3702 = vadd.f32 %v3531, %v3701
    %v3703 = vpop.f32.mrb[0].mxu0
    %3704 = vmatprep.mubr.f32.mxu0 0.0
    %3705 = vmatmul.mubr.f32.gmra.mrb[0].mxu0 %v3573
    %v3706 = vpop.f32.mrb[0].mxu0
    %v3707 = vadd.f32 %v3532, %v3706
    %v3708 = vpop.f32.mrb[0].mxu0
    %3709 = vdwg.mxu0
    %3710 = vst.msk [vmem:[#allocation3] sm:$0xff] %vm209, %v3642
    %3711 = vst.msk [vmem:[#allocation3 + $0x8] sm:$0xff] %vm209, %v3647
    %3712 = vst.msk [vmem:[#allocation3 + $0x10] sm:$0xff] %vm209, %v3652
    %3713 = vst.msk [vmem:[#allocation3 + $0x18] sm:$0xff] %vm209, %v3657
    %3714 = vst.msk [vmem:[#allocation3 + $0x20] sm:$0xff] %vm209, %v3662
    %3715 = vst.msk [vmem:[#allocation3 + $0x28] sm:$0xff] %vm209, %v3667
    %3716 = vst.msk [vmem:[#allocation3 + $0x30] sm:$0xff] %vm209, %v3672
    %3717 = vst.msk [vmem:[#allocation3 + $0x38] sm:$0xff] %vm209, %v3677
    %3718 = vst.msk [vmem:[#allocation3 + $0x40] sm:$0xff] %vm209, %v3682
    %3719 = vst.msk [vmem:[#allocation3 + $0x48] sm:$0xff] %vm209, %v3687
    %3720 = vst.msk [vmem:[#allocation3 + $0x50] sm:$0xff] %vm209, %v3692
    %3721 = vst.msk [vmem:[#allocation3 + $0x58] sm:$0xff] %vm209, %v3697
    %3722 = vst.msk [vmem:[#allocation3 + $0x60] sm:$0xff] %vm209, %v3702
    %3723 = vst.msk [vmem:[#allocation3 + $0x68] sm:$0xff] %vm209, %v3707
    %3724 = vset.pattern.permute.xlu0 1
    %3725 = vperm.xlu0 %3724, %v3096
    %v3726 = vpop.permute.xlu0 %3725
    %3728 = vset.pattern.permute.xlu0 1
    %3729 = vperm.xlu0 %3728, %v3101
    %v3730 = vpop.permute.xlu0 %3729
    %3732 = vset.pattern.permute.xlu0 1
    %3733 = vperm.xlu0 %3732, %v3106
    %v3734 = vpop.permute.xlu0 %3733
    %3736 = vset.pattern.permute.xlu0 1
    %3737 = vperm.xlu0 %3736, %v3111
    %v3738 = vpop.permute.xlu0 %3737
    %3740 = vset.pattern.permute.xlu0 1
    %3741 = vperm.xlu0 %3740, %v3116
    %v3742 = vpop.permute.xlu0 %3741
    %3744 = vset.pattern.permute.xlu0 1
    %3745 = vperm.xlu0 %3744, %v3121
    %v3746 = vpop.permute.xlu0 %3745
    %3748 = vset.pattern.permute.xlu0 1
    %3749 = vperm.xlu0 %3748, %v3126
    %v3750 = vpop.permute.xlu0 %3749
    %3752 = vset.pattern.permute.xlu0 1
    %3753 = vperm.xlu0 %3752, %v3131
    %v3754 = vpop.permute.xlu0 %3753
    %3756 = vset.pattern.permute.xlu0 1
    %3757 = vperm.xlu0 %3756, %v3136
    %v3758 = vpop.permute.xlu0 %3757
    %3760 = vset.pattern.permute.xlu0 1
    %3761 = vperm.xlu0 %3760, %v3141
    %v3762 = vpop.permute.xlu0 %3761
    %3764 = vset.pattern.permute.xlu0 1
    %3765 = vperm.xlu0 %3764, %v3146
    %v3766 = vpop.permute.xlu0 %3765
    %3768 = vset.pattern.permute.xlu0 1
    %3769 = vperm.xlu0 %3768, %v3151
    %v3770 = vpop.permute.xlu0 %3769
    %3772 = vset.pattern.permute.xlu0 1
    %3773 = vperm.xlu0 %3772, %v3156
    %v3774 = vpop.permute.xlu0 %3773
    %3776 = vset.pattern.permute.xlu0 1
    %3777 = vperm.xlu0 %3776, %v3161
    %v3778 = vpop.permute.xlu0 %3777
    %v3780 = vlaneseq
    %v3781 = vshrl.u32 %v3780, 7
    %v3782 = vsub.s32 1, %v3781
    %v3783 = vrot.slane %v3266, %v3782
    %v3784 = vsub.f32 %v3726, %v3783
    %v3785 = vsub.f32 %v3730, %v3783
    %v3786 = vsub.f32 %v3734, %v3783
    %v3787 = vsub.f32 %v3738, %v3783
    %v3788 = vsub.f32 %v3742, %v3783
    %v3789 = vsub.f32 %v3746, %v3783
    %v3790 = vsub.f32 %v3750, %v3783
    %v3791 = vsub.f32 %v3754, %v3783
    %v3792 = vsub.f32 %v3758, %v3783
    %v3793 = vsub.f32 %v3762, %v3783
    %v3794 = vsub.f32 %v3766, %v3783
    %v3795 = vsub.f32 %v3770, %v3783
    %v3796 = vsub.f32 %v3774, %v3783
    %v3797 = vsub.f32 %v3778, %v3783
    %v3798 = vmul.f32 %v3784, %v1611
    %v3799 = vmul.f32 %v3785, %v1612
    %v3800 = vmul.f32 %v3786, %v1613
    %v3801 = vmul.f32 %v3787, %v1614
    %v3802 = vmul.f32 %v3788, %v1615
    %v3803 = vmul.f32 %v3789, %v1616
    %v3804 = vmul.f32 %v3790, %v1617
    %v3805 = vmul.f32 %v3791, %v1618
    %v3806 = vmul.f32 %v3792, %v1619
    %v3807 = vmul.f32 %v3793, %v1620
    %v3808 = vmul.f32 %v3794, %v1621
    %v3809 = vmul.f32 %v3795, %v1622
    %v3810 = vmul.f32 %v3796, %v1623
    %v3811 = vmul.f32 %v3797, %v1624
    %3812 = vset.pattern.permute.xlu0 3
    %3813 = vperm.xlu0 %3812, %v2164
    %v3814 = vpop.permute.xlu0 %3813
    %v3816 = vmul.f32 %v3814, %v3798
    %v3817 = vmul.f32 %v3814, %v3799
    %v3818 = vmul.f32 %v3814, %v3800
    %v3819 = vmul.f32 %v3814, %v3801
    %v3820 = vmul.f32 %v3814, %v3802
    %v3821 = vmul.f32 %v3814, %v3803
    %v3822 = vmul.f32 %v3814, %v3804
    %v3823 = vmul.f32 %v3814, %v3805
    %v3824 = vmul.f32 %v3814, %v3806
    %v3825 = vmul.f32 %v3814, %v3807
    %v3826 = vmul.f32 %v3814, %v3808
    %v3827 = vmul.f32 %v3814, %v3809
    %v3828 = vmul.f32 %v3814, %v3810
    %v3829 = vmul.f32 %v3814, %v3811
    %v3830 = vmul.f32 %v3816, 1.442695
    %v3831 = vpow.pop %v3830
    %v3832 = vmul.f32 %v3817, 1.442695
    %v3833 = vpow.pop %v3832
    %v3834 = vmul.f32 %v3818, 1.442695
    %v3835 = vpow.pop %v3834
    %v3836 = vmul.f32 %v3819, 1.442695
    %v3837 = vpow.pop %v3836
    %v3838 = vmul.f32 %v3820, 1.442695
    %v3839 = vpow.pop %v3838
    %v3840 = vmul.f32 %v3821, 1.442695
    %v3841 = vpow.pop %v3840
    %v3842 = vmul.f32 %v3822, 1.442695
    %v3843 = vpow.pop %v3842
    %v3844 = vmul.f32 %v3823, 1.442695
    %v3845 = vpow.pop %v3844
    %v3846 = vmul.f32 %v3824, 1.442695
    %v3847 = vpow.pop %v3846
    %v3848 = vmul.f32 %v3825, 1.442695
    %v3849 = vpow.pop %v3848
    %v3850 = vmul.f32 %v3826, 1.442695
    %v3851 = vpow.pop %v3850
    %v3852 = vmul.f32 %v3827, 1.442695
    %v3853 = vpow.pop %v3852
    %v3854 = vmul.f32 %v3828, 1.442695
    %v3855 = vpow.pop %v3854
    %v3856 = vmul.f32 %v3829, 1.442695
    %v3857 = vpow.pop %v3856
    %v3858 = vmul.f32 %v3831, %v1611
    %v3859 = vmul.f32 %v3833, %v1612
    %v3860 = vmul.f32 %v3835, %v1613
    %v3861 = vmul.f32 %v3837, %v1614
    %v3862 = vmul.f32 %v3839, %v1615
    %v3863 = vmul.f32 %v3841, %v1616
    %v3864 = vmul.f32 %v3843, %v1617
    %v3865 = vmul.f32 %v3845, %v1618
    %v3866 = vmul.f32 %v3847, %v1619
    %v3867 = vmul.f32 %v3849, %v1620
    %v3868 = vmul.f32 %v3851, %v1621
    %v3869 = vmul.f32 %v3853, %v1622
    %v3870 = vmul.f32 %v3855, %v1623
    %v3871 = vmul.f32 %v3857, %v1624
    %v3872 = vmul.f32 %v2862, %v3858
    %v3873 = vmul.f32 %v2867, %v3859
    %v3874 = vmul.f32 %v2872, %v3860
    %v3875 = vmul.f32 %v2877, %v3861
    %v3876 = vmul.f32 %v2882, %v3862
    %v3877 = vmul.f32 %v2887, %v3863
    %v3878 = vmul.f32 %v2892, %v3864
    %v3879 = vmul.f32 %v2897, %v3865
    %v3880 = vmul.f32 %v2902, %v3866
    %v3881 = vmul.f32 %v2907, %v3867
    %v3882 = vmul.f32 %v2912, %v3868
    %v3883 = vmul.f32 %v2917, %v3869
    %v3884 = vmul.f32 %v2922, %v3870
    %v3885 = vmul.f32 %v2927, %v3871
    %3886 = vset.pattern.permute.xlu0 65
    %3887 = vperm.xlu0 %3886, %v2294
    %v3888 = vpop.permute.xlu0 %3887
    %3890 = vset.pattern.permute.xlu0 65
    %3891 = vperm.xlu0 %3890, %v2295
    %v3892 = vpop.permute.xlu0 %3891
    %3894 = vset.pattern.permute.xlu0 65
    %3895 = vperm.xlu0 %3894, %v2296
    %v3896 = vpop.permute.xlu0 %3895
    %3898 = vset.pattern.permute.xlu0 65
    %3899 = vperm.xlu0 %3898, %v2297
    %v3900 = vpop.permute.xlu0 %3899
    %3902 = vset.pattern.permute.xlu0 65
    %3903 = vperm.xlu0 %3902, %v2298
    %v3904 = vpop.permute.xlu0 %3903
    %3906 = vset.pattern.permute.xlu0 65
    %3907 = vperm.xlu0 %3906, %v2299
    %v3908 = vpop.permute.xlu0 %3907
    %3910 = vset.pattern.permute.xlu0 65
    %3911 = vperm.xlu0 %3910, %v2300
    %v3912 = vpop.permute.xlu0 %3911
    %3914 = vset.pattern.permute.xlu0 65
    %3915 = vperm.xlu0 %3914, %v2301
    %v3916 = vpop.permute.xlu0 %3915
    %3918 = vset.pattern.permute.xlu0 65
    %3919 = vperm.xlu0 %3918, %v2302
    %v3920 = vpop.permute.xlu0 %3919
    %3922 = vset.pattern.permute.xlu0 65
    %3923 = vperm.xlu0 %3922, %v2303
    %v3924 = vpop.permute.xlu0 %3923
    %3926 = vset.pattern.permute.xlu0 65
    %3927 = vperm.xlu0 %3926, %v2304
    %v3928 = vpop.permute.xlu0 %3927
    %3930 = vset.pattern.permute.xlu0 65
    %3931 = vperm.xlu0 %3930, %v2305
    %v3932 = vpop.permute.xlu0 %3931
    %3934 = vset.pattern.permute.xlu0 65
    %3935 = vperm.xlu0 %3934, %v2306
    %v3936 = vpop.permute.xlu0 %3935
    %3938 = vset.pattern.permute.xlu0 65
    %3939 = vperm.xlu0 %3938, %v2307
    %v3940 = vpop.permute.xlu0 %3939
    %v3942 = vmul.f32 %v2654, %v3888
    %v3943 = vmul.f32 %v2655, %v3892
    %v3944 = vmul.f32 %v2656, %v3896
    %v3945 = vmul.f32 %v2657, %v3900
    %v3946 = vmul.f32 %v2658, %v3904
    %v3947 = vmul.f32 %v2659, %v3908
    %v3948 = vmul.f32 %v2660, %v3912
    %v3949 = vmul.f32 %v2661, %v3916
    %v3950 = vmul.f32 %v2662, %v3920
    %v3951 = vmul.f32 %v2663, %v3924
    %v3952 = vmul.f32 %v2664, %v3928
    %v3953 = vmul.f32 %v2665, %v3932
    %v3954 = vmul.f32 %v2666, %v3936
    %v3955 = vmul.f32 %v2667, %v3940
    %3956 = vset.pattern.permute.xlu0 5
    %3957 = vperm.xlu0 %3956, %v2164
    %v3958 = vpop.permute.xlu0 %3957
    %v3960 = vmul.f32 %v3958, %v2654
    %v3961 = vmul.f32 %v3958, %v2655
    %v3962 = vmul.f32 %v3958, %v2656
    %v3963 = vmul.f32 %v3958, %v2657
    %v3964 = vmul.f32 %v3958, %v2658
    %v3965 = vmul.f32 %v3958, %v2659
    %v3966 = vmul.f32 %v3958, %v2660
    %v3967 = vmul.f32 %v3958, %v2661
    %v3968 = vmul.f32 %v3958, %v2662
    %v3969 = vmul.f32 %v3958, %v2663
    %v3970 = vmul.f32 %v3958, %v2664
    %v3971 = vmul.f32 %v3958, %v2665
    %v3972 = vmul.f32 %v3958, %v2666
    %v3973 = vmul.f32 %v3958, %v2667
    %3988 = vrot.lane.b32.xlu0 %v3942, 96
    %v3989 = vpop.permute.xlu0 %3988
    %3990 = vrot.lane.b32.xlu0 %v3943, 96
    %v3991 = vpop.permute.xlu0 %3990
    %3992 = vrot.lane.b32.xlu0 %v3944, 96
    %v3993 = vpop.permute.xlu0 %3992
    %3994 = vrot.lane.b32.xlu0 %v3945, 96
    %v3995 = vpop.permute.xlu0 %3994
    %3996 = vrot.lane.b32.xlu0 %v3946, 96
    %v3997 = vpop.permute.xlu0 %3996
    %3998 = vrot.lane.b32.xlu0 %v3947, 96
    %v3999 = vpop.permute.xlu0 %3998
    %4000 = vrot.lane.b32.xlu0 %v3948, 96
    %v4001 = vpop.permute.xlu0 %4000
    %4002 = vrot.lane.b32.xlu0 %v3949, 96
    %v4003 = vpop.permute.xlu0 %4002
    %4004 = vrot.lane.b32.xlu0 %v3950, 96
    %v4005 = vpop.permute.xlu0 %4004
    %4006 = vrot.lane.b32.xlu0 %v3951, 96
    %v4007 = vpop.permute.xlu0 %4006
    %4008 = vrot.lane.b32.xlu0 %v3952, 96
    %v4009 = vpop.permute.xlu0 %4008
    %4010 = vrot.lane.b32.xlu0 %v3953, 96
    %v4011 = vpop.permute.xlu0 %4010
    %4012 = vrot.lane.b32.xlu0 %v3954, 96
    %v4013 = vpop.permute.xlu0 %4012
    %4014 = vrot.lane.b32.xlu0 %v3955, 96
    %v4015 = vpop.permute.xlu0 %4014
    %4044 = vrot.lane.b32.xlu0 %v3960, 96
    %v4045 = vpop.permute.xlu0 %4044
    %4046 = vrot.lane.b32.xlu0 %v3961, 96
    %v4047 = vpop.permute.xlu0 %4046
    %4048 = vrot.lane.b32.xlu0 %v3962, 96
    %v4049 = vpop.permute.xlu0 %4048
    %4050 = vrot.lane.b32.xlu0 %v3963, 96
    %v4051 = vpop.permute.xlu0 %4050
    %4052 = vrot.lane.b32.xlu0 %v3964, 96
    %v4053 = vpop.permute.xlu0 %4052
    %4054 = vrot.lane.b32.xlu0 %v3965, 96
    %v4055 = vpop.permute.xlu0 %4054
    %4056 = vrot.lane.b32.xlu0 %v3966, 96
    %v4057 = vpop.permute.xlu0 %4056
    %4058 = vrot.lane.b32.xlu0 %v3967, 96
    %v4059 = vpop.permute.xlu0 %4058
    %4060 = vrot.lane.b32.xlu0 %v3968, 96
    %v4061 = vpop.permute.xlu0 %4060
    %4062 = vrot.lane.b32.xlu0 %v3969, 96
    %v4063 = vpop.permute.xlu0 %4062
    %4064 = vrot.lane.b32.xlu0 %v3970, 96
    %v4065 = vpop.permute.xlu0 %4064
    %4066 = vrot.lane.b32.xlu0 %v3971, 96
    %v4067 = vpop.permute.xlu0 %4066
    %4068 = vrot.lane.b32.xlu0 %v3972, 96
    %v4069 = vpop.permute.xlu0 %4068
    %4070 = vrot.lane.b32.xlu0 %v3973, 96
    %v4071 = vpop.permute.xlu0 %4070
    %v4087 = vsel %vm2986, %v3872, 0
    %v4090 = vsel %vm2986, %v3873, 0
    %v4093 = vsel %vm2986, %v3874, 0
    %v4096 = vsel %vm2986, %v3875, 0
    %v4099 = vsel %vm2986, %v3876, 0
    %v4102 = vsel %vm2986, %v3877, 0
    %v4105 = vsel %vm2986, %v3878, 0
    %v4108 = vsel %vm2986, %v3879, 0
    %v4111 = vsel %vm2986, %v3880, 0
    %v4114 = vsel %vm2986, %v3881, 0
    %v4117 = vsel %vm2986, %v3882, 0
    %v4120 = vsel %vm2986, %v3883, 0
    %v4123 = vsel %vm2986, %v3884, 0
    %v4126 = vsel %vm2986, %v3885, 0
    %4128 = vmatprep.subr.mxu0 0.0
    %4129 = vmatpush1.msra.mxu0 %v3989
    %4130 = vmatprep.subr.mxu0 0.0
    %4131 = vmatpush1.msra.mxu0 %v3991
    %4132 = vmatprep.subr.mxu0 0.0
    %4133 = vmatpush1.msra.mxu0 %v3993
    %4134 = vmatprep.subr.mxu0 0.0
    %4135 = vmatpush1.msra.mxu0 %v3995
    %4136 = vmatprep.subr.mxu0 0.0
    %4137 = vmatpush1.msra.mxu0 %v3997
    %4138 = vmatprep.subr.mxu0 0.0
    %4139 = vmatpush1.msra.mxu0 %v3999
    %4140 = vmatprep.subr.mxu0 0.0
    %4141 = vmatpush1.msra.mxu0 %v4001
    %4142 = vmatprep.subr.mxu0 0.0
    %4143 = vmatpush1.msra.mxu0 %v4003
    %4144 = vmatprep.subr.mxu0 0.0
    %4145 = vmatpush1.msra.mxu0 %v4005
    %4146 = vmatprep.subr.mxu0 0.0
    %4147 = vmatpush1.msra.mxu0 %v4007
    %4148 = vmatprep.subr.mxu0 0.0
    %4149 = vmatpush1.msra.mxu0 %v4009
    %4150 = vmatprep.subr.mxu0 0.0
    %4151 = vmatpush1.msra.mxu0 %v4011
    %4152 = vmatprep.subr.mxu0 0.0
    %4153 = vmatpush1.msra.mxu0 %v4013
    %4154 = vmatprep.subr.mxu0 0.0
    %4155 = vmatpush1.msra.mxu0 %v4015
    %4156 = vmatprep.subr.mxu0 0.0
    %4157 = vmatpush1.msra.mxu0 0.0
    %4158 = vmatprep.subr.mxu0 0.0
    %4159 = vmatpush1.msra.mxu0 0.0
    %4160 = vmatprep.subr.mxu0 0.0
    %4161 = vmatpush1.msra.mxu0 0.0
    %4162 = vmatprep.subr.mxu0 0.0
    %4163 = vmatpush1.msra.mxu0 0.0
    %4164 = vmatprep.subr.mxu0 0.0
    %4165 = vmatpush1.msra.mxu0 0.0
    %4166 = vmatprep.subr.mxu0 0.0
    %4167 = vmatpush1.msra.mxu0 0.0
    %4168 = vmatprep.subr.mxu0 0.0
    %4169 = vmatpush1.msra.mxu0 0.0
    %4170 = vmatprep.subr.mxu0 0.0
    %4171 = vmatpush1.msra.mxu0 0.0
    %4172 = vmatprep.subr.mxu0 0.0
    %4173 = vmatpush1.msra.mxu0 0.0
    %4174 = vmatprep.subr.mxu0 0.0
    %4175 = vmatpush1.msra.mxu0 0.0
    %4176 = vmatprep.subr.mxu0 0.0
    %4177 = vmatpush1.msra.mxu0 0.0
    %4178 = vmatprep.subr.mxu0 0.0
    %4179 = vmatpush1.msra.mxu0 0.0
    %4180 = vmatprep.subr.mxu0 0.0
    %4181 = vmatpush1.msra.mxu0 0.0
    %4182 = vmatprep.subr.mxu0 0.0
    %4183 = vmatpush1.msra.mxu0 0.0
    %4184 = vmatprep.subr.mxu0 0.0
    %4185 = vmatpush1.msra.mxu0 0.0
    %4186 = vmatprep.subr.mxu0 0.0
    %4187 = vmatpush1.msra.mxu0 0.0
    %4188 = vmatprep.subr.mxu0 0.0
    %4189 = vmatpush1.msra.mxu0 0.0
    %4190 = vmatprep.subr.mxu0 0.0
    %4191 = vmatpush1.msra.mxu0 0.0
    %4192 = vmatprep.mubr.f32.mxu0 0.0
    %4193 = vmatmul.mubr.f32.gmra.mrb[0].mxu0 %v4087
    %v4194 = vpop.f32.mrb[0].mxu0
    %v4195 = vadd.f32 %v4045, %v4194
    %v4196 = vpop.f32.mrb[0].mxu0
    %4197 = vmatprep.mubr.f32.mxu0 0.0
    %4198 = vmatmul.mubr.f32.gmra.mrb[0].mxu0 %v4090
    %v4199 = vpop.f32.mrb[0].mxu0
    %v4200 = vadd.f32 %v4047, %v4199
    %v4201 = vpop.f32.mrb[0].mxu0
    %4202 = vmatprep.mubr.f32.mxu0 0.0
    %4203 = vmatmul.mubr.f32.gmra.mrb[0].mxu0 %v4093
    %v4204 = vpop.f32.mrb[0].mxu0
    %v4205 = vadd.f32 %v4049, %v4204
    %v4206 = vpop.f32.mrb[0].mxu0
    %4207 = vmatprep.mubr.f32.mxu0 0.0
    %4208 = vmatmul.mubr.f32.gmra.mrb[0].mxu0 %v4096
    %v4209 = vpop.f32.mrb[0].mxu0
    %v4210 = vadd.f32 %v4051, %v4209
    %v4211 = vpop.f32.mrb[0].mxu0
    %4212 = vmatprep.mubr.f32.mxu0 0.0
    %4213 = vmatmul.mubr.f32.gmra.mrb[0].mxu0 %v4099
    %v4214 = vpop.f32.mrb[0].mxu0
    %v4215 = vadd.f32 %v4053, %v4214
    %v4216 = vpop.f32.mrb[0].mxu0
    %4217 = vmatprep.mubr.f32.mxu0 0.0
    %4218 = vmatmul.mubr.f32.gmra.mrb[0].mxu0 %v4102
    %v4219 = vpop.f32.mrb[0].mxu0
    %v4220 = vadd.f32 %v4055, %v4219
    %v4221 = vpop.f32.mrb[0].mxu0
    %4222 = vmatprep.mubr.f32.mxu0 0.0
    %4223 = vmatmul.mubr.f32.gmra.mrb[0].mxu0 %v4105
    %v4224 = vpop.f32.mrb[0].mxu0
    %v4225 = vadd.f32 %v4057, %v4224
    %v4226 = vpop.f32.mrb[0].mxu0
    %4227 = vmatprep.mubr.f32.mxu0 0.0
    %4228 = vmatmul.mubr.f32.gmra.mrb[0].mxu0 %v4108
    %v4229 = vpop.f32.mrb[0].mxu0
    %v4230 = vadd.f32 %v4059, %v4229
    %v4231 = vpop.f32.mrb[0].mxu0
    %4232 = vmatprep.mubr.f32.mxu0 0.0
    %4233 = vmatmul.mubr.f32.gmra.mrb[0].mxu0 %v4111
    %v4234 = vpop.f32.mrb[0].mxu0
    %v4235 = vadd.f32 %v4061, %v4234
    %v4236 = vpop.f32.mrb[0].mxu0
    %4237 = vmatprep.mubr.f32.mxu0 0.0
    %4238 = vmatmul.mubr.f32.gmra.mrb[0].mxu0 %v4114
    %v4239 = vpop.f32.mrb[0].mxu0
    %v4240 = vadd.f32 %v4063, %v4239
    %v4241 = vpop.f32.mrb[0].mxu0
    %4242 = vmatprep.mubr.f32.mxu0 0.0
    %4243 = vmatmul.mubr.f32.gmra.mrb[0].mxu0 %v4117
    %v4244 = vpop.f32.mrb[0].mxu0
    %v4245 = vadd.f32 %v4065, %v4244
    %v4246 = vpop.f32.mrb[0].mxu0
    %4247 = vmatprep.mubr.f32.mxu0 0.0
    %4248 = vmatmul.mubr.f32.gmra.mrb[0].mxu0 %v4120
    %v4249 = vpop.f32.mrb[0].mxu0
    %v4250 = vadd.f32 %v4067, %v4249
    %v4251 = vpop.f32.mrb[0].mxu0
    %4252 = vmatprep.mubr.f32.mxu0 0.0
    %4253 = vmatmul.mubr.f32.gmra.mrb[0].mxu0 %v4123
    %v4254 = vpop.f32.mrb[0].mxu0
    %v4255 = vadd.f32 %v4069, %v4254
    %v4256 = vpop.f32.mrb[0].mxu0
    %4257 = vmatprep.mubr.f32.mxu0 0.0
    %4258 = vmatmul.mubr.f32.gmra.mrb[0].mxu0 %v4126
    %v4259 = vpop.f32.mrb[0].mxu0
    %v4260 = vadd.f32 %v4071, %v4259
    %v4261 = vpop.f32.mrb[0].mxu0
    %4262 = vdwg.mxu0
    %4277 = vrot.lane.b32.xlu0 %v4195, 32
    %v4278 = vpop.permute.xlu0 %4277
    %4279 = vrot.lane.b32.xlu0 %v4200, 32
    %v4280 = vpop.permute.xlu0 %4279
    %4281 = vrot.lane.b32.xlu0 %v4205, 32
    %v4282 = vpop.permute.xlu0 %4281
    %4283 = vrot.lane.b32.xlu0 %v4210, 32
    %v4284 = vpop.permute.xlu0 %4283
    %4285 = vrot.lane.b32.xlu0 %v4215, 32
    %v4286 = vpop.permute.xlu0 %4285
    %4287 = vrot.lane.b32.xlu0 %v4220, 32
    %v4288 = vpop.permute.xlu0 %4287
    %4289 = vrot.lane.b32.xlu0 %v4225, 32
    %v4290 = vpop.permute.xlu0 %4289
    %4291 = vrot.lane.b32.xlu0 %v4230, 32
    %v4292 = vpop.permute.xlu0 %4291
    %4293 = vrot.lane.b32.xlu0 %v4235, 32
    %v4294 = vpop.permute.xlu0 %4293
    %4295 = vrot.lane.b32.xlu0 %v4240, 32
    %v4296 = vpop.permute.xlu0 %4295
    %4297 = vrot.lane.b32.xlu0 %v4245, 32
    %v4298 = vpop.permute.xlu0 %4297
    %4299 = vrot.lane.b32.xlu0 %v4250, 32
    %v4300 = vpop.permute.xlu0 %4299
    %4301 = vrot.lane.b32.xlu0 %v4255, 32
    %v4302 = vpop.permute.xlu0 %4301
    %4303 = vrot.lane.b32.xlu0 %v4260, 32
    %v4304 = vpop.permute.xlu0 %4303
    %vm4319 = vcmask 523520
    %4320 = vst.msk [vmem:[#allocation3] sm:$0xff] %vm4319, %v4278
    %4321 = vst.msk [vmem:[#allocation3 + $0x8] sm:$0xff] %vm4319, %v4280
    %4322 = vst.msk [vmem:[#allocation3 + $0x10] sm:$0xff] %vm4319, %v4282
    %4323 = vst.msk [vmem:[#allocation3 + $0x18] sm:$0xff] %vm4319, %v4284
    %4324 = vst.msk [vmem:[#allocation3 + $0x20] sm:$0xff] %vm4319, %v4286
    %4325 = vst.msk [vmem:[#allocation3 + $0x28] sm:$0xff] %vm4319, %v4288
    %4326 = vst.msk [vmem:[#allocation3 + $0x30] sm:$0xff] %vm4319, %v4290
    %4327 = vst.msk [vmem:[#allocation3 + $0x38] sm:$0xff] %vm4319, %v4292
    %4328 = vst.msk [vmem:[#allocation3 + $0x40] sm:$0xff] %vm4319, %v4294
    %4329 = vst.msk [vmem:[#allocation3 + $0x48] sm:$0xff] %vm4319, %v4296
    %4330 = vst.msk [vmem:[#allocation3 + $0x50] sm:$0xff] %vm4319, %v4298
    %4331 = vst.msk [vmem:[#allocation3 + $0x58] sm:$0xff] %vm4319, %v4300
    %4332 = vst.msk [vmem:[#allocation3 + $0x60] sm:$0xff] %vm4319, %v4302
    %4333 = vst.msk [vmem:[#allocation3 + $0x68] sm:$0xff] %vm4319, %v4304
    %v4334 = vld [vmem:[#allocation3] sm:$0xff]
    %v4335 = vld [vmem:[#allocation3 + $0x8] sm:$0xff]
    %v4336 = vld [vmem:[#allocation3 + $0x10] sm:$0xff]
    %v4337 = vld [vmem:[#allocation3 + $0x18] sm:$0xff]
    %v4338 = vld [vmem:[#allocation3 + $0x20] sm:$0xff]
    %v4339 = vld [vmem:[#allocation3 + $0x28] sm:$0xff]
    %v4340 = vld [vmem:[#allocation3 + $0x30] sm:$0xff]
    %v4341 = vld [vmem:[#allocation3 + $0x38] sm:$0xff]
    %v4342 = vld [vmem:[#allocation3 + $0x40] sm:$0xff]
    %v4343 = vld [vmem:[#allocation3 + $0x48] sm:$0xff]
    %v4344 = vld [vmem:[#allocation3 + $0x50] sm:$0xff]
    %v4345 = vld [vmem:[#allocation3 + $0x58] sm:$0xff]
    %v4346 = vld [vmem:[#allocation3 + $0x60] sm:$0xff]
    %v4347 = vld [vmem:[#allocation3 + $0x68] sm:$0xff]
    %v4348 = vsub.f32 0.0, %v2094
    %v4349 = vsub.f32 0.0, %v2098
    %v4350 = vsub.f32 0.0, %v2104
    %v4351 = vsub.f32 0.0, %v2108
    %v4352 = vsub.f32 0.0, %v2114
    %v4353 = vsub.f32 0.0, %v2118
    %v4354 = vsub.f32 0.0, %v2124
    %v4355 = vsub.f32 0.0, %v2128
    %v4356 = vsub.f32 0.0, %v2134
    %v4357 = vsub.f32 0.0, %v2138
    %v4358 = vsub.f32 0.0, %v2144
    %v4359 = vsub.f32 0.0, %v2148
    %v4360 = vsub.f32 0.0, %v2154
    %v4361 = vsub.f32 0.0, %v2158
    %v4362 = vmul.f32 %v4348, 1.442695
    %v4363 = vpow.pop %v4362
    %v4364 = vmul.f32 %v4349, 1.442695
    %v4365 = vpow.pop %v4364
    %v4366 = vmul.f32 %v4350, 1.442695
    %v4367 = vpow.pop %v4366
    %v4368 = vmul.f32 %v4351, 1.442695
    %v4369 = vpow.pop %v4368
    %v4370 = vmul.f32 %v4352, 1.442695
    %v4371 = vpow.pop %v4370
    %v4372 = vmul.f32 %v4353, 1.442695
    %v4373 = vpow.pop %v4372
    %v4374 = vmul.f32 %v4354, 1.442695
    %v4375 = vpow.pop %v4374
    %v4376 = vmul.f32 %v4355, 1.442695
    %v4377 = vpow.pop %v4376
    %v4378 = vmul.f32 %v4356, 1.442695
    %v4379 = vpow.pop %v4378
    %v4380 = vmul.f32 %v4357, 1.442695
    %v4381 = vpow.pop %v4380
    %v4382 = vmul.f32 %v4358, 1.442695
    %v4383 = vpow.pop %v4382
    %v4384 = vmul.f32 %v4359, 1.442695
    %v4385 = vpow.pop %v4384
    %v4386 = vmul.f32 %v4360, 1.442695
    %v4387 = vpow.pop %v4386
    %v4388 = vmul.f32 %v4361, 1.442695
    %v4389 = vpow.pop %v4388
    %v4390 = vadd.f32 %v4363, 1.0
    %v4391 = vadd.f32 %v4365, 1.0
    %v4392 = vadd.f32 %v4367, 1.0
    %v4393 = vadd.f32 %v4369, 1.0
    %v4394 = vadd.f32 %v4371, 1.0
    %v4395 = vadd.f32 %v4373, 1.0
    %v4396 = vadd.f32 %v4375, 1.0
    %v4397 = vadd.f32 %v4377, 1.0
    %v4398 = vadd.f32 %v4379, 1.0
    %v4399 = vadd.f32 %v4381, 1.0
    %v4400 = vadd.f32 %v4383, 1.0
    %v4401 = vadd.f32 %v4385, 1.0
    %v4402 = vadd.f32 %v4387, 1.0
    %v4403 = vadd.f32 %v4389, 1.0
    %v4404 = vrcp.pop %v4390
    %v4405 = vmul.f32 1.0, %v4404
    %v4406 = vrcp.pop %v4391
    %v4407 = vmul.f32 1.0, %v4406
    %v4408 = vrcp.pop %v4392
    %v4409 = vmul.f32 1.0, %v4408
    %v4410 = vrcp.pop %v4393
    %v4411 = vmul.f32 1.0, %v4410
    %v4412 = vrcp.pop %v4394
    %v4413 = vmul.f32 1.0, %v4412
    %v4414 = vrcp.pop %v4395
    %v4415 = vmul.f32 1.0, %v4414
    %v4416 = vrcp.pop %v4396
    %v4417 = vmul.f32 1.0, %v4416
    %v4418 = vrcp.pop %v4397
    %v4419 = vmul.f32 1.0, %v4418
    %v4420 = vrcp.pop %v4398
    %v4421 = vmul.f32 1.0, %v4420
    %v4422 = vrcp.pop %v4399
    %v4423 = vmul.f32 1.0, %v4422
    %v4424 = vrcp.pop %v4400
    %v4425 = vmul.f32 1.0, %v4424
    %v4426 = vrcp.pop %v4401
    %v4427 = vmul.f32 1.0, %v4426
    %v4428 = vrcp.pop %v4402
    %v4429 = vmul.f32 1.0, %v4428
    %v4430 = vrcp.pop %v4403
    %v4431 = vmul.f32 1.0, %v4430
    %v4432 = vmul.f32 %v2094, %v4405
    %v4433 = vmul.f32 %v2098, %v4407
    %v4434 = vmul.f32 %v2104, %v4409
    %v4435 = vmul.f32 %v2108, %v4411
    %v4436 = vmul.f32 %v2114, %v4413
    %v4437 = vmul.f32 %v2118, %v4415
    %v4438 = vmul.f32 %v2124, %v4417
    %v4439 = vmul.f32 %v2128, %v4419
    %v4440 = vmul.f32 %v2134, %v4421
    %v4441 = vmul.f32 %v2138, %v4423
    %v4442 = vmul.f32 %v2144, %v4425
    %v4443 = vmul.f32 %v2148, %v4427
    %v4444 = vmul.f32 %v2154, %v4429
    %v4445 = vmul.f32 %v2158, %v4431
    %v4446 = vmul.f32 %v4334, %v4432
    %v4447 = vmul.f32 %v4335, %v4433
    %v4448 = vmul.f32 %v4336, %v4434
    %v4449 = vmul.f32 %v4337, %v4435
    %v4450 = vmul.f32 %v4338, %v4436
    %v4451 = vmul.f32 %v4339, %v4437
    %v4452 = vmul.f32 %v4340, %v4438
    %v4453 = vmul.f32 %v4341, %v4439
    %v4454 = vmul.f32 %v4342, %v4440
    %v4455 = vmul.f32 %v4343, %v4441
    %v4456 = vmul.f32 %v4344, %v4442
    %v4457 = vmul.f32 %v4345, %v4443
    %v4458 = vmul.f32 %v4346, %v4444
    %v4459 = vmul.f32 %v4347, %v4445
    %v4460 = vmul.f32 %v4446, %v4446
    %v4461 = vmul.f32 %v4447, %v4447
    %v4462 = vmul.f32 %v4448, %v4448
    %v4463 = vmul.f32 %v4449, %v4449
    %v4464 = vmul.f32 %v4450, %v4450
    %v4465 = vmul.f32 %v4451, %v4451
    %v4466 = vmul.f32 %v4452, %v4452
    %v4467 = vmul.f32 %v4453, %v4453
    %v4468 = vmul.f32 %v4454, %v4454
    %v4469 = vmul.f32 %v4455, %v4455
    %v4470 = vmul.f32 %v4456, %v4456
    %v4471 = vmul.f32 %v4457, %v4457
    %v4472 = vmul.f32 %v4458, %v4458
    %v4473 = vmul.f32 %v4459, %v4459
    %v4474 = vsel %vm348, %v4460, 0.0
    %4475 = vadd.xlane.f32.xlu0 %v4474
    %v4476 = vpop.xlane.xlu0 %4475
    %v4477 = vsel %vm348, %v4461, 0.0
    %4478 = vadd.xlane.f32.xlu0 %v4477
    %v4479 = vpop.xlane.xlu0 %4478
    %v4480 = vsel %vm348, %v4462, 0.0
    %4481 = vadd.xlane.f32.xlu0 %v4480
    %v4482 = vpop.xlane.xlu0 %4481
    %v4483 = vsel %vm348, %v4463, 0.0
    %4484 = vadd.xlane.f32.xlu0 %v4483
    %v4485 = vpop.xlane.xlu0 %4484
    %v4486 = vsel %vm348, %v4464, 0.0
    %4487 = vadd.xlane.f32.xlu0 %v4486
    %v4488 = vpop.xlane.xlu0 %4487
    %v4489 = vsel %vm348, %v4465, 0.0
    %4490 = vadd.xlane.f32.xlu0 %v4489
    %v4491 = vpop.xlane.xlu0 %4490
    %v4492 = vsel %vm348, %v4466, 0.0
    %4493 = vadd.xlane.f32.xlu0 %v4492
    %v4494 = vpop.xlane.xlu0 %4493
    %v4495 = vsel %vm348, %v4467, 0.0
    %4496 = vadd.xlane.f32.xlu0 %v4495
    %v4497 = vpop.xlane.xlu0 %4496
    %v4498 = vsel %vm348, %v4468, 0.0
    %4499 = vadd.xlane.f32.xlu0 %v4498
    %v4500 = vpop.xlane.xlu0 %4499
    %v4501 = vsel %vm348, %v4469, 0.0
    %4502 = vadd.xlane.f32.xlu0 %v4501
    %v4503 = vpop.xlane.xlu0 %4502
    %v4504 = vsel %vm348, %v4470, 0.0
    %4505 = vadd.xlane.f32.xlu0 %v4504
    %v4506 = vpop.xlane.xlu0 %4505
    %v4507 = vsel %vm348, %v4471, 0.0
    %4508 = vadd.xlane.f32.xlu0 %v4507
    %v4509 = vpop.xlane.xlu0 %4508
    %v4510 = vsel %vm348, %v4472, 0.0
    %4511 = vadd.xlane.f32.xlu0 %v4510
    %v4512 = vpop.xlane.xlu0 %4511
    %v4513 = vsel %vm348, %v4473, 0.0
    %4514 = vadd.xlane.f32.xlu0 %v4513
    %v4515 = vpop.xlane.xlu0 %4514
    %v4516 = vrcp.pop 64.0
    %v4517 = vmul.f32 %v4476, %v4516
    %v4518 = vmul.f32 %v4479, %v4516
    %v4519 = vmul.f32 %v4482, %v4516
    %v4520 = vmul.f32 %v4485, %v4516
    %v4521 = vmul.f32 %v4488, %v4516
    %v4522 = vmul.f32 %v4491, %v4516
    %v4523 = vmul.f32 %v4494, %v4516
    %v4524 = vmul.f32 %v4497, %v4516
    %v4525 = vmul.f32 %v4500, %v4516
    %v4526 = vmul.f32 %v4503, %v4516
    %v4527 = vmul.f32 %v4506, %v4516
    %v4528 = vmul.f32 %v4509, %v4516
    %v4529 = vmul.f32 %v4512, %v4516
    %v4530 = vmul.f32 %v4515, %v4516
    %v4531 = vadd.f32 %v4517, 1e-05
    %v4532 = vadd.f32 %v4518, 1e-05
    %v4533 = vadd.f32 %v4519, 1e-05
    %v4534 = vadd.f32 %v4520, 1e-05
    %v4535 = vadd.f32 %v4521, 1e-05
    %v4536 = vadd.f32 %v4522, 1e-05
    %v4537 = vadd.f32 %v4523, 1e-05
    %v4538 = vadd.f32 %v4524, 1e-05
    %v4539 = vadd.f32 %v4525, 1e-05
    %v4540 = vadd.f32 %v4526, 1e-05
    %v4541 = vadd.f32 %v4527, 1e-05
    %v4542 = vadd.f32 %v4528, 1e-05
    %v4543 = vadd.f32 %v4529, 1e-05
    %v4544 = vadd.f32 %v4530, 1e-05
    %v4545 = vrsqrt.pop %v4531
    %v4546 = vrsqrt.pop %v4532
    %v4547 = vrsqrt.pop %v4533
    %v4548 = vrsqrt.pop %v4534
    %v4549 = vrsqrt.pop %v4535
    %v4550 = vrsqrt.pop %v4536
    %v4551 = vrsqrt.pop %v4537
    %v4552 = vrsqrt.pop %v4538
    %v4553 = vrsqrt.pop %v4539
    %v4554 = vrsqrt.pop %v4540
    %v4555 = vrsqrt.pop %v4541
    %v4556 = vrsqrt.pop %v4542
    %v4557 = vrsqrt.pop %v4543
    %v4558 = vrsqrt.pop %v4544
    %v4559 = vmul.f32 %v4446, %v4545
    %v4560 = vmul.f32 %v4447, %v4546
    %v4561 = vmul.f32 %v4448, %v4547
    %v4562 = vmul.f32 %v4449, %v4548
    %v4563 = vmul.f32 %v4450, %v4549
    %v4564 = vmul.f32 %v4451, %v4550
    %v4565 = vmul.f32 %v4452, %v4551
    %v4566 = vmul.f32 %v4453, %v4552
    %v4567 = vmul.f32 %v4454, %v4553
    %v4568 = vmul.f32 %v4455, %v4554
    %v4569 = vmul.f32 %v4456, %v4555
    %v4570 = vmul.f32 %v4457, %v4556
    %v4571 = vmul.f32 %v4458, %v4557
    %v4572 = vmul.f32 %v4459, %v4558
    %4573 = vrot.lane.b32.xlu0 %v2164, 122
    %v4574 = vpop.permute.xlu0 %4573
    %v4576 = vmul.f32 %v4559, %v4574
    %v4577 = vmul.f32 %v4560, %v4574
    %v4578 = vmul.f32 %v4561, %v4574
    %v4579 = vmul.f32 %v4562, %v4574
    %v4580 = vmul.f32 %v4563, %v4574
    %v4581 = vmul.f32 %v4564, %v4574
    %v4582 = vmul.f32 %v4565, %v4574
    %v4583 = vmul.f32 %v4566, %v4574
    %v4584 = vmul.f32 %v4567, %v4574
    %v4585 = vmul.f32 %v4568, %v4574
    %v4586 = vmul.f32 %v4569, %v4574
    %v4587 = vmul.f32 %v4570, %v4574
    %v4588 = vmul.f32 %v4571, %v4574
    %v4589 = vmul.f32 %v4572, %v4574
    %v4590 = vpack.c.bf16 %v4577, %v4576
    %v4591 = vpack.c.bf16 %v4579, %v4578
    %v4592 = vpack.c.bf16 %v4581, %v4580
    %v4593 = vpack.c.bf16 %v4583, %v4582
    %v4594 = vpack.c.bf16 %v4585, %v4584
    %v4595 = vpack.c.bf16 %v4587, %v4586
    %v4596 = vpack.c.bf16 %v4589, %v4588
    %v4597 = vld [vmem:[%s11] sm:$0xf]
    %v4598 = vld [vmem:[%s11 + $0x4] sm:$0xf]
    %v4599 = vld [vmem:[%s11 + $0x8] sm:$0xf]
    %v4600 = vld [vmem:[%s11 + $0xc] sm:$0xf]
    %v4601 = vld [vmem:[%s11 + $0x10] sm:$0xf]
    %v4602 = vld [vmem:[%s11 + $0x14] sm:$0xf]
    %v4603 = vld [vmem:[%s11 + $0x18] sm:$0xf]
    %v4604 = vld [vmem:[%s11 + $0x1c] sm:$0xf]
    %v4613 = vunpack.c.l.b16 %v4597
    %v4614 = vunpack.c.l.b16 %v4598
    %v4615 = vunpack.c.l.b16 %v4599
    %v4616 = vunpack.c.l.b16 %v4600
    %v4617 = vunpack.c.l.b16 %v4601
    %v4618 = vunpack.c.l.b16 %v4602
    %v4619 = vunpack.c.l.b16 %v4603
    %v4620 = vunpack.c.l.b16 %v4604
    %v4621 = vpack.c.b16 %v4614, %v4613
    %v4622 = vpack.c.b16 %v4616, %v4615
    %v4623 = vpack.c.b16 %v4618, %v4617
    %v4624 = vpack.c.b16 %v4620, %v4619
    %v4630 = vsel %vm348, %v4590, 0
    %v4633 = vsel %vm348, %v4591, 0
    %v4636 = vsel %vm348, %v4592, 0
    %v4639 = vsel %vm348, %v4593, 0
    %v4642 = vsel %vm348, %v4594, 0
    %v4645 = vsel %vm348, %v4595, 0
    %v4648 = vsel %vm348, %v4596, 0
    %4650 = vmatprep.subr.bf16.mxu0 0
    %4651 = vmatpush1.bf16.msra.mxu0 %v4621
    %4652 = vmatprep.subr.bf16.mxu0 0
    %4653 = vmatpush1.bf16.msra.mxu0 %v4622
    %4654 = vmatprep.subr.bf16.mxu0 0
    %4655 = vmatpush1.bf16.msra.mxu0 %v4623
    %4656 = vmatprep.subr.bf16.mxu0 0
    %4657 = vmatpush1.bf16.msra.mxu0 %v4624
    %4658 = vmatprep.subr.bf16.mxu0 0
    %4659 = vmatpush1.bf16.msra.mxu0 0
    %4660 = vmatprep.subr.bf16.mxu0 0
    %4661 = vmatpush1.bf16.msra.mxu0 0
    %4662 = vmatprep.subr.bf16.mxu0 0
    %4663 = vmatpush1.bf16.msra.mxu0 0
    %4664 = vmatprep.subr.bf16.mxu0 0
    %4665 = vmatpush1.bf16.msra.mxu0 0
    %4666 = vmatprep.subr.bf16.mxu0 0
    %4667 = vmatpush1.bf16.msra.mxu0 0
    %4668 = vmatprep.subr.bf16.mxu0 0
    %4669 = vmatpush1.bf16.msra.mxu0 0
    %4670 = vmatprep.subr.bf16.mxu0 0
    %4671 = vmatpush1.bf16.msra.mxu0 0
    %4672 = vmatprep.subr.bf16.mxu0 0
    %4673 = vmatpush1.bf16.msra.mxu0 0
    %4674 = vmatprep.subr.bf16.mxu0 0
    %4675 = vmatpush1.bf16.msra.mxu0 0
    %4676 = vmatprep.subr.bf16.mxu0 0
    %4677 = vmatpush1.bf16.msra.mxu0 0
    %4678 = vmatprep.subr.bf16.mxu0 0
    %4679 = vmatpush1.bf16.msra.mxu0 0
    %4680 = vmatprep.subr.bf16.mxu0 0
    %4681 = vmatpush1.bf16.msra.mxu0 0
    %4682 = vmatprep.mubr.bf16.mxu0 0
    %4683 = vmatmul.mubr.bf16.gmra.mrb[0].mxu0 %v4630
    %v4684 = vpop.f32.mrb[0].mxu0
    %v4685 = vadd.f32 0.0, %v4684
    %v4686 = vpop.f32.mrb[0].mxu0
    %v4687 = vpop.f32.mrb[0].mxu0
    %v4688 = vadd.f32 0.0, %v4687
    %v4689 = vpop.f32.mrb[0].mxu0
    %4690 = vmatprep.mubr.bf16.mxu0 0
    %4691 = vmatmul.mubr.bf16.gmra.mrb[0].mxu0 %v4633
    %v4692 = vpop.f32.mrb[0].mxu0
    %v4693 = vadd.f32 0.0, %v4692
    %v4694 = vpop.f32.mrb[0].mxu0
    %v4695 = vpop.f32.mrb[0].mxu0
    %v4696 = vadd.f32 0.0, %v4695
    %v4697 = vpop.f32.mrb[0].mxu0
    %4698 = vmatprep.mubr.bf16.mxu0 0
    %4699 = vmatmul.mubr.bf16.gmra.mrb[0].mxu0 %v4636
    %v4700 = vpop.f32.mrb[0].mxu0
    %v4701 = vadd.f32 0.0, %v4700
    %v4702 = vpop.f32.mrb[0].mxu0
    %v4703 = vpop.f32.mrb[0].mxu0
    %v4704 = vadd.f32 0.0, %v4703
    %v4705 = vpop.f32.mrb[0].mxu0
    %4706 = vmatprep.mubr.bf16.mxu0 0
    %4707 = vmatmul.mubr.bf16.gmra.mrb[0].mxu0 %v4639
    %v4708 = vpop.f32.mrb[0].mxu0
    %v4709 = vadd.f32 0.0, %v4708
    %v4710 = vpop.f32.mrb[0].mxu0
    %v4711 = vpop.f32.mrb[0].mxu0
    %v4712 = vadd.f32 0.0, %v4711
    %v4713 = vpop.f32.mrb[0].mxu0
    %4714 = vmatprep.mubr.bf16.mxu0 0
    %4715 = vmatmul.mubr.bf16.gmra.mrb[0].mxu0 %v4642
    %v4716 = vpop.f32.mrb[0].mxu0
    %v4717 = vadd.f32 0.0, %v4716
    %v4718 = vpop.f32.mrb[0].mxu0
    %v4719 = vpop.f32.mrb[0].mxu0
    %v4720 = vadd.f32 0.0, %v4719
    %v4721 = vpop.f32.mrb[0].mxu0
    %4722 = vmatprep.mubr.bf16.mxu0 0
    %4723 = vmatmul.mubr.bf16.gmra.mrb[0].mxu0 %v4645
    %v4724 = vpop.f32.mrb[0].mxu0
    %v4725 = vadd.f32 0.0, %v4724
    %v4726 = vpop.f32.mrb[0].mxu0
    %v4727 = vpop.f32.mrb[0].mxu0
    %v4728 = vadd.f32 0.0, %v4727
    %v4729 = vpop.f32.mrb[0].mxu0
    %4730 = vmatprep.mubr.bf16.mxu0 0
    %4731 = vmatmul.mubr.bf16.gmra.mrb[0].mxu0 %v4648
    %v4732 = vpop.f32.mrb[0].mxu0
    %v4733 = vadd.f32 0.0, %v4732
    %v4734 = vpop.f32.mrb[0].mxu0
    %v4735 = vpop.f32.mrb[0].mxu0
    %v4736 = vadd.f32 0.0, %v4735
    %v4737 = vpop.f32.mrb[0].mxu0
    %4738 = vdwg.mxu0
    %v4739 = vsel %vm209, %v4685, 0.0
    %4740 = vadd.xlane.f32.xlu0 %v4739
    %v4741 = vpop.xlane.xlu0 %4740
    %v4742 = vsel %vm209, %v4688, 0.0
    %4743 = vadd.xlane.f32.xlu0 %v4742
    %v4744 = vpop.xlane.xlu0 %4743
    %v4745 = vsel %vm209, %v4693, 0.0
    %4746 = vadd.xlane.f32.xlu0 %v4745
    %v4747 = vpop.xlane.xlu0 %4746
    %v4748 = vsel %vm209, %v4696, 0.0
    %4749 = vadd.xlane.f32.xlu0 %v4748
    %v4750 = vpop.xlane.xlu0 %4749
    %v4751 = vsel %vm209, %v4701, 0.0
    %4752 = vadd.xlane.f32.xlu0 %v4751
    %v4753 = vpop.xlane.xlu0 %4752
    %v4754 = vsel %vm209, %v4704, 0.0
    %4755 = vadd.xlane.f32.xlu0 %v4754
    %v4756 = vpop.xlane.xlu0 %4755
    %v4757 = vsel %vm209, %v4709, 0.0
    %4758 = vadd.xlane.f32.xlu0 %v4757
    %v4759 = vpop.xlane.xlu0 %4758
    %v4760 = vsel %vm209, %v4712, 0.0
    %4761 = vadd.xlane.f32.xlu0 %v4760
    %v4762 = vpop.xlane.xlu0 %4761
    %v4763 = vsel %vm209, %v4717, 0.0
    %4764 = vadd.xlane.f32.xlu0 %v4763
    %v4765 = vpop.xlane.xlu0 %4764
    %v4766 = vsel %vm209, %v4720, 0.0
    %4767 = vadd.xlane.f32.xlu0 %v4766
    %v4768 = vpop.xlane.xlu0 %4767
    %v4769 = vsel %vm209, %v4725, 0.0
    %4770 = vadd.xlane.f32.xlu0 %v4769
    %v4771 = vpop.xlane.xlu0 %4770
    %v4772 = vsel %vm209, %v4728, 0.0
    %4773 = vadd.xlane.f32.xlu0 %v4772
    %v4774 = vpop.xlane.xlu0 %4773
    %v4775 = vsel %vm209, %v4733, 0.0
    %4776 = vadd.xlane.f32.xlu0 %v4775
    %v4777 = vpop.xlane.xlu0 %4776
    %v4778 = vsel %vm209, %v4736, 0.0
    %4779 = vadd.xlane.f32.xlu0 %v4778
    %v4780 = vpop.xlane.xlu0 %4779
    %v4781 = vrcp.pop 32.0
    %v4782 = vmul.f32 %v4741, %v4781
    %v4783 = vmul.f32 %v4744, %v4781
    %v4784 = vmul.f32 %v4747, %v4781
    %v4785 = vmul.f32 %v4750, %v4781
    %v4786 = vmul.f32 %v4753, %v4781
    %v4787 = vmul.f32 %v4756, %v4781
    %v4788 = vmul.f32 %v4759, %v4781
    %v4789 = vmul.f32 %v4762, %v4781
    %v4790 = vmul.f32 %v4765, %v4781
    %v4791 = vmul.f32 %v4768, %v4781
    %v4792 = vmul.f32 %v4771, %v4781
    %v4793 = vmul.f32 %v4774, %v4781
    %v4794 = vmul.f32 %v4777, %v4781
    %v4795 = vmul.f32 %v4780, %v4781
    %v4796 = vsub.f32 %v4685, %v4782
    %v4797 = vsub.f32 %v4688, %v4783
    %v4798 = vsub.f32 %v4693, %v4784
    %v4799 = vsub.f32 %v4696, %v4785
    %v4800 = vsub.f32 %v4701, %v4786
    %v4801 = vsub.f32 %v4704, %v4787
    %v4802 = vsub.f32 %v4709, %v4788
    %v4803 = vsub.f32 %v4712, %v4789
    %v4804 = vsub.f32 %v4717, %v4790
    %v4805 = vsub.f32 %v4720, %v4791
    %v4806 = vsub.f32 %v4725, %v4792
    %v4807 = vsub.f32 %v4728, %v4793
    %v4808 = vsub.f32 %v4733, %v4794
    %v4809 = vsub.f32 %v4736, %v4795
    %v4810 = vmul.f32 %v4796, %v4796
    %v4811 = vmul.f32 %v4797, %v4797
    %v4812 = vmul.f32 %v4798, %v4798
    %v4813 = vmul.f32 %v4799, %v4799
    %v4814 = vmul.f32 %v4800, %v4800
    %v4815 = vmul.f32 %v4801, %v4801
    %v4816 = vmul.f32 %v4802, %v4802
    %v4817 = vmul.f32 %v4803, %v4803
    %v4818 = vmul.f32 %v4804, %v4804
    %v4819 = vmul.f32 %v4805, %v4805
    %v4820 = vmul.f32 %v4806, %v4806
    %v4821 = vmul.f32 %v4807, %v4807
    %v4822 = vmul.f32 %v4808, %v4808
    %v4823 = vmul.f32 %v4809, %v4809
    %v4824 = vsel %vm209, %v4810, 0.0
    %4825 = vadd.xlane.f32.xlu0 %v4824
    %v4826 = vpop.xlane.xlu0 %4825
    %v4827 = vsel %vm209, %v4811, 0.0
    %4828 = vadd.xlane.f32.xlu0 %v4827
    %v4829 = vpop.xlane.xlu0 %4828
    %v4830 = vsel %vm209, %v4812, 0.0
    %4831 = vadd.xlane.f32.xlu0 %v4830
    %v4832 = vpop.xlane.xlu0 %4831
    %v4833 = vsel %vm209, %v4813, 0.0
    %4834 = vadd.xlane.f32.xlu0 %v4833
    %v4835 = vpop.xlane.xlu0 %4834
    %v4836 = vsel %vm209, %v4814, 0.0
    %4837 = vadd.xlane.f32.xlu0 %v4836
    %v4838 = vpop.xlane.xlu0 %4837
    %v4839 = vsel %vm209, %v4815, 0.0
    %4840 = vadd.xlane.f32.xlu0 %v4839
    %v4841 = vpop.xlane.xlu0 %4840
    %v4842 = vsel %vm209, %v4816, 0.0
    %4843 = vadd.xlane.f32.xlu0 %v4842
    %v4844 = vpop.xlane.xlu0 %4843
    %v4845 = vsel %vm209, %v4817, 0.0
    %4846 = vadd.xlane.f32.xlu0 %v4845
    %v4847 = vpop.xlane.xlu0 %4846
    %v4848 = vsel %vm209, %v4818, 0.0
    %4849 = vadd.xlane.f32.xlu0 %v4848
    %v4850 = vpop.xlane.xlu0 %4849
    %v4851 = vsel %vm209, %v4819, 0.0
    %4852 = vadd.xlane.f32.xlu0 %v4851
    %v4853 = vpop.xlane.xlu0 %4852
    %v4854 = vsel %vm209, %v4820, 0.0
    %4855 = vadd.xlane.f32.xlu0 %v4854
    %v4856 = vpop.xlane.xlu0 %4855
    %v4857 = vsel %vm209, %v4821, 0.0
    %4858 = vadd.xlane.f32.xlu0 %v4857
    %v4859 = vpop.xlane.xlu0 %4858
    %v4860 = vsel %vm209, %v4822, 0.0
    %4861 = vadd.xlane.f32.xlu0 %v4860
    %v4862 = vpop.xlane.xlu0 %4861
    %v4863 = vsel %vm209, %v4823, 0.0
    %4864 = vadd.xlane.f32.xlu0 %v4863
    %v4865 = vpop.xlane.xlu0 %4864
    %v4866 = vmul.f32 %v4826, %v4781
    %v4867 = vmul.f32 %v4829, %v4781
    %v4868 = vmul.f32 %v4832, %v4781
    %v4869 = vmul.f32 %v4835, %v4781
    %v4870 = vmul.f32 %v4838, %v4781
    %v4871 = vmul.f32 %v4841, %v4781
    %v4872 = vmul.f32 %v4844, %v4781
    %v4873 = vmul.f32 %v4847, %v4781
    %v4874 = vmul.f32 %v4850, %v4781
    %v4875 = vmul.f32 %v4853, %v4781
    %v4876 = vmul.f32 %v4856, %v4781
    %v4877 = vmul.f32 %v4859, %v4781
    %v4878 = vmul.f32 %v4862, %v4781
    %v4879 = vmul.f32 %v4865, %v4781
    %v4880 = vadd.f32 %v4866, 1e-05
    %v4881 = vadd.f32 %v4867, 1e-05
    %v4882 = vadd.f32 %v4868, 1e-05
    %v4883 = vadd.f32 %v4869, 1e-05
    %v4884 = vadd.f32 %v4870, 1e-05
    %v4885 = vadd.f32 %v4871, 1e-05
    %v4886 = vadd.f32 %v4872, 1e-05
    %v4887 = vadd.f32 %v4873, 1e-05
    %v4888 = vadd.f32 %v4874, 1e-05
    %v4889 = vadd.f32 %v4875, 1e-05
    %v4890 = vadd.f32 %v4876, 1e-05
    %v4891 = vadd.f32 %v4877, 1e-05
    %v4892 = vadd.f32 %v4878, 1e-05
    %v4893 = vadd.f32 %v4879, 1e-05
    %v4894 = vrsqrt.pop %v4880
    %v4895 = vrsqrt.pop %v4881
    %v4896 = vrsqrt.pop %v4882
    %v4897 = vrsqrt.pop %v4883
    %v4898 = vrsqrt.pop %v4884
    %v4899 = vrsqrt.pop %v4885
    %v4900 = vrsqrt.pop %v4886
    %v4901 = vrsqrt.pop %v4887
    %v4902 = vrsqrt.pop %v4888
    %v4903 = vrsqrt.pop %v4889
    %v4904 = vrsqrt.pop %v4890
    %v4905 = vrsqrt.pop %v4891
    %v4906 = vrsqrt.pop %v4892
    %v4907 = vrsqrt.pop %v4893
    %v4908 = vmul.f32 %v4796, %v4894
    %v4909 = vmul.f32 %v4797, %v4895
    %v4910 = vmul.f32 %v4798, %v4896
    %v4911 = vmul.f32 %v4799, %v4897
    %v4912 = vmul.f32 %v4800, %v4898
    %v4913 = vmul.f32 %v4801, %v4899
    %v4914 = vmul.f32 %v4802, %v4900
    %v4915 = vmul.f32 %v4803, %v4901
    %v4916 = vmul.f32 %v4804, %v4902
    %v4917 = vmul.f32 %v4805, %v4903
    %v4918 = vmul.f32 %v4806, %v4904
    %v4919 = vmul.f32 %v4807, %v4905
    %v4920 = vmul.f32 %v4808, %v4906
    %v4921 = vmul.f32 %v4809, %v4907
    %4922 = vrot.lane.b32.xlu0 %v2164, 58
    %v4923 = vpop.permute.xlu0 %4922
    %v4925 = vmul.f32 %v4908, %v4923
    %v4926 = vmul.f32 %v4909, %v4923
    %v4927 = vmul.f32 %v4910, %v4923
    %v4928 = vmul.f32 %v4911, %v4923
    %v4929 = vmul.f32 %v4912, %v4923
    %v4930 = vmul.f32 %v4913, %v4923
    %v4931 = vmul.f32 %v4914, %v4923
    %v4932 = vmul.f32 %v4915, %v4923
    %v4933 = vmul.f32 %v4916, %v4923
    %v4934 = vmul.f32 %v4917, %v4923
    %v4935 = vmul.f32 %v4918, %v4923
    %v4936 = vmul.f32 %v4919, %v4923
    %v4937 = vmul.f32 %v4920, %v4923
    %v4938 = vmul.f32 %v4921, %v4923
    %v4939 = vlaneseq
    %v4940 = vshrl.u32 %v4939, 7
    %v4941 = vsub.s32 1, %v4940
    %v4942 = vrot.slane %v2004, %v4941
    %4943 = vrot.lane.b32.xlu0 %v2164, 26
    %v4944 = vpop.permute.xlu0 %4943
    %4945 = vrot.lane.b32.xlu0 %v4942, 26
    %v4946 = vpop.permute.xlu0 %4945
    %vm4947 = vcmask 211968
    %v4948 = vsel %vm4947, %v4944, %v4946
    %v4950 = vadd.f32 %v4925, %v4948
    %v4951 = vadd.f32 %v4926, %v4948
    %v4952 = vadd.f32 %v4927, %v4948
    %v4953 = vadd.f32 %v4928, %v4948
    %v4954 = vadd.f32 %v4929, %v4948
    %v4955 = vadd.f32 %v4930, %v4948
    %v4956 = vadd.f32 %v4931, %v4948
    %v4957 = vadd.f32 %v4932, %v4948
    %v4958 = vadd.f32 %v4933, %v4948
    %v4959 = vadd.f32 %v4934, %v4948
    %v4960 = vadd.f32 %v4935, %v4948
    %v4961 = vadd.f32 %v4936, %v4948
    %v4962 = vadd.f32 %v4937, %v4948
    %v4963 = vadd.f32 %v4938, %v4948
    %s4964 = scalar_lea.vmem %s10, 2
    %v4965 = vld [vmem:[%s4964] sm:$0x3]
    %v4966 = vpack.c.bf16 %v4951, %v4950
    %v4967 = vpack.c.bf16 %v4953, %v4952
    %v4968 = vpack.c.bf16 %v4955, %v4954
    %v4969 = vpack.c.bf16 %v4957, %v4956
    %v4970 = vpack.c.bf16 %v4959, %v4958
    %v4971 = vpack.c.bf16 %v4961, %v4960
    %v4972 = vpack.c.bf16 %v4963, %v4962
    %s4973 = scalar_lea.vmem %s7, 32
    %v4974 = vld [vmem:[%s4973] sm:$0xff]
    %v4975 = vld [vmem:[%s4973 + $0x8] sm:$0xff]
    %v4976 = vld [vmem:[%s4973 + $0x10] sm:$0xff]
    %v4977 = vld [vmem:[%s4973 + $0x18] sm:$0xff]
    %v4982 = vunpack.c.l.b16 %v4974
    %v4983 = vunpack.c.h.b16 %v4974
    %v4984 = vunpack.c.l.b16 %v4975
    %v4985 = vunpack.c.h.b16 %v4975
    %v4986 = vunpack.c.l.b16 %v4976
    %v4987 = vunpack.c.h.b16 %v4976
    %v4988 = vunpack.c.l.b16 %v4977
    %v4989 = vunpack.c.h.b16 %v4977
    %v4990 = vpack.c.b16 %v4984, %v4982
    %v4991 = vpack.c.b16 %v4985, %v4983
    %v4992 = vpack.c.b16 %v4988, %v4986
    %v4993 = vpack.c.b16 %v4989, %v4987
    %v4999 = vsel %vm209, %v4966, 0
    %v5002 = vsel %vm209, %v4967, 0
    %v5005 = vsel %vm209, %v4968, 0
    %v5008 = vsel %vm209, %v4969, 0
    %v5011 = vsel %vm209, %v4970, 0
    %v5014 = vsel %vm209, %v4971, 0
    %v5017 = vsel %vm209, %v4972, 0
    %5019 = vmatprep.subr.bf16.mxu0 %v4991
    %5020 = vmatpush1.bf16.msra.mxu0 %v4990
    %5021 = vmatprep.subr.bf16.mxu0 %v4993
    %5022 = vmatpush1.bf16.msra.mxu0 %v4992
    %5023 = vmatprep.subr.bf16.mxu0 0
    %5024 = vmatpush1.bf16.msra.mxu0 0
    %5025 = vmatprep.subr.bf16.mxu0 0
    %5026 = vmatpush1.bf16.msra.mxu0 0
    %5027 = vmatprep.subr.bf16.mxu0 0
    %5028 = vmatpush1.bf16.msra.mxu0 0
    %5029 = vmatprep.subr.bf16.mxu0 0
    %5030 = vmatpush1.bf16.msra.mxu0 0
    %5031 = vmatprep.subr.bf16.mxu0 0
    %5032 = vmatpush1.bf16.msra.mxu0 0
    %5033 = vmatprep.subr.bf16.mxu0 0
    %5034 = vmatpush1.bf16.msra.mxu0 0
    %5035 = vmatprep.subr.bf16.mxu0 0
    %5036 = vmatpush1.bf16.msra.mxu0 0
    %5037 = vmatprep.subr.bf16.mxu0 0
    %5038 = vmatpush1.bf16.msra.mxu0 0
    %5039 = vmatprep.subr.bf16.mxu0 0
    %5040 = vmatpush1.bf16.msra.mxu0 0
    %5041 = vmatprep.subr.bf16.mxu0 0
    %5042 = vmatpush1.bf16.msra.mxu0 0
    %5043 = vmatprep.subr.bf16.mxu0 0
    %5044 = vmatpush1.bf16.msra.mxu0 0
    %5045 = vmatprep.subr.bf16.mxu0 0
    %5046 = vmatpush1.bf16.msra.mxu0 0
    %5047 = vmatprep.subr.bf16.mxu0 0
    %5048 = vmatpush1.bf16.msra.mxu0 0
    %5049 = vmatprep.subr.bf16.mxu0 0
    %5050 = vmatpush1.bf16.msra.mxu0 0
    %5051 = vmatprep.mubr.bf16.mxu0 0
    %5052 = vmatmul.mubr.bf16.gmra.mrb[0].mxu0 %v4999
    %v5053 = vpop.f32.mrb[0].mxu0
    %v5054 = vadd.f32 0.0, %v5053
    %v5055 = vpop.f32.mrb[0].mxu0
    %v5056 = vadd.f32 0.0, %v5055
    %v5057 = vpop.f32.mrb[0].mxu0
    %v5058 = vadd.f32 0.0, %v5057
    %v5059 = vpop.f32.mrb[0].mxu0
    %v5060 = vadd.f32 0.0, %v5059
    %5061 = vmatprep.mubr.bf16.mxu0 0
    %5062 = vmatmul.mubr.bf16.gmra.mrb[0].mxu0 %v5002
    %v5063 = vpop.f32.mrb[0].mxu0
    %v5064 = vadd.f32 0.0, %v5063
    %v5065 = vpop.f32.mrb[0].mxu0
    %v5066 = vadd.f32 0.0, %v5065
    %v5067 = vpop.f32.mrb[0].mxu0
    %v5068 = vadd.f32 0.0, %v5067
    %v5069 = vpop.f32.mrb[0].mxu0
    %v5070 = vadd.f32 0.0, %v5069
    %5071 = vmatprep.mubr.bf16.mxu0 0
    %5072 = vmatmul.mubr.bf16.gmra.mrb[0].mxu0 %v5005
    %v5073 = vpop.f32.mrb[0].mxu0
    %v5074 = vadd.f32 0.0, %v5073
    %v5075 = vpop.f32.mrb[0].mxu0
    %v5076 = vadd.f32 0.0, %v5075
    %v5077 = vpop.f32.mrb[0].mxu0
    %v5078 = vadd.f32 0.0, %v5077
    %v5079 = vpop.f32.mrb[0].mxu0
    %v5080 = vadd.f32 0.0, %v5079
    %5081 = vmatprep.mubr.bf16.mxu0 0
    %5082 = vmatmul.mubr.bf16.gmra.mrb[0].mxu0 %v5008
    %v5083 = vpop.f32.mrb[0].mxu0
    %v5084 = vadd.f32 0.0, %v5083
    %v5085 = vpop.f32.mrb[0].mxu0
    %v5086 = vadd.f32 0.0, %v5085
    %v5087 = vpop.f32.mrb[0].mxu0
    %v5088 = vadd.f32 0.0, %v5087
    %v5089 = vpop.f32.mrb[0].mxu0
    %v5090 = vadd.f32 0.0, %v5089
    %5091 = vmatprep.mubr.bf16.mxu0 0
    %5092 = vmatmul.mubr.bf16.gmra.mrb[0].mxu0 %v5011
    %v5093 = vpop.f32.mrb[0].mxu0
    %v5094 = vadd.f32 0.0, %v5093
    %v5095 = vpop.f32.mrb[0].mxu0
    %v5096 = vadd.f32 0.0, %v5095
    %v5097 = vpop.f32.mrb[0].mxu0
    %v5098 = vadd.f32 0.0, %v5097
    %v5099 = vpop.f32.mrb[0].mxu0
    %v5100 = vadd.f32 0.0, %v5099
    %5101 = vmatprep.mubr.bf16.mxu0 0
    %5102 = vmatmul.mubr.bf16.gmra.mrb[0].mxu0 %v5014
    %v5103 = vpop.f32.mrb[0].mxu0
    %v5104 = vadd.f32 0.0, %v5103
    %v5105 = vpop.f32.mrb[0].mxu0
    %v5106 = vadd.f32 0.0, %v5105
    %v5107 = vpop.f32.mrb[0].mxu0
    %v5108 = vadd.f32 0.0, %v5107
    %v5109 = vpop.f32.mrb[0].mxu0
    %v5110 = vadd.f32 0.0, %v5109
    %5111 = vmatprep.mubr.bf16.mxu0 0
    %5112 = vmatmul.mubr.bf16.gmra.mrb[0].mxu0 %v5017
    %v5113 = vpop.f32.mrb[0].mxu0
    %v5114 = vadd.f32 0.0, %v5113
    %v5115 = vpop.f32.mrb[0].mxu0
    %v5116 = vadd.f32 0.0, %v5115
    %v5117 = vpop.f32.mrb[0].mxu0
    %v5118 = vadd.f32 0.0, %v5117
    %v5119 = vpop.f32.mrb[0].mxu0
    %v5120 = vadd.f32 0.0, %v5119
    %5121 = vdwg.mxu0
    %v5123 = vlaneseq
    %v5124 = vshrl.u32 %v5123, 7
    %v5125 = vsub.s32 0, %v5124
    %v5126 = vrot.slane %v4965, %v5125
    %5127 = vrot.lane.b32.xlu0 %v5126, 64
    %v5128 = vpop.permute.xlu0 %5127
    %v5130 = vadd.f32 %v5056, %v5128
    %v5131 = vadd.f32 %v5060, %v5128
    %v5132 = vadd.f32 %v5066, %v5128
    %v5133 = vadd.f32 %v5070, %v5128
    %v5134 = vadd.f32 %v5076, %v5128
    %v5135 = vadd.f32 %v5080, %v5128
    %v5136 = vadd.f32 %v5086, %v5128
    %v5137 = vadd.f32 %v5090, %v5128
    %v5138 = vadd.f32 %v5096, %v5128
    %v5139 = vadd.f32 %v5100, %v5128
    %v5140 = vadd.f32 %v5106, %v5128
    %v5141 = vadd.f32 %v5110, %v5128
    %v5142 = vadd.f32 %v5116, %v5128
    %v5143 = vadd.f32 %v5120, %v5128
    %v5144 = vmax.f32 %v5130, 0.0
    %v5145 = vmax.f32 %v5131, 0.0
    %v5146 = vmax.f32 %v5132, 0.0
    %v5147 = vmax.f32 %v5133, 0.0
    %v5148 = vmax.f32 %v5134, 0.0
    %v5149 = vmax.f32 %v5135, 0.0
    %v5150 = vmax.f32 %v5136, 0.0
    %v5151 = vmax.f32 %v5137, 0.0
    %v5152 = vmax.f32 %v5138, 0.0
    %v5153 = vmax.f32 %v5139, 0.0
    %v5154 = vmax.f32 %v5140, 0.0
    %v5155 = vmax.f32 %v5141, 0.0
    %v5156 = vmax.f32 %v5142, 0.0
    %v5157 = vmax.f32 %v5143, 0.0
    %v5158 = vand.u32 2147483647, %v5130
    %v5159 = vand.u32 2147483647, %v5131
    %v5160 = vand.u32 2147483647, %v5132
    %v5161 = vand.u32 2147483647, %v5133
    %v5162 = vand.u32 2147483647, %v5134
    %v5163 = vand.u32 2147483647, %v5135
    %v5164 = vand.u32 2147483647, %v5136
    %v5165 = vand.u32 2147483647, %v5137
    %v5166 = vand.u32 2147483647, %v5138
    %v5167 = vand.u32 2147483647, %v5139
    %v5168 = vand.u32 2147483647, %v5140
    %v5169 = vand.u32 2147483647, %v5141
    %v5170 = vand.u32 2147483647, %v5142
    %v5171 = vand.u32 2147483647, %v5143
    %v5172 = vsub.f32 0.0, %v5158
    %v5173 = vsub.f32 0.0, %v5159
    %v5174 = vsub.f32 0.0, %v5160
    %v5175 = vsub.f32 0.0, %v5161
    %v5176 = vsub.f32 0.0, %v5162
    %v5177 = vsub.f32 0.0, %v5163
    %v5178 = vsub.f32 0.0, %v5164
    %v5179 = vsub.f32 0.0, %v5165
    %v5180 = vsub.f32 0.0, %v5166
    %v5181 = vsub.f32 0.0, %v5167
    %v5182 = vsub.f32 0.0, %v5168
    %v5183 = vsub.f32 0.0, %v5169
    %v5184 = vsub.f32 0.0, %v5170
    %v5185 = vsub.f32 0.0, %v5171
    %v5186 = vmul.f32 %v5172, 1.442695
    %v5187 = vpow.pop %v5186
    %v5188 = vmul.f32 %v5173, 1.442695
    %v5189 = vpow.pop %v5188
    %v5190 = vmul.f32 %v5174, 1.442695
    %v5191 = vpow.pop %v5190
    %v5192 = vmul.f32 %v5175, 1.442695
    %v5193 = vpow.pop %v5192
    %v5194 = vmul.f32 %v5176, 1.442695
    %v5195 = vpow.pop %v5194
    %v5196 = vmul.f32 %v5177, 1.442695
    %v5197 = vpow.pop %v5196
    %v5198 = vmul.f32 %v5178, 1.442695
    %v5199 = vpow.pop %v5198
    %v5200 = vmul.f32 %v5179, 1.442695
    %v5201 = vpow.pop %v5200
    %v5202 = vmul.f32 %v5180, 1.442695
    %v5203 = vpow.pop %v5202
    %v5204 = vmul.f32 %v5181, 1.442695
    %v5205 = vpow.pop %v5204
    %v5206 = vmul.f32 %v5182, 1.442695
    %v5207 = vpow.pop %v5206
    %v5208 = vmul.f32 %v5183, 1.442695
    %v5209 = vpow.pop %v5208
    %v5210 = vmul.f32 %v5184, 1.442695
    %v5211 = vpow.pop %v5210
    %v5212 = vmul.f32 %v5185, 1.442695
    %v5213 = vpow.pop %v5212
    %v5214 = vadd.f32 %v5187, 1.0
    %v5215 = vadd.f32 %v5189, 1.0
    %v5216 = vadd.f32 %v5191, 1.0
    %v5217 = vadd.f32 %v5193, 1.0
    %v5218 = vadd.f32 %v5195, 1.0
    %v5219 = vadd.f32 %v5197, 1.0
    %v5220 = vadd.f32 %v5199, 1.0
    %v5221 = vadd.f32 %v5201, 1.0
    %v5222 = vadd.f32 %v5203, 1.0
    %v5223 = vadd.f32 %v5205, 1.0
    %v5224 = vadd.f32 %v5207, 1.0
    %v5225 = vadd.f32 %v5209, 1.0
    %v5226 = vadd.f32 %v5211, 1.0
    %v5227 = vadd.f32 %v5213, 1.0
    %v5228 = vlog2.pop %v5214
    %v5229 = vmul.f32 %v5228, 0.6931472
    %v5230 = vlog2.pop %v5215
    %v5231 = vmul.f32 %v5230, 0.6931472
    %v5232 = vlog2.pop %v5216
    %v5233 = vmul.f32 %v5232, 0.6931472
    %v5234 = vlog2.pop %v5217
    %v5235 = vmul.f32 %v5234, 0.6931472
    %v5236 = vlog2.pop %v5218
    %v5237 = vmul.f32 %v5236, 0.6931472
    %v5238 = vlog2.pop %v5219
    %v5239 = vmul.f32 %v5238, 0.6931472
    %v5240 = vlog2.pop %v5220
    %v5241 = vmul.f32 %v5240, 0.6931472
    %v5242 = vlog2.pop %v5221
    %v5243 = vmul.f32 %v5242, 0.6931472
    %v5244 = vlog2.pop %v5222
    %v5245 = vmul.f32 %v5244, 0.6931472
    %v5246 = vlog2.pop %v5223
    %v5247 = vmul.f32 %v5246, 0.6931472
    %v5248 = vlog2.pop %v5224
    %v5249 = vmul.f32 %v5248, 0.6931472
    %v5250 = vlog2.pop %v5225
    %v5251 = vmul.f32 %v5250, 0.6931472
    %v5252 = vlog2.pop %v5226
    %v5253 = vmul.f32 %v5252, 0.6931472
    %v5254 = vlog2.pop %v5227
    %v5255 = vmul.f32 %v5254, 0.6931472
    %v5256 = vadd.f32 %v5144, %v5229
    %v5257 = vadd.f32 %v5145, %v5231
    %v5258 = vadd.f32 %v5146, %v5233
    %v5259 = vadd.f32 %v5147, %v5235
    %v5260 = vadd.f32 %v5148, %v5237
    %v5261 = vadd.f32 %v5149, %v5239
    %v5262 = vadd.f32 %v5150, %v5241
    %v5263 = vadd.f32 %v5151, %v5243
    %v5264 = vadd.f32 %v5152, %v5245
    %v5265 = vadd.f32 %v5153, %v5247
    %v5266 = vadd.f32 %v5154, %v5249
    %v5267 = vadd.f32 %v5155, %v5251
    %v5268 = vadd.f32 %v5156, %v5253
    %v5269 = vadd.f32 %v5157, %v5255
    %s5270 = scalar_lea.vmem %s8, 4
    %v5271 = vld [vmem:[%s5270] sm:$0xf]
    %v5272 = vlaneseq
    %v5273 = vshrl.u32 %v5272, 7
    %v5274 = vsub.s32 3, %v5273
    %v5275 = vrot.slane %v5271, %v5274
    %v5276 = vmul.f32 %v5054, %v5275
    %v5277 = vmul.f32 %v5058, %v5275
    %v5278 = vmul.f32 %v5064, %v5275
    %v5279 = vmul.f32 %v5068, %v5275
    %v5280 = vmul.f32 %v5074, %v5275
    %v5281 = vmul.f32 %v5078, %v5275
    %v5282 = vmul.f32 %v5084, %v5275
    %v5283 = vmul.f32 %v5088, %v5275
    %v5284 = vmul.f32 %v5094, %v5275
    %v5285 = vmul.f32 %v5098, %v5275
    %v5286 = vmul.f32 %v5104, %v5275
    %v5287 = vmul.f32 %v5108, %v5275
    %v5288 = vmul.f32 %v5114, %v5275
    %v5289 = vmul.f32 %v5118, %v5275
    %v5290 = vrot.slane %v5054, 7
    %v5291 = vrot.slane %v5058, 7
    %v5292 = vrot.slane %v5064, 7
    %v5293 = vrot.slane %v5068, 7
    %v5294 = vrot.slane %v5074, 7
    %v5295 = vrot.slane %v5078, 7
    %v5296 = vrot.slane %v5084, 7
    %v5297 = vrot.slane %v5088, 7
    %v5298 = vrot.slane %v5094, 7
    %v5299 = vrot.slane %v5098, 7
    %v5300 = vrot.slane %v5104, 7
    %v5301 = vrot.slane %v5108, 7
    %v5302 = vrot.slane %v5114, 7
    %v5303 = vrot.slane %v5118, 7
    %v5304 = vsel %vm1654, %v5302, %v5303
    %v5305 = vsel %vm1654, %v5301, %v5302
    %v5306 = vsel %vm1654, %v5300, %v5301
    %v5307 = vsel %vm1654, %v5299, %v5300
    %v5308 = vsel %vm1654, %v5298, %v5299
    %v5309 = vsel %vm1654, %v5297, %v5298
    %v5310 = vsel %vm1654, %v5296, %v5297
    %v5311 = vsel %vm1654, %v5295, %v5296
    %v5312 = vsel %vm1654, %v5294, %v5295
    %v5313 = vsel %vm1654, %v5293, %v5294
    %v5314 = vsel %vm1654, %v5292, %v5293
    %v5315 = vsel %vm1654, %v5291, %v5292
    %v5316 = vsel %vm1654, %v5290, %v5291
    %v5317 = vsel %vm1654, %v5303, %v5290
    %v5318 = vmul.f32 %v5317, %v1766
    %v5319 = vmul.f32 %v5316, %v1767
    %v5320 = vmul.f32 %v5315, %v1768
    %v5321 = vmul.f32 %v5314, %v1769
    %v5322 = vmul.f32 %v5313, %v1770
    %v5323 = vmul.f32 %v5312, %v1771
    %v5324 = vmul.f32 %v5311, %v1772
    %v5325 = vmul.f32 %v5310, %v1773
    %v5326 = vmul.f32 %v5309, %v1774
    %v5327 = vmul.f32 %v5308, %v1775
    %v5328 = vmul.f32 %v5307, %v1776
    %v5329 = vmul.f32 %v5306, %v1777
    %v5330 = vmul.f32 %v5305, %v1778
    %v5331 = vmul.f32 %v5304, %v1779
    %v5332 = vlaneseq
    %v5333 = vshrl.u32 %v5332, 7
    %v5334 = vsub.s32 2, %v5333
    %v5335 = vrot.slane %v5271, %v5334
    %v5336 = vmul.f32 %v5318, %v5335
    %v5337 = vmul.f32 %v5319, %v5335
    %v5338 = vmul.f32 %v5320, %v5335
    %v5339 = vmul.f32 %v5321, %v5335
    %v5340 = vmul.f32 %v5322, %v5335
    %v5341 = vmul.f32 %v5323, %v5335
    %v5342 = vmul.f32 %v5324, %v5335
    %v5343 = vmul.f32 %v5325, %v5335
    %v5344 = vmul.f32 %v5326, %v5335
    %v5345 = vmul.f32 %v5327, %v5335
    %v5346 = vmul.f32 %v5328, %v5335
    %v5347 = vmul.f32 %v5329, %v5335
    %v5348 = vmul.f32 %v5330, %v5335
    %v5349 = vmul.f32 %v5331, %v5335
    %v5350 = vadd.f32 %v5276, %v5336
    %v5351 = vadd.f32 %v5277, %v5337
    %v5352 = vadd.f32 %v5278, %v5338
    %v5353 = vadd.f32 %v5279, %v5339
    %v5354 = vadd.f32 %v5280, %v5340
    %v5355 = vadd.f32 %v5281, %v5341
    %v5356 = vadd.f32 %v5282, %v5342
    %v5357 = vadd.f32 %v5283, %v5343
    %v5358 = vadd.f32 %v5284, %v5344
    %v5359 = vadd.f32 %v5285, %v5345
    %v5360 = vadd.f32 %v5286, %v5346
    %v5361 = vadd.f32 %v5287, %v5347
    %v5362 = vadd.f32 %v5288, %v5348
    %v5363 = vadd.f32 %v5289, %v5349
    %v5364 = vrot.slane %v5054, 6
    %v5365 = vrot.slane %v5058, 6
    %v5366 = vrot.slane %v5064, 6
    %v5367 = vrot.slane %v5068, 6
    %v5368 = vrot.slane %v5074, 6
    %v5369 = vrot.slane %v5078, 6
    %v5370 = vrot.slane %v5084, 6
    %v5371 = vrot.slane %v5088, 6
    %v5372 = vrot.slane %v5094, 6
    %v5373 = vrot.slane %v5098, 6
    %v5374 = vrot.slane %v5104, 6
    %v5375 = vrot.slane %v5108, 6
    %v5376 = vrot.slane %v5114, 6
    %v5377 = vrot.slane %v5118, 6
    %v5378 = vsel %vm1780, %v5376, %v5377
    %v5379 = vsel %vm1780, %v5375, %v5376
    %v5380 = vsel %vm1780, %v5374, %v5375
    %v5381 = vsel %vm1780, %v5373, %v5374
    %v5382 = vsel %vm1780, %v5372, %v5373
    %v5383 = vsel %vm1780, %v5371, %v5372
    %v5384 = vsel %vm1780, %v5370, %v5371
    %v5385 = vsel %vm1780, %v5369, %v5370
    %v5386 = vsel %vm1780, %v5368, %v5369
    %v5387 = vsel %vm1780, %v5367, %v5368
    %v5388 = vsel %vm1780, %v5366, %v5367
    %v5389 = vsel %vm1780, %v5365, %v5366
    %v5390 = vsel %vm1780, %v5364, %v5365
    %v5391 = vsel %vm1780, %v5377, %v5364
    %v5392 = vmul.f32 %v5391, %v1878
    %v5393 = vmul.f32 %v5390, %v1879
    %v5394 = vmul.f32 %v5389, %v1880
    %v5395 = vmul.f32 %v5388, %v1881
    %v5396 = vmul.f32 %v5387, %v1882
    %v5397 = vmul.f32 %v5386, %v1883
    %v5398 = vmul.f32 %v5385, %v1884
    %v5399 = vmul.f32 %v5384, %v1885
    %v5400 = vmul.f32 %v5383, %v1886
    %v5401 = vmul.f32 %v5382, %v1887
    %v5402 = vmul.f32 %v5381, %v1888
    %v5403 = vmul.f32 %v5380, %v1889
    %v5404 = vmul.f32 %v5379, %v1890
    %v5405 = vmul.f32 %v5378, %v1891
    %v5406 = vlaneseq
    %v5407 = vshrl.u32 %v5406, 7
    %v5408 = vsub.s32 1, %v5407
    %v5409 = vrot.slane %v5271, %v5408
    %v5410 = vmul.f32 %v5392, %v5409
    %v5411 = vmul.f32 %v5393, %v5409
    %v5412 = vmul.f32 %v5394, %v5409
    %v5413 = vmul.f32 %v5395, %v5409
    %v5414 = vmul.f32 %v5396, %v5409
    %v5415 = vmul.f32 %v5397, %v5409
    %v5416 = vmul.f32 %v5398, %v5409
    %v5417 = vmul.f32 %v5399, %v5409
    %v5418 = vmul.f32 %v5400, %v5409
    %v5419 = vmul.f32 %v5401, %v5409
    %v5420 = vmul.f32 %v5402, %v5409
    %v5421 = vmul.f32 %v5403, %v5409
    %v5422 = vmul.f32 %v5404, %v5409
    %v5423 = vmul.f32 %v5405, %v5409
    %v5424 = vadd.f32 %v5350, %v5410
    %v5425 = vadd.f32 %v5351, %v5411
    %v5426 = vadd.f32 %v5352, %v5412
    %v5427 = vadd.f32 %v5353, %v5413
    %v5428 = vadd.f32 %v5354, %v5414
    %v5429 = vadd.f32 %v5355, %v5415
    %v5430 = vadd.f32 %v5356, %v5416
    %v5431 = vadd.f32 %v5357, %v5417
    %v5432 = vadd.f32 %v5358, %v5418
    %v5433 = vadd.f32 %v5359, %v5419
    %v5434 = vadd.f32 %v5360, %v5420
    %v5435 = vadd.f32 %v5361, %v5421
    %v5436 = vadd.f32 %v5362, %v5422
    %v5437 = vadd.f32 %v5363, %v5423
    %v5438 = vrot.slane %v5054, 5
    %v5439 = vrot.slane %v5058, 5
    %v5440 = vrot.slane %v5064, 5
    %v5441 = vrot.slane %v5068, 5
    %v5442 = vrot.slane %v5074, 5
    %v5443 = vrot.slane %v5078, 5
    %v5444 = vrot.slane %v5084, 5
    %v5445 = vrot.slane %v5088, 5
    %v5446 = vrot.slane %v5094, 5
    %v5447 = vrot.slane %v5098, 5
    %v5448 = vrot.slane %v5104, 5
    %v5449 = vrot.slane %v5108, 5
    %v5450 = vrot.slane %v5114, 5
    %v5451 = vrot.slane %v5118, 5
    %v5452 = vsel %vm1892, %v5450, %v5451
    %v5453 = vsel %vm1892, %v5449, %v5450
    %v5454 = vsel %vm1892, %v5448, %v5449
    %v5455 = vsel %vm1892, %v5447, %v5448
    %v5456 = vsel %vm1892, %v5446, %v5447
    %v5457 = vsel %vm1892, %v5445, %v5446
    %v5458 = vsel %vm1892, %v5444, %v5445
    %v5459 = vsel %vm1892, %v5443, %v5444
    %v5460 = vsel %vm1892, %v5442, %v5443
    %v5461 = vsel %vm1892, %v5441, %v5442
    %v5462 = vsel %vm1892, %v5440, %v5441
    %v5463 = vsel %vm1892, %v5439, %v5440
    %v5464 = vsel %vm1892, %v5438, %v5439
    %v5465 = vsel %vm1892, %v5451, %v5438
    %v5466 = vmul.f32 %v5465, %v1990
    %v5467 = vmul.f32 %v5464, %v1991
    %v5468 = vmul.f32 %v5463, %v1992
    %v5469 = vmul.f32 %v5462, %v1993
    %v5470 = vmul.f32 %v5461, %v1994
    %v5471 = vmul.f32 %v5460, %v1995
    %v5472 = vmul.f32 %v5459, %v1996
    %v5473 = vmul.f32 %v5458, %v1997
    %v5474 = vmul.f32 %v5457, %v1998
    %v5475 = vmul.f32 %v5456, %v1999
    %v5476 = vmul.f32 %v5455, %v2000
    %v5477 = vmul.f32 %v5454, %v2001
    %v5478 = vmul.f32 %v5453, %v2002
    %v5479 = vmul.f32 %v5452, %v2003
    %v5480 = vlaneseq
    %v5481 = vshrl.u32 %v5480, 7
    %v5482 = vsub.s32 0, %v5481
    %v5483 = vrot.slane %v5271, %v5482
    %v5484 = vmul.f32 %v5466, %v5483
    %v5485 = vmul.f32 %v5467, %v5483
    %v5486 = vmul.f32 %v5468, %v5483
    %v5487 = vmul.f32 %v5469, %v5483
    %v5488 = vmul.f32 %v5470, %v5483
    %v5489 = vmul.f32 %v5471, %v5483
    %v5490 = vmul.f32 %v5472, %v5483
    %v5491 = vmul.f32 %v5473, %v5483
    %v5492 = vmul.f32 %v5474, %v5483
    %v5493 = vmul.f32 %v5475, %v5483
    %v5494 = vmul.f32 %v5476, %v5483
    %v5495 = vmul.f32 %v5477, %v5483
    %v5496 = vmul.f32 %v5478, %v5483
    %v5497 = vmul.f32 %v5479, %v5483
    %v5498 = vadd.f32 %v5424, %v5484
    %v5499 = vadd.f32 %v5425, %v5485
    %v5500 = vadd.f32 %v5426, %v5486
    %v5501 = vadd.f32 %v5427, %v5487
    %v5502 = vadd.f32 %v5428, %v5488
    %v5503 = vadd.f32 %v5429, %v5489
    %v5504 = vadd.f32 %v5430, %v5490
    %v5505 = vadd.f32 %v5431, %v5491
    %v5506 = vadd.f32 %v5432, %v5492
    %v5507 = vadd.f32 %v5433, %v5493
    %v5508 = vadd.f32 %v5434, %v5494
    %v5509 = vadd.f32 %v5435, %v5495
    %v5510 = vadd.f32 %v5436, %v5496
    %v5511 = vadd.f32 %v5437, %v5497
    %s5512 = scalar_lea.vmem %s9, 1
    %v5513 = vld [vmem:[%s5512] sm:$0x1]
    %v5515 = vlaneseq
    %v5516 = vshrl.u32 %v5515, 7
    %v5517 = vsub.s32 0, %v5516
    %v5518 = vrot.slane %v5513, %v5517
    %v5520 = vadd.f32 %v5498, %v5518
    %v5521 = vadd.f32 %v5499, %v5518
    %v5522 = vadd.f32 %v5500, %v5518
    %v5523 = vadd.f32 %v5501, %v5518
    %v5524 = vadd.f32 %v5502, %v5518
    %v5525 = vadd.f32 %v5503, %v5518
    %v5526 = vadd.f32 %v5504, %v5518
    %v5527 = vadd.f32 %v5505, %v5518
    %v5528 = vadd.f32 %v5506, %v5518
    %v5529 = vadd.f32 %v5507, %v5518
    %v5530 = vadd.f32 %v5508, %v5518
    %v5531 = vadd.f32 %v5509, %v5518
    %v5532 = vadd.f32 %v5510, %v5518
    %v5533 = vadd.f32 %v5511, %v5518
    %v5534 = vsub.f32 0.0, %v5520
    %v5535 = vsub.f32 0.0, %v5521
    %v5536 = vsub.f32 0.0, %v5522
    %v5537 = vsub.f32 0.0, %v5523
    %v5538 = vsub.f32 0.0, %v5524
    %v5539 = vsub.f32 0.0, %v5525
    %v5540 = vsub.f32 0.0, %v5526
    %v5541 = vsub.f32 0.0, %v5527
    %v5542 = vsub.f32 0.0, %v5528
    %v5543 = vsub.f32 0.0, %v5529
    %v5544 = vsub.f32 0.0, %v5530
    %v5545 = vsub.f32 0.0, %v5531
    %v5546 = vsub.f32 0.0, %v5532
    %v5547 = vsub.f32 0.0, %v5533
    %v5548 = vmul.f32 %v5534, 1.442695
    %v5549 = vpow.pop %v5548
    %v5550 = vmul.f32 %v5535, 1.442695
    %v5551 = vpow.pop %v5550
    %v5552 = vmul.f32 %v5536, 1.442695
    %v5553 = vpow.pop %v5552
    %v5554 = vmul.f32 %v5537, 1.442695
    %v5555 = vpow.pop %v5554
    %v5556 = vmul.f32 %v5538, 1.442695
    %v5557 = vpow.pop %v5556
    %v5558 = vmul.f32 %v5539, 1.442695
    %v5559 = vpow.pop %v5558
    %v5560 = vmul.f32 %v5540, 1.442695
    %v5561 = vpow.pop %v5560
    %v5562 = vmul.f32 %v5541, 1.442695
    %v5563 = vpow.pop %v5562
    %v5564 = vmul.f32 %v5542, 1.442695
    %v5565 = vpow.pop %v5564
    %v5566 = vmul.f32 %v5543, 1.442695
    %v5567 = vpow.pop %v5566
    %v5568 = vmul.f32 %v5544, 1.442695
    %v5569 = vpow.pop %v5568
    %v5570 = vmul.f32 %v5545, 1.442695
    %v5571 = vpow.pop %v5570
    %v5572 = vmul.f32 %v5546, 1.442695
    %v5573 = vpow.pop %v5572
    %v5574 = vmul.f32 %v5547, 1.442695
    %v5575 = vpow.pop %v5574
    %v5576 = vadd.f32 %v5549, 1.0
    %v5577 = vadd.f32 %v5551, 1.0
    %v5578 = vadd.f32 %v5553, 1.0
    %v5579 = vadd.f32 %v5555, 1.0
    %v5580 = vadd.f32 %v5557, 1.0
    %v5581 = vadd.f32 %v5559, 1.0
    %v5582 = vadd.f32 %v5561, 1.0
    %v5583 = vadd.f32 %v5563, 1.0
    %v5584 = vadd.f32 %v5565, 1.0
    %v5585 = vadd.f32 %v5567, 1.0
    %v5586 = vadd.f32 %v5569, 1.0
    %v5587 = vadd.f32 %v5571, 1.0
    %v5588 = vadd.f32 %v5573, 1.0
    %v5589 = vadd.f32 %v5575, 1.0
    %v5590 = vrcp.pop %v5576
    %v5591 = vmul.f32 1.0, %v5590
    %v5592 = vrcp.pop %v5577
    %v5593 = vmul.f32 1.0, %v5592
    %v5594 = vrcp.pop %v5578
    %v5595 = vmul.f32 1.0, %v5594
    %v5596 = vrcp.pop %v5579
    %v5597 = vmul.f32 1.0, %v5596
    %v5598 = vrcp.pop %v5580
    %v5599 = vmul.f32 1.0, %v5598
    %v5600 = vrcp.pop %v5581
    %v5601 = vmul.f32 1.0, %v5600
    %v5602 = vrcp.pop %v5582
    %v5603 = vmul.f32 1.0, %v5602
    %v5604 = vrcp.pop %v5583
    %v5605 = vmul.f32 1.0, %v5604
    %v5606 = vrcp.pop %v5584
    %v5607 = vmul.f32 1.0, %v5606
    %v5608 = vrcp.pop %v5585
    %v5609 = vmul.f32 1.0, %v5608
    %v5610 = vrcp.pop %v5586
    %v5611 = vmul.f32 1.0, %v5610
    %v5612 = vrcp.pop %v5587
    %v5613 = vmul.f32 1.0, %v5612
    %v5614 = vrcp.pop %v5588
    %v5615 = vmul.f32 1.0, %v5614
    %v5616 = vrcp.pop %v5589
    %v5617 = vmul.f32 1.0, %v5616
    %v5618 = vmul.f32 %v5520, %v5591
    %v5619 = vmul.f32 %v5521, %v5593
    %v5620 = vmul.f32 %v5522, %v5595
    %v5621 = vmul.f32 %v5523, %v5597
    %v5622 = vmul.f32 %v5524, %v5599
    %v5623 = vmul.f32 %v5525, %v5601
    %v5624 = vmul.f32 %v5526, %v5603
    %v5625 = vmul.f32 %v5527, %v5605
    %v5626 = vmul.f32 %v5528, %v5607
    %v5627 = vmul.f32 %v5529, %v5609
    %v5628 = vmul.f32 %v5530, %v5611
    %v5629 = vmul.f32 %v5531, %v5613
    %v5630 = vmul.f32 %v5532, %v5615
    %v5631 = vmul.f32 %v5533, %v5617
    %5646 = vrot.lane.b32.xlu0 %v5618, 48
    %v5647 = vpop.permute.xlu0 %5646
    %5648 = vrot.lane.b32.xlu0 %v5619, 48
    %v5649 = vpop.permute.xlu0 %5648
    %5650 = vrot.lane.b32.xlu0 %v5620, 48
    %v5651 = vpop.permute.xlu0 %5650
    %5652 = vrot.lane.b32.xlu0 %v5621, 48
    %v5653 = vpop.permute.xlu0 %5652
    %5654 = vrot.lane.b32.xlu0 %v5622, 48
    %v5655 = vpop.permute.xlu0 %5654
    %5656 = vrot.lane.b32.xlu0 %v5623, 48
    %v5657 = vpop.permute.xlu0 %5656
    %5658 = vrot.lane.b32.xlu0 %v5624, 48
    %v5659 = vpop.permute.xlu0 %5658
    %5660 = vrot.lane.b32.xlu0 %v5625, 48
    %v5661 = vpop.permute.xlu0 %5660
    %5662 = vrot.lane.b32.xlu0 %v5626, 48
    %v5663 = vpop.permute.xlu0 %5662
    %5664 = vrot.lane.b32.xlu0 %v5627, 48
    %v5665 = vpop.permute.xlu0 %5664
    %5666 = vrot.lane.b32.xlu0 %v5628, 48
    %v5667 = vpop.permute.xlu0 %5666
    %5668 = vrot.lane.b32.xlu0 %v5629, 48
    %v5669 = vpop.permute.xlu0 %5668
    %5670 = vrot.lane.b32.xlu0 %v5630, 48
    %v5671 = vpop.permute.xlu0 %5670
    %5672 = vrot.lane.b32.xlu0 %v5631, 48
    %v5673 = vpop.permute.xlu0 %5672
    %5674 = vrot.lane.b32.xlu0 %v5618, 64
    %v5675 = vpop.permute.xlu0 %5674
    %5676 = vrot.lane.b32.xlu0 %v5619, 64
    %v5677 = vpop.permute.xlu0 %5676
    %5678 = vrot.lane.b32.xlu0 %v5620, 64
    %v5679 = vpop.permute.xlu0 %5678
    %5680 = vrot.lane.b32.xlu0 %v5621, 64
    %v5681 = vpop.permute.xlu0 %5680
    %5682 = vrot.lane.b32.xlu0 %v5622, 64
    %v5683 = vpop.permute.xlu0 %5682
    %5684 = vrot.lane.b32.xlu0 %v5623, 64
    %v5685 = vpop.permute.xlu0 %5684
    %5686 = vrot.lane.b32.xlu0 %v5624, 64
    %v5687 = vpop.permute.xlu0 %5686
    %5688 = vrot.lane.b32.xlu0 %v5625, 64
    %v5689 = vpop.permute.xlu0 %5688
    %5690 = vrot.lane.b32.xlu0 %v5626, 64
    %v5691 = vpop.permute.xlu0 %5690
    %5692 = vrot.lane.b32.xlu0 %v5627, 64
    %v5693 = vpop.permute.xlu0 %5692
    %5694 = vrot.lane.b32.xlu0 %v5628, 64
    %v5695 = vpop.permute.xlu0 %5694
    %5696 = vrot.lane.b32.xlu0 %v5629, 64
    %v5697 = vpop.permute.xlu0 %5696
    %5698 = vrot.lane.b32.xlu0 %v5630, 64
    %v5699 = vpop.permute.xlu0 %5698
    %5700 = vrot.lane.b32.xlu0 %v5631, 64
    %v5701 = vpop.permute.xlu0 %5700
    %v5702 = vsel %vm2738, %v5647, 0
    %v5704 = vsel %vm2738, %v5649, 0
    %v5706 = vsel %vm2738, %v5651, 0
    %v5708 = vsel %vm2738, %v5653, 0
    %v5710 = vsel %vm2738, %v5655, 0
    %v5712 = vsel %vm2738, %v5657, 0
    %v5714 = vsel %vm2738, %v5659, 0
    %v5716 = vsel %vm2738, %v5661, 0
    %v5718 = vsel %vm2738, %v5663, 0
    %v5720 = vsel %vm2738, %v5665, 0
    %v5722 = vsel %vm2738, %v5667, 0
    %v5724 = vsel %vm2738, %v5669, 0
    %v5726 = vsel %vm2738, %v5671, 0
    %v5728 = vsel %vm2738, %v5673, 0
    %v5730 = vsel %vm2738, %v5675, 0
    %v5732 = vsel %vm2738, %v5677, 0
    %v5734 = vsel %vm2738, %v5679, 0
    %v5736 = vsel %vm2738, %v5681, 0
    %v5738 = vsel %vm2738, %v5683, 0
    %v5740 = vsel %vm2738, %v5685, 0
    %v5742 = vsel %vm2738, %v5687, 0
    %v5744 = vsel %vm2738, %v5689, 0
    %v5746 = vsel %vm2738, %v5691, 0
    %v5748 = vsel %vm2738, %v5693, 0
    %v5750 = vsel %vm2738, %v5695, 0
    %v5752 = vsel %vm2738, %v5697, 0
    %v5754 = vsel %vm2738, %v5699, 0
    %v5756 = vsel %vm2738, %v5701, 0
    %5758 = vmatprep.subr.mxu0 0.0
    %5759 = vmatpush1.xpose.msra.mxu0 %v5730
    %5760 = vmatprep.subr.mxu0 0.0
    %5761 = vmatpush1.xpose.msra.mxu0 %v5732
    %5762 = vmatprep.subr.mxu0 0.0
    %5763 = vmatpush1.xpose.msra.mxu0 %v5734
    %5764 = vmatprep.subr.mxu0 0.0
    %5765 = vmatpush1.xpose.msra.mxu0 %v5736
    %5766 = vmatprep.subr.mxu0 0.0
    %5767 = vmatpush1.xpose.msra.mxu0 %v5738
    %5768 = vmatprep.subr.mxu0 0.0
    %5769 = vmatpush1.xpose.msra.mxu0 %v5740
    %5770 = vmatprep.subr.mxu0 0.0
    %5771 = vmatpush1.xpose.msra.mxu0 %v5742
    %5772 = vmatprep.subr.mxu0 0.0
    %5773 = vmatpush1.xpose.msra.mxu0 %v5744
    %5774 = vmatprep.subr.mxu0 0.0
    %5775 = vmatpush1.xpose.msra.mxu0 %v5746
    %5776 = vmatprep.subr.mxu0 0.0
    %5777 = vmatpush1.xpose.msra.mxu0 %v5748
    %5778 = vmatprep.subr.mxu0 0.0
    %5779 = vmatpush1.xpose.msra.mxu0 %v5750
    %5780 = vmatprep.subr.mxu0 0.0
    %5781 = vmatpush1.xpose.msra.mxu0 %v5752
    %5782 = vmatprep.subr.mxu0 0.0
    %5783 = vmatpush1.xpose.msra.mxu0 %v5754
    %5784 = vmatprep.subr.mxu0 0.0
    %5785 = vmatpush1.xpose.msra.mxu0 %v5756
    %5786 = vmatprep.subr.mxu0 0.0
    %5787 = vmatpush1.xpose.msra.mxu0 0.0
    %5788 = vmatprep.subr.mxu0 0.0
    %5789 = vmatpush1.xpose.msra.mxu0 0.0
    %5790 = vmatprep.subr.mxu0 0.0
    %5791 = vmatpush1.xpose.msra.mxu0 0.0
    %5792 = vmatprep.subr.mxu0 0.0
    %5793 = vmatpush1.xpose.msra.mxu0 0.0
    %5794 = vmatprep.subr.mxu0 0.0
    %5795 = vmatpush1.xpose.msra.mxu0 0.0
    %5796 = vmatprep.subr.mxu0 0.0
    %5797 = vmatpush1.xpose.msra.mxu0 0.0
    %5798 = vmatprep.subr.mxu0 0.0
    %5799 = vmatpush1.xpose.msra.mxu0 0.0
    %5800 = vmatprep.subr.mxu0 0.0
    %5801 = vmatpush1.xpose.msra.mxu0 0.0
    %5802 = vmatprep.subr.mxu0 0.0
    %5803 = vmatpush1.xpose.msra.mxu0 0.0
    %5804 = vmatprep.subr.mxu0 0.0
    %5805 = vmatpush1.xpose.msra.mxu0 0.0
    %5806 = vmatprep.subr.mxu0 0.0
    %5807 = vmatpush1.xpose.msra.mxu0 0.0
    %5808 = vmatprep.subr.mxu0 0.0
    %5809 = vmatpush1.xpose.msra.mxu0 0.0
    %5810 = vmatprep.subr.mxu0 0.0
    %5811 = vmatpush1.xpose.msra.mxu0 0.0
    %5812 = vmatprep.subr.mxu0 0.0
    %5813 = vmatpush1.xpose.msra.mxu0 0.0
    %5814 = vmatprep.subr.mxu0 0.0
    %5815 = vmatpush1.xpose.msra.mxu0 0.0
    %5816 = vmatprep.subr.mxu0 0.0
    %5817 = vmatpush1.xpose.msra.mxu0 0.0
    %5818 = vmatprep.subr.mxu0 0.0
    %5819 = vmatpush1.xpose.msra.mxu0 0.0
    %5820 = vmatprep.subr.mxu0 0.0
    %5821 = vmatpush1.xpose.msra.mxu0 0.0
    %5822 = vmatprep.mubr.f32.mxu0 0.0
    %5823 = vmatmul.mubr.f32.gmra.mrb[0].mxu0 %v5702
    %v5824 = vpop.f32.mrb[0].mxu0
    %v5825 = vadd.f32 0.0, %v5824
    %v5826 = vpop.f32.mrb[0].mxu0
    %5827 = vmatprep.mubr.f32.mxu0 0.0
    %5828 = vmatmul.mubr.f32.gmra.mrb[0].mxu0 %v5704
    %v5829 = vpop.f32.mrb[0].mxu0
    %v5830 = vadd.f32 0.0, %v5829
    %v5831 = vpop.f32.mrb[0].mxu0
    %5832 = vmatprep.mubr.f32.mxu0 0.0
    %5833 = vmatmul.mubr.f32.gmra.mrb[0].mxu0 %v5706
    %v5834 = vpop.f32.mrb[0].mxu0
    %v5835 = vadd.f32 0.0, %v5834
    %v5836 = vpop.f32.mrb[0].mxu0
    %5837 = vmatprep.mubr.f32.mxu0 0.0
    %5838 = vmatmul.mubr.f32.gmra.mrb[0].mxu0 %v5708
    %v5839 = vpop.f32.mrb[0].mxu0
    %v5840 = vadd.f32 0.0, %v5839
    %v5841 = vpop.f32.mrb[0].mxu0
    %5842 = vmatprep.mubr.f32.mxu0 0.0
    %5843 = vmatmul.mubr.f32.gmra.mrb[0].mxu0 %v5710
    %v5844 = vpop.f32.mrb[0].mxu0
    %v5845 = vadd.f32 0.0, %v5844
    %v5846 = vpop.f32.mrb[0].mxu0
    %5847 = vmatprep.mubr.f32.mxu0 0.0
    %5848 = vmatmul.mubr.f32.gmra.mrb[0].mxu0 %v5712
    %v5849 = vpop.f32.mrb[0].mxu0
    %v5850 = vadd.f32 0.0, %v5849
    %v5851 = vpop.f32.mrb[0].mxu0
    %5852 = vmatprep.mubr.f32.mxu0 0.0
    %5853 = vmatmul.mubr.f32.gmra.mrb[0].mxu0 %v5714
    %v5854 = vpop.f32.mrb[0].mxu0
    %v5855 = vadd.f32 0.0, %v5854
    %v5856 = vpop.f32.mrb[0].mxu0
    %5857 = vmatprep.mubr.f32.mxu0 0.0
    %5858 = vmatmul.mubr.f32.gmra.mrb[0].mxu0 %v5716
    %v5859 = vpop.f32.mrb[0].mxu0
    %v5860 = vadd.f32 0.0, %v5859
    %v5861 = vpop.f32.mrb[0].mxu0
    %5862 = vmatprep.mubr.f32.mxu0 0.0
    %5863 = vmatmul.mubr.f32.gmra.mrb[0].mxu0 %v5718
    %v5864 = vpop.f32.mrb[0].mxu0
    %v5865 = vadd.f32 0.0, %v5864
    %v5866 = vpop.f32.mrb[0].mxu0
    %5867 = vmatprep.mubr.f32.mxu0 0.0
    %5868 = vmatmul.mubr.f32.gmra.mrb[0].mxu0 %v5720
    %v5869 = vpop.f32.mrb[0].mxu0
    %v5870 = vadd.f32 0.0, %v5869
    %v5871 = vpop.f32.mrb[0].mxu0
    %5872 = vmatprep.mubr.f32.mxu0 0.0
    %5873 = vmatmul.mubr.f32.gmra.mrb[0].mxu0 %v5722
    %v5874 = vpop.f32.mrb[0].mxu0
    %v5875 = vadd.f32 0.0, %v5874
    %v5876 = vpop.f32.mrb[0].mxu0
    %5877 = vmatprep.mubr.f32.mxu0 0.0
    %5878 = vmatmul.mubr.f32.gmra.mrb[0].mxu0 %v5724
    %v5879 = vpop.f32.mrb[0].mxu0
    %v5880 = vadd.f32 0.0, %v5879
    %v5881 = vpop.f32.mrb[0].mxu0
    %5882 = vmatprep.mubr.f32.mxu0 0.0
    %5883 = vmatmul.mubr.f32.gmra.mrb[0].mxu0 %v5726
    %v5884 = vpop.f32.mrb[0].mxu0
    %v5885 = vadd.f32 0.0, %v5884
    %v5886 = vpop.f32.mrb[0].mxu0
    %5887 = vmatprep.mubr.f32.mxu0 0.0
    %5888 = vmatmul.mubr.f32.gmra.mrb[0].mxu0 %v5728
    %v5889 = vpop.f32.mrb[0].mxu0
    %v5890 = vadd.f32 0.0, %v5889
    %v5891 = vpop.f32.mrb[0].mxu0
    %5892 = vdwg.mxu0
    %5907 = vrot.lane.b32.xlu0 %v5256, 64
    %v5908 = vpop.permute.xlu0 %5907
    %5909 = vrot.lane.b32.xlu0 %v5257, 64
    %v5910 = vpop.permute.xlu0 %5909
    %5911 = vrot.lane.b32.xlu0 %v5258, 64
    %v5912 = vpop.permute.xlu0 %5911
    %5913 = vrot.lane.b32.xlu0 %v5259, 64
    %v5914 = vpop.permute.xlu0 %5913
    %5915 = vrot.lane.b32.xlu0 %v5260, 64
    %v5916 = vpop.permute.xlu0 %5915
    %5917 = vrot.lane.b32.xlu0 %v5261, 64
    %v5918 = vpop.permute.xlu0 %5917
    %5919 = vrot.lane.b32.xlu0 %v5262, 64
    %v5920 = vpop.permute.xlu0 %5919
    %5921 = vrot.lane.b32.xlu0 %v5263, 64
    %v5922 = vpop.permute.xlu0 %5921
    %5923 = vrot.lane.b32.xlu0 %v5264, 64
    %v5924 = vpop.permute.xlu0 %5923
    %5925 = vrot.lane.b32.xlu0 %v5265, 64
    %v5926 = vpop.permute.xlu0 %5925
    %5927 = vrot.lane.b32.xlu0 %v5266, 64
    %v5928 = vpop.permute.xlu0 %5927
    %5929 = vrot.lane.b32.xlu0 %v5267, 64
    %v5930 = vpop.permute.xlu0 %5929
    %5931 = vrot.lane.b32.xlu0 %v5268, 64
    %v5932 = vpop.permute.xlu0 %5931
    %5933 = vrot.lane.b32.xlu0 %v5269, 64
    %v5934 = vpop.permute.xlu0 %5933
    %5949 = vmatprep.subr.mxu0 0.0
    %5950 = vmatpush1.msra.mxu0 %v5908
    %5951 = vmatprep.subr.mxu0 0.0
    %5952 = vmatpush1.msra.mxu0 %v5910
    %5953 = vmatprep.subr.mxu0 0.0
    %5954 = vmatpush1.msra.mxu0 %v5912
    %5955 = vmatprep.subr.mxu0 0.0
    %5956 = vmatpush1.msra.mxu0 %v5914
    %5957 = vmatprep.subr.mxu0 0.0
    %5958 = vmatpush1.msra.mxu0 %v5916
    %5959 = vmatprep.subr.mxu0 0.0
    %5960 = vmatpush1.msra.mxu0 %v5918
    %5961 = vmatprep.subr.mxu0 0.0
    %5962 = vmatpush1.msra.mxu0 %v5920
    %5963 = vmatprep.subr.mxu0 0.0
    %5964 = vmatpush1.msra.mxu0 %v5922
    %5965 = vmatprep.subr.mxu0 0.0
    %5966 = vmatpush1.msra.mxu0 %v5924
    %5967 = vmatprep.subr.mxu0 0.0
    %5968 = vmatpush1.msra.mxu0 %v5926
    %5969 = vmatprep.subr.mxu0 0.0
    %5970 = vmatpush1.msra.mxu0 %v5928
    %5971 = vmatprep.subr.mxu0 0.0
    %5972 = vmatpush1.msra.mxu0 %v5930
    %5973 = vmatprep.subr.mxu0 0.0
    %5974 = vmatpush1.msra.mxu0 %v5932
    %5975 = vmatprep.subr.mxu0 0.0
    %5976 = vmatpush1.msra.mxu0 %v5934
    %5977 = vmatprep.subr.mxu0 0.0
    %5978 = vmatpush1.msra.mxu0 0.0
    %5979 = vmatprep.subr.mxu0 0.0
    %5980 = vmatpush1.msra.mxu0 0.0
    %5981 = vmatprep.subr.mxu0 0.0
    %5982 = vmatpush1.msra.mxu0 0.0
    %5983 = vmatprep.subr.mxu0 0.0
    %5984 = vmatpush1.msra.mxu0 0.0
    %5985 = vmatprep.subr.mxu0 0.0
    %5986 = vmatpush1.msra.mxu0 0.0
    %5987 = vmatprep.subr.mxu0 0.0
    %5988 = vmatpush1.msra.mxu0 0.0
    %5989 = vmatprep.subr.mxu0 0.0
    %5990 = vmatpush1.msra.mxu0 0.0
    %5991 = vmatprep.subr.mxu0 0.0
    %5992 = vmatpush1.msra.mxu0 0.0
    %5993 = vmatprep.subr.mxu0 0.0
    %5994 = vmatpush1.msra.mxu0 0.0
    %5995 = vmatprep.subr.mxu0 0.0
    %5996 = vmatpush1.msra.mxu0 0.0
    %5997 = vmatprep.subr.mxu0 0.0
    %5998 = vmatpush1.msra.mxu0 0.0
    %5999 = vmatprep.subr.mxu0 0.0
    %6000 = vmatpush1.msra.mxu0 0.0
    %6001 = vmatprep.subr.mxu0 0.0
    %6002 = vmatpush1.msra.mxu0 0.0
    %6003 = vmatprep.subr.mxu0 0.0
    %6004 = vmatpush1.msra.mxu0 0.0
    %6005 = vmatprep.subr.mxu0 0.0
    %6006 = vmatpush1.msra.mxu0 0.0
    %6007 = vmatprep.subr.mxu0 0.0
    %6008 = vmatpush1.msra.mxu0 0.0
    %6009 = vmatprep.subr.mxu0 0.0
    %6010 = vmatpush1.msra.mxu0 0.0
    %6011 = vmatprep.subr.mxu0 0.0
    %6012 = vmatpush1.msra.mxu0 0.0
    %6013 = vmatprep.mubr.f32.mxu0 0.0
    %6014 = vmatmul.mubr.f32.gmra.mrb[0].mxu0 %v2988
    %v6015 = vpop.f32.mrb[0].mxu0
    %v6016 = vadd.f32 0.0, %v6015
    %v6017 = vpop.f32.mrb[0].mxu0
    %6018 = vmatprep.mubr.f32.mxu0 0.0
    %6019 = vmatmul.mubr.f32.gmra.mrb[0].mxu0 %v2991
    %v6020 = vpop.f32.mrb[0].mxu0
    %v6021 = vadd.f32 0.0, %v6020
    %v6022 = vpop.f32.mrb[0].mxu0
    %6023 = vmatprep.mubr.f32.mxu0 0.0
    %6024 = vmatmul.mubr.f32.gmra.mrb[0].mxu0 %v2994
    %v6025 = vpop.f32.mrb[0].mxu0
    %v6026 = vadd.f32 0.0, %v6025
    %v6027 = vpop.f32.mrb[0].mxu0
    %6028 = vmatprep.mubr.f32.mxu0 0.0
    %6029 = vmatmul.mubr.f32.gmra.mrb[0].mxu0 %v2997
    %v6030 = vpop.f32.mrb[0].mxu0
    %v6031 = vadd.f32 0.0, %v6030
    %v6032 = vpop.f32.mrb[0].mxu0
    %6033 = vmatprep.mubr.f32.mxu0 0.0
    %6034 = vmatmul.mubr.f32.gmra.mrb[0].mxu0 %v3000
    %v6035 = vpop.f32.mrb[0].mxu0
    %v6036 = vadd.f32 0.0, %v6035
    %v6037 = vpop.f32.mrb[0].mxu0
    %6038 = vmatprep.mubr.f32.mxu0 0.0
    %6039 = vmatmul.mubr.f32.gmra.mrb[0].mxu0 %v3003
    %v6040 = vpop.f32.mrb[0].mxu0
    %v6041 = vadd.f32 0.0, %v6040
    %v6042 = vpop.f32.mrb[0].mxu0
    %6043 = vmatprep.mubr.f32.mxu0 0.0
    %6044 = vmatmul.mubr.f32.gmra.mrb[0].mxu0 %v3006
    %v6045 = vpop.f32.mrb[0].mxu0
    %v6046 = vadd.f32 0.0, %v6045
    %v6047 = vpop.f32.mrb[0].mxu0
    %6048 = vmatprep.mubr.f32.mxu0 0.0
    %6049 = vmatmul.mubr.f32.gmra.mrb[0].mxu0 %v3009
    %v6050 = vpop.f32.mrb[0].mxu0
    %v6051 = vadd.f32 0.0, %v6050
    %v6052 = vpop.f32.mrb[0].mxu0
    %6053 = vmatprep.mubr.f32.mxu0 0.0
    %6054 = vmatmul.mubr.f32.gmra.mrb[0].mxu0 %v3012
    %v6055 = vpop.f32.mrb[0].mxu0
    %v6056 = vadd.f32 0.0, %v6055
    %v6057 = vpop.f32.mrb[0].mxu0
    %6058 = vmatprep.mubr.f32.mxu0 0.0
    %6059 = vmatmul.mubr.f32.gmra.mrb[0].mxu0 %v3015
    %v6060 = vpop.f32.mrb[0].mxu0
    %v6061 = vadd.f32 0.0, %v6060
    %v6062 = vpop.f32.mrb[0].mxu0
    %6063 = vmatprep.mubr.f32.mxu0 0.0
    %6064 = vmatmul.mubr.f32.gmra.mrb[0].mxu0 %v3018
    %v6065 = vpop.f32.mrb[0].mxu0
    %v6066 = vadd.f32 0.0, %v6065
    %v6067 = vpop.f32.mrb[0].mxu0
    %6068 = vmatprep.mubr.f32.mxu0 0.0
    %6069 = vmatmul.mubr.f32.gmra.mrb[0].mxu0 %v3021
    %v6070 = vpop.f32.mrb[0].mxu0
    %v6071 = vadd.f32 0.0, %v6070
    %v6072 = vpop.f32.mrb[0].mxu0
    %6073 = vmatprep.mubr.f32.mxu0 0.0
    %6074 = vmatmul.mubr.f32.gmra.mrb[0].mxu0 %v3024
    %v6075 = vpop.f32.mrb[0].mxu0
    %v6076 = vadd.f32 0.0, %v6075
    %v6077 = vpop.f32.mrb[0].mxu0
    %6078 = vmatprep.mubr.f32.mxu0 0.0
    %6079 = vmatmul.mubr.f32.gmra.mrb[0].mxu0 %v3027
    %v6080 = vpop.f32.mrb[0].mxu0
    %v6081 = vadd.f32 0.0, %v6080
    %v6082 = vpop.f32.mrb[0].mxu0
    %6083 = vdwg.mxu0
    %6084 = vxpose.xlu0.b32.start [1/16] %v5908, 128
    %6085 = vxpose.xlu0.b32.cont [2/16] %v5910, 128
    %6086 = vxpose.xlu0.b32.cont [3/16] %v5912, 128
    %6087 = vxpose.xlu0.b32.cont [4/16] %v5914, 128
    %6088 = vxpose.xlu0.b32.cont [5/16] %v5916, 128
    %6089 = vxpose.xlu0.b32.cont [6/16] %v5918, 128
    %6090 = vxpose.xlu0.b32.cont [7/16] %v5920, 128
    %6091 = vxpose.xlu0.b32.cont [8/16] %v5922, 128
    %6092 = vxpose.xlu0.b32.cont [9/16] %v5924, 128
    %6093 = vxpose.xlu0.b32.cont [10/16] %v5926, 128
    %6094 = vxpose.xlu0.b32.cont [11/16] %v5928, 128
    %6095 = vxpose.xlu0.b32.cont [12/16] %v5930, 128
    %6096 = vxpose.xlu0.b32.cont [13/16] %v5932, 128
    %6097 = vxpose.xlu0.b32.cont [14/16] %v5934, 128
    %6098 = vxpose.xlu0.b32.cont [15/16] 0.0, 128
    %6099 = vxpose.xlu0.b32.end [16/16] 0.0, 128
    %v6100 = vpop.trf.xlu0
    %v6101 = vpop.trf.xlu0
    %v6102 = vpop.trf.xlu0
    %v6103 = vpop.trf.xlu0
    %v6104 = vpop.trf.xlu0
    %v6105 = vpop.trf.xlu0
    %v6106 = vpop.trf.xlu0
    %v6107 = vpop.trf.xlu0
    %v6108 = vpop.trf.xlu0
    %v6109 = vpop.trf.xlu0
    %v6110 = vpop.trf.xlu0
    %v6111 = vpop.trf.xlu0
    %v6112 = vpop.trf.xlu0
    %v6113 = vpop.trf.xlu0
    %v6114 = vpop.trf.xlu0
    %v6115 = vpop.trf.xlu0
    %v6117 = vsel %vm2986, %v6100, 0
    %6119 = vmatprep.subr.mxu0 0.0
    %6120 = vmatpush1.xpose.msra.mxu0 %v2988
    %6121 = vmatprep.subr.mxu0 0.0
    %6122 = vmatpush1.xpose.msra.mxu0 %v2991
    %6123 = vmatprep.subr.mxu0 0.0
    %6124 = vmatpush1.xpose.msra.mxu0 %v2994
    %6125 = vmatprep.subr.mxu0 0.0
    %6126 = vmatpush1.xpose.msra.mxu0 %v2997
    %6127 = vmatprep.subr.mxu0 0.0
    %6128 = vmatpush1.xpose.msra.mxu0 %v3000
    %6129 = vmatprep.subr.mxu0 0.0
    %6130 = vmatpush1.xpose.msra.mxu0 %v3003
    %6131 = vmatprep.subr.mxu0 0.0
    %6132 = vmatpush1.xpose.msra.mxu0 %v3006
    %6133 = vmatprep.subr.mxu0 0.0
    %6134 = vmatpush1.xpose.msra.mxu0 %v3009
    %6135 = vmatprep.subr.mxu0 0.0
    %6136 = vmatpush1.xpose.msra.mxu0 %v3012
    %6137 = vmatprep.subr.mxu0 0.0
    %6138 = vmatpush1.xpose.msra.mxu0 %v3015
    %6139 = vmatprep.subr.mxu0 0.0
    %6140 = vmatpush1.xpose.msra.mxu0 %v3018
    %6141 = vmatprep.subr.mxu0 0.0
    %6142 = vmatpush1.xpose.msra.mxu0 %v3021
    %6143 = vmatprep.subr.mxu0 0.0
    %6144 = vmatpush1.xpose.msra.mxu0 %v3024
    %6145 = vmatprep.subr.mxu0 0.0
    %6146 = vmatpush1.xpose.msra.mxu0 %v3027
    %6147 = vmatprep.subr.mxu0 0.0
    %6148 = vmatpush1.xpose.msra.mxu0 0.0
    %6149 = vmatprep.subr.mxu0 0.0
    %6150 = vmatpush1.xpose.msra.mxu0 0.0
    %6151 = vmatprep.subr.mxu0 0.0
    %6152 = vmatpush1.xpose.msra.mxu0 0.0
    %6153 = vmatprep.subr.mxu0 0.0
    %6154 = vmatpush1.xpose.msra.mxu0 0.0
    %6155 = vmatprep.subr.mxu0 0.0
    %6156 = vmatpush1.xpose.msra.mxu0 0.0
    %6157 = vmatprep.subr.mxu0 0.0
    %6158 = vmatpush1.xpose.msra.mxu0 0.0
    %6159 = vmatprep.subr.mxu0 0.0
    %6160 = vmatpush1.xpose.msra.mxu0 0.0
    %6161 = vmatprep.subr.mxu0 0.0
    %6162 = vmatpush1.xpose.msra.mxu0 0.0
    %6163 = vmatprep.subr.mxu0 0.0
    %6164 = vmatpush1.xpose.msra.mxu0 0.0
    %6165 = vmatprep.subr.mxu0 0.0
    %6166 = vmatpush1.xpose.msra.mxu0 0.0
    %6167 = vmatprep.subr.mxu0 0.0
    %6168 = vmatpush1.xpose.msra.mxu0 0.0
    %6169 = vmatprep.subr.mxu0 0.0
    %6170 = vmatpush1.xpose.msra.mxu0 0.0
    %6171 = vmatprep.subr.mxu0 0.0
    %6172 = vmatpush1.xpose.msra.mxu0 0.0
    %6173 = vmatprep.subr.mxu0 0.0
    %6174 = vmatpush1.xpose.msra.mxu0 0.0
    %6175 = vmatprep.subr.mxu0 0.0
    %6176 = vmatpush1.xpose.msra.mxu0 0.0
    %6177 = vmatprep.subr.mxu0 0.0
    %6178 = vmatpush1.xpose.msra.mxu0 0.0
    %6179 = vmatprep.subr.mxu0 0.0
    %6180 = vmatpush1.xpose.msra.mxu0 0.0
    %6181 = vmatprep.subr.mxu0 0.0
    %6182 = vmatpush1.xpose.msra.mxu0 0.0
    %6183 = vmatprep.mubr.f32.mxu0 0.0
    %6184 = vmatmul.mubr.f32.gmra.mrb[0].mxu0 %v6117
    %v6185 = vpop.f32.mrb[0].mxu0
    %v6186 = vadd.f32 0.0, %v6185
    %v6187 = vpop.f32.mrb[0].mxu0
    %6188 = vdwg.mxu0
    %6190 = vset.pattern.permute.xlu0 0
    %6191 = vperm.xlu0 %6190, %v6016
    %v6192 = vpop.permute.xlu0 %6191
    %6195 = vset.pattern.permute.xlu0 0
    %6196 = vperm.xlu0 %6195, %v6021
    %v6197 = vpop.permute.xlu0 %6196
    %6200 = vset.pattern.permute.xlu0 0
    %6201 = vperm.xlu0 %6200, %v6026
    %v6202 = vpop.permute.xlu0 %6201
    %6205 = vset.pattern.permute.xlu0 0
    %6206 = vperm.xlu0 %6205, %v6031
    %v6207 = vpop.permute.xlu0 %6206
    %6210 = vset.pattern.permute.xlu0 0
    %6211 = vperm.xlu0 %6210, %v6036
    %v6212 = vpop.permute.xlu0 %6211
    %6215 = vset.pattern.permute.xlu0 0
    %6216 = vperm.xlu0 %6215, %v6041
    %v6217 = vpop.permute.xlu0 %6216
    %6220 = vset.pattern.permute.xlu0 0
    %6221 = vperm.xlu0 %6220, %v6046
    %v6222 = vpop.permute.xlu0 %6221
    %6225 = vset.pattern.permute.xlu0 0
    %6226 = vperm.xlu0 %6225, %v6051
    %v6227 = vpop.permute.xlu0 %6226
    %6230 = vset.pattern.permute.xlu0 0
    %6231 = vperm.xlu0 %6230, %v6056
    %v6232 = vpop.permute.xlu0 %6231
    %6235 = vset.pattern.permute.xlu0 0
    %6236 = vperm.xlu0 %6235, %v6061
    %v6237 = vpop.permute.xlu0 %6236
    %6240 = vset.pattern.permute.xlu0 0
    %6241 = vperm.xlu0 %6240, %v6066
    %v6242 = vpop.permute.xlu0 %6241
    %6245 = vset.pattern.permute.xlu0 0
    %6246 = vperm.xlu0 %6245, %v6071
    %v6247 = vpop.permute.xlu0 %6246
    %6250 = vset.pattern.permute.xlu0 0
    %6251 = vperm.xlu0 %6250, %v6076
    %v6252 = vpop.permute.xlu0 %6251
    %6255 = vset.pattern.permute.xlu0 0
    %6256 = vperm.xlu0 %6255, %v6081
    %v6257 = vpop.permute.xlu0 %6256
    %v6259 = vlaneseq
    %v6260 = vshrl.u32 %v6259, 7
    %v6261 = vsub.s32 0, %v6260
    %v6262 = vrot.slane %v6186, %v6261
    %v6263 = vsub.f32 %v6192, %v6262
    %v6264 = vsub.f32 %v6197, %v6262
    %v6265 = vsub.f32 %v6202, %v6262
    %v6266 = vsub.f32 %v6207, %v6262
    %v6267 = vsub.f32 %v6212, %v6262
    %v6268 = vsub.f32 %v6217, %v6262
    %v6269 = vsub.f32 %v6222, %v6262
    %v6270 = vsub.f32 %v6227, %v6262
    %v6271 = vsub.f32 %v6232, %v6262
    %v6272 = vsub.f32 %v6237, %v6262
    %v6273 = vsub.f32 %v6242, %v6262
    %v6274 = vsub.f32 %v6247, %v6262
    %v6275 = vsub.f32 %v6252, %v6262
    %v6276 = vsub.f32 %v6257, %v6262
    %v6277 = vmul.f32 %v6263, %v1611
    %v6278 = vmul.f32 %v6264, %v1612
    %v6279 = vmul.f32 %v6265, %v1613
    %v6280 = vmul.f32 %v6266, %v1614
    %v6281 = vmul.f32 %v6267, %v1615
    %v6282 = vmul.f32 %v6268, %v1616
    %v6283 = vmul.f32 %v6269, %v1617
    %v6284 = vmul.f32 %v6270, %v1618
    %v6285 = vmul.f32 %v6271, %v1619
    %v6286 = vmul.f32 %v6272, %v1620
    %v6287 = vmul.f32 %v6273, %v1621
    %v6288 = vmul.f32 %v6274, %v1622
    %v6289 = vmul.f32 %v6275, %v1623
    %v6290 = vmul.f32 %v6276, %v1624
    %6291 = vset.pattern.permute.xlu0 2
    %6292 = vperm.xlu0 %6291, %v5126
    %v6293 = vpop.permute.xlu0 %6292
    %v6295 = vmul.f32 %v6293, %v6277
    %v6296 = vmul.f32 %v6293, %v6278
    %v6297 = vmul.f32 %v6293, %v6279
    %v6298 = vmul.f32 %v6293, %v6280
    %v6299 = vmul.f32 %v6293, %v6281
    %v6300 = vmul.f32 %v6293, %v6282
    %v6301 = vmul.f32 %v6293, %v6283
    %v6302 = vmul.f32 %v6293, %v6284
    %v6303 = vmul.f32 %v6293, %v6285
    %v6304 = vmul.f32 %v6293, %v6286
    %v6305 = vmul.f32 %v6293, %v6287
    %v6306 = vmul.f32 %v6293, %v6288
    %v6307 = vmul.f32 %v6293, %v6289
    %v6308 = vmul.f32 %v6293, %v6290
    %v6309 = vmul.f32 %v6295, 1.442695
    %v6310 = vpow.pop %v6309
    %v6311 = vmul.f32 %v6296, 1.442695
    %v6312 = vpow.pop %v6311
    %v6313 = vmul.f32 %v6297, 1.442695
    %v6314 = vpow.pop %v6313
    %v6315 = vmul.f32 %v6298, 1.442695
    %v6316 = vpow.pop %v6315
    %v6317 = vmul.f32 %v6299, 1.442695
    %v6318 = vpow.pop %v6317
    %v6319 = vmul.f32 %v6300, 1.442695
    %v6320 = vpow.pop %v6319
    %v6321 = vmul.f32 %v6301, 1.442695
    %v6322 = vpow.pop %v6321
    %v6323 = vmul.f32 %v6302, 1.442695
    %v6324 = vpow.pop %v6323
    %v6325 = vmul.f32 %v6303, 1.442695
    %v6326 = vpow.pop %v6325
    %v6327 = vmul.f32 %v6304, 1.442695
    %v6328 = vpow.pop %v6327
    %v6329 = vmul.f32 %v6305, 1.442695
    %v6330 = vpow.pop %v6329
    %v6331 = vmul.f32 %v6306, 1.442695
    %v6332 = vpow.pop %v6331
    %v6333 = vmul.f32 %v6307, 1.442695
    %v6334 = vpow.pop %v6333
    %v6335 = vmul.f32 %v6308, 1.442695
    %v6336 = vpow.pop %v6335
    %v6337 = vmul.f32 %v6310, %v1611
    %v6338 = vmul.f32 %v6312, %v1612
    %v6339 = vmul.f32 %v6314, %v1613
    %v6340 = vmul.f32 %v6316, %v1614
    %v6341 = vmul.f32 %v6318, %v1615
    %v6342 = vmul.f32 %v6320, %v1616
    %v6343 = vmul.f32 %v6322, %v1617
    %v6344 = vmul.f32 %v6324, %v1618
    %v6345 = vmul.f32 %v6326, %v1619
    %v6346 = vmul.f32 %v6328, %v1620
    %v6347 = vmul.f32 %v6330, %v1621
    %v6348 = vmul.f32 %v6332, %v1622
    %v6349 = vmul.f32 %v6334, %v1623
    %v6350 = vmul.f32 %v6336, %v1624
    %v6351 = vmul.f32 %v5825, %v6337
    %v6352 = vmul.f32 %v5830, %v6338
    %v6353 = vmul.f32 %v5835, %v6339
    %v6354 = vmul.f32 %v5840, %v6340
    %v6355 = vmul.f32 %v5845, %v6341
    %v6356 = vmul.f32 %v5850, %v6342
    %v6357 = vmul.f32 %v5855, %v6343
    %v6358 = vmul.f32 %v5860, %v6344
    %v6359 = vmul.f32 %v5865, %v6345
    %v6360 = vmul.f32 %v5870, %v6346
    %v6361 = vmul.f32 %v5875, %v6347
    %v6362 = vmul.f32 %v5880, %v6348
    %v6363 = vmul.f32 %v5885, %v6349
    %v6364 = vmul.f32 %v5890, %v6350
    %6365 = vset.pattern.permute.xlu0 64
    %6366 = vperm.xlu0 %6365, %v5256
    %v6367 = vpop.permute.xlu0 %6366
    %6369 = vset.pattern.permute.xlu0 64
    %6370 = vperm.xlu0 %6369, %v5257
    %v6371 = vpop.permute.xlu0 %6370
    %6373 = vset.pattern.permute.xlu0 64
    %6374 = vperm.xlu0 %6373, %v5258
    %v6375 = vpop.permute.xlu0 %6374
    %6377 = vset.pattern.permute.xlu0 64
    %6378 = vperm.xlu0 %6377, %v5259
    %v6379 = vpop.permute.xlu0 %6378
    %6381 = vset.pattern.permute.xlu0 64
    %6382 = vperm.xlu0 %6381, %v5260
    %v6383 = vpop.permute.xlu0 %6382
    %6385 = vset.pattern.permute.xlu0 64
    %6386 = vperm.xlu0 %6385, %v5261
    %v6387 = vpop.permute.xlu0 %6386
    %6389 = vset.pattern.permute.xlu0 64
    %6390 = vperm.xlu0 %6389, %v5262
    %v6391 = vpop.permute.xlu0 %6390
    %6393 = vset.pattern.permute.xlu0 64
    %6394 = vperm.xlu0 %6393, %v5263
    %v6395 = vpop.permute.xlu0 %6394
    %6397 = vset.pattern.permute.xlu0 64
    %6398 = vperm.xlu0 %6397, %v5264
    %v6399 = vpop.permute.xlu0 %6398
    %6401 = vset.pattern.permute.xlu0 64
    %6402 = vperm.xlu0 %6401, %v5265
    %v6403 = vpop.permute.xlu0 %6402
    %6405 = vset.pattern.permute.xlu0 64
    %6406 = vperm.xlu0 %6405, %v5266
    %v6407 = vpop.permute.xlu0 %6406
    %6409 = vset.pattern.permute.xlu0 64
    %6410 = vperm.xlu0 %6409, %v5267
    %v6411 = vpop.permute.xlu0 %6410
    %6413 = vset.pattern.permute.xlu0 64
    %6414 = vperm.xlu0 %6413, %v5268
    %v6415 = vpop.permute.xlu0 %6414
    %6417 = vset.pattern.permute.xlu0 64
    %6418 = vperm.xlu0 %6417, %v5269
    %v6419 = vpop.permute.xlu0 %6418
    %v6421 = vmul.f32 %v5618, %v6367
    %v6422 = vmul.f32 %v5619, %v6371
    %v6423 = vmul.f32 %v5620, %v6375
    %v6424 = vmul.f32 %v5621, %v6379
    %v6425 = vmul.f32 %v5622, %v6383
    %v6426 = vmul.f32 %v5623, %v6387
    %v6427 = vmul.f32 %v5624, %v6391
    %v6428 = vmul.f32 %v5625, %v6395
    %v6429 = vmul.f32 %v5626, %v6399
    %v6430 = vmul.f32 %v5627, %v6403
    %v6431 = vmul.f32 %v5628, %v6407
    %v6432 = vmul.f32 %v5629, %v6411
    %v6433 = vmul.f32 %v5630, %v6415
    %v6434 = vmul.f32 %v5631, %v6419
    %6435 = vset.pattern.permute.xlu0 4
    %6436 = vperm.xlu0 %6435, %v5126
    %v6437 = vpop.permute.xlu0 %6436
    %v6439 = vmul.f32 %v6437, %v5618
    %v6440 = vmul.f32 %v6437, %v5619
    %v6441 = vmul.f32 %v6437, %v5620
    %v6442 = vmul.f32 %v6437, %v5621
    %v6443 = vmul.f32 %v6437, %v5622
    %v6444 = vmul.f32 %v6437, %v5623
    %v6445 = vmul.f32 %v6437, %v5624
    %v6446 = vmul.f32 %v6437, %v5625
    %v6447 = vmul.f32 %v6437, %v5626
    %v6448 = vmul.f32 %v6437, %v5627
    %v6449 = vmul.f32 %v6437, %v5628
    %v6450 = vmul.f32 %v6437, %v5629
    %v6451 = vmul.f32 %v6437, %v5630
    %v6452 = vmul.f32 %v6437, %v5631
    %v6454 = vsel %vm2986, %v6351, 0
    %v6457 = vsel %vm2986, %v6352, 0
    %v6460 = vsel %vm2986, %v6353, 0
    %v6463 = vsel %vm2986, %v6354, 0
    %v6466 = vsel %vm2986, %v6355, 0
    %v6469 = vsel %vm2986, %v6356, 0
    %v6472 = vsel %vm2986, %v6357, 0
    %v6475 = vsel %vm2986, %v6358, 0
    %v6478 = vsel %vm2986, %v6359, 0
    %v6481 = vsel %vm2986, %v6360, 0
    %v6484 = vsel %vm2986, %v6361, 0
    %v6487 = vsel %vm2986, %v6362, 0
    %v6490 = vsel %vm2986, %v6363, 0
    %v6493 = vsel %vm2986, %v6364, 0
    %6495 = vmatprep.subr.mxu0 0.0
    %6496 = vmatpush1.msra.mxu0 %v6421
    %6497 = vmatprep.subr.mxu0 0.0
    %6498 = vmatpush1.msra.mxu0 %v6422
    %6499 = vmatprep.subr.mxu0 0.0
    %6500 = vmatpush1.msra.mxu0 %v6423
    %6501 = vmatprep.subr.mxu0 0.0
    %6502 = vmatpush1.msra.mxu0 %v6424
    %6503 = vmatprep.subr.mxu0 0.0
    %6504 = vmatpush1.msra.mxu0 %v6425
    %6505 = vmatprep.subr.mxu0 0.0
    %6506 = vmatpush1.msra.mxu0 %v6426
    %6507 = vmatprep.subr.mxu0 0.0
    %6508 = vmatpush1.msra.mxu0 %v6427
    %6509 = vmatprep.subr.mxu0 0.0
    %6510 = vmatpush1.msra.mxu0 %v6428
    %6511 = vmatprep.subr.mxu0 0.0
    %6512 = vmatpush1.msra.mxu0 %v6429
    %6513 = vmatprep.subr.mxu0 0.0
    %6514 = vmatpush1.msra.mxu0 %v6430
    %6515 = vmatprep.subr.mxu0 0.0
    %6516 = vmatpush1.msra.mxu0 %v6431
    %6517 = vmatprep.subr.mxu0 0.0
    %6518 = vmatpush1.msra.mxu0 %v6432
    %6519 = vmatprep.subr.mxu0 0.0
    %6520 = vmatpush1.msra.mxu0 %v6433
    %6521 = vmatprep.subr.mxu0 0.0
    %6522 = vmatpush1.msra.mxu0 %v6434
    %6523 = vmatprep.subr.mxu0 0.0
    %6524 = vmatpush1.msra.mxu0 0.0
    %6525 = vmatprep.subr.mxu0 0.0
    %6526 = vmatpush1.msra.mxu0 0.0
    %6527 = vmatprep.subr.mxu0 0.0
    %6528 = vmatpush1.msra.mxu0 0.0
    %6529 = vmatprep.subr.mxu0 0.0
    %6530 = vmatpush1.msra.mxu0 0.0
    %6531 = vmatprep.subr.mxu0 0.0
    %6532 = vmatpush1.msra.mxu0 0.0
    %6533 = vmatprep.subr.mxu0 0.0
    %6534 = vmatpush1.msra.mxu0 0.0
    %6535 = vmatprep.subr.mxu0 0.0
    %6536 = vmatpush1.msra.mxu0 0.0
    %6537 = vmatprep.subr.mxu0 0.0
    %6538 = vmatpush1.msra.mxu0 0.0
    %6539 = vmatprep.subr.mxu0 0.0
    %6540 = vmatpush1.msra.mxu0 0.0
    %6541 = vmatprep.subr.mxu0 0.0
    %6542 = vmatpush1.msra.mxu0 0.0
    %6543 = vmatprep.subr.mxu0 0.0
    %6544 = vmatpush1.msra.mxu0 0.0
    %6545 = vmatprep.subr.mxu0 0.0
    %6546 = vmatpush1.msra.mxu0 0.0
    %6547 = vmatprep.subr.mxu0 0.0
    %6548 = vmatpush1.msra.mxu0 0.0
    %6549 = vmatprep.subr.mxu0 0.0
    %6550 = vmatpush1.msra.mxu0 0.0
    %6551 = vmatprep.subr.mxu0 0.0
    %6552 = vmatpush1.msra.mxu0 0.0
    %6553 = vmatprep.subr.mxu0 0.0
    %6554 = vmatpush1.msra.mxu0 0.0
    %6555 = vmatprep.subr.mxu0 0.0
    %6556 = vmatpush1.msra.mxu0 0.0
    %6557 = vmatprep.subr.mxu0 0.0
    %6558 = vmatpush1.msra.mxu0 0.0
    %6559 = vmatprep.mubr.f32.mxu0 0.0
    %6560 = vmatmul.mubr.f32.gmra.mrb[0].mxu0 %v6454
    %v6561 = vpop.f32.mrb[0].mxu0
    %v6562 = vadd.f32 %v6439, %v6561
    %v6563 = vpop.f32.mrb[0].mxu0
    %6564 = vmatprep.mubr.f32.mxu0 0.0
    %6565 = vmatmul.mubr.f32.gmra.mrb[0].mxu0 %v6457
    %v6566 = vpop.f32.mrb[0].mxu0
    %v6567 = vadd.f32 %v6440, %v6566
    %v6568 = vpop.f32.mrb[0].mxu0
    %6569 = vmatprep.mubr.f32.mxu0 0.0
    %6570 = vmatmul.mubr.f32.gmra.mrb[0].mxu0 %v6460
    %v6571 = vpop.f32.mrb[0].mxu0
    %v6572 = vadd.f32 %v6441, %v6571
    %v6573 = vpop.f32.mrb[0].mxu0
    %6574 = vmatprep.mubr.f32.mxu0 0.0
    %6575 = vmatmul.mubr.f32.gmra.mrb[0].mxu0 %v6463
    %v6576 = vpop.f32.mrb[0].mxu0
    %v6577 = vadd.f32 %v6442, %v6576
    %v6578 = vpop.f32.mrb[0].mxu0
    %6579 = vmatprep.mubr.f32.mxu0 0.0
    %6580 = vmatmul.mubr.f32.gmra.mrb[0].mxu0 %v6466
    %v6581 = vpop.f32.mrb[0].mxu0
    %v6582 = vadd.f32 %v6443, %v6581
    %v6583 = vpop.f32.mrb[0].mxu0
    %6584 = vmatprep.mubr.f32.mxu0 0.0
    %6585 = vmatmul.mubr.f32.gmra.mrb[0].mxu0 %v6469
    %v6586 = vpop.f32.mrb[0].mxu0
    %v6587 = vadd.f32 %v6444, %v6586
    %v6588 = vpop.f32.mrb[0].mxu0
    %6589 = vmatprep.mubr.f32.mxu0 0.0
    %6590 = vmatmul.mubr.f32.gmra.mrb[0].mxu0 %v6472
    %v6591 = vpop.f32.mrb[0].mxu0
    %v6592 = vadd.f32 %v6445, %v6591
    %v6593 = vpop.f32.mrb[0].mxu0
    %6594 = vmatprep.mubr.f32.mxu0 0.0
    %6595 = vmatmul.mubr.f32.gmra.mrb[0].mxu0 %v6475
    %v6596 = vpop.f32.mrb[0].mxu0
    %v6597 = vadd.f32 %v6446, %v6596
    %v6598 = vpop.f32.mrb[0].mxu0
    %6599 = vmatprep.mubr.f32.mxu0 0.0
    %6600 = vmatmul.mubr.f32.gmra.mrb[0].mxu0 %v6478
    %v6601 = vpop.f32.mrb[0].mxu0
    %v6602 = vadd.f32 %v6447, %v6601
    %v6603 = vpop.f32.mrb[0].mxu0
    %6604 = vmatprep.mubr.f32.mxu0 0.0
    %6605 = vmatmul.mubr.f32.gmra.mrb[0].mxu0 %v6481
    %v6606 = vpop.f32.mrb[0].mxu0
    %v6607 = vadd.f32 %v6448, %v6606
    %v6608 = vpop.f32.mrb[0].mxu0
    %6609 = vmatprep.mubr.f32.mxu0 0.0
    %6610 = vmatmul.mubr.f32.gmra.mrb[0].mxu0 %v6484
    %v6611 = vpop.f32.mrb[0].mxu0
    %v6612 = vadd.f32 %v6449, %v6611
    %v6613 = vpop.f32.mrb[0].mxu0
    %6614 = vmatprep.mubr.f32.mxu0 0.0
    %6615 = vmatmul.mubr.f32.gmra.mrb[0].mxu0 %v6487
    %v6616 = vpop.f32.mrb[0].mxu0
    %v6617 = vadd.f32 %v6450, %v6616
    %v6618 = vpop.f32.mrb[0].mxu0
    %6619 = vmatprep.mubr.f32.mxu0 0.0
    %6620 = vmatmul.mubr.f32.gmra.mrb[0].mxu0 %v6490
    %v6621 = vpop.f32.mrb[0].mxu0
    %v6622 = vadd.f32 %v6451, %v6621
    %v6623 = vpop.f32.mrb[0].mxu0
    %6624 = vmatprep.mubr.f32.mxu0 0.0
    %6625 = vmatmul.mubr.f32.gmra.mrb[0].mxu0 %v6493
    %v6626 = vpop.f32.mrb[0].mxu0
    %v6627 = vadd.f32 %v6452, %v6626
    %v6628 = vpop.f32.mrb[0].mxu0
    %6629 = vdwg.mxu0
    %6630 = vst.msk [vmem:[#allocation3] sm:$0xff] %vm209, %v6562
    %6631 = vst.msk [vmem:[#allocation3 + $0x8] sm:$0xff] %vm209, %v6567
    %6632 = vst.msk [vmem:[#allocation3 + $0x10] sm:$0xff] %vm209, %v6572
    %6633 = vst.msk [vmem:[#allocation3 + $0x18] sm:$0xff] %vm209, %v6577
    %6634 = vst.msk [vmem:[#allocation3 + $0x20] sm:$0xff] %vm209, %v6582
    %6635 = vst.msk [vmem:[#allocation3 + $0x28] sm:$0xff] %vm209, %v6587
    %6636 = vst.msk [vmem:[#allocation3 + $0x30] sm:$0xff] %vm209, %v6592
    %6637 = vst.msk [vmem:[#allocation3 + $0x38] sm:$0xff] %vm209, %v6597
    %6638 = vst.msk [vmem:[#allocation3 + $0x40] sm:$0xff] %vm209, %v6602
    %6639 = vst.msk [vmem:[#allocation3 + $0x48] sm:$0xff] %vm209, %v6607
    %6640 = vst.msk [vmem:[#allocation3 + $0x50] sm:$0xff] %vm209, %v6612
    %6641 = vst.msk [vmem:[#allocation3 + $0x58] sm:$0xff] %vm209, %v6617
    %6642 = vst.msk [vmem:[#allocation3 + $0x60] sm:$0xff] %vm209, %v6622
    %6643 = vst.msk [vmem:[#allocation3 + $0x68] sm:$0xff] %vm209, %v6627
    %6644 = vset.pattern.permute.xlu0 1
    %6645 = vperm.xlu0 %6644, %v6016
    %v6646 = vpop.permute.xlu0 %6645
    %6648 = vset.pattern.permute.xlu0 1
    %6649 = vperm.xlu0 %6648, %v6021
    %v6650 = vpop.permute.xlu0 %6649
    %6652 = vset.pattern.permute.xlu0 1
    %6653 = vperm.xlu0 %6652, %v6026
    %v6654 = vpop.permute.xlu0 %6653
    %6656 = vset.pattern.permute.xlu0 1
    %6657 = vperm.xlu0 %6656, %v6031
    %v6658 = vpop.permute.xlu0 %6657
    %6660 = vset.pattern.permute.xlu0 1
    %6661 = vperm.xlu0 %6660, %v6036
    %v6662 = vpop.permute.xlu0 %6661
    %6664 = vset.pattern.permute.xlu0 1
    %6665 = vperm.xlu0 %6664, %v6041
    %v6666 = vpop.permute.xlu0 %6665
    %6668 = vset.pattern.permute.xlu0 1
    %6669 = vperm.xlu0 %6668, %v6046
    %v6670 = vpop.permute.xlu0 %6669
    %6672 = vset.pattern.permute.xlu0 1
    %6673 = vperm.xlu0 %6672, %v6051
    %v6674 = vpop.permute.xlu0 %6673
    %6676 = vset.pattern.permute.xlu0 1
    %6677 = vperm.xlu0 %6676, %v6056
    %v6678 = vpop.permute.xlu0 %6677
    %6680 = vset.pattern.permute.xlu0 1
    %6681 = vperm.xlu0 %6680, %v6061
    %v6682 = vpop.permute.xlu0 %6681
    %6684 = vset.pattern.permute.xlu0 1
    %6685 = vperm.xlu0 %6684, %v6066
    %v6686 = vpop.permute.xlu0 %6685
    %6688 = vset.pattern.permute.xlu0 1
    %6689 = vperm.xlu0 %6688, %v6071
    %v6690 = vpop.permute.xlu0 %6689
    %6692 = vset.pattern.permute.xlu0 1
    %6693 = vperm.xlu0 %6692, %v6076
    %v6694 = vpop.permute.xlu0 %6693
    %6696 = vset.pattern.permute.xlu0 1
    %6697 = vperm.xlu0 %6696, %v6081
    %v6698 = vpop.permute.xlu0 %6697
    %v6700 = vlaneseq
    %v6701 = vshrl.u32 %v6700, 7
    %v6702 = vsub.s32 1, %v6701
    %v6703 = vrot.slane %v6186, %v6702
    %v6704 = vsub.f32 %v6646, %v6703
    %v6705 = vsub.f32 %v6650, %v6703
    %v6706 = vsub.f32 %v6654, %v6703
    %v6707 = vsub.f32 %v6658, %v6703
    %v6708 = vsub.f32 %v6662, %v6703
    %v6709 = vsub.f32 %v6666, %v6703
    %v6710 = vsub.f32 %v6670, %v6703
    %v6711 = vsub.f32 %v6674, %v6703
    %v6712 = vsub.f32 %v6678, %v6703
    %v6713 = vsub.f32 %v6682, %v6703
    %v6714 = vsub.f32 %v6686, %v6703
    %v6715 = vsub.f32 %v6690, %v6703
    %v6716 = vsub.f32 %v6694, %v6703
    %v6717 = vsub.f32 %v6698, %v6703
    %v6718 = vmul.f32 %v6704, %v1611
    %v6719 = vmul.f32 %v6705, %v1612
    %v6720 = vmul.f32 %v6706, %v1613
    %v6721 = vmul.f32 %v6707, %v1614
    %v6722 = vmul.f32 %v6708, %v1615
    %v6723 = vmul.f32 %v6709, %v1616
    %v6724 = vmul.f32 %v6710, %v1617
    %v6725 = vmul.f32 %v6711, %v1618
    %v6726 = vmul.f32 %v6712, %v1619
    %v6727 = vmul.f32 %v6713, %v1620
    %v6728 = vmul.f32 %v6714, %v1621
    %v6729 = vmul.f32 %v6715, %v1622
    %v6730 = vmul.f32 %v6716, %v1623
    %v6731 = vmul.f32 %v6717, %v1624
    %6732 = vset.pattern.permute.xlu0 3
    %6733 = vperm.xlu0 %6732, %v5126
    %v6734 = vpop.permute.xlu0 %6733
    %v6736 = vmul.f32 %v6734, %v6718
    %v6737 = vmul.f32 %v6734, %v6719
    %v6738 = vmul.f32 %v6734, %v6720
    %v6739 = vmul.f32 %v6734, %v6721
    %v6740 = vmul.f32 %v6734, %v6722
    %v6741 = vmul.f32 %v6734, %v6723
    %v6742 = vmul.f32 %v6734, %v6724
    %v6743 = vmul.f32 %v6734, %v6725
    %v6744 = vmul.f32 %v6734, %v6726
    %v6745 = vmul.f32 %v6734, %v6727
    %v6746 = vmul.f32 %v6734, %v6728
    %v6747 = vmul.f32 %v6734, %v6729
    %v6748 = vmul.f32 %v6734, %v6730
    %v6749 = vmul.f32 %v6734, %v6731
    %v6750 = vmul.f32 %v6736, 1.442695
    %v6751 = vpow.pop %v6750
    %v6752 = vmul.f32 %v6737, 1.442695
    %v6753 = vpow.pop %v6752
    %v6754 = vmul.f32 %v6738, 1.442695
    %v6755 = vpow.pop %v6754
    %v6756 = vmul.f32 %v6739, 1.442695
    %v6757 = vpow.pop %v6756
    %v6758 = vmul.f32 %v6740, 1.442695
    %v6759 = vpow.pop %v6758
    %v6760 = vmul.f32 %v6741, 1.442695
    %v6761 = vpow.pop %v6760
    %v6762 = vmul.f32 %v6742, 1.442695
    %v6763 = vpow.pop %v6762
    %v6764 = vmul.f32 %v6743, 1.442695
    %v6765 = vpow.pop %v6764
    %v6766 = vmul.f32 %v6744, 1.442695
    %v6767 = vpow.pop %v6766
    %v6768 = vmul.f32 %v6745, 1.442695
    %v6769 = vpow.pop %v6768
    %v6770 = vmul.f32 %v6746, 1.442695
    %v6771 = vpow.pop %v6770
    %v6772 = vmul.f32 %v6747, 1.442695
    %v6773 = vpow.pop %v6772
    %v6774 = vmul.f32 %v6748, 1.442695
    %v6775 = vpow.pop %v6774
    %v6776 = vmul.f32 %v6749, 1.442695
    %v6777 = vpow.pop %v6776
    %v6778 = vmul.f32 %v6751, %v1611
    %v6779 = vmul.f32 %v6753, %v1612
    %v6780 = vmul.f32 %v6755, %v1613
    %v6781 = vmul.f32 %v6757, %v1614
    %v6782 = vmul.f32 %v6759, %v1615
    %v6783 = vmul.f32 %v6761, %v1616
    %v6784 = vmul.f32 %v6763, %v1617
    %v6785 = vmul.f32 %v6765, %v1618
    %v6786 = vmul.f32 %v6767, %v1619
    %v6787 = vmul.f32 %v6769, %v1620
    %v6788 = vmul.f32 %v6771, %v1621
    %v6789 = vmul.f32 %v6773, %v1622
    %v6790 = vmul.f32 %v6775, %v1623
    %v6791 = vmul.f32 %v6777, %v1624
    %v6792 = vmul.f32 %v5825, %v6778
    %v6793 = vmul.f32 %v5830, %v6779
    %v6794 = vmul.f32 %v5835, %v6780
    %v6795 = vmul.f32 %v5840, %v6781
    %v6796 = vmul.f32 %v5845, %v6782
    %v6797 = vmul.f32 %v5850, %v6783
    %v6798 = vmul.f32 %v5855, %v6784
    %v6799 = vmul.f32 %v5860, %v6785
    %v6800 = vmul.f32 %v5865, %v6786
    %v6801 = vmul.f32 %v5870, %v6787
    %v6802 = vmul.f32 %v5875, %v6788
    %v6803 = vmul.f32 %v5880, %v6789
    %v6804 = vmul.f32 %v5885, %v6790
    %v6805 = vmul.f32 %v5890, %v6791
    %6806 = vset.pattern.permute.xlu0 65
    %6807 = vperm.xlu0 %6806, %v5256
    %v6808 = vpop.permute.xlu0 %6807
    %6810 = vset.pattern.permute.xlu0 65
    %6811 = vperm.xlu0 %6810, %v5257
    %v6812 = vpop.permute.xlu0 %6811
    %6814 = vset.pattern.permute.xlu0 65
    %6815 = vperm.xlu0 %6814, %v5258
    %v6816 = vpop.permute.xlu0 %6815
    %6818 = vset.pattern.permute.xlu0 65
    %6819 = vperm.xlu0 %6818, %v5259
    %v6820 = vpop.permute.xlu0 %6819
    %6822 = vset.pattern.permute.xlu0 65
    %6823 = vperm.xlu0 %6822, %v5260
    %v6824 = vpop.permute.xlu0 %6823
    %6826 = vset.pattern.permute.xlu0 65
    %6827 = vperm.xlu0 %6826, %v5261
    %v6828 = vpop.permute.xlu0 %6827
    %6830 = vset.pattern.permute.xlu0 65
    %6831 = vperm.xlu0 %6830, %v5262
    %v6832 = vpop.permute.xlu0 %6831
    %6834 = vset.pattern.permute.xlu0 65
    %6835 = vperm.xlu0 %6834, %v5263
    %v6836 = vpop.permute.xlu0 %6835
    %6838 = vset.pattern.permute.xlu0 65
    %6839 = vperm.xlu0 %6838, %v5264
    %v6840 = vpop.permute.xlu0 %6839
    %6842 = vset.pattern.permute.xlu0 65
    %6843 = vperm.xlu0 %6842, %v5265
    %v6844 = vpop.permute.xlu0 %6843
    %6846 = vset.pattern.permute.xlu0 65
    %6847 = vperm.xlu0 %6846, %v5266
    %v6848 = vpop.permute.xlu0 %6847
    %6850 = vset.pattern.permute.xlu0 65
    %6851 = vperm.xlu0 %6850, %v5267
    %v6852 = vpop.permute.xlu0 %6851
    %6854 = vset.pattern.permute.xlu0 65
    %6855 = vperm.xlu0 %6854, %v5268
    %v6856 = vpop.permute.xlu0 %6855
    %6858 = vset.pattern.permute.xlu0 65
    %6859 = vperm.xlu0 %6858, %v5269
    %v6860 = vpop.permute.xlu0 %6859
    %v6862 = vmul.f32 %v5618, %v6808
    %v6863 = vmul.f32 %v5619, %v6812
    %v6864 = vmul.f32 %v5620, %v6816
    %v6865 = vmul.f32 %v5621, %v6820
    %v6866 = vmul.f32 %v5622, %v6824
    %v6867 = vmul.f32 %v5623, %v6828
    %v6868 = vmul.f32 %v5624, %v6832
    %v6869 = vmul.f32 %v5625, %v6836
    %v6870 = vmul.f32 %v5626, %v6840
    %v6871 = vmul.f32 %v5627, %v6844
    %v6872 = vmul.f32 %v5628, %v6848
    %v6873 = vmul.f32 %v5629, %v6852
    %v6874 = vmul.f32 %v5630, %v6856
    %v6875 = vmul.f32 %v5631, %v6860
    %6876 = vset.pattern.permute.xlu0 5
    %6877 = vperm.xlu0 %6876, %v5126
    %v6878 = vpop.permute.xlu0 %6877
    %v6880 = vmul.f32 %v6878, %v5618
    %v6881 = vmul.f32 %v6878, %v5619
    %v6882 = vmul.f32 %v6878, %v5620
    %v6883 = vmul.f32 %v6878, %v5621
    %v6884 = vmul.f32 %v6878, %v5622
    %v6885 = vmul.f32 %v6878, %v5623
    %v6886 = vmul.f32 %v6878, %v5624
    %v6887 = vmul.f32 %v6878, %v5625
    %v6888 = vmul.f32 %v6878, %v5626
    %v6889 = vmul.f32 %v6878, %v5627
    %v6890 = vmul.f32 %v6878, %v5628
    %v6891 = vmul.f32 %v6878, %v5629
    %v6892 = vmul.f32 %v6878, %v5630
    %v6893 = vmul.f32 %v6878, %v5631
    %6908 = vrot.lane.b32.xlu0 %v6862, 96
    %v6909 = vpop.permute.xlu0 %6908
    %6910 = vrot.lane.b32.xlu0 %v6863, 96
    %v6911 = vpop.permute.xlu0 %6910
    %6912 = vrot.lane.b32.xlu0 %v6864, 96
    %v6913 = vpop.permute.xlu0 %6912
    %6914 = vrot.lane.b32.xlu0 %v6865, 96
    %v6915 = vpop.permute.xlu0 %6914
    %6916 = vrot.lane.b32.xlu0 %v6866, 96
    %v6917 = vpop.permute.xlu0 %6916
    %6918 = vrot.lane.b32.xlu0 %v6867, 96
    %v6919 = vpop.permute.xlu0 %6918
    %6920 = vrot.lane.b32.xlu0 %v6868, 96
    %v6921 = vpop.permute.xlu0 %6920
    %6922 = vrot.lane.b32.xlu0 %v6869, 96
    %v6923 = vpop.permute.xlu0 %6922
    %6924 = vrot.lane.b32.xlu0 %v6870, 96
    %v6925 = vpop.permute.xlu0 %6924
    %6926 = vrot.lane.b32.xlu0 %v6871, 96
    %v6927 = vpop.permute.xlu0 %6926
    %6928 = vrot.lane.b32.xlu0 %v6872, 96
    %v6929 = vpop.permute.xlu0 %6928
    %6930 = vrot.lane.b32.xlu0 %v6873, 96
    %v6931 = vpop.permute.xlu0 %6930
    %6932 = vrot.lane.b32.xlu0 %v6874, 96
    %v6933 = vpop.permute.xlu0 %6932
    %6934 = vrot.lane.b32.xlu0 %v6875, 96
    %v6935 = vpop.permute.xlu0 %6934
    %6964 = vrot.lane.b32.xlu0 %v6880, 96
    %v6965 = vpop.permute.xlu0 %6964
    %6966 = vrot.lane.b32.xlu0 %v6881, 96
    %v6967 = vpop.permute.xlu0 %6966
    %6968 = vrot.lane.b32.xlu0 %v6882, 96
    %v6969 = vpop.permute.xlu0 %6968
    %6970 = vrot.lane.b32.xlu0 %v6883, 96
    %v6971 = vpop.permute.xlu0 %6970
    %6972 = vrot.lane.b32.xlu0 %v6884, 96
    %v6973 = vpop.permute.xlu0 %6972
    %6974 = vrot.lane.b32.xlu0 %v6885, 96
    %v6975 = vpop.permute.xlu0 %6974
    %6976 = vrot.lane.b32.xlu0 %v6886, 96
    %v6977 = vpop.permute.xlu0 %6976
    %6978 = vrot.lane.b32.xlu0 %v6887, 96
    %v6979 = vpop.permute.xlu0 %6978
    %6980 = vrot.lane.b32.xlu0 %v6888, 96
    %v6981 = vpop.permute.xlu0 %6980
    %6982 = vrot.lane.b32.xlu0 %v6889, 96
    %v6983 = vpop.permute.xlu0 %6982
    %6984 = vrot.lane.b32.xlu0 %v6890, 96
    %v6985 = vpop.permute.xlu0 %6984
    %6986 = vrot.lane.b32.xlu0 %v6891, 96
    %v6987 = vpop.permute.xlu0 %6986
    %6988 = vrot.lane.b32.xlu0 %v6892, 96
    %v6989 = vpop.permute.xlu0 %6988
    %6990 = vrot.lane.b32.xlu0 %v6893, 96
    %v6991 = vpop.permute.xlu0 %6990
    %v7007 = vsel %vm2986, %v6792, 0
    %v7010 = vsel %vm2986, %v6793, 0
    %v7013 = vsel %vm2986, %v6794, 0
    %v7016 = vsel %vm2986, %v6795, 0
    %v7019 = vsel %vm2986, %v6796, 0
    %v7022 = vsel %vm2986, %v6797, 0
    %v7025 = vsel %vm2986, %v6798, 0
    %v7028 = vsel %vm2986, %v6799, 0
    %v7031 = vsel %vm2986, %v6800, 0
    %v7034 = vsel %vm2986, %v6801, 0
    %v7037 = vsel %vm2986, %v6802, 0
    %v7040 = vsel %vm2986, %v6803, 0
    %v7043 = vsel %vm2986, %v6804, 0
    %v7046 = vsel %vm2986, %v6805, 0
    %7048 = vmatprep.subr.mxu0 0.0
    %7049 = vmatpush1.msra.mxu0 %v6909
    %7050 = vmatprep.subr.mxu0 0.0
    %7051 = vmatpush1.msra.mxu0 %v6911
    %7052 = vmatprep.subr.mxu0 0.0
    %7053 = vmatpush1.msra.mxu0 %v6913
    %7054 = vmatprep.subr.mxu0 0.0
    %7055 = vmatpush1.msra.mxu0 %v6915
    %7056 = vmatprep.subr.mxu0 0.0
    %7057 = vmatpush1.msra.mxu0 %v6917
    %7058 = vmatprep.subr.mxu0 0.0
    %7059 = vmatpush1.msra.mxu0 %v6919
    %7060 = vmatprep.subr.mxu0 0.0
    %7061 = vmatpush1.msra.mxu0 %v6921
    %7062 = vmatprep.subr.mxu0 0.0
    %7063 = vmatpush1.msra.mxu0 %v6923
    %7064 = vmatprep.subr.mxu0 0.0
    %7065 = vmatpush1.msra.mxu0 %v6925
    %7066 = vmatprep.subr.mxu0 0.0
    %7067 = vmatpush1.msra.mxu0 %v6927
    %7068 = vmatprep.subr.mxu0 0.0
    %7069 = vmatpush1.msra.mxu0 %v6929
    %7070 = vmatprep.subr.mxu0 0.0
    %7071 = vmatpush1.msra.mxu0 %v6931
    %7072 = vmatprep.subr.mxu0 0.0
    %7073 = vmatpush1.msra.mxu0 %v6933
    %7074 = vmatprep.subr.mxu0 0.0
    %7075 = vmatpush1.msra.mxu0 %v6935
    %7076 = vmatprep.subr.mxu0 0.0
    %7077 = vmatpush1.msra.mxu0 0.0
    %7078 = vmatprep.subr.mxu0 0.0
    %7079 = vmatpush1.msra.mxu0 0.0
    %7080 = vmatprep.subr.mxu0 0.0
    %7081 = vmatpush1.msra.mxu0 0.0
    %7082 = vmatprep.subr.mxu0 0.0
    %7083 = vmatpush1.msra.mxu0 0.0
    %7084 = vmatprep.subr.mxu0 0.0
    %7085 = vmatpush1.msra.mxu0 0.0
    %7086 = vmatprep.subr.mxu0 0.0
    %7087 = vmatpush1.msra.mxu0 0.0
    %7088 = vmatprep.subr.mxu0 0.0
    %7089 = vmatpush1.msra.mxu0 0.0
    %7090 = vmatprep.subr.mxu0 0.0
    %7091 = vmatpush1.msra.mxu0 0.0
    %7092 = vmatprep.subr.mxu0 0.0
    %7093 = vmatpush1.msra.mxu0 0.0
    %7094 = vmatprep.subr.mxu0 0.0
    %7095 = vmatpush1.msra.mxu0 0.0
    %7096 = vmatprep.subr.mxu0 0.0
    %7097 = vmatpush1.msra.mxu0 0.0
    %7098 = vmatprep.subr.mxu0 0.0
    %7099 = vmatpush1.msra.mxu0 0.0
    %7100 = vmatprep.subr.mxu0 0.0
    %7101 = vmatpush1.msra.mxu0 0.0
    %7102 = vmatprep.subr.mxu0 0.0
    %7103 = vmatpush1.msra.mxu0 0.0
    %7104 = vmatprep.subr.mxu0 0.0
    %7105 = vmatpush1.msra.mxu0 0.0
    %7106 = vmatprep.subr.mxu0 0.0
    %7107 = vmatpush1.msra.mxu0 0.0
    %7108 = vmatprep.subr.mxu0 0.0
    %7109 = vmatpush1.msra.mxu0 0.0
    %7110 = vmatprep.subr.mxu0 0.0
    %7111 = vmatpush1.msra.mxu0 0.0
    %7112 = vmatprep.mubr.f32.mxu0 0.0
    %7113 = vmatmul.mubr.f32.gmra.mrb[0].mxu0 %v7007
    %v7114 = vpop.f32.mrb[0].mxu0
    %v7115 = vadd.f32 %v6965, %v7114
    %v7116 = vpop.f32.mrb[0].mxu0
    %7117 = vmatprep.mubr.f32.mxu0 0.0
    %7118 = vmatmul.mubr.f32.gmra.mrb[0].mxu0 %v7010
    %v7119 = vpop.f32.mrb[0].mxu0
    %v7120 = vadd.f32 %v6967, %v7119
    %v7121 = vpop.f32.mrb[0].mxu0
    %7122 = vmatprep.mubr.f32.mxu0 0.0
    %7123 = vmatmul.mubr.f32.gmra.mrb[0].mxu0 %v7013
    %v7124 = vpop.f32.mrb[0].mxu0
    %v7125 = vadd.f32 %v6969, %v7124
    %v7126 = vpop.f32.mrb[0].mxu0
    %7127 = vmatprep.mubr.f32.mxu0 0.0
    %7128 = vmatmul.mubr.f32.gmra.mrb[0].mxu0 %v7016
    %v7129 = vpop.f32.mrb[0].mxu0
    %v7130 = vadd.f32 %v6971, %v7129
    %v7131 = vpop.f32.mrb[0].mxu0
    %7132 = vmatprep.mubr.f32.mxu0 0.0
    %7133 = vmatmul.mubr.f32.gmra.mrb[0].mxu0 %v7019
    %v7134 = vpop.f32.mrb[0].mxu0
    %v7135 = vadd.f32 %v6973, %v7134
    %v7136 = vpop.f32.mrb[0].mxu0
    %7137 = vmatprep.mubr.f32.mxu0 0.0
    %7138 = vmatmul.mubr.f32.gmra.mrb[0].mxu0 %v7022
    %v7139 = vpop.f32.mrb[0].mxu0
    %v7140 = vadd.f32 %v6975, %v7139
    %v7141 = vpop.f32.mrb[0].mxu0
    %7142 = vmatprep.mubr.f32.mxu0 0.0
    %7143 = vmatmul.mubr.f32.gmra.mrb[0].mxu0 %v7025
    %v7144 = vpop.f32.mrb[0].mxu0
    %v7145 = vadd.f32 %v6977, %v7144
    %v7146 = vpop.f32.mrb[0].mxu0
    %7147 = vmatprep.mubr.f32.mxu0 0.0
    %7148 = vmatmul.mubr.f32.gmra.mrb[0].mxu0 %v7028
    %v7149 = vpop.f32.mrb[0].mxu0
    %v7150 = vadd.f32 %v6979, %v7149
    %v7151 = vpop.f32.mrb[0].mxu0
    %7152 = vmatprep.mubr.f32.mxu0 0.0
    %7153 = vmatmul.mubr.f32.gmra.mrb[0].mxu0 %v7031
    %v7154 = vpop.f32.mrb[0].mxu0
    %v7155 = vadd.f32 %v6981, %v7154
    %v7156 = vpop.f32.mrb[0].mxu0
    %7157 = vmatprep.mubr.f32.mxu0 0.0
    %7158 = vmatmul.mubr.f32.gmra.mrb[0].mxu0 %v7034
    %v7159 = vpop.f32.mrb[0].mxu0
    %v7160 = vadd.f32 %v6983, %v7159
    %v7161 = vpop.f32.mrb[0].mxu0
    %7162 = vmatprep.mubr.f32.mxu0 0.0
    %7163 = vmatmul.mubr.f32.gmra.mrb[0].mxu0 %v7037
    %v7164 = vpop.f32.mrb[0].mxu0
    %v7165 = vadd.f32 %v6985, %v7164
    %v7166 = vpop.f32.mrb[0].mxu0
    %7167 = vmatprep.mubr.f32.mxu0 0.0
    %7168 = vmatmul.mubr.f32.gmra.mrb[0].mxu0 %v7040
    %v7169 = vpop.f32.mrb[0].mxu0
    %v7170 = vadd.f32 %v6987, %v7169
    %v7171 = vpop.f32.mrb[0].mxu0
    %7172 = vmatprep.mubr.f32.mxu0 0.0
    %7173 = vmatmul.mubr.f32.gmra.mrb[0].mxu0 %v7043
    %v7174 = vpop.f32.mrb[0].mxu0
    %v7175 = vadd.f32 %v6989, %v7174
    %v7176 = vpop.f32.mrb[0].mxu0
    %7177 = vmatprep.mubr.f32.mxu0 0.0
    %7178 = vmatmul.mubr.f32.gmra.mrb[0].mxu0 %v7046
    %v7179 = vpop.f32.mrb[0].mxu0
    %v7180 = vadd.f32 %v6991, %v7179
    %v7181 = vpop.f32.mrb[0].mxu0
    %7182 = vdwg.mxu0
    %7197 = vrot.lane.b32.xlu0 %v7115, 32
    %v7198 = vpop.permute.xlu0 %7197
    %7199 = vrot.lane.b32.xlu0 %v7120, 32
    %v7200 = vpop.permute.xlu0 %7199
    %7201 = vrot.lane.b32.xlu0 %v7125, 32
    %v7202 = vpop.permute.xlu0 %7201
    %7203 = vrot.lane.b32.xlu0 %v7130, 32
    %v7204 = vpop.permute.xlu0 %7203
    %7205 = vrot.lane.b32.xlu0 %v7135, 32
    %v7206 = vpop.permute.xlu0 %7205
    %7207 = vrot.lane.b32.xlu0 %v7140, 32
    %v7208 = vpop.permute.xlu0 %7207
    %7209 = vrot.lane.b32.xlu0 %v7145, 32
    %v7210 = vpop.permute.xlu0 %7209
    %7211 = vrot.lane.b32.xlu0 %v7150, 32
    %v7212 = vpop.permute.xlu0 %7211
    %7213 = vrot.lane.b32.xlu0 %v7155, 32
    %v7214 = vpop.permute.xlu0 %7213
    %7215 = vrot.lane.b32.xlu0 %v7160, 32
    %v7216 = vpop.permute.xlu0 %7215
    %7217 = vrot.lane.b32.xlu0 %v7165, 32
    %v7218 = vpop.permute.xlu0 %7217
    %7219 = vrot.lane.b32.xlu0 %v7170, 32
    %v7220 = vpop.permute.xlu0 %7219
    %7221 = vrot.lane.b32.xlu0 %v7175, 32
    %v7222 = vpop.permute.xlu0 %7221
    %7223 = vrot.lane.b32.xlu0 %v7180, 32
    %v7224 = vpop.permute.xlu0 %7223
    %7239 = vst.msk [vmem:[#allocation3] sm:$0xff] %vm4319, %v7198
    %7240 = vst.msk [vmem:[#allocation3 + $0x8] sm:$0xff] %vm4319, %v7200
    %7241 = vst.msk [vmem:[#allocation3 + $0x10] sm:$0xff] %vm4319, %v7202
    %7242 = vst.msk [vmem:[#allocation3 + $0x18] sm:$0xff] %vm4319, %v7204
    %7243 = vst.msk [vmem:[#allocation3 + $0x20] sm:$0xff] %vm4319, %v7206
    %7244 = vst.msk [vmem:[#allocation3 + $0x28] sm:$0xff] %vm4319, %v7208
    %7245 = vst.msk [vmem:[#allocation3 + $0x30] sm:$0xff] %vm4319, %v7210
    %7246 = vst.msk [vmem:[#allocation3 + $0x38] sm:$0xff] %vm4319, %v7212
    %7247 = vst.msk [vmem:[#allocation3 + $0x40] sm:$0xff] %vm4319, %v7214
    %7248 = vst.msk [vmem:[#allocation3 + $0x48] sm:$0xff] %vm4319, %v7216
    %7249 = vst.msk [vmem:[#allocation3 + $0x50] sm:$0xff] %vm4319, %v7218
    %7250 = vst.msk [vmem:[#allocation3 + $0x58] sm:$0xff] %vm4319, %v7220
    %7251 = vst.msk [vmem:[#allocation3 + $0x60] sm:$0xff] %vm4319, %v7222
    %7252 = vst.msk [vmem:[#allocation3 + $0x68] sm:$0xff] %vm4319, %v7224
    %v7253 = vld [vmem:[#allocation3] sm:$0xff]
    %v7254 = vld [vmem:[#allocation3 + $0x8] sm:$0xff]
    %v7255 = vld [vmem:[#allocation3 + $0x10] sm:$0xff]
    %v7256 = vld [vmem:[#allocation3 + $0x18] sm:$0xff]
    %v7257 = vld [vmem:[#allocation3 + $0x20] sm:$0xff]
    %v7258 = vld [vmem:[#allocation3 + $0x28] sm:$0xff]
    %v7259 = vld [vmem:[#allocation3 + $0x30] sm:$0xff]
    %v7260 = vld [vmem:[#allocation3 + $0x38] sm:$0xff]
    %v7261 = vld [vmem:[#allocation3 + $0x40] sm:$0xff]
    %v7262 = vld [vmem:[#allocation3 + $0x48] sm:$0xff]
    %v7263 = vld [vmem:[#allocation3 + $0x50] sm:$0xff]
    %v7264 = vld [vmem:[#allocation3 + $0x58] sm:$0xff]
    %v7265 = vld [vmem:[#allocation3 + $0x60] sm:$0xff]
    %v7266 = vld [vmem:[#allocation3 + $0x68] sm:$0xff]
    %v7267 = vsub.f32 0.0, %v5056
    %v7268 = vsub.f32 0.0, %v5060
    %v7269 = vsub.f32 0.0, %v5066
    %v7270 = vsub.f32 0.0, %v5070
    %v7271 = vsub.f32 0.0, %v5076
    %v7272 = vsub.f32 0.0, %v5080
    %v7273 = vsub.f32 0.0, %v5086
    %v7274 = vsub.f32 0.0, %v5090
    %v7275 = vsub.f32 0.0, %v5096
    %v7276 = vsub.f32 0.0, %v5100
    %v7277 = vsub.f32 0.0, %v5106
    %v7278 = vsub.f32 0.0, %v5110
    %v7279 = vsub.f32 0.0, %v5116
    %v7280 = vsub.f32 0.0, %v5120
    %v7281 = vmul.f32 %v7267, 1.442695
    %v7282 = vpow.pop %v7281
    %v7283 = vmul.f32 %v7268, 1.442695
    %v7284 = vpow.pop %v7283
    %v7285 = vmul.f32 %v7269, 1.442695
    %v7286 = vpow.pop %v7285
    %v7287 = vmul.f32 %v7270, 1.442695
    %v7288 = vpow.pop %v7287
    %v7289 = vmul.f32 %v7271, 1.442695
    %v7290 = vpow.pop %v7289
    %v7291 = vmul.f32 %v7272, 1.442695
    %v7292 = vpow.pop %v7291
    %v7293 = vmul.f32 %v7273, 1.442695
    %v7294 = vpow.pop %v7293
    %v7295 = vmul.f32 %v7274, 1.442695
    %v7296 = vpow.pop %v7295
    %v7297 = vmul.f32 %v7275, 1.442695
    %v7298 = vpow.pop %v7297
    %v7299 = vmul.f32 %v7276, 1.442695
    %v7300 = vpow.pop %v7299
    %v7301 = vmul.f32 %v7277, 1.442695
    %v7302 = vpow.pop %v7301
    %v7303 = vmul.f32 %v7278, 1.442695
    %v7304 = vpow.pop %v7303
    %v7305 = vmul.f32 %v7279, 1.442695
    %v7306 = vpow.pop %v7305
    %v7307 = vmul.f32 %v7280, 1.442695
    %v7308 = vpow.pop %v7307
    %v7309 = vadd.f32 %v7282, 1.0
    %v7310 = vadd.f32 %v7284, 1.0
    %v7311 = vadd.f32 %v7286, 1.0
    %v7312 = vadd.f32 %v7288, 1.0
    %v7313 = vadd.f32 %v7290, 1.0
    %v7314 = vadd.f32 %v7292, 1.0
    %v7315 = vadd.f32 %v7294, 1.0
    %v7316 = vadd.f32 %v7296, 1.0
    %v7317 = vadd.f32 %v7298, 1.0
    %v7318 = vadd.f32 %v7300, 1.0
    %v7319 = vadd.f32 %v7302, 1.0
    %v7320 = vadd.f32 %v7304, 1.0
    %v7321 = vadd.f32 %v7306, 1.0
    %v7322 = vadd.f32 %v7308, 1.0
    %v7323 = vrcp.pop %v7309
    %v7324 = vmul.f32 1.0, %v7323
    %v7325 = vrcp.pop %v7310
    %v7326 = vmul.f32 1.0, %v7325
    %v7327 = vrcp.pop %v7311
    %v7328 = vmul.f32 1.0, %v7327
    %v7329 = vrcp.pop %v7312
    %v7330 = vmul.f32 1.0, %v7329
    %v7331 = vrcp.pop %v7313
    %v7332 = vmul.f32 1.0, %v7331
    %v7333 = vrcp.pop %v7314
    %v7334 = vmul.f32 1.0, %v7333
    %v7335 = vrcp.pop %v7315
    %v7336 = vmul.f32 1.0, %v7335
    %v7337 = vrcp.pop %v7316
    %v7338 = vmul.f32 1.0, %v7337
    %v7339 = vrcp.pop %v7317
    %v7340 = vmul.f32 1.0, %v7339
    %v7341 = vrcp.pop %v7318
    %v7342 = vmul.f32 1.0, %v7341
    %v7343 = vrcp.pop %v7319
    %v7344 = vmul.f32 1.0, %v7343
    %v7345 = vrcp.pop %v7320
    %v7346 = vmul.f32 1.0, %v7345
    %v7347 = vrcp.pop %v7321
    %v7348 = vmul.f32 1.0, %v7347
    %v7349 = vrcp.pop %v7322
    %v7350 = vmul.f32 1.0, %v7349
    %v7351 = vmul.f32 %v5056, %v7324
    %v7352 = vmul.f32 %v5060, %v7326
    %v7353 = vmul.f32 %v5066, %v7328
    %v7354 = vmul.f32 %v5070, %v7330
    %v7355 = vmul.f32 %v5076, %v7332
    %v7356 = vmul.f32 %v5080, %v7334
    %v7357 = vmul.f32 %v5086, %v7336
    %v7358 = vmul.f32 %v5090, %v7338
    %v7359 = vmul.f32 %v5096, %v7340
    %v7360 = vmul.f32 %v5100, %v7342
    %v7361 = vmul.f32 %v5106, %v7344
    %v7362 = vmul.f32 %v5110, %v7346
    %v7363 = vmul.f32 %v5116, %v7348
    %v7364 = vmul.f32 %v5120, %v7350
    %v7365 = vmul.f32 %v7253, %v7351
    %v7366 = vmul.f32 %v7254, %v7352
    %v7367 = vmul.f32 %v7255, %v7353
    %v7368 = vmul.f32 %v7256, %v7354
    %v7369 = vmul.f32 %v7257, %v7355
    %v7370 = vmul.f32 %v7258, %v7356
    %v7371 = vmul.f32 %v7259, %v7357
    %v7372 = vmul.f32 %v7260, %v7358
    %v7373 = vmul.f32 %v7261, %v7359
    %v7374 = vmul.f32 %v7262, %v7360
    %v7375 = vmul.f32 %v7263, %v7361
    %v7376 = vmul.f32 %v7264, %v7362
    %v7377 = vmul.f32 %v7265, %v7363
    %v7378 = vmul.f32 %v7266, %v7364
    %v7379 = vmul.f32 %v7365, %v7365
    %v7380 = vmul.f32 %v7366, %v7366
    %v7381 = vmul.f32 %v7367, %v7367
    %v7382 = vmul.f32 %v7368, %v7368
    %v7383 = vmul.f32 %v7369, %v7369
    %v7384 = vmul.f32 %v7370, %v7370
    %v7385 = vmul.f32 %v7371, %v7371
    %v7386 = vmul.f32 %v7372, %v7372
    %v7387 = vmul.f32 %v7373, %v7373
    %v7388 = vmul.f32 %v7374, %v7374
    %v7389 = vmul.f32 %v7375, %v7375
    %v7390 = vmul.f32 %v7376, %v7376
    %v7391 = vmul.f32 %v7377, %v7377
    %v7392 = vmul.f32 %v7378, %v7378
    %v7393 = vsel %vm348, %v7379, 0.0
    %7394 = vadd.xlane.f32.xlu0 %v7393
    %v7395 = vpop.xlane.xlu0 %7394
    %v7396 = vsel %vm348, %v7380, 0.0
    %7397 = vadd.xlane.f32.xlu0 %v7396
    %v7398 = vpop.xlane.xlu0 %7397
    %v7399 = vsel %vm348, %v7381, 0.0
    %7400 = vadd.xlane.f32.xlu0 %v7399
    %v7401 = vpop.xlane.xlu0 %7400
    %v7402 = vsel %vm348, %v7382, 0.0
    %7403 = vadd.xlane.f32.xlu0 %v7402
    %v7404 = vpop.xlane.xlu0 %7403
    %v7405 = vsel %vm348, %v7383, 0.0
    %7406 = vadd.xlane.f32.xlu0 %v7405
    %v7407 = vpop.xlane.xlu0 %7406
    %v7408 = vsel %vm348, %v7384, 0.0
    %7409 = vadd.xlane.f32.xlu0 %v7408
    %v7410 = vpop.xlane.xlu0 %7409
    %v7411 = vsel %vm348, %v7385, 0.0
    %7412 = vadd.xlane.f32.xlu0 %v7411
    %v7413 = vpop.xlane.xlu0 %7412
    %v7414 = vsel %vm348, %v7386, 0.0
    %7415 = vadd.xlane.f32.xlu0 %v7414
    %v7416 = vpop.xlane.xlu0 %7415
    %v7417 = vsel %vm348, %v7387, 0.0
    %7418 = vadd.xlane.f32.xlu0 %v7417
    %v7419 = vpop.xlane.xlu0 %7418
    %v7420 = vsel %vm348, %v7388, 0.0
    %7421 = vadd.xlane.f32.xlu0 %v7420
    %v7422 = vpop.xlane.xlu0 %7421
    %v7423 = vsel %vm348, %v7389, 0.0
    %7424 = vadd.xlane.f32.xlu0 %v7423
    %v7425 = vpop.xlane.xlu0 %7424
    %v7426 = vsel %vm348, %v7390, 0.0
    %7427 = vadd.xlane.f32.xlu0 %v7426
    %v7428 = vpop.xlane.xlu0 %7427
    %v7429 = vsel %vm348, %v7391, 0.0
    %7430 = vadd.xlane.f32.xlu0 %v7429
    %v7431 = vpop.xlane.xlu0 %7430
    %v7432 = vsel %vm348, %v7392, 0.0
    %7433 = vadd.xlane.f32.xlu0 %v7432
    %v7434 = vpop.xlane.xlu0 %7433
    %v7435 = vmul.f32 %v7395, %v4516
    %v7436 = vmul.f32 %v7398, %v4516
    %v7437 = vmul.f32 %v7401, %v4516
    %v7438 = vmul.f32 %v7404, %v4516
    %v7439 = vmul.f32 %v7407, %v4516
    %v7440 = vmul.f32 %v7410, %v4516
    %v7441 = vmul.f32 %v7413, %v4516
    %v7442 = vmul.f32 %v7416, %v4516
    %v7443 = vmul.f32 %v7419, %v4516
    %v7444 = vmul.f32 %v7422, %v4516
    %v7445 = vmul.f32 %v7425, %v4516
    %v7446 = vmul.f32 %v7428, %v4516
    %v7447 = vmul.f32 %v7431, %v4516
    %v7448 = vmul.f32 %v7434, %v4516
    %v7449 = vadd.f32 %v7435, 1e-05
    %v7450 = vadd.f32 %v7436, 1e-05
    %v7451 = vadd.f32 %v7437, 1e-05
    %v7452 = vadd.f32 %v7438, 1e-05
    %v7453 = vadd.f32 %v7439, 1e-05
    %v7454 = vadd.f32 %v7440, 1e-05
    %v7455 = vadd.f32 %v7441, 1e-05
    %v7456 = vadd.f32 %v7442, 1e-05
    %v7457 = vadd.f32 %v7443, 1e-05
    %v7458 = vadd.f32 %v7444, 1e-05
    %v7459 = vadd.f32 %v7445, 1e-05
    %v7460 = vadd.f32 %v7446, 1e-05
    %v7461 = vadd.f32 %v7447, 1e-05
    %v7462 = vadd.f32 %v7448, 1e-05
    %v7463 = vrsqrt.pop %v7449
    %v7464 = vrsqrt.pop %v7450
    %v7465 = vrsqrt.pop %v7451
    %v7466 = vrsqrt.pop %v7452
    %v7467 = vrsqrt.pop %v7453
    %v7468 = vrsqrt.pop %v7454
    %v7469 = vrsqrt.pop %v7455
    %v7470 = vrsqrt.pop %v7456
    %v7471 = vrsqrt.pop %v7457
    %v7472 = vrsqrt.pop %v7458
    %v7473 = vrsqrt.pop %v7459
    %v7474 = vrsqrt.pop %v7460
    %v7475 = vrsqrt.pop %v7461
    %v7476 = vrsqrt.pop %v7462
    %v7477 = vmul.f32 %v7365, %v7463
    %v7478 = vmul.f32 %v7366, %v7464
    %v7479 = vmul.f32 %v7367, %v7465
    %v7480 = vmul.f32 %v7368, %v7466
    %v7481 = vmul.f32 %v7369, %v7467
    %v7482 = vmul.f32 %v7370, %v7468
    %v7483 = vmul.f32 %v7371, %v7469
    %v7484 = vmul.f32 %v7372, %v7470
    %v7485 = vmul.f32 %v7373, %v7471
    %v7486 = vmul.f32 %v7374, %v7472
    %v7487 = vmul.f32 %v7375, %v7473
    %v7488 = vmul.f32 %v7376, %v7474
    %v7489 = vmul.f32 %v7377, %v7475
    %v7490 = vmul.f32 %v7378, %v7476
    %7491 = vrot.lane.b32.xlu0 %v5126, 122
    %v7492 = vpop.permute.xlu0 %7491
    %v7494 = vmul.f32 %v7477, %v7492
    %v7495 = vmul.f32 %v7478, %v7492
    %v7496 = vmul.f32 %v7479, %v7492
    %v7497 = vmul.f32 %v7480, %v7492
    %v7498 = vmul.f32 %v7481, %v7492
    %v7499 = vmul.f32 %v7482, %v7492
    %v7500 = vmul.f32 %v7483, %v7492
    %v7501 = vmul.f32 %v7484, %v7492
    %v7502 = vmul.f32 %v7485, %v7492
    %v7503 = vmul.f32 %v7486, %v7492
    %v7504 = vmul.f32 %v7487, %v7492
    %v7505 = vmul.f32 %v7488, %v7492
    %v7506 = vmul.f32 %v7489, %v7492
    %v7507 = vmul.f32 %v7490, %v7492
    %v7508 = vpack.c.bf16 %v7495, %v7494
    %v7509 = vpack.c.bf16 %v7497, %v7496
    %v7510 = vpack.c.bf16 %v7499, %v7498
    %v7511 = vpack.c.bf16 %v7501, %v7500
    %v7512 = vpack.c.bf16 %v7503, %v7502
    %v7513 = vpack.c.bf16 %v7505, %v7504
    %v7514 = vpack.c.bf16 %v7507, %v7506
    %s7515 = scalar_lea.vmem %s11, 32
    %v7516 = vld [vmem:[%s7515] sm:$0xf]
    %v7517 = vld [vmem:[%s7515 + $0x4] sm:$0xf]
    %v7518 = vld [vmem:[%s7515 + $0x8] sm:$0xf]
    %v7519 = vld [vmem:[%s7515 + $0xc] sm:$0xf]
    %v7520 = vld [vmem:[%s7515 + $0x10] sm:$0xf]
    %v7521 = vld [vmem:[%s7515 + $0x14] sm:$0xf]
    %v7522 = vld [vmem:[%s7515 + $0x18] sm:$0xf]
    %v7523 = vld [vmem:[%s7515 + $0x1c] sm:$0xf]
    %v7532 = vunpack.c.l.b16 %v7516
    %v7533 = vunpack.c.l.b16 %v7517
    %v7534 = vunpack.c.l.b16 %v7518
    %v7535 = vunpack.c.l.b16 %v7519
    %v7536 = vunpack.c.l.b16 %v7520
    %v7537 = vunpack.c.l.b16 %v7521
    %v7538 = vunpack.c.l.b16 %v7522
    %v7539 = vunpack.c.l.b16 %v7523
    %v7540 = vpack.c.b16 %v7533, %v7532
    %v7541 = vpack.c.b16 %v7535, %v7534
    %v7542 = vpack.c.b16 %v7537, %v7536
    %v7543 = vpack.c.b16 %v7539, %v7538
    %v7549 = vsel %vm348, %v7508, 0
    %v7552 = vsel %vm348, %v7509, 0
    %v7555 = vsel %vm348, %v7510, 0
    %v7558 = vsel %vm348, %v7511, 0
    %v7561 = vsel %vm348, %v7512, 0
    %v7564 = vsel %vm348, %v7513, 0
    %v7567 = vsel %vm348, %v7514, 0
    %7569 = vmatprep.subr.bf16.mxu0 0
    %7570 = vmatpush1.bf16.msra.mxu0 %v7540
    %7571 = vmatprep.subr.bf16.mxu0 0
    %7572 = vmatpush1.bf16.msra.mxu0 %v7541
    %7573 = vmatprep.subr.bf16.mxu0 0
    %7574 = vmatpush1.bf16.msra.mxu0 %v7542
    %7575 = vmatprep.subr.bf16.mxu0 0
    %7576 = vmatpush1.bf16.msra.mxu0 %v7543
    %7577 = vmatprep.subr.bf16.mxu0 0
    %7578 = vmatpush1.bf16.msra.mxu0 0
    %7579 = vmatprep.subr.bf16.mxu0 0
    %7580 = vmatpush1.bf16.msra.mxu0 0
    %7581 = vmatprep.subr.bf16.mxu0 0
    %7582 = vmatpush1.bf16.msra.mxu0 0
    %7583 = vmatprep.subr.bf16.mxu0 0
    %7584 = vmatpush1.bf16.msra.mxu0 0
    %7585 = vmatprep.subr.bf16.mxu0 0
    %7586 = vmatpush1.bf16.msra.mxu0 0
    %7587 = vmatprep.subr.bf16.mxu0 0
    %7588 = vmatpush1.bf16.msra.mxu0 0
    %7589 = vmatprep.subr.bf16.mxu0 0
    %7590 = vmatpush1.bf16.msra.mxu0 0
    %7591 = vmatprep.subr.bf16.mxu0 0
    %7592 = vmatpush1.bf16.msra.mxu0 0
    %7593 = vmatprep.subr.bf16.mxu0 0
    %7594 = vmatpush1.bf16.msra.mxu0 0
    %7595 = vmatprep.subr.bf16.mxu0 0
    %7596 = vmatpush1.bf16.msra.mxu0 0
    %7597 = vmatprep.subr.bf16.mxu0 0
    %7598 = vmatpush1.bf16.msra.mxu0 0
    %7599 = vmatprep.subr.bf16.mxu0 0
    %7600 = vmatpush1.bf16.msra.mxu0 0
    %7601 = vmatprep.mubr.bf16.mxu0 0
    %7602 = vmatmul.mubr.bf16.gmra.mrb[0].mxu0 %v7549
    %v7603 = vpop.f32.mrb[0].mxu0
    %v7604 = vadd.f32 0.0, %v7603
    %v7605 = vpop.f32.mrb[0].mxu0
    %v7606 = vpop.f32.mrb[0].mxu0
    %v7607 = vadd.f32 0.0, %v7606
    %v7608 = vpop.f32.mrb[0].mxu0
    %7609 = vmatprep.mubr.bf16.mxu0 0
    %7610 = vmatmul.mubr.bf16.gmra.mrb[0].mxu0 %v7552
    %v7611 = vpop.f32.mrb[0].mxu0
    %v7612 = vadd.f32 0.0, %v7611
    %v7613 = vpop.f32.mrb[0].mxu0
    %v7614 = vpop.f32.mrb[0].mxu0
    %v7615 = vadd.f32 0.0, %v7614
    %v7616 = vpop.f32.mrb[0].mxu0
    %7617 = vmatprep.mubr.bf16.mxu0 0
    %7618 = vmatmul.mubr.bf16.gmra.mrb[0].mxu0 %v7555
    %v7619 = vpop.f32.mrb[0].mxu0
    %v7620 = vadd.f32 0.0, %v7619
    %v7621 = vpop.f32.mrb[0].mxu0
    %v7622 = vpop.f32.mrb[0].mxu0
    %v7623 = vadd.f32 0.0, %v7622
    %v7624 = vpop.f32.mrb[0].mxu0
    %7625 = vmatprep.mubr.bf16.mxu0 0
    %7626 = vmatmul.mubr.bf16.gmra.mrb[0].mxu0 %v7558
    %v7627 = vpop.f32.mrb[0].mxu0
    %v7628 = vadd.f32 0.0, %v7627
    %v7629 = vpop.f32.mrb[0].mxu0
    %v7630 = vpop.f32.mrb[0].mxu0
    %v7631 = vadd.f32 0.0, %v7630
    %v7632 = vpop.f32.mrb[0].mxu0
    %7633 = vmatprep.mubr.bf16.mxu0 0
    %7634 = vmatmul.mubr.bf16.gmra.mrb[0].mxu0 %v7561
    %v7635 = vpop.f32.mrb[0].mxu0
    %v7636 = vadd.f32 0.0, %v7635
    %v7637 = vpop.f32.mrb[0].mxu0
    %v7638 = vpop.f32.mrb[0].mxu0
    %v7639 = vadd.f32 0.0, %v7638
    %v7640 = vpop.f32.mrb[0].mxu0
    %7641 = vmatprep.mubr.bf16.mxu0 0
    %7642 = vmatmul.mubr.bf16.gmra.mrb[0].mxu0 %v7564
    %v7643 = vpop.f32.mrb[0].mxu0
    %v7644 = vadd.f32 0.0, %v7643
    %v7645 = vpop.f32.mrb[0].mxu0
    %v7646 = vpop.f32.mrb[0].mxu0
    %v7647 = vadd.f32 0.0, %v7646
    %v7648 = vpop.f32.mrb[0].mxu0
    %7649 = vmatprep.mubr.bf16.mxu0 0
    %7650 = vmatmul.mubr.bf16.gmra.mrb[0].mxu0 %v7567
    %v7651 = vpop.f32.mrb[0].mxu0
    %v7652 = vadd.f32 0.0, %v7651
    %v7653 = vpop.f32.mrb[0].mxu0
    %v7654 = vpop.f32.mrb[0].mxu0
    %v7655 = vadd.f32 0.0, %v7654
    %v7656 = vpop.f32.mrb[0].mxu0
    %7657 = vdwg.mxu0
    %v7658 = vsel %vm209, %v7604, 0.0
    %7659 = vadd.xlane.f32.xlu0 %v7658
    %v7660 = vpop.xlane.xlu0 %7659
    %v7661 = vsel %vm209, %v7607, 0.0
    %7662 = vadd.xlane.f32.xlu0 %v7661
    %v7663 = vpop.xlane.xlu0 %7662
    %v7664 = vsel %vm209, %v7612, 0.0
    %7665 = vadd.xlane.f32.xlu0 %v7664
    %v7666 = vpop.xlane.xlu0 %7665
    %v7667 = vsel %vm209, %v7615, 0.0
    %7668 = vadd.xlane.f32.xlu0 %v7667
    %v7669 = vpop.xlane.xlu0 %7668
    %v7670 = vsel %vm209, %v7620, 0.0
    %7671 = vadd.xlane.f32.xlu0 %v7670
    %v7672 = vpop.xlane.xlu0 %7671
    %v7673 = vsel %vm209, %v7623, 0.0
    %7674 = vadd.xlane.f32.xlu0 %v7673
    %v7675 = vpop.xlane.xlu0 %7674
    %v7676 = vsel %vm209, %v7628, 0.0
    %7677 = vadd.xlane.f32.xlu0 %v7676
    %v7678 = vpop.xlane.xlu0 %7677
    %v7679 = vsel %vm209, %v7631, 0.0
    %7680 = vadd.xlane.f32.xlu0 %v7679
    %v7681 = vpop.xlane.xlu0 %7680
    %v7682 = vsel %vm209, %v7636, 0.0
    %7683 = vadd.xlane.f32.xlu0 %v7682
    %v7684 = vpop.xlane.xlu0 %7683
    %v7685 = vsel %vm209, %v7639, 0.0
    %7686 = vadd.xlane.f32.xlu0 %v7685
    %v7687 = vpop.xlane.xlu0 %7686
    %v7688 = vsel %vm209, %v7644, 0.0
    %7689 = vadd.xlane.f32.xlu0 %v7688
    %v7690 = vpop.xlane.xlu0 %7689
    %v7691 = vsel %vm209, %v7647, 0.0
    %7692 = vadd.xlane.f32.xlu0 %v7691
    %v7693 = vpop.xlane.xlu0 %7692
    %v7694 = vsel %vm209, %v7652, 0.0
    %7695 = vadd.xlane.f32.xlu0 %v7694
    %v7696 = vpop.xlane.xlu0 %7695
    %v7697 = vsel %vm209, %v7655, 0.0
    %7698 = vadd.xlane.f32.xlu0 %v7697
    %v7699 = vpop.xlane.xlu0 %7698
    %v7700 = vmul.f32 %v7660, %v4781
    %v7701 = vmul.f32 %v7663, %v4781
    %v7702 = vmul.f32 %v7666, %v4781
    %v7703 = vmul.f32 %v7669, %v4781
    %v7704 = vmul.f32 %v7672, %v4781
    %v7705 = vmul.f32 %v7675, %v4781
    %v7706 = vmul.f32 %v7678, %v4781
    %v7707 = vmul.f32 %v7681, %v4781
    %v7708 = vmul.f32 %v7684, %v4781
    %v7709 = vmul.f32 %v7687, %v4781
    %v7710 = vmul.f32 %v7690, %v4781
    %v7711 = vmul.f32 %v7693, %v4781
    %v7712 = vmul.f32 %v7696, %v4781
    %v7713 = vmul.f32 %v7699, %v4781
    %v7714 = vsub.f32 %v7604, %v7700
    %v7715 = vsub.f32 %v7607, %v7701
    %v7716 = vsub.f32 %v7612, %v7702
    %v7717 = vsub.f32 %v7615, %v7703
    %v7718 = vsub.f32 %v7620, %v7704
    %v7719 = vsub.f32 %v7623, %v7705
    %v7720 = vsub.f32 %v7628, %v7706
    %v7721 = vsub.f32 %v7631, %v7707
    %v7722 = vsub.f32 %v7636, %v7708
    %v7723 = vsub.f32 %v7639, %v7709
    %v7724 = vsub.f32 %v7644, %v7710
    %v7725 = vsub.f32 %v7647, %v7711
    %v7726 = vsub.f32 %v7652, %v7712
    %v7727 = vsub.f32 %v7655, %v7713
    %v7728 = vmul.f32 %v7714, %v7714
    %v7729 = vmul.f32 %v7715, %v7715
    %v7730 = vmul.f32 %v7716, %v7716
    %v7731 = vmul.f32 %v7717, %v7717
    %v7732 = vmul.f32 %v7718, %v7718
    %v7733 = vmul.f32 %v7719, %v7719
    %v7734 = vmul.f32 %v7720, %v7720
    %v7735 = vmul.f32 %v7721, %v7721
    %v7736 = vmul.f32 %v7722, %v7722
    %v7737 = vmul.f32 %v7723, %v7723
    %v7738 = vmul.f32 %v7724, %v7724
    %v7739 = vmul.f32 %v7725, %v7725
    %v7740 = vmul.f32 %v7726, %v7726
    %v7741 = vmul.f32 %v7727, %v7727
    %v7742 = vsel %vm209, %v7728, 0.0
    %7743 = vadd.xlane.f32.xlu0 %v7742
    %v7744 = vpop.xlane.xlu0 %7743
    %v7745 = vsel %vm209, %v7729, 0.0
    %7746 = vadd.xlane.f32.xlu0 %v7745
    %v7747 = vpop.xlane.xlu0 %7746
    %v7748 = vsel %vm209, %v7730, 0.0
    %7749 = vadd.xlane.f32.xlu0 %v7748
    %v7750 = vpop.xlane.xlu0 %7749
    %v7751 = vsel %vm209, %v7731, 0.0
    %7752 = vadd.xlane.f32.xlu0 %v7751
    %v7753 = vpop.xlane.xlu0 %7752
    %v7754 = vsel %vm209, %v7732, 0.0
    %7755 = vadd.xlane.f32.xlu0 %v7754
    %v7756 = vpop.xlane.xlu0 %7755
    %v7757 = vsel %vm209, %v7733, 0.0
    %7758 = vadd.xlane.f32.xlu0 %v7757
    %v7759 = vpop.xlane.xlu0 %7758
    %v7760 = vsel %vm209, %v7734, 0.0
    %7761 = vadd.xlane.f32.xlu0 %v7760
    %v7762 = vpop.xlane.xlu0 %7761
    %v7763 = vsel %vm209, %v7735, 0.0
    %7764 = vadd.xlane.f32.xlu0 %v7763
    %v7765 = vpop.xlane.xlu0 %7764
    %v7766 = vsel %vm209, %v7736, 0.0
    %7767 = vadd.xlane.f32.xlu0 %v7766
    %v7768 = vpop.xlane.xlu0 %7767
    %v7769 = vsel %vm209, %v7737, 0.0
    %7770 = vadd.xlane.f32.xlu0 %v7769
    %v7771 = vpop.xlane.xlu0 %7770
    %v7772 = vsel %vm209, %v7738, 0.0
    %7773 = vadd.xlane.f32.xlu0 %v7772
    %v7774 = vpop.xlane.xlu0 %7773
    %v7775 = vsel %vm209, %v7739, 0.0
    %7776 = vadd.xlane.f32.xlu0 %v7775
    %v7777 = vpop.xlane.xlu0 %7776
    %v7778 = vsel %vm209, %v7740, 0.0
    %7779 = vadd.xlane.f32.xlu0 %v7778
    %v7780 = vpop.xlane.xlu0 %7779
    %v7781 = vsel %vm209, %v7741, 0.0
    %7782 = vadd.xlane.f32.xlu0 %v7781
    %v7783 = vpop.xlane.xlu0 %7782
    %v7784 = vmul.f32 %v7744, %v4781
    %v7785 = vmul.f32 %v7747, %v4781
    %v7786 = vmul.f32 %v7750, %v4781
    %v7787 = vmul.f32 %v7753, %v4781
    %v7788 = vmul.f32 %v7756, %v4781
    %v7789 = vmul.f32 %v7759, %v4781
    %v7790 = vmul.f32 %v7762, %v4781
    %v7791 = vmul.f32 %v7765, %v4781
    %v7792 = vmul.f32 %v7768, %v4781
    %v7793 = vmul.f32 %v7771, %v4781
    %v7794 = vmul.f32 %v7774, %v4781
    %v7795 = vmul.f32 %v7777, %v4781
    %v7796 = vmul.f32 %v7780, %v4781
    %v7797 = vmul.f32 %v7783, %v4781
    %v7798 = vadd.f32 %v7784, 1e-05
    %v7799 = vadd.f32 %v7785, 1e-05
    %v7800 = vadd.f32 %v7786, 1e-05
    %v7801 = vadd.f32 %v7787, 1e-05
    %v7802 = vadd.f32 %v7788, 1e-05
    %v7803 = vadd.f32 %v7789, 1e-05
    %v7804 = vadd.f32 %v7790, 1e-05
    %v7805 = vadd.f32 %v7791, 1e-05
    %v7806 = vadd.f32 %v7792, 1e-05
    %v7807 = vadd.f32 %v7793, 1e-05
    %v7808 = vadd.f32 %v7794, 1e-05
    %v7809 = vadd.f32 %v7795, 1e-05
    %v7810 = vadd.f32 %v7796, 1e-05
    %v7811 = vadd.f32 %v7797, 1e-05
    %v7812 = vrsqrt.pop %v7798
    %v7813 = vrsqrt.pop %v7799
    %v7814 = vrsqrt.pop %v7800
    %v7815 = vrsqrt.pop %v7801
    %v7816 = vrsqrt.pop %v7802
    %v7817 = vrsqrt.pop %v7803
    %v7818 = vrsqrt.pop %v7804
    %v7819 = vrsqrt.pop %v7805
    %v7820 = vrsqrt.pop %v7806
    %v7821 = vrsqrt.pop %v7807
    %v7822 = vrsqrt.pop %v7808
    %v7823 = vrsqrt.pop %v7809
    %v7824 = vrsqrt.pop %v7810
    %v7825 = vrsqrt.pop %v7811
    %v7826 = vmul.f32 %v7714, %v7812
    %v7827 = vmul.f32 %v7715, %v7813
    %v7828 = vmul.f32 %v7716, %v7814
    %v7829 = vmul.f32 %v7717, %v7815
    %v7830 = vmul.f32 %v7718, %v7816
    %v7831 = vmul.f32 %v7719, %v7817
    %v7832 = vmul.f32 %v7720, %v7818
    %v7833 = vmul.f32 %v7721, %v7819
    %v7834 = vmul.f32 %v7722, %v7820
    %v7835 = vmul.f32 %v7723, %v7821
    %v7836 = vmul.f32 %v7724, %v7822
    %v7837 = vmul.f32 %v7725, %v7823
    %v7838 = vmul.f32 %v7726, %v7824
    %v7839 = vmul.f32 %v7727, %v7825
    %7840 = vrot.lane.b32.xlu0 %v5126, 58
    %v7841 = vpop.permute.xlu0 %7840
    %v7843 = vmul.f32 %v7826, %v7841
    %v7844 = vmul.f32 %v7827, %v7841
    %v7845 = vmul.f32 %v7828, %v7841
    %v7846 = vmul.f32 %v7829, %v7841
    %v7847 = vmul.f32 %v7830, %v7841
    %v7848 = vmul.f32 %v7831, %v7841
    %v7849 = vmul.f32 %v7832, %v7841
    %v7850 = vmul.f32 %v7833, %v7841
    %v7851 = vmul.f32 %v7834, %v7841
    %v7852 = vmul.f32 %v7835, %v7841
    %v7853 = vmul.f32 %v7836, %v7841
    %v7854 = vmul.f32 %v7837, %v7841
    %v7855 = vmul.f32 %v7838, %v7841
    %v7856 = vmul.f32 %v7839, %v7841
    %v7857 = vlaneseq
    %v7858 = vshrl.u32 %v7857, 7
    %v7859 = vsub.s32 1, %v7858
    %v7860 = vrot.slane %v4965, %v7859
    %7861 = vrot.lane.b32.xlu0 %v5126, 26
    %v7862 = vpop.permute.xlu0 %7861
    %7863 = vrot.lane.b32.xlu0 %v7860, 26
    %v7864 = vpop.permute.xlu0 %7863
    %v7865 = vsel %vm4947, %v7862, %v7864
    %v7867 = vadd.f32 %v7843, %v7865
    %v7868 = vadd.f32 %v7844, %v7865
    %v7869 = vadd.f32 %v7845, %v7865
    %v7870 = vadd.f32 %v7846, %v7865
    %v7871 = vadd.f32 %v7847, %v7865
    %v7872 = vadd.f32 %v7848, %v7865
    %v7873 = vadd.f32 %v7849, %v7865
    %v7874 = vadd.f32 %v7850, %v7865
    %v7875 = vadd.f32 %v7851, %v7865
    %v7876 = vadd.f32 %v7852, %v7865
    %v7877 = vadd.f32 %v7853, %v7865
    %v7878 = vadd.f32 %v7854, %v7865
    %v7879 = vadd.f32 %v7855, %v7865
    %v7880 = vadd.f32 %v7856, %v7865
    %v7881 = vld [vmem:[%s12] sm:$0x3]
    %v7883 = vsel %vm2986, %v7881, 0
    %7885 = vmatprep.subr.mxu0 0.0
    %7886 = vmatpush1.msra.mxu0 %v7867
    %7887 = vmatprep.subr.mxu0 0.0
    %7888 = vmatpush1.msra.mxu0 %v7868
    %7889 = vmatprep.subr.mxu0 0.0
    %7890 = vmatpush1.msra.mxu0 %v7869
    %7891 = vmatprep.subr.mxu0 0.0
    %7892 = vmatpush1.msra.mxu0 %v7870
    %7893 = vmatprep.subr.mxu0 0.0
    %7894 = vmatpush1.msra.mxu0 %v7871
    %7895 = vmatprep.subr.mxu0 0.0
    %7896 = vmatpush1.msra.mxu0 %v7872
    %7897 = vmatprep.subr.mxu0 0.0
    %7898 = vmatpush1.msra.mxu0 %v7873
    %7899 = vmatprep.subr.mxu0 0.0
    %7900 = vmatpush1.msra.mxu0 %v7874
    %7901 = vmatprep.subr.mxu0 0.0
    %7902 = vmatpush1.msra.mxu0 %v7875
    %7903 = vmatprep.subr.mxu0 0.0
    %7904 = vmatpush1.msra.mxu0 %v7876
    %7905 = vmatprep.subr.mxu0 0.0
    %7906 = vmatpush1.msra.mxu0 %v7877
    %7907 = vmatprep.subr.mxu0 0.0
    %7908 = vmatpush1.msra.mxu0 %v7878
    %7909 = vmatprep.subr.mxu0 0.0
    %7910 = vmatpush1.msra.mxu0 %v7879
    %7911 = vmatprep.subr.mxu0 0.0
    %7912 = vmatpush1.msra.mxu0 %v7880
    %7913 = vmatprep.subr.mxu0 0.0
    %7914 = vmatpush1.msra.mxu0 0.0
    %7915 = vmatprep.subr.mxu0 0.0
    %7916 = vmatpush1.msra.mxu0 0.0
    %7917 = vmatprep.subr.mxu0 0.0
    %7918 = vmatpush1.msra.mxu0 0.0
    %7919 = vmatprep.subr.mxu0 0.0
    %7920 = vmatpush1.msra.mxu0 0.0
    %7921 = vmatprep.subr.mxu0 0.0
    %7922 = vmatpush1.msra.mxu0 0.0
    %7923 = vmatprep.subr.mxu0 0.0
    %7924 = vmatpush1.msra.mxu0 0.0
    %7925 = vmatprep.subr.mxu0 0.0
    %7926 = vmatpush1.msra.mxu0 0.0
    %7927 = vmatprep.subr.mxu0 0.0
    %7928 = vmatpush1.msra.mxu0 0.0
    %7929 = vmatprep.subr.mxu0 0.0
    %7930 = vmatpush1.msra.mxu0 0.0
    %7931 = vmatprep.subr.mxu0 0.0
    %7932 = vmatpush1.msra.mxu0 0.0
    %7933 = vmatprep.subr.mxu0 0.0
    %7934 = vmatpush1.msra.mxu0 0.0
    %7935 = vmatprep.subr.mxu0 0.0
    %7936 = vmatpush1.msra.mxu0 0.0
    %7937 = vmatprep.subr.mxu0 0.0
    %7938 = vmatpush1.msra.mxu0 0.0
    %7939 = vmatprep.subr.mxu0 0.0
    %7940 = vmatpush1.msra.mxu0 0.0
    %7941 = vmatprep.subr.mxu0 0.0
    %7942 = vmatpush1.msra.mxu0 0.0
    %7943 = vmatprep.subr.mxu0 0.0
    %7944 = vmatpush1.msra.mxu0 0.0
    %7945 = vmatprep.subr.mxu0 0.0
    %7946 = vmatpush1.msra.mxu0 0.0
    %7947 = vmatprep.subr.mxu0 0.0
    %7948 = vmatpush1.msra.mxu0 0.0
    %7949 = vmatprep.mubr.f32.mxu0 0.0
    %7950 = vmatmul.mubr.f32.gmra.mrb[0].mxu0 %v7883
    %v7951 = vpop.f32.mrb[0].mxu0
    %v7952 = vadd.f32 0.0, %v7951
    %v7953 = vpop.f32.mrb[0].mxu0
    %7954 = vdwg.mxu0
    %v7955 = vmul.f32 %v7952, %v7952
    %vm7956 = vcmask 254976
    %v7957 = vsel %vm7956, %v7955, 0.0
    %7958 = vadd.xlane.f32.xlu0 %v7957
    %v7959 = vpop.xlane.xlu0 %7958
    %v7960 = vadd.f32 %v7959, 1e-12
    %v7961 = vrsqrt.pop %v7960
    %v7962 = vmul.f32 %v7952, %v7961
    %7964 = vrot.lane.b32.xlu0 %v7962, 4
    %v7965 = vpop.permute.xlu0 %7964
    %vm7967 = vcmask 287776
    %7968 = vst.msk [vmem:[%s16] sm:$0x3] %vm7967, %v7965
    %v7969 = vld [vmem:[%s13] sm:$0xf]
    %v7970 = vld [vmem:[%s13 + $0x4] sm:$0xf]
    %v7971 = vld [vmem:[%s13 + $0x8] sm:$0xf]
    %v7972 = vld [vmem:[%s13 + $0xc] sm:$0xf]
    %v7973 = vld [vmem:[%s14] sm:$0x1]
    %v7974 = vld [vmem:[#allocation4] sm:$0x1]
    %v7975 = vpack.c.bf16 %v7868, %v7867
    %v7976 = vpack.c.bf16 %v7870, %v7869
    %v7977 = vpack.c.bf16 %v7872, %v7871
    %v7978 = vpack.c.bf16 %v7873, %v7873
    %v7983 = vunpack.c.l.b16 %v7969
    %v7984 = vunpack.c.l.b16 %v7970
    %v7985 = vunpack.c.l.b16 %v7971
    %v7986 = vunpack.c.l.b16 %v7972
    %v7987 = vpack.c.b16 %v7984, %v7983
    %v7988 = vpack.c.b16 %v7986, %v7985
    %7991 = vxpose.xlu0.c.b16.start [1/8] %v7987, 128
    %7992 = vxpose.xlu0.c.b16.cont [2/8] %v7988, 128
    %7993 = vxpose.xlu0.c.b16.cont [3/8] 0, 128
    %7994 = vxpose.xlu0.c.b16.cont [4/8] 0, 128
    %7995 = vxpose.xlu0.c.b16.cont [5/8] 0, 128
    %7996 = vxpose.xlu0.c.b16.cont [6/8] 0, 128
    %7997 = vxpose.xlu0.c.b16.cont [7/8] 0, 128
    %7998 = vxpose.xlu0.c.b16.end [8/8] 0, 128
    %v7999 = vpop.trf.xlu0
    %v8000 = vpop.trf.xlu0
    %v8001 = vpop.trf.xlu0
    %v8002 = vpop.trf.xlu0
    %v8003 = vpop.trf.xlu0
    %v8004 = vpop.trf.xlu0
    %v8005 = vpop.trf.xlu0
    %v8006 = vpop.trf.xlu0
    %v8008 = vsel %vm209, %v7999, 0
    %v8011 = vsel %vm209, %v7975, 0
    %v8014 = vsel %vm209, %v7976, 0
    %v8017 = vsel %vm209, %v7977, 0
    %v8020 = vsel %vm209, %v7978, 0
    %8022 = vmatprep.subr.bf16.mxu0 0
    %8023 = vmatpush1.bf16.xpose.msra.mxu0 %v8011
    %8024 = vmatprep.subr.bf16.mxu0 0
    %8025 = vmatpush1.bf16.xpose.msra.mxu0 %v8014
    %8026 = vmatprep.subr.bf16.mxu0 0
    %8027 = vmatpush1.bf16.xpose.msra.mxu0 %v8017
    %8028 = vmatprep.subr.bf16.mxu0 0
    %8029 = vmatpush1.bf16.xpose.msra.mxu0 %v8020
    %8030 = vmatprep.subr.bf16.mxu0 0
    %8031 = vmatpush1.bf16.xpose.msra.mxu0 0
    %8032 = vmatprep.subr.bf16.mxu0 0
    %8033 = vmatpush1.bf16.xpose.msra.mxu0 0
    %8034 = vmatprep.subr.bf16.mxu0 0
    %8035 = vmatpush1.bf16.xpose.msra.mxu0 0
    %8036 = vmatprep.subr.bf16.mxu0 0
    %8037 = vmatpush1.bf16.xpose.msra.mxu0 0
    %8038 = vmatprep.subr.bf16.mxu0 0
    %8039 = vmatpush1.bf16.xpose.msra.mxu0 0
    %8040 = vmatprep.subr.bf16.mxu0 0
    %8041 = vmatpush1.bf16.xpose.msra.mxu0 0
    %8042 = vmatprep.subr.bf16.mxu0 0
    %8043 = vmatpush1.bf16.xpose.msra.mxu0 0
    %8044 = vmatprep.subr.bf16.mxu0 0
    %8045 = vmatpush1.bf16.xpose.msra.mxu0 0
    %8046 = vmatprep.subr.bf16.mxu0 0
    %8047 = vmatpush1.bf16.xpose.msra.mxu0 0
    %8048 = vmatprep.subr.bf16.mxu0 0
    %8049 = vmatpush1.bf16.xpose.msra.mxu0 0
    %8050 = vmatprep.subr.bf16.mxu0 0
    %8051 = vmatpush1.bf16.xpose.msra.mxu0 0
    %8052 = vmatprep.subr.bf16.mxu0 0
    %8053 = vmatpush1.bf16.xpose.msra.mxu0 0
    %8054 = vmatprep.mubr.bf16.mxu0 0
    %8055 = vmatmul.mubr.bf16.gmra.mrb[0].mxu0 %v8008
    %v8056 = vpop.f32.mrb[0].mxu0
    %v8057 = vadd.f32 0.0, %v8056
    %v8058 = vpop.f32.mrb[0].mxu0
    %v8059 = vpop.f32.mrb[0].mxu0
    %v8060 = vpop.f32.mrb[0].mxu0
    %8061 = vdwg.mxu0
    %vm8062 = vcmask 453632
    %v8063 = vsel %vm8062, %v8057, -inf
    %8064 = vmax.xlane.f32.xlu0 %v8063
    %v8065 = vpop.xlane.xlu0 %8064
    %v8066 = vsub.f32 %v8057, %v8065
    %v8067 = vmul.f32 %v8066, 1.442695
    %v8068 = vpow.pop %v8067
    %v8069 = vsel %vm8062, %v8068, 0.0
    %8070 = vadd.xlane.f32.xlu0 %v8069
    %v8071 = vpop.xlane.xlu0 %8070
    %v8072 = vrcp.pop %v8071
    %v8073 = vmul.f32 %v8068, %v8072
    %8074 = vst.msk [vmem:[#allocation5] sm:$0xf] %vm8062, %v8073
    %8075 = vxpose.xlu0.b32.start [1/16] %v7867, 128
    %8076 = vxpose.xlu0.b32.cont [2/16] %v7868, 128
    %8077 = vxpose.xlu0.b32.cont [3/16] %v7869, 128
    %8078 = vxpose.xlu0.b32.cont [4/16] %v7870, 128
    %8079 = vxpose.xlu0.b32.cont [5/16] %v7871, 128
    %8080 = vxpose.xlu0.b32.cont [6/16] %v7872, 128
    %8081 = vxpose.xlu0.b32.cont [7/16] %v7873, 128
    %8082 = vxpose.xlu0.b32.cont [8/16] 0.0, 128
    %8083 = vxpose.xlu0.b32.cont [9/16] 0.0, 128
    %8084 = vxpose.xlu0.b32.cont [10/16] 0.0, 128
    %8085 = vxpose.xlu0.b32.cont [11/16] 0.0, 128
    %8086 = vxpose.xlu0.b32.cont [12/16] 0.0, 128
    %8087 = vxpose.xlu0.b32.cont [13/16] 0.0, 128
    %8088 = vxpose.xlu0.b32.cont [14/16] 0.0, 128
    %8089 = vxpose.xlu0.b32.cont [15/16] 0.0, 128
    %8090 = vxpose.xlu0.b32.end [16/16] 0.0, 128
    %v8091 = vpop.trf.xlu0
    %v8092 = vpop.trf.xlu0
    %v8093 = vpop.trf.xlu0
    %v8094 = vpop.trf.xlu0
    %v8095 = vpop.trf.xlu0
    %v8096 = vpop.trf.xlu0
    %v8097 = vpop.trf.xlu0
    %v8098 = vpop.trf.xlu0
    %v8099 = vpop.trf.xlu0
    %v8100 = vpop.trf.xlu0
    %v8101 = vpop.trf.xlu0
    %v8102 = vpop.trf.xlu0
    %v8103 = vpop.trf.xlu0
    %v8104 = vpop.trf.xlu0
    %v8105 = vpop.trf.xlu0
    %v8106 = vpop.trf.xlu0
    %vm8107 = vcmask 457728
    %v8109 = vsel %vm8107, %v8091, 0
    %v8112 = vsel %vm8107, %v8092, 0
    %v8115 = vsel %vm8107, %v8093, 0
    %v8118 = vsel %vm8107, %v8094, 0
    %v8121 = vsel %vm8107, %v8073, 0
    %8123 = vmatprep.subr.mxu0 0.0
    %8124 = vmatpush1.xpose.msra.mxu0 %v8121
    %8125 = vmatprep.subr.mxu0 0.0
    %8126 = vmatpush1.xpose.msra.mxu0 0.0
    %8127 = vmatprep.subr.mxu0 0.0
    %8128 = vmatpush1.xpose.msra.mxu0 0.0
    %8129 = vmatprep.subr.mxu0 0.0
    %8130 = vmatpush1.xpose.msra.mxu0 0.0
    %8131 = vmatprep.subr.mxu0 0.0
    %8132 = vmatpush1.xpose.msra.mxu0 0.0
    %8133 = vmatprep.subr.mxu0 0.0
    %8134 = vmatpush1.xpose.msra.mxu0 0.0
    %8135 = vmatprep.subr.mxu0 0.0
    %8136 = vmatpush1.xpose.msra.mxu0 0.0
    %8137 = vmatprep.subr.mxu0 0.0
    %8138 = vmatpush1.xpose.msra.mxu0 0.0
    %8139 = vmatprep.subr.mxu0 0.0
    %8140 = vmatpush1.xpose.msra.mxu0 0.0
    %8141 = vmatprep.subr.mxu0 0.0
    %8142 = vmatpush1.xpose.msra.mxu0 0.0
    %8143 = vmatprep.subr.mxu0 0.0
    %8144 = vmatpush1.xpose.msra.mxu0 0.0
    %8145 = vmatprep.subr.mxu0 0.0
    %8146 = vmatpush1.xpose.msra.mxu0 0.0
    %8147 = vmatprep.subr.mxu0 0.0
    %8148 = vmatpush1.xpose.msra.mxu0 0.0
    %8149 = vmatprep.subr.mxu0 0.0
    %8150 = vmatpush1.xpose.msra.mxu0 0.0
    %8151 = vmatprep.subr.mxu0 0.0
    %8152 = vmatpush1.xpose.msra.mxu0 0.0
    %8153 = vmatprep.subr.mxu0 0.0
    %8154 = vmatpush1.xpose.msra.mxu0 0.0
    %8155 = vmatprep.subr.mxu0 0.0
    %8156 = vmatpush1.xpose.msra.mxu0 0.0
    %8157 = vmatprep.subr.mxu0 0.0
    %8158 = vmatpush1.xpose.msra.mxu0 0.0
    %8159 = vmatprep.subr.mxu0 0.0
    %8160 = vmatpush1.xpose.msra.mxu0 0.0
    %8161 = vmatprep.subr.mxu0 0.0
    %8162 = vmatpush1.xpose.msra.mxu0 0.0
    %8163 = vmatprep.subr.mxu0 0.0
    %8164 = vmatpush1.xpose.msra.mxu0 0.0
    %8165 = vmatprep.subr.mxu0 0.0
    %8166 = vmatpush1.xpose.msra.mxu0 0.0
    %8167 = vmatprep.subr.mxu0 0.0
    %8168 = vmatpush1.xpose.msra.mxu0 0.0
    %8169 = vmatprep.subr.mxu0 0.0
    %8170 = vmatpush1.xpose.msra.mxu0 0.0
    %8171 = vmatprep.subr.mxu0 0.0
    %8172 = vmatpush1.xpose.msra.mxu0 0.0
    %8173 = vmatprep.subr.mxu0 0.0
    %8174 = vmatpush1.xpose.msra.mxu0 0.0
    %8175 = vmatprep.subr.mxu0 0.0
    %8176 = vmatpush1.xpose.msra.mxu0 0.0
    %8177 = vmatprep.subr.mxu0 0.0
    %8178 = vmatpush1.xpose.msra.mxu0 0.0
    %8179 = vmatprep.subr.mxu0 0.0
    %8180 = vmatpush1.xpose.msra.mxu0 0.0
    %8181 = vmatprep.subr.mxu0 0.0
    %8182 = vmatpush1.xpose.msra.mxu0 0.0
    %8183 = vmatprep.subr.mxu0 0.0
    %8184 = vmatpush1.xpose.msra.mxu0 0.0
    %8185 = vmatprep.subr.mxu0 0.0
    %8186 = vmatpush1.xpose.msra.mxu0 0.0
    %8187 = vmatprep.mubr.f32.mxu0 0.0
    %8188 = vmatmul.mubr.f32.gmra.mrb[0].mxu0 %v8109
    %v8189 = vpop.f32.mrb[0].mxu0
    %v8190 = vadd.f32 0.0, %v8189
    %v8191 = vpop.f32.mrb[0].mxu0
    %8192 = vmatprep.mubr.f32.mxu0 0.0
    %8193 = vmatmul.mubr.f32.gmra.mrb[0].mxu0 %v8112
    %v8194 = vpop.f32.mrb[0].mxu0
    %v8195 = vadd.f32 0.0, %v8194
    %v8196 = vpop.f32.mrb[0].mxu0
    %8197 = vmatprep.mubr.f32.mxu0 0.0
    %8198 = vmatmul.mubr.f32.gmra.mrb[0].mxu0 %v8115
    %v8199 = vpop.f32.mrb[0].mxu0
    %v8200 = vadd.f32 0.0, %v8199
    %v8201 = vpop.f32.mrb[0].mxu0
    %8202 = vmatprep.mubr.f32.mxu0 0.0
    %8203 = vmatmul.mubr.f32.gmra.mrb[0].mxu0 %v8118
    %v8204 = vpop.f32.mrb[0].mxu0
    %v8205 = vadd.f32 0.0, %v8204
    %v8206 = vpop.f32.mrb[0].mxu0
    %8207 = vdwg.mxu0
    %8209 = vset.pattern.permute.xlu0 0
    %8210 = vperm.xlu0 %8209, %v7974
    %v8211 = vpop.permute.xlu0 %8210
    %v8213 = vlaneseq
    %v8214 = vshrl.u32 %v8213, 7
    %v8215 = vsub.s32 0, %v8214
    %v8216 = vrot.slane %v8211, %v8215
    %v8218 = vsel %vm209, %v7973, 0
    %8220 = vmatprep.subr.mxu0 0.0
    %8221 = vmatpush1.msra.mxu0 %v8190
    %8222 = vmatprep.subr.mxu0 0.0
    %8223 = vmatpush1.msra.mxu0 %v8195
    %8224 = vmatprep.subr.mxu0 0.0
    %8225 = vmatpush1.msra.mxu0 %v8200
    %8226 = vmatprep.subr.mxu0 0.0
    %8227 = vmatpush1.msra.mxu0 %v8205
    %8228 = vmatprep.subr.mxu0 0.0
    %8229 = vmatpush1.msra.mxu0 0.0
    %8230 = vmatprep.subr.mxu0 0.0
    %8231 = vmatpush1.msra.mxu0 0.0
    %8232 = vmatprep.subr.mxu0 0.0
    %8233 = vmatpush1.msra.mxu0 0.0
    %8234 = vmatprep.subr.mxu0 0.0
    %8235 = vmatpush1.msra.mxu0 0.0
    %8236 = vmatprep.subr.mxu0 0.0
    %8237 = vmatpush1.msra.mxu0 0.0
    %8238 = vmatprep.subr.mxu0 0.0
    %8239 = vmatpush1.msra.mxu0 0.0
    %8240 = vmatprep.subr.mxu0 0.0
    %8241 = vmatpush1.msra.mxu0 0.0
    %8242 = vmatprep.subr.mxu0 0.0
    %8243 = vmatpush1.msra.mxu0 0.0
    %8244 = vmatprep.subr.mxu0 0.0
    %8245 = vmatpush1.msra.mxu0 0.0
    %8246 = vmatprep.subr.mxu0 0.0
    %8247 = vmatpush1.msra.mxu0 0.0
    %8248 = vmatprep.subr.mxu0 0.0
    %8249 = vmatpush1.msra.mxu0 0.0
    %8250 = vmatprep.subr.mxu0 0.0
    %8251 = vmatpush1.msra.mxu0 0.0
    %8252 = vmatprep.subr.mxu0 0.0
    %8253 = vmatpush1.msra.mxu0 0.0
    %8254 = vmatprep.subr.mxu0 0.0
    %8255 = vmatpush1.msra.mxu0 0.0
    %8256 = vmatprep.subr.mxu0 0.0
    %8257 = vmatpush1.msra.mxu0 0.0
    %8258 = vmatprep.subr.mxu0 0.0
    %8259 = vmatpush1.msra.mxu0 0.0
    %8260 = vmatprep.subr.mxu0 0.0
    %8261 = vmatpush1.msra.mxu0 0.0
    %8262 = vmatprep.subr.mxu0 0.0
    %8263 = vmatpush1.msra.mxu0 0.0
    %8264 = vmatprep.subr.mxu0 0.0
    %8265 = vmatpush1.msra.mxu0 0.0
    %8266 = vmatprep.subr.mxu0 0.0
    %8267 = vmatpush1.msra.mxu0 0.0
    %8268 = vmatprep.subr.mxu0 0.0
    %8269 = vmatpush1.msra.mxu0 0.0
    %8270 = vmatprep.subr.mxu0 0.0
    %8271 = vmatpush1.msra.mxu0 0.0
    %8272 = vmatprep.subr.mxu0 0.0
    %8273 = vmatpush1.msra.mxu0 0.0
    %8274 = vmatprep.subr.mxu0 0.0
    %8275 = vmatpush1.msra.mxu0 0.0
    %8276 = vmatprep.subr.mxu0 0.0
    %8277 = vmatpush1.msra.mxu0 0.0
    %8278 = vmatprep.subr.mxu0 0.0
    %8279 = vmatpush1.msra.mxu0 0.0
    %8280 = vmatprep.subr.mxu0 0.0
    %8281 = vmatpush1.msra.mxu0 0.0
    %8282 = vmatprep.subr.mxu0 0.0
    %8283 = vmatpush1.msra.mxu0 0.0
    %8284 = vmatprep.mubr.f32.mxu0 0.0
    %8285 = vmatmul.mubr.f32.gmra.mrb[0].mxu0 %v8218
    %v8286 = vpop.f32.mrb[0].mxu0
    %v8287 = vadd.f32 %v8216, %v8286
    %v8288 = vpop.f32.mrb[0].mxu0
    %8289 = vdwg.mxu0
    %vm8290 = vcmask 24576
    %8291 = vst.msk [vmem:[%s16] sm:$0x1] %vm8290, %v8287
    %v8292 = vpack.c.bf16 %v7875, %v7874
    %v8293 = vpack.c.bf16 %v7877, %v7876
    %v8294 = vpack.c.bf16 %v7879, %v7878
    %v8295 = vpack.c.bf16 %v7880, %v7880
    %v8297 = vsel %vm209, %v8292, 0
    %v8300 = vsel %vm209, %v8293, 0
    %v8303 = vsel %vm209, %v8294, 0
    %v8306 = vsel %vm209, %v8295, 0
    %8308 = vmatprep.subr.bf16.mxu0 0
    %8309 = vmatpush1.bf16.xpose.msra.mxu0 %v8297
    %8310 = vmatprep.subr.bf16.mxu0 0
    %8311 = vmatpush1.bf16.xpose.msra.mxu0 %v8300
    %8312 = vmatprep.subr.bf16.mxu0 0
    %8313 = vmatpush1.bf16.xpose.msra.mxu0 %v8303
    %8314 = vmatprep.subr.bf16.mxu0 0
    %8315 = vmatpush1.bf16.xpose.msra.mxu0 %v8306
    %8316 = vmatprep.subr.bf16.mxu0 0
    %8317 = vmatpush1.bf16.xpose.msra.mxu0 0
    %8318 = vmatprep.subr.bf16.mxu0 0
    %8319 = vmatpush1.bf16.xpose.msra.mxu0 0
    %8320 = vmatprep.subr.bf16.mxu0 0
    %8321 = vmatpush1.bf16.xpose.msra.mxu0 0
    %8322 = vmatprep.subr.bf16.mxu0 0
    %8323 = vmatpush1.bf16.xpose.msra.mxu0 0
    %8324 = vmatprep.subr.bf16.mxu0 0
    %8325 = vmatpush1.bf16.xpose.msra.mxu0 0
    %8326 = vmatprep.subr.bf16.mxu0 0
    %8327 = vmatpush1.bf16.xpose.msra.mxu0 0
    %8328 = vmatprep.subr.bf16.mxu0 0
    %8329 = vmatpush1.bf16.xpose.msra.mxu0 0
    %8330 = vmatprep.subr.bf16.mxu0 0
    %8331 = vmatpush1.bf16.xpose.msra.mxu0 0
    %8332 = vmatprep.subr.bf16.mxu0 0
    %8333 = vmatpush1.bf16.xpose.msra.mxu0 0
    %8334 = vmatprep.subr.bf16.mxu0 0
    %8335 = vmatpush1.bf16.xpose.msra.mxu0 0
    %8336 = vmatprep.subr.bf16.mxu0 0
    %8337 = vmatpush1.bf16.xpose.msra.mxu0 0
    %8338 = vmatprep.subr.bf16.mxu0 0
    %8339 = vmatpush1.bf16.xpose.msra.mxu0 0
    %8340 = vmatprep.mubr.bf16.mxu0 0
    %8341 = vmatmul.mubr.bf16.gmra.mrb[0].mxu0 %v8008
    %v8342 = vpop.f32.mrb[0].mxu0
    %v8343 = vadd.f32 0.0, %v8342
    %v8344 = vpop.f32.mrb[0].mxu0
    %v8345 = vpop.f32.mrb[0].mxu0
    %v8346 = vpop.f32.mrb[0].mxu0
    %8347 = vdwg.mxu0
    %v8348 = vsel %vm8062, %v8343, -inf
    %8349 = vmax.xlane.f32.xlu0 %v8348
    %v8350 = vpop.xlane.xlu0 %8349
    %v8351 = vsub.f32 %v8343, %v8350
    %v8352 = vmul.f32 %v8351, 1.442695
    %v8353 = vpow.pop %v8352
    %v8354 = vsel %vm8062, %v8353, 0.0
    %8355 = vadd.xlane.f32.xlu0 %v8354
    %v8356 = vpop.xlane.xlu0 %8355
    %v8357 = vrcp.pop %v8356
    %v8358 = vmul.f32 %v8353, %v8357
    %s8359 = scalar_lea.vmem [#allocation5], 4
    %8360 = vst.msk [vmem:[%s8359] sm:$0xf] %vm8062, %v8358
    %8361 = vxpose.xlu0.b32.start [1/16] %v7874, 128
    %8362 = vxpose.xlu0.b32.cont [2/16] %v7875, 128
    %8363 = vxpose.xlu0.b32.cont [3/16] %v7876, 128
    %8364 = vxpose.xlu0.b32.cont [4/16] %v7877, 128
    %8365 = vxpose.xlu0.b32.cont [5/16] %v7878, 128
    %8366 = vxpose.xlu0.b32.cont [6/16] %v7879, 128
    %8367 = vxpose.xlu0.b32.cont [7/16] %v7880, 128
    %8368 = vxpose.xlu0.b32.cont [8/16] 0.0, 128
    %8369 = vxpose.xlu0.b32.cont [9/16] 0.0, 128
    %8370 = vxpose.xlu0.b32.cont [10/16] 0.0, 128
    %8371 = vxpose.xlu0.b32.cont [11/16] 0.0, 128
    %8372 = vxpose.xlu0.b32.cont [12/16] 0.0, 128
    %8373 = vxpose.xlu0.b32.cont [13/16] 0.0, 128
    %8374 = vxpose.xlu0.b32.cont [14/16] 0.0, 128
    %8375 = vxpose.xlu0.b32.cont [15/16] 0.0, 128
    %8376 = vxpose.xlu0.b32.end [16/16] 0.0, 128
    %v8377 = vpop.trf.xlu0
    %v8378 = vpop.trf.xlu0
    %v8379 = vpop.trf.xlu0
    %v8380 = vpop.trf.xlu0
    %v8381 = vpop.trf.xlu0
    %v8382 = vpop.trf.xlu0
    %v8383 = vpop.trf.xlu0
    %v8384 = vpop.trf.xlu0
    %v8385 = vpop.trf.xlu0
    %v8386 = vpop.trf.xlu0
    %v8387 = vpop.trf.xlu0
    %v8388 = vpop.trf.xlu0
    %v8389 = vpop.trf.xlu0
    %v8390 = vpop.trf.xlu0
    %v8391 = vpop.trf.xlu0
    %v8392 = vpop.trf.xlu0
    %v8394 = vsel %vm8107, %v8377, 0
    %v8397 = vsel %vm8107, %v8378, 0
    %v8400 = vsel %vm8107, %v8379, 0
    %v8403 = vsel %vm8107, %v8380, 0
    %v8406 = vsel %vm8107, %v8358, 0
    %8408 = vmatprep.subr.mxu0 0.0
    %8409 = vmatpush1.xpose.msra.mxu0 %v8406
    %8410 = vmatprep.subr.mxu0 0.0
    %8411 = vmatpush1.xpose.msra.mxu0 0.0
    %8412 = vmatprep.subr.mxu0 0.0
    %8413 = vmatpush1.xpose.msra.mxu0 0.0
    %8414 = vmatprep.subr.mxu0 0.0
    %8415 = vmatpush1.xpose.msra.mxu0 0.0
    %8416 = vmatprep.subr.mxu0 0.0
    %8417 = vmatpush1.xpose.msra.mxu0 0.0
    %8418 = vmatprep.subr.mxu0 0.0
    %8419 = vmatpush1.xpose.msra.mxu0 0.0
    %8420 = vmatprep.subr.mxu0 0.0
    %8421 = vmatpush1.xpose.msra.mxu0 0.0
    %8422 = vmatprep.subr.mxu0 0.0
    %8423 = vmatpush1.xpose.msra.mxu0 0.0
    %8424 = vmatprep.subr.mxu0 0.0
    %8425 = vmatpush1.xpose.msra.mxu0 0.0
    %8426 = vmatprep.subr.mxu0 0.0
    %8427 = vmatpush1.xpose.msra.mxu0 0.0
    %8428 = vmatprep.subr.mxu0 0.0
    %8429 = vmatpush1.xpose.msra.mxu0 0.0
    %8430 = vmatprep.subr.mxu0 0.0
    %8431 = vmatpush1.xpose.msra.mxu0 0.0
    %8432 = vmatprep.subr.mxu0 0.0
    %8433 = vmatpush1.xpose.msra.mxu0 0.0
    %8434 = vmatprep.subr.mxu0 0.0
    %8435 = vmatpush1.xpose.msra.mxu0 0.0
    %8436 = vmatprep.subr.mxu0 0.0
    %8437 = vmatpush1.xpose.msra.mxu0 0.0
    %8438 = vmatprep.subr.mxu0 0.0
    %8439 = vmatpush1.xpose.msra.mxu0 0.0
    %8440 = vmatprep.subr.mxu0 0.0
    %8441 = vmatpush1.xpose.msra.mxu0 0.0
    %8442 = vmatprep.subr.mxu0 0.0
    %8443 = vmatpush1.xpose.msra.mxu0 0.0
    %8444 = vmatprep.subr.mxu0 0.0
    %8445 = vmatpush1.xpose.msra.mxu0 0.0
    %8446 = vmatprep.subr.mxu0 0.0
    %8447 = vmatpush1.xpose.msra.mxu0 0.0
    %8448 = vmatprep.subr.mxu0 0.0
    %8449 = vmatpush1.xpose.msra.mxu0 0.0
    %8450 = vmatprep.subr.mxu0 0.0
    %8451 = vmatpush1.xpose.msra.mxu0 0.0
    %8452 = vmatprep.subr.mxu0 0.0
    %8453 = vmatpush1.xpose.msra.mxu0 0.0
    %8454 = vmatprep.subr.mxu0 0.0
    %8455 = vmatpush1.xpose.msra.mxu0 0.0
    %8456 = vmatprep.subr.mxu0 0.0
    %8457 = vmatpush1.xpose.msra.mxu0 0.0
    %8458 = vmatprep.subr.mxu0 0.0
    %8459 = vmatpush1.xpose.msra.mxu0 0.0
    %8460 = vmatprep.subr.mxu0 0.0
    %8461 = vmatpush1.xpose.msra.mxu0 0.0
    %8462 = vmatprep.subr.mxu0 0.0
    %8463 = vmatpush1.xpose.msra.mxu0 0.0
    %8464 = vmatprep.subr.mxu0 0.0
    %8465 = vmatpush1.xpose.msra.mxu0 0.0
    %8466 = vmatprep.subr.mxu0 0.0
    %8467 = vmatpush1.xpose.msra.mxu0 0.0
    %8468 = vmatprep.subr.mxu0 0.0
    %8469 = vmatpush1.xpose.msra.mxu0 0.0
    %8470 = vmatprep.subr.mxu0 0.0
    %8471 = vmatpush1.xpose.msra.mxu0 0.0
    %8472 = vmatprep.mubr.f32.mxu0 0.0
    %8473 = vmatmul.mubr.f32.gmra.mrb[0].mxu0 %v8394
    %v8474 = vpop.f32.mrb[0].mxu0
    %v8475 = vadd.f32 0.0, %v8474
    %v8476 = vpop.f32.mrb[0].mxu0
    %8477 = vmatprep.mubr.f32.mxu0 0.0
    %8478 = vmatmul.mubr.f32.gmra.mrb[0].mxu0 %v8397
    %v8479 = vpop.f32.mrb[0].mxu0
    %v8480 = vadd.f32 0.0, %v8479
    %v8481 = vpop.f32.mrb[0].mxu0
    %8482 = vmatprep.mubr.f32.mxu0 0.0
    %8483 = vmatmul.mubr.f32.gmra.mrb[0].mxu0 %v8400
    %v8484 = vpop.f32.mrb[0].mxu0
    %v8485 = vadd.f32 0.0, %v8484
    %v8486 = vpop.f32.mrb[0].mxu0
    %8487 = vmatprep.mubr.f32.mxu0 0.0
    %8488 = vmatmul.mubr.f32.gmra.mrb[0].mxu0 %v8403
    %v8489 = vpop.f32.mrb[0].mxu0
    %v8490 = vadd.f32 0.0, %v8489
    %v8491 = vpop.f32.mrb[0].mxu0
    %8492 = vdwg.mxu0
    %8493 = vmatprep.subr.mxu0 0.0
    %8494 = vmatpush1.msra.mxu0 %v8475
    %8495 = vmatprep.subr.mxu0 0.0
    %8496 = vmatpush1.msra.mxu0 %v8480
    %8497 = vmatprep.subr.mxu0 0.0
    %8498 = vmatpush1.msra.mxu0 %v8485
    %8499 = vmatprep.subr.mxu0 0.0
    %8500 = vmatpush1.msra.mxu0 %v8490
    %8501 = vmatprep.subr.mxu0 0.0
    %8502 = vmatpush1.msra.mxu0 0.0
    %8503 = vmatprep.subr.mxu0 0.0
    %8504 = vmatpush1.msra.mxu0 0.0
    %8505 = vmatprep.subr.mxu0 0.0
    %8506 = vmatpush1.msra.mxu0 0.0
    %8507 = vmatprep.subr.mxu0 0.0
    %8508 = vmatpush1.msra.mxu0 0.0
    %8509 = vmatprep.subr.mxu0 0.0
    %8510 = vmatpush1.msra.mxu0 0.0
    %8511 = vmatprep.subr.mxu0 0.0
    %8512 = vmatpush1.msra.mxu0 0.0
    %8513 = vmatprep.subr.mxu0 0.0
    %8514 = vmatpush1.msra.mxu0 0.0
    %8515 = vmatprep.subr.mxu0 0.0
    %8516 = vmatpush1.msra.mxu0 0.0
    %8517 = vmatprep.subr.mxu0 0.0
    %8518 = vmatpush1.msra.mxu0 0.0
    %8519 = vmatprep.subr.mxu0 0.0
    %8520 = vmatpush1.msra.mxu0 0.0
    %8521 = vmatprep.subr.mxu0 0.0
    %8522 = vmatpush1.msra.mxu0 0.0
    %8523 = vmatprep.subr.mxu0 0.0
    %8524 = vmatpush1.msra.mxu0 0.0
    %8525 = vmatprep.subr.mxu0 0.0
    %8526 = vmatpush1.msra.mxu0 0.0
    %8527 = vmatprep.subr.mxu0 0.0
    %8528 = vmatpush1.msra.mxu0 0.0
    %8529 = vmatprep.subr.mxu0 0.0
    %8530 = vmatpush1.msra.mxu0 0.0
    %8531 = vmatprep.subr.mxu0 0.0
    %8532 = vmatpush1.msra.mxu0 0.0
    %8533 = vmatprep.subr.mxu0 0.0
    %8534 = vmatpush1.msra.mxu0 0.0
    %8535 = vmatprep.subr.mxu0 0.0
    %8536 = vmatpush1.msra.mxu0 0.0
    %8537 = vmatprep.subr.mxu0 0.0
    %8538 = vmatpush1.msra.mxu0 0.0
    %8539 = vmatprep.subr.mxu0 0.0
    %8540 = vmatpush1.msra.mxu0 0.0
    %8541 = vmatprep.subr.mxu0 0.0
    %8542 = vmatpush1.msra.mxu0 0.0
    %8543 = vmatprep.subr.mxu0 0.0
    %8544 = vmatpush1.msra.mxu0 0.0
    %8545 = vmatprep.subr.mxu0 0.0
    %8546 = vmatpush1.msra.mxu0 0.0
    %8547 = vmatprep.subr.mxu0 0.0
    %8548 = vmatpush1.msra.mxu0 0.0
    %8549 = vmatprep.subr.mxu0 0.0
    %8550 = vmatpush1.msra.mxu0 0.0
    %8551 = vmatprep.subr.mxu0 0.0
    %8552 = vmatpush1.msra.mxu0 0.0
    %8553 = vmatprep.subr.mxu0 0.0
    %8554 = vmatpush1.msra.mxu0 0.0
    %8555 = vmatprep.subr.mxu0 0.0
    %8556 = vmatpush1.msra.mxu0 0.0
    %8557 = vmatprep.mubr.f32.mxu0 0.0
    %8558 = vmatmul.mubr.f32.gmra.mrb[0].mxu0 %v8218
    %v8559 = vpop.f32.mrb[0].mxu0
    %v8560 = vadd.f32 %v8216, %v8559
    %v8561 = vpop.f32.mrb[0].mxu0
    %8562 = vdwg.mxu0
    %8563 = vst.msk [vmem:[%s16 + $0x1] sm:$0x1] %vm8290, %v8560
    // Predicated region
    $region66: #{forward.1} parent=1 // pred_check
      _
    $region67: #{forward.1} parent=1 // pred_check_branch
      %8565 = sbr.rel (0) target = $region69
    $region68: #{forward.1} parent=1 // pred_region
      _
    $region69: #{forward.1} parent=1 // pred_fallthru
      _
    // Predicated region
    $region70: #{forward.1} parent=1 // pred_check
      _
    $region71: #{forward.1} parent=1 // pred_check_branch
      %8567 = sbr.rel (0) target = $region73
    $region72: #{forward.1} parent=1 // pred_region
      %s8569 = ssub.s32 128, 128
      %8570 = vsyncadd [#allocation6], %s8569
      %s8571 = sshll.u32 [#allocation5], 4
      %s8572 = int_to_ptr.vmem [resolvable:$true] %s8571
      %8577 = dma.vmem_to_hbm [thread:$0]  %s8572, 128, %s17, [#allocation6], 64, 64, 4
    $region73: #{forward.1} parent=1 // pred_fallthru
      _
    // Predicated region
    $region74: #{forward.1} parent=1 // pred_check
      _
    $region75: #{forward.1} parent=1 // pred_check_branch
      %8579 = sbr.rel (0) target = $region77
    $region76: #{forward.1} parent=1 // pred_region
      _
    $region77: #{forward.1} parent=1 // pred_fallthru
      _
    // Predicated region
    $region78: #{forward.1} parent=1 // pred_check
      _
    $region79: #{forward.1} parent=1 // pred_check_branch
      %8581 = sbr.rel (0) target = $region81
    $region80: #{forward.1} parent=1 // pred_region
      %8582 = dma.done [#allocation6], 128
    $region81: #{forward.1} parent=1 // pred_fallthru
      _
    %8583 = vsyncpa [#allocation6], 1

</llo_original>
